<compile_context>
chip_gen: v5e
topology: v5e:2x2
jax: 0.10.0
libtpu: 0.0.40
codegen_flags: <defaults>
</compile_context>

<pallas_src>
import functools
import math

import jax
import jax.numpy as jnp
from jax.experimental import pallas as pl
from jax.experimental.pallas import tpu as pltpu

EPS = 1e-5
LANE = 128           # TPU lane width: channel counts are padded to a multiple of this
MXU_M_TARGET = 256   # target matmul M per grid step (multiple of 128; fills v6e/v7x MXU)


# --------------------------- small helpers ---------------------------

def _round_up(a, m):
    return ((a + m - 1) // m) * m


def _pick_row_block(h_out, w_out, c_out, *, m_target=MXU_M_TARGET, max_acc_bytes=4 << 20):
    """Output rows per grid step: TH*Wout ~ m_target, under an f32-accumulator budget,
    keeping TH*Wout a multiple of 8 (sublane rule) unless the block covers all rows."""
    th = max(1, -(-m_target // w_out))                          # ceil(m_target / w_out)
    cap = max(1, max_acc_bytes // (4 * w_out * max(c_out, 1)))
    th = max(1, min(th, cap, h_out))
    if th < h_out:
        mult = 8 // math.gcd(w_out, 8)                          # TH multiple so TH*Wout % 8 == 0
        th = (th // mult) * mult
        if th <= 0 or (th * w_out) % 8 != 0:
            th = h_out                                          # full extent is always legal
    return th


# --------------------------- Pallas kernels ---------------------------

def _bn_stats_kernel(x_ref, sum_ref, sumsq_ref, *, M, BM):
    # Tiled reduction: x_ref is a (BM, C) lane-dense row block; outputs are resident (1, C)
    # f32 accumulators (output index_map constant across the grid).
    i = pl.program_id(0)

    @pl.when(i == 0)
    def _():
        sum_ref[...] = jnp.zeros_like(sum_ref)
        sumsq_ref[...] = jnp.zeros_like(sumsq_ref)

    x = x_ref[...].astype(jnp.float32)                 # input may be bf16 (conv1 output)
    row = jax.lax.broadcasted_iota(jnp.int32, x.shape, 0) + i * BM
    x = jnp.where(row < M, x, 0.0)                     # mask partial last block
    sum_ref[...] += jnp.sum(x, axis=0, keepdims=True)
    sumsq_ref[...] += jnp.sum(x * x, axis=0, keepdims=True)


def _fused_conv_kernel(x_ref, scale_ref, shift_ref, w_ref, b_ref, *rest,
                       KH, KW, SH, SW, PAD, Wout, TH, apply_relu):
    # x_ref      : (1, H, W, Cp_in) f32/bf16 input image (resident across row blocks)
    # scale/shift: (1, Cp_in) f32 fused BatchNorm affine (identity for the 1x1 skip conv)
    # w_ref      : (KH*KW*Cp_in, Cp_out) bf16 flattened filter (channel-padded)
    # b_ref      : (1, Cp_out) f32 bias
    # optional res_ref : (1, TH*Wout, Cp_out) f32 residual block (fused skip add)
    # o_ref      : (1, TH*Wout, Cp_out) output row block (f32 or bf16)
    # scratches  : xpad_ref (Hp_a, Wp, Cp_in) bf16 padded activation,
    #              bcol_ref (TH*Wout, KH*KW*Cp_in) bf16 im2col block (2-D: no reshape later)
    if len(rest) == 4:
        res_ref, o_ref, xpad_ref, bcol_ref = rest
    else:
        o_ref, xpad_ref, bcol_ref = rest
        res_ref = None

    rb = pl.program_id(1)
    _, H, W, Cin = x_ref.shape
    Hp_a = xpad_ref.shape[0]

    # ---- stage 1 (once per image): BN affine (+ReLU) in f32, cast once to bf16, pad ----
    @pl.when(rb == 0)
    def _():
        if PAD > 0 or Hp_a != H:
            xpad_ref[...] = jnp.zeros_like(xpad_ref)
        a = x_ref[0].astype(jnp.float32) * scale_ref[...] + shift_ref[...]
        if apply_relu:
            a = jnp.maximum(a, 0.0)
        xpad_ref[pl.ds(PAD, H), pl.ds(PAD, W), :] = a.astype(xpad_ref.dtype)

    # ---- stage 2: im2col gather for this row block (lane-aligned 128-wide column writes) ----
    row0 = pl.multiple_of(rb * (TH * SH), TH * SH)
    for i in range(KH):
        for j in range(KW):
            if SH == 1 and SW == 1:
                patch = xpad_ref[pl.ds(row0 + i, TH), pl.ds(j, Wout), :]
            else:
                patch = xpad_ref[pl.ds(row0 + i, TH, stride=SH),
                                 pl.ds(j, Wout, stride=SW), :]
            c0 = (i * KW + j) * Cin                     # multiple of 128 -> lane-aligned
            bcol_ref[:, c0:c0 + Cin] = patch.reshape(TH * Wout, Cin)

    # ---- stage 3: single MXU matmul, K = KH*KW*Cp_in, bf16 x bf16 -> f32 accumulate ----
    acc = jnp.dot(bcol_ref[...], w_ref[...], preferred_element_type=jnp.float32)
    acc = acc + b_ref[...]                              # bias in f32
    if res_ref is not None:
        acc = acc + res_ref[0]                          # fused residual add in f32
    o_ref[0] = acc.astype(o_ref.dtype)


# --------------------------- wrappers ---------------------------

def bn_scale_shift(x2d, gamma, beta):
    """Training-mode BatchNorm batch statistics on a lane-dense (M, Cpad) array
    -> fused (scale, shift), each shape (1, Cpad) f32. Padded channels (gamma=beta=0) -> 0."""
    M, C = x2d.shape
    bytes_per_row = C * x2d.dtype.itemsize
    BM = max(8, ((2 * 1024 * 1024) // bytes_per_row) // 8 * 8)   # ~2 MiB per grid step
    if BM >= M:
        BM = M                                                   # single full-extent block
    grid = (pl.cdiv(M, BM),)

    s, ss = pl.pallas_call(
        functools.partial(_bn_stats_kernel, M=M, BM=BM),
        out_shape=(jax.ShapeDtypeStruct((1, C), jnp.float32),
                   jax.ShapeDtypeStruct((1, C), jnp.float32)),
        grid=grid,
        in_specs=[pl.BlockSpec((BM, C), lambda i: (i, 0))],
        out_specs=(pl.BlockSpec((1, C), lambda i: (0, 0)),
                   pl.BlockSpec((1, C), lambda i: (0, 0))),
        compiler_params=pltpu.CompilerParams(dimension_semantics=("arbitrary",)),
    )(x2d)

    mean = s / M
    # TODO(synk): single-pass E[x^2]-E[x]^2 variance can cancel for large-mean data; clamp
    #             guards tiny negatives (and exact zeros for padded channels).
    var = jnp.maximum(ss / M - mean * mean, 0.0)
    inv = gamma.reshape(1, -1) * jax.lax.rsqrt(var + EPS)
    scale = inv.astype(jnp.float32)
    shift = (beta.reshape(1, -1) - mean * inv).astype(jnp.float32)
    return scale, shift


def conv2d_fused(x, scale, shift, w2d, bias2d, *, ksize, stride, pad,
                 apply_relu, residual=None, out_dtype=jnp.float32):
    """Fused (BN-affine + ReLU) -> pad -> strided conv -> bias [-> +residual] in one kernel.
    Returns (flattened output (N, Hout*Wout, Cp_out), Hout, Wout)."""
    N, H, W, Cp_in = x.shape
    K2C, Cp_out = w2d.shape
    KH = KW = ksize
    assert K2C == KH * KW * Cp_in
    assert Cp_in % LANE == 0 and Cp_out % LANE == 0
    Hp, Wp = H + 2 * pad, W + 2 * pad
    Hout = (Hp - KH) // stride + 1
    Wout = (Wp - KW) // stride + 1

    TH = _pick_row_block(Hout, Wout, Cp_out)
    RB = -(-Hout // TH)                                  # cdiv grid; ragged tail is dropped
    MB = TH * Wout                                       # matmul M per grid step
    Hp_a = max(Hp, (RB * TH - 1) * stride + KH)          # scratch rows cover the padded grid

    in_specs = [
        pl.BlockSpec((1, H, W, Cp_in), lambda n, rb: (n, 0, 0, 0)),  # resident across rb
        pl.BlockSpec((1, Cp_in), lambda n, rb: (0, 0)),
        pl.BlockSpec((1, Cp_in), lambda n, rb: (0, 0)),
        pl.BlockSpec((K2C, Cp_out), lambda n, rb: (0, 0)),
        pl.BlockSpec((1, Cp_out), lambda n, rb: (0, 0)),
    ]
    args = [x, scale, shift, w2d, bias2d]
    if residual is not None:
        in_specs.append(pl.BlockSpec((1, MB, Cp_out), lambda n, rb: (n, rb, 0)))
        args.append(residual)

    # rough VMEM budget (double-buffered I/O blocks + weights + scratches), with headroom
    out_isize = jnp.dtype(out_dtype).itemsize
    est = (2 * H * W * Cp_in * x.dtype.itemsize
           + 2 * MB * Cp_out * out_isize
           + 2 * (K2C * Cp_out * 2 + Cp_out * 4 + 2 * Cp_in * 4)
           + Hp_a * Wp * Cp_in * 2
           + MB * K2C * 2)
    if residual is not None:
        est += 2 * MB * Cp_out * residual.dtype.itemsize
    vmem_limit = int(min(max(2 * est, 32 << 20), 48 << 20))   # >= defaults, <= v7x physical

    kernel = functools.partial(
        _fused_conv_kernel, KH=KH, KW=KW, SH=stride, SW=stride,
        PAD=pad, Wout=Wout, TH=TH, apply_relu=apply_relu)

    out = pl.pallas_call(
        kernel,
        out_shape=jax.ShapeDtypeStruct((N, Hout * Wout, Cp_out), out_dtype),
        grid=(N, RB),
        in_specs=in_specs,
        out_specs=pl.BlockSpec((1, MB, Cp_out), lambda n, rb: (n, rb, 0)),
        scratch_shapes=[pltpu.VMEM((Hp_a, Wp, Cp_in), jnp.bfloat16),   # padded BN+ReLU act
                        pltpu.VMEM((MB, K2C), jnp.bfloat16)],          # 2-D im2col block
        compiler_params=pltpu.CompilerParams(
            dimension_semantics=("parallel", "arbitrary"),
            vmem_limit_bytes=vmem_limit),
    )(*args)
    return out, Hout, Wout


# --------------------------- parameters ---------------------------

def init_params(key, input_channels, num_channels, use_1x1conv):
    ks = jax.random.split(key, 6)
    p = {
        "w1": 0.1 * jax.random.normal(ks[0], (num_channels, input_channels, 3, 3), jnp.float32),
        "b1": 0.1 * jax.random.normal(ks[1], (num_channels,), jnp.float32),
        "w2": 0.1 * jax.random.normal(ks[2], (num_channels, num_channels, 3, 3), jnp.float32),
        "b2": 0.1 * jax.random.normal(ks[3], (num_channels,), jnp.float32),
        # BatchNorm affine params (PyTorch default init: weight=1, bias=0)
        "bn1_gamma": jnp.ones((input_channels,), jnp.float32),
        "bn1_beta": jnp.zeros((input_channels,), jnp.float32),
        "bn2_gamma": jnp.ones((num_channels,), jnp.float32),
        "bn2_beta": jnp.zeros((num_channels,), jnp.float32),
    }
    if use_1x1conv:
        p["w3"] = 0.1 * jax.random.normal(ks[4], (num_channels, input_channels, 1, 1), jnp.float32)
        p["b3"] = 0.1 * jax.random.normal(ks[5], (num_channels,), jnp.float32)
    return p


def prepare_params(p, use_1x1conv):
    """One-time prep: OIHW -> flattened (KH*KW*Cp_in, Cp_out) bf16 weights with channels
    zero-padded to multiples of 128 (lane-dense); (1, Cp_out) f32 bias; padded BN affine."""
    def prep_w(w):
        O, I, KH, KW = w.shape
        Ip, Op = _round_up(I, LANE), _round_up(O, LANE)
        wt = jnp.transpose(w, (2, 3, 1, 0))                          # (KH, KW, I, O)
        wt = jnp.pad(wt, ((0, 0), (0, 0), (0, Ip - I), (0, Op - O)))
        return wt.reshape(KH * KW * Ip, Op).astype(jnp.bfloat16)

    def prep_b(b):
        O = b.shape[0]
        return jnp.pad(b, (0, _round_up(O, LANE) - O)).reshape(1, -1).astype(jnp.float32)

    def prep_bn(v):                                                  # pad gamma/beta with 0
        C = v.shape[0]
        return jnp.pad(v, (0, _round_up(C, LANE) - C)).astype(jnp.float32)

    pp = {
        "w1": prep_w(p["w1"]), "b1": prep_b(p["b1"]),
        "w2": prep_w(p["w2"]), "b2": prep_b(p["b2"]),
        "bn1_gamma": prep_bn(p["bn1_gamma"]), "bn1_beta": prep_bn(p["bn1_beta"]),
        "bn2_gamma": prep_bn(p["bn2_gamma"]), "bn2_beta": prep_bn(p["bn2_beta"]),
    }
    if use_1x1conv:
        pp["w3"] = prep_w(p["w3"])
        pp["b3"] = prep_b(p["b3"])
    return pp


# --------------------------- module forward (Pallas path) ---------------------------

def residual_forward(x_nchw, pp, *, strides=1, use_1x1conv=False, out_channels):
    N, Cin, H, W = x_nchw.shape
    Cp_in = _round_up(Cin, LANE)
    Cp_out = pp["w2"].shape[1]

    # NCHW -> NHWC, zero-pad channels to a lane-dense multiple of 128
    x = jnp.transpose(x_nchw, (0, 2, 3, 1)).astype(jnp.float32)
    if Cp_in != Cin:
        x = jnp.pad(x, ((0, 0), (0, 0), (0, 0), (0, Cp_in - Cin)))

    # BN1 batch statistics -> fused scale/shift; the affine + ReLU is fused into conv1.
    s1, t1 = bn_scale_shift(x.reshape(N * H * W, Cp_in), pp["bn1_gamma"], pp["bn1_beta"])

    # Y = conv1(relu(bn1(X))); emitted in bf16 (read twice downstream: BN2 stats + conv2)
    y_flat, H1, W1 = conv2d_fused(x, s1, t1, pp["w1"], pp["b1"],
                                  ksize=3, stride=strides, pad=1,
                                  apply_relu=True, out_dtype=jnp.bfloat16)
    Cp_mid = pp["w1"].shape[1]

    # skip connection (kept f32 for the final residual add)
    if use_1x1conv:
        one = jnp.ones((1, Cp_in), jnp.float32)
        zero = jnp.zeros((1, Cp_in), jnp.float32)
        skip_flat, _, _ = conv2d_fused(x, one, zero, pp["w3"], pp["b3"],
                                       ksize=1, stride=strides, pad=0,
                                       apply_relu=False, out_dtype=jnp.float32)
    else:
        if strides != 1 or Cin != out_channels:
            raise ValueError("identity skip requires strides == 1 and "
                             "input_channels == num_channels (matches nn.Module contract)")
        skip_flat = x.reshape(N, H * W, Cp_in)

    # Y = conv2(relu(bn2(Y))) + skip  -- BN2 affine+ReLU and the residual add fused into conv2
    s2, t2 = bn_scale_shift(y_flat.reshape(N * H1 * W1, Cp_mid),
                            pp["bn2_gamma"], pp["bn2_beta"])
    out_flat, H2, W2 = conv2d_fused(y_flat.reshape(N, H1, W1, Cp_mid), s2, t2,
                                    pp["w2"], pp["b2"], ksize=3, stride=1, pad=1,
                                    apply_relu=True, residual=skip_flat,
                                    out_dtype=jnp.float32)

    out = out_flat.reshape(N, H2, W2, Cp_out)[..., :out_channels]   # drop padded channels
    return jnp.transpose(out, (0, 3, 1, 2))                         # back to NCHW


# --------------------------- pure-JAX reference ---------------------------

def reference_forward(x, p, strides=1, use_1x1conv=False, conv_dtype=jnp.float32):
    def bn(z, gamma, beta):
        mean = jnp.mean(z, axis=(0, 2, 3), keepdims=True)
        var = jnp.var(z, axis=(0, 2, 3), keepdims=True)
        return (z - mean) / jnp.sqrt(var + EPS) * gamma.reshape(1, -1, 1, 1) \
               + beta.reshape(1, -1, 1, 1)

    def conv(z, w, b, stride, pad):
        y = jax.lax.conv_general_dilated(
            z.astype(conv_dtype), w.astype(conv_dtype),
            window_strides=(stride, stride), padding=[(pad, pad), (pad, pad)],
            dimension_numbers=("NCHW", "OIHW", "NCHW"),
            preferred_element_type=jnp.float32)
        return y + b.reshape(1, -1, 1, 1)

    y = conv(jax.nn.relu(bn(x, p["bn1_gamma"], p["bn1_beta"])), p["w1"], p["b1"], strides, 1)
    y = conv(jax.nn.relu(bn(y, p["bn2_gamma"], p["bn2_beta"])), p["w2"], p["b2"], 1, 1)
    skip = conv(x, p["w3"], p["b3"], strides, 0) if use_1x1conv else x
    return y + skip


# --------------------------- demo ---------------------------

if __name__ == "__main__":
    key = jax.random.PRNGKey(0)
    kx, kp1, kp2 = jax.random.split(key, 3)

    N, Cin, H, W = 2, 4, 16, 16
    x = jax.random.normal(kx, (N, Cin, H, W), jnp.float32)

    # case 1: identity skip (use_1x1conv=False, strides=1)
    p1 = init_params(kp1, Cin, Cin, use_1x1conv=False)
    pp1 = prepare_params(p1, use_1x1conv=False)
    fwd1 = jax.jit(functools.partial(residual_forward, strides=1, use_1x1conv=False,
                                     out_channels=Cin))
    out1 = fwd1(x, pp1)
    jax.block_until_ready(out1)
    ref1_q = reference_forward(x, p1, 1, False, conv_dtype=jnp.bfloat16)   # bf16-matched ref
    ref1_f = reference_forward(x, p1, 1, False, conv_dtype=jnp.float32)    # exact f32 ref
    assert out1.shape == (N, Cin, H, W)
    assert float(jnp.max(jnp.abs(out1 - ref1_q))) < 3e-2, "mismatch vs bf16 reference (case 1)"
    assert float(jnp.max(jnp.abs(out1 - ref1_f))) < 1e-1, "mismatch vs f32 reference (case 1)"

    # case 2: projection skip (use_1x1conv=True, strides=2)
    Cout = 8
    p2 = init_params(kp2, Cin, Cout, use_1x1conv=True)
    pp2 = prepare_params(p2, use_1x1conv=True)
    fwd2 = jax.jit(functools.partial(residual_forward, strides=2, use_1x1conv=True,
                                     out_channels=Cout))
    out2 = fwd2(x, pp2)
    jax.block_until_ready(out2)
    ref2_q = reference_forward(x, p2, 2, True, conv_dtype=jnp.bfloat16)
    ref2_f = reference_forward(x, p2, 2, True, conv_dtype=jnp.float32)
    assert out2.shape == (N, Cout, H // 2, W // 2)
    assert float(jnp.max(jnp.abs(out2 - ref2_q))) < 3e-2, "mismatch vs bf16 reference (case 2)"
    assert float(jnp.max(jnp.abs(out2 - ref2_f))) < 1e-1, "mismatch vs f32 reference (case 2)"

    print("KERNEL_OK")
</pallas_src>

<mosaic_0001>
module attributes {stable_mosaic.version = 11 : i64} {
  func.func @_bn_stats_kernel(%arg0: i32, %arg1: memref<512x128xf32, #tpu.memory_space<vmem>>, %arg2: memref<1x128xf32, #tpu.memory_space<vmem>>, %arg3: memref<1x128xf32, #tpu.memory_space<vmem>>) attributes {dimension_semantics = [#tpu.dimension_semantics<arbitrary>], iteration_bounds = array<i64: 1>, scalar_prefetch = 0 : i64, scratch_operands = 0 : i64, tpu.core_type = #tpu.core_type<tc>, window_params = [{transform_indices = @transform_0, window_bounds = array<i64: 512, 128>}, {pipeline_mode = #tpu.pipeline_mode<synchronous>, transform_indices = @transform_1, window_bounds = array<i64: 1, 128>}, {pipeline_mode = #tpu.pipeline_mode<synchronous>, transform_indices = @transform_2, window_bounds = array<i64: 1, 128>}]} {
    %c0_i32 = arith.constant 0 : i32
    %0 = arith.cmpi eq, %arg0, %c0_i32 : i32
    %1 = arith.extui %0 : i1 to i32
    %c0_i32_0 = arith.constant 0 : i32
    %2 = arith.cmpi ne, %1, %c0_i32_0 : i32
    scf.if %2 {
      %cst_13 = arith.constant 0.000000e+00 : f32
      %23 = vector.broadcast %cst_13 : f32 to vector<1x128xf32>
      %c0_14 = arith.constant 0 : index
      %c0_15 = arith.constant 0 : index
      %24 = vector.load %arg2[%c0_14, %c0_15] : memref<1x128xf32, #tpu.memory_space<vmem>>, vector<1x128xf32>
      tpu.vector_store %arg2[%c0_14, %c0_15], %23 {strides = array<i32>} : memref<1x128xf32, #tpu.memory_space<vmem>>, vector<1x128xf32>,
      %cst_16 = arith.constant 0.000000e+00 : f32
      %25 = vector.broadcast %cst_16 : f32 to vector<1x128xf32>
      %c0_17 = arith.constant 0 : index
      %c0_18 = arith.constant 0 : index
      %26 = vector.load %arg3[%c0_17, %c0_18] : memref<1x128xf32, #tpu.memory_space<vmem>>, vector<1x128xf32>
      tpu.vector_store %arg3[%c0_17, %c0_18], %25 {strides = array<i32>} : memref<1x128xf32, #tpu.memory_space<vmem>>, vector<1x128xf32>,
    } else {
    }
    %c0 = arith.constant 0 : index
    %c0_1 = arith.constant 0 : index
    %3 = vector.load %arg1[%c0, %c0_1] : memref<512x128xf32, #tpu.memory_space<vmem>>, vector<512x128xf32>
    %4 = tpu.iota {dimensions = array<i32: 0>} : vector<512x128xi32>
    %c512_i32 = arith.constant 512 : i32
    %5 = arith.muli %arg0, %c512_i32 : i32
    %6 = vector.broadcast %5 : i32 to vector<512x128xi32>
    %7 = arith.addi %4, %6 : vector<512x128xi32>
    %c512_i32_2 = arith.constant 512 : i32
    %8 = vector.broadcast %c512_i32_2 : i32 to vector<512x128xi32>
    %9 = arith.cmpi slt, %7, %8 : vector<512x128xi32>
    %cst = arith.constant 0.000000e+00 : f32
    %10 = vector.broadcast %cst : f32 to vector<512x128xf32>
    %11 = arith.select %9, %3, %10 : vector<512x128xi1>, vector<512x128xf32>
    %c0_3 = arith.constant 0 : index
    %c0_4 = arith.constant 0 : index
    %12 = vector.load %arg2[%c0_3, %c0_4] : memref<1x128xf32, #tpu.memory_space<vmem>>, vector<1x128xf32>
    %cst_5 = arith.constant dense<0.000000e+00> : vector<128xf32>
    %13 = vector.multi_reduction <add>, %11, %cst_5 [0] : vector<512x128xf32> to vector<128xf32>
    %14 = vector.shape_cast %13 : vector<128xf32> to vector<1x128xf32>
    %15 = arith.addf %12, %14 : vector<1x128xf32>
    %c0_6 = arith.constant 0 : index
    %c0_7 = arith.constant 0 : index
    %16 = vector.load %arg2[%c0_6, %c0_7] : memref<1x128xf32, #tpu.memory_space<vmem>>, vector<1x128xf32>
    tpu.vector_store %arg2[%c0_6, %c0_7], %15 {strides = array<i32>} : memref<1x128xf32, #tpu.memory_space<vmem>>, vector<1x128xf32>,
    %c0_8 = arith.constant 0 : index
    %c0_9 = arith.constant 0 : index
    %17 = vector.load %arg3[%c0_8, %c0_9] : memref<1x128xf32, #tpu.memory_space<vmem>>, vector<1x128xf32>
    %18 = arith.mulf %11, %11 : vector<512x128xf32>
    %cst_10 = arith.constant dense<0.000000e+00> : vector<128xf32>
    %19 = vector.multi_reduction <add>, %18, %cst_10 [0] : vector<512x128xf32> to vector<128xf32>
    %20 = vector.shape_cast %19 : vector<128xf32> to vector<1x128xf32>
    %21 = arith.addf %17, %20 : vector<1x128xf32>
    %c0_11 = arith.constant 0 : index
    %c0_12 = arith.constant 0 : index
    %22 = vector.load %arg3[%c0_11, %c0_12] : memref<1x128xf32, #tpu.memory_space<vmem>>, vector<1x128xf32>
    tpu.vector_store %arg3[%c0_11, %c0_12], %21 {strides = array<i32>} : memref<1x128xf32, #tpu.memory_space<vmem>>, vector<1x128xf32>,
    return
  }
  func.func @transform_0(%arg0: i32) -> (i32, i32) {
    %c0_i32 = arith.constant 0 : i32
    %c0_i32_0 = arith.constant 0 : i32
    return %arg0, %c0_i32 : i32, i32
  }
  func.func @transform_1(%arg0: i32) -> (i32, i32) {
    %c0_i32 = arith.constant 0 : i32
    %c0_i32_0 = arith.constant 0 : i32
    %c0_i32_1 = arith.constant 0 : i32
    return %c0_i32, %c0_i32_0 : i32, i32
  }
  func.func @transform_2(%arg0: i32) -> (i32, i32) {
    %c0_i32 = arith.constant 0 : i32
    %c0_i32_0 = arith.constant 0 : i32
    %c0_i32_1 = arith.constant 0 : i32
    return %c0_i32, %c0_i32_0 : i32, i32
  }
}

module attributes {stable_mosaic.version = 11 : i64} {
  func.func @_fused_conv_kernel(%arg0: i32, %arg1: i32, %arg2: memref<1x16x16x128xf32, #tpu.memory_space<vmem>>, %arg3: memref<1x128xf32, #tpu.memory_space<vmem>>, %arg4: memref<1x128xf32, #tpu.memory_space<vmem>>, %arg5: memref<1152x128xbf16, #tpu.memory_space<vmem>>, %arg6: memref<1x128xf32, #tpu.memory_space<vmem>>, %arg7: memref<1x256x128xbf16, #tpu.memory_space<vmem>>, %arg8: memref<18x18x128xbf16, #tpu.memory_space<vmem>>, %arg9: memref<256x1152xbf16, #tpu.memory_space<vmem>>) attributes {dimension_semantics = [#tpu.dimension_semantics<parallel>, #tpu.dimension_semantics<arbitrary>], iteration_bounds = array<i64: 2, 1>, scalar_prefetch = 0 : i64, scratch_operands = 2 : i64, tpu.core_type = #tpu.core_type<tc>, window_params = [{transform_indices = @transform_0, window_bounds = array<i64: 1, 16, 16, 128>}, {pipeline_mode = #tpu.pipeline_mode<synchronous>, transform_indices = @transform_1, window_bounds = array<i64: 1, 128>}, {pipeline_mode = #tpu.pipeline_mode<synchronous>, transform_indices = @transform_2, window_bounds = array<i64: 1, 128>}, {pipeline_mode = #tpu.pipeline_mode<synchronous>, transform_indices = @transform_3, window_bounds = array<i64: 1152, 128>}, {pipeline_mode = #tpu.pipeline_mode<synchronous>, transform_indices = @transform_4, window_bounds = array<i64: 1, 128>}, {transform_indices = @transform_5, window_bounds = array<i64: 1, 256, 128>}]} {
    %c0_i32 = arith.constant 0 : i32
    %0 = arith.cmpi eq, %arg1, %c0_i32 : i32
    %1 = arith.extui %0 : i1 to i32
    %c0_i32_0 = arith.constant 0 : i32
    %2 = arith.cmpi ne, %1, %c0_i32_0 : i32
    scf.if %2 {
      %cst_42 = arith.constant 0.000000e+00 : bf16
      %60 = vector.broadcast %cst_42 : bf16 to vector<18x18x128xbf16>
      %c0_43 = arith.constant 0 : index
      %c0_44 = arith.constant 0 : index
      %c0_45 = arith.constant 0 : index
      %61 = vector.load %arg8[%c0_43, %c0_44, %c0_45] : memref<18x18x128xbf16, #tpu.memory_space<vmem>>, vector<18x18x128xbf16>
      tpu.vector_store %arg8[%c0_43, %c0_44, %c0_45], %60 {strides = array<i32>} : memref<18x18x128xbf16, #tpu.memory_space<vmem>>, vector<18x18x128xbf16>,
      %c0_46 = arith.constant 0 : index
      %c0_47 = arith.constant 0 : index
      %c0_48 = arith.constant 0 : index
      %c0_49 = arith.constant 0 : index
      %62 = vector.load %arg2[%c0_46, %c0_47, %c0_48, %c0_49] : memref<1x16x16x128xf32, #tpu.memory_space<vmem>>, vector<1x16x16x128xf32>
      %63 = vector.shape_cast %62 : vector<1x16x16x128xf32> to vector<16x16x128xf32>
      %c0_50 = arith.constant 0 : index
      %c0_51 = arith.constant 0 : index
      %64 = vector.load %arg3[%c0_50, %c0_51] : memref<1x128xf32, #tpu.memory_space<vmem>>, vector<1x128xf32>
      %65 = vector.shape_cast %64 : vector<1x128xf32> to vector<1x1x128xf32>
      %66 = vector.broadcast %65 : vector<1x1x128xf32> to vector<16x16x128xf32>
      %67 = arith.mulf %63, %66 : vector<16x16x128xf32>
      %c0_52 = arith.constant 0 : index
      %c0_53 = arith.constant 0 : index
      %68 = vector.load %arg4[%c0_52, %c0_53] : memref<1x128xf32, #tpu.memory_space<vmem>>, vector<1x128xf32>
      %69 = vector.shape_cast %68 : vector<1x128xf32> to vector<1x1x128xf32>
      %70 = vector.broadcast %69 : vector<1x1x128xf32> to vector<16x16x128xf32>
      %71 = arith.addf %67, %70 : vector<16x16x128xf32>
      %cst_54 = arith.constant 0.000000e+00 : f32
      %72 = vector.broadcast %cst_54 : f32 to vector<16x16x128xf32>
      %73 = arith.maximumf %71, %72 : vector<16x16x128xf32>
      %74 = arith.truncf %73 : vector<16x16x128xf32> to vector<16x16x128xbf16>
      %c1_55 = arith.constant 1 : index
      %c1_56 = arith.constant 1 : index
      %c0_57 = arith.constant 0 : index
      %75 = vector.load %arg8[%c1_55, %c1_56, %c0_57] : memref<18x18x128xbf16, #tpu.memory_space<vmem>>, vector<16x16x128xbf16>
      tpu.vector_store %arg8[%c1_55, %c1_56, %c0_57], %74 {strides = array<i32>} : memref<18x18x128xbf16, #tpu.memory_space<vmem>>, vector<16x16x128xbf16>,
    } else {
    }
    %c16_i32 = arith.constant 16 : i32
    %3 = arith.muli %arg1, %c16_i32 : i32
    %4 = tpu.assume_multiple %3, 16 : i32
    %c0_i32_1 = arith.constant 0 : i32
    %5 = arith.addi %4, %c0_i32_1 : i32
    %6 = arith.index_cast %5 : i32 to index
    %c0 = arith.constant 0 : index
    %c0_2 = arith.constant 0 : index
    %7 = vector.load %arg8[%6, %c0, %c0_2] : memref<18x18x128xbf16, #tpu.memory_space<vmem>>, vector<16x16x128xbf16>
    %8 = vector.shape_cast %7 : vector<16x16x128xbf16> to vector<256x128xbf16>
    %c0_3 = arith.constant 0 : index
    %c0_4 = arith.constant 0 : index
    %9 = vector.load %arg9[%c0_3, %c0_4] : memref<256x1152xbf16, #tpu.memory_space<vmem>>, vector<256x128xbf16>
    tpu.vector_store %arg9[%c0_3, %c0_4], %8 {strides = array<i32>} : memref<256x1152xbf16, #tpu.memory_space<vmem>>, vector<256x128xbf16>,
    %c0_i32_5 = arith.constant 0 : i32
    %10 = arith.addi %4, %c0_i32_5 : i32
    %11 = arith.index_cast %10 : i32 to index
    %c1 = arith.constant 1 : index
    %c0_6 = arith.constant 0 : index
    %12 = vector.load %arg8[%11, %c1, %c0_6] : memref<18x18x128xbf16, #tpu.memory_space<vmem>>, vector<16x16x128xbf16>
    %13 = vector.shape_cast %12 : vector<16x16x128xbf16> to vector<256x128xbf16>
    %c0_7 = arith.constant 0 : index
    %c128 = arith.constant 128 : index
    %14 = vector.load %arg9[%c0_7, %c128] : memref<256x1152xbf16, #tpu.memory_space<vmem>>, vector<256x128xbf16>
    tpu.vector_store %arg9[%c0_7, %c128], %13 {strides = array<i32>} : memref<256x1152xbf16, #tpu.memory_space<vmem>>, vector<256x128xbf16>,
    %c0_i32_8 = arith.constant 0 : i32
    %15 = arith.addi %4, %c0_i32_8 : i32
    %16 = arith.index_cast %15 : i32 to index
    %c2 = arith.constant 2 : index
    %c0_9 = arith.constant 0 : index
    %17 = vector.load %arg8[%16, %c2, %c0_9] : memref<18x18x128xbf16, #tpu.memory_space<vmem>>, vector<16x16x128xbf16>
    %18 = vector.shape_cast %17 : vector<16x16x128xbf16> to vector<256x128xbf16>
    %c0_10 = arith.constant 0 : index
    %c256 = arith.constant 256 : index
    %19 = vector.load %arg9[%c0_10, %c256] : memref<256x1152xbf16, #tpu.memory_space<vmem>>, vector<256x128xbf16>
    tpu.vector_store %arg9[%c0_10, %c256], %18 {strides = array<i32>} : memref<256x1152xbf16, #tpu.memory_space<vmem>>, vector<256x128xbf16>,
    %c1_i32 = arith.constant 1 : i32
    %20 = arith.addi %4, %c1_i32 : i32
    %21 = arith.index_cast %20 : i32 to index
    %c0_11 = arith.constant 0 : index
    %c0_12 = arith.constant 0 : index
    %22 = vector.load %arg8[%21, %c0_11, %c0_12] : memref<18x18x128xbf16, #tpu.memory_space<vmem>>, vector<16x16x128xbf16>
    %23 = vector.shape_cast %22 : vector<16x16x128xbf16> to vector<256x128xbf16>
    %c0_13 = arith.constant 0 : index
    %c384 = arith.constant 384 : index
    %24 = vector.load %arg9[%c0_13, %c384] : memref<256x1152xbf16, #tpu.memory_space<vmem>>, vector<256x128xbf16>
    tpu.vector_store %arg9[%c0_13, %c384], %23 {strides = array<i32>} : memref<256x1152xbf16, #tpu.memory_space<vmem>>, vector<256x128xbf16>,
    %c1_i32_14 = arith.constant 1 : i32
    %25 = arith.addi %4, %c1_i32_14 : i32
    %26 = arith.index_cast %25 : i32 to index
    %c1_15 = arith.constant 1 : index
    %c0_16 = arith.constant 0 : index
    %27 = vector.load %arg8[%26, %c1_15, %c0_16] : memref<18x18x128xbf16, #tpu.memory_space<vmem>>, vector<16x16x128xbf16>
    %28 = vector.shape_cast %27 : vector<16x16x128xbf16> to vector<256x128xbf16>
    %c0_17 = arith.constant 0 : index
    %c512 = arith.constant 512 : index
    %29 = vector.load %arg9[%c0_17, %c512] : memref<256x1152xbf16, #tpu.memory_space<vmem>>, vector<256x128xbf16>
    tpu.vector_store %arg9[%c0_17, %c512], %28 {strides = array<i32>} : memref<256x1152xbf16, #tpu.memory_space<vmem>>, vector<256x128xbf16>,
    %c1_i32_18 = arith.constant 1 : i32
    %30 = arith.addi %4, %c1_i32_18 : i32
    %31 = arith.index_cast %30 : i32 to index
    %c2_19 = arith.constant 2 : index
    %c0_20 = arith.constant 0 : index
    %32 = vector.load %arg8[%31, %c2_19, %c0_20] : memref<18x18x128xbf16, #tpu.memory_space<vmem>>, vector<16x16x128xbf16>
    %33 = vector.shape_cast %32 : vector<16x16x128xbf16> to vector<256x128xbf16>
    %c0_21 = arith.constant 0 : index
    %c640 = arith.constant 640 : index
    %34 = vector.load %arg9[%c0_21, %c640] : memref<256x1152xbf16, #tpu.memory_space<vmem>>, vector<256x128xbf16>
    tpu.vector_store %arg9[%c0_21, %c640], %33 {strides = array<i32>} : memref<256x1152xbf16, #tpu.memory_space<vmem>>, vector<256x128xbf16>,
    %c2_i32 = arith.constant 2 : i32
    %35 = arith.addi %4, %c2_i32 : i32
    %36 = arith.index_cast %35 : i32 to index
    %c0_22 = arith.constant 0 : index
    %c0_23 = arith.constant 0 : index
    %37 = vector.load %arg8[%36, %c0_22, %c0_23] : memref<18x18x128xbf16, #tpu.memory_space<vmem>>, vector<16x16x128xbf16>
    %38 = vector.shape_cast %37 : vector<16x16x128xbf16> to vector<256x128xbf16>
    %c0_24 = arith.constant 0 : index
    %c768 = arith.constant 768 : index
    %39 = vector.load %arg9[%c0_24, %c768] : memref<256x1152xbf16, #tpu.memory_space<vmem>>, vector<256x128xbf16>
    tpu.vector_store %arg9[%c0_24, %c768], %38 {strides = array<i32>} : memref<256x1152xbf16, #tpu.memory_space<vmem>>, vector<256x128xbf16>,
    %c2_i32_25 = arith.constant 2 : i32
    %40 = arith.addi %4, %c2_i32_25 : i32
    %41 = arith.index_cast %40 : i32 to index
    %c1_26 = arith.constant 1 : index
    %c0_27 = arith.constant 0 : index
    %42 = vector.load %arg8[%41, %c1_26, %c0_27] : memref<18x18x128xbf16, #tpu.memory_space<vmem>>, vector<16x16x128xbf16>
    %43 = vector.shape_cast %42 : vector<16x16x128xbf16> to vector<256x128xbf16>
    %c0_28 = arith.constant 0 : index
    %c896 = arith.constant 896 : index
    %44 = vector.load %arg9[%c0_28, %c896] : memref<256x1152xbf16, #tpu.memory_space<vmem>>, vector<256x128xbf16>
    tpu.vector_store %arg9[%c0_28, %c896], %43 {strides = array<i32>} : memref<256x1152xbf16, #tpu.memory_space<vmem>>, vector<256x128xbf16>,
    %c2_i32_29 = arith.constant 2 : i32
    %45 = arith.addi %4, %c2_i32_29 : i32
    %46 = arith.index_cast %45 : i32 to index
    %c2_30 = arith.constant 2 : index
    %c0_31 = arith.constant 0 : index
    %47 = vector.load %arg8[%46, %c2_30, %c0_31] : memref<18x18x128xbf16, #tpu.memory_space<vmem>>, vector<16x16x128xbf16>
    %48 = vector.shape_cast %47 : vector<16x16x128xbf16> to vector<256x128xbf16>
    %c0_32 = arith.constant 0 : index
    %c1024 = arith.constant 1024 : index
    %49 = vector.load %arg9[%c0_32, %c1024] : memref<256x1152xbf16, #tpu.memory_space<vmem>>, vector<256x128xbf16>
    tpu.vector_store %arg9[%c0_32, %c1024], %48 {strides = array<i32>} : memref<256x1152xbf16, #tpu.memory_space<vmem>>, vector<256x128xbf16>,
    %c0_33 = arith.constant 0 : index
    %c0_34 = arith.constant 0 : index
    %50 = vector.load %arg9[%c0_33, %c0_34] : memref<256x1152xbf16, #tpu.memory_space<vmem>>, vector<256x1152xbf16>
    %c0_35 = arith.constant 0 : index
    %c0_36 = arith.constant 0 : index
    %51 = vector.load %arg5[%c0_35, %c0_36] : memref<1152x128xbf16, #tpu.memory_space<vmem>>, vector<1152x128xbf16>
    %cst = arith.constant dense<0.000000e+00> : vector<256x128xf32>
    %52 = tpu.matmul %50, %51, %cst {dimension_numbers = #tpu.dot_dimension_numbers<[1], [0], [0], [1], [0, 0, 1, 1], [], []>} : vector<256x1152xbf16>, vector<1152x128xbf16>, vector<256x128xf32> -> vector<256x128xf32>
    %c0_37 = arith.constant 0 : index
    %c0_38 = arith.constant 0 : index
    %53 = vector.load %arg6[%c0_37, %c0_38] : memref<1x128xf32, #tpu.memory_space<vmem>>, vector<1x128xf32>
    %54 = vector.broadcast %53 : vector<1x128xf32> to vector<256x128xf32>
    %55 = arith.addf %52, %54 : vector<256x128xf32>
    %56 = arith.truncf %55 : vector<256x128xf32> to vector<256x128xbf16>
    %c0_39 = arith.constant 0 : index
    %c0_40 = arith.constant 0 : index
    %c0_41 = arith.constant 0 : index
    %57 = vector.load %arg7[%c0_39, %c0_40, %c0_41] : memref<1x256x128xbf16, #tpu.memory_space<vmem>>, vector<1x256x128xbf16>
    %58 = vector.shape_cast %57 : vector<1x256x128xbf16> to vector<256x128xbf16>
    %59 = vector.shape_cast %56 : vector<256x128xbf16> to vector<1x256x128xbf16>
    tpu.vector_store %arg7[%c0_39, %c0_40, %c0_41], %59 {strides = array<i32>} : memref<1x256x128xbf16, #tpu.memory_space<vmem>>, vector<1x256x128xbf16>,
    return
  }
  func.func @transform_0(%arg0: i32, %arg1: i32) -> (i32, i32, i32, i32) {
    %c0_i32 = arith.constant 0 : i32
    %c0_i32_0 = arith.constant 0 : i32
    %c0_i32_1 = arith.constant 0 : i32
    %c0_i32_2 = arith.constant 0 : i32
    return %arg0, %c0_i32, %c0_i32_0, %c0_i32_1 : i32, i32, i32, i32
  }
  func.func @transform_1(%arg0: i32, %arg1: i32) -> (i32, i32) {
    %c0_i32 = arith.constant 0 : i32
    %c0_i32_0 = arith.constant 0 : i32
    %c0_i32_1 = arith.constant 0 : i32
    return %c0_i32, %c0_i32_0 : i32, i32
  }
  func.func @transform_2(%arg0: i32, %arg1: i32) -> (i32, i32) {
    %c0_i32 = arith.constant 0 : i32
    %c0_i32_0 = arith.constant 0 : i32
    %c0_i32_1 = arith.constant 0 : i32
    return %c0_i32, %c0_i32_0 : i32, i32
  }
  func.func @transform_3(%arg0: i32, %arg1: i32) -> (i32, i32) {
    %c0_i32 = arith.constant 0 : i32
    %c0_i32_0 = arith.constant 0 : i32
    %c0_i32_1 = arith.constant 0 : i32
    return %c0_i32, %c0_i32_0 : i32, i32
  }
  func.func @transform_4(%arg0: i32, %arg1: i32) -> (i32, i32) {
    %c0_i32 = arith.constant 0 : i32
    %c0_i32_0 = arith.constant 0 : i32
    %c0_i32_1 = arith.constant 0 : i32
    return %c0_i32, %c0_i32_0 : i32, i32
  }
  func.func @transform_5(%arg0: i32, %arg1: i32) -> (i32, i32, i32) {
    %c0_i32 = arith.constant 0 : i32
    %c0_i32_0 = arith.constant 0 : i32
    return %arg0, %arg1, %c0_i32 : i32, i32, i32
  }
}

module attributes {stable_mosaic.version = 11 : i64} {
  func.func @_bn_stats_kernel(%arg0: i32, %arg1: memref<512x128xbf16, #tpu.memory_space<vmem>>, %arg2: memref<1x128xf32, #tpu.memory_space<vmem>>, %arg3: memref<1x128xf32, #tpu.memory_space<vmem>>) attributes {dimension_semantics = [#tpu.dimension_semantics<arbitrary>], iteration_bounds = array<i64: 1>, scalar_prefetch = 0 : i64, scratch_operands = 0 : i64, tpu.core_type = #tpu.core_type<tc>, window_params = [{transform_indices = @transform_0, window_bounds = array<i64: 512, 128>}, {pipeline_mode = #tpu.pipeline_mode<synchronous>, transform_indices = @transform_1, window_bounds = array<i64: 1, 128>}, {pipeline_mode = #tpu.pipeline_mode<synchronous>, transform_indices = @transform_2, window_bounds = array<i64: 1, 128>}]} {
    %c0_i32 = arith.constant 0 : i32
    %0 = arith.cmpi eq, %arg0, %c0_i32 : i32
    %1 = arith.extui %0 : i1 to i32
    %c0_i32_0 = arith.constant 0 : i32
    %2 = arith.cmpi ne, %1, %c0_i32_0 : i32
    scf.if %2 {
      %cst_13 = arith.constant 0.000000e+00 : f32
      %24 = vector.broadcast %cst_13 : f32 to vector<1x128xf32>
      %c0_14 = arith.constant 0 : index
      %c0_15 = arith.constant 0 : index
      %25 = vector.load %arg2[%c0_14, %c0_15] : memref<1x128xf32, #tpu.memory_space<vmem>>, vector<1x128xf32>
      tpu.vector_store %arg2[%c0_14, %c0_15], %24 {strides = array<i32>} : memref<1x128xf32, #tpu.memory_space<vmem>>, vector<1x128xf32>,
      %cst_16 = arith.constant 0.000000e+00 : f32
      %26 = vector.broadcast %cst_16 : f32 to vector<1x128xf32>
      %c0_17 = arith.constant 0 : index
      %c0_18 = arith.constant 0 : index
      %27 = vector.load %arg3[%c0_17, %c0_18] : memref<1x128xf32, #tpu.memory_space<vmem>>, vector<1x128xf32>
      tpu.vector_store %arg3[%c0_17, %c0_18], %26 {strides = array<i32>} : memref<1x128xf32, #tpu.memory_space<vmem>>, vector<1x128xf32>,
    } else {
    }
    %c0 = arith.constant 0 : index
    %c0_1 = arith.constant 0 : index
    %3 = vector.load %arg1[%c0, %c0_1] : memref<512x128xbf16, #tpu.memory_space<vmem>>, vector<512x128xbf16>
    %4 = arith.extf %3 : vector<512x128xbf16> to vector<512x128xf32>
    %5 = tpu.iota {dimensions = array<i32: 0>} : vector<512x128xi32>
    %c512_i32 = arith.constant 512 : i32
    %6 = arith.muli %arg0, %c512_i32 : i32
    %7 = vector.broadcast %6 : i32 to vector<512x128xi32>
    %8 = arith.addi %5, %7 : vector<512x128xi32>
    %c512_i32_2 = arith.constant 512 : i32
    %9 = vector.broadcast %c512_i32_2 : i32 to vector<512x128xi32>
    %10 = arith.cmpi slt, %8, %9 : vector<512x128xi32>
    %cst = arith.constant 0.000000e+00 : f32
    %11 = vector.broadcast %cst : f32 to vector<512x128xf32>
    %12 = arith.select %10, %4, %11 : vector<512x128xi1>, vector<512x128xf32>
    %c0_3 = arith.constant 0 : index
    %c0_4 = arith.constant 0 : index
    %13 = vector.load %arg2[%c0_3, %c0_4] : memref<1x128xf32, #tpu.memory_space<vmem>>, vector<1x128xf32>
    %cst_5 = arith.constant dense<0.000000e+00> : vector<128xf32>
    %14 = vector.multi_reduction <add>, %12, %cst_5 [0] : vector<512x128xf32> to vector<128xf32>
    %15 = vector.shape_cast %14 : vector<128xf32> to vector<1x128xf32>
    %16 = arith.addf %13, %15 : vector<1x128xf32>
    %c0_6 = arith.constant 0 : index
    %c0_7 = arith.constant 0 : index
    %17 = vector.load %arg2[%c0_6, %c0_7] : memref<1x128xf32, #tpu.memory_space<vmem>>, vector<1x128xf32>
    tpu.vector_store %arg2[%c0_6, %c0_7], %16 {strides = array<i32>} : memref<1x128xf32, #tpu.memory_space<vmem>>, vector<1x128xf32>,
    %c0_8 = arith.constant 0 : index
    %c0_9 = arith.constant 0 : index
    %18 = vector.load %arg3[%c0_8, %c0_9] : memref<1x128xf32, #tpu.memory_space<vmem>>, vector<1x128xf32>
    %19 = arith.mulf %12, %12 : vector<512x128xf32>
    %cst_10 = arith.constant dense<0.000000e+00> : vector<128xf32>
    %20 = vector.multi_reduction <add>, %19, %cst_10 [0] : vector<512x128xf32> to vector<128xf32>
    %21 = vector.shape_cast %20 : vector<128xf32> to vector<1x128xf32>
    %22 = arith.addf %18, %21 : vector<1x128xf32>
    %c0_11 = arith.constant 0 : index
    %c0_12 = arith.constant 0 : index
    %23 = vector.load %arg3[%c0_11, %c0_12] : memref<1x128xf32, #tpu.memory_space<vmem>>, vector<1x128xf32>
    tpu.vector_store %arg3[%c0_11, %c0_12], %22 {strides = array<i32>} : memref<1x128xf32, #tpu.memory_space<vmem>>, vector<1x128xf32>,
    return
  }
  func.func @transform_0(%arg0: i32) -> (i32, i32) {
    %c0_i32 = arith.constant 0 : i32
    %c0_i32_0 = arith.constant 0 : i32
    return %arg0, %c0_i32 : i32, i32
  }
  func.func @transform_1(%arg0: i32) -> (i32, i32) {
    %c0_i32 = arith.constant 0 : i32
    %c0_i32_0 = arith.constant 0 : i32
    %c0_i32_1 = arith.constant 0 : i32
    return %c0_i32, %c0_i32_0 : i32, i32
  }
  func.func @transform_2(%arg0: i32) -> (i32, i32) {
    %c0_i32 = arith.constant 0 : i32
    %c0_i32_0 = arith.constant 0 : i32
    %c0_i32_1 = arith.constant 0 : i32
    return %c0_i32, %c0_i32_0 : i32, i32
  }
}

module attributes {stable_mosaic.version = 11 : i64} {
  func.func @_fused_conv_kernel(%arg0: i32, %arg1: i32, %arg2: memref<1x16x16x128xbf16, #tpu.memory_space<vmem>>, %arg3: memref<1x128xf32, #tpu.memory_space<vmem>>, %arg4: memref<1x128xf32, #tpu.memory_space<vmem>>, %arg5: memref<1152x128xbf16, #tpu.memory_space<vmem>>, %arg6: memref<1x128xf32, #tpu.memory_space<vmem>>, %arg7: memref<1x256x128xf32, #tpu.memory_space<vmem>>, %arg8: memref<1x256x128xf32, #tpu.memory_space<vmem>>, %arg9: memref<18x18x128xbf16, #tpu.memory_space<vmem>>, %arg10: memref<256x1152xbf16, #tpu.memory_space<vmem>>) attributes {dimension_semantics = [#tpu.dimension_semantics<parallel>, #tpu.dimension_semantics<arbitrary>], iteration_bounds = array<i64: 2, 1>, scalar_prefetch = 0 : i64, scratch_operands = 2 : i64, tpu.core_type = #tpu.core_type<tc>, window_params = [{transform_indices = @transform_0, window_bounds = array<i64: 1, 16, 16, 128>}, {pipeline_mode = #tpu.pipeline_mode<synchronous>, transform_indices = @transform_1, window_bounds = array<i64: 1, 128>}, {pipeline_mode = #tpu.pipeline_mode<synchronous>, transform_indices = @transform_2, window_bounds = array<i64: 1, 128>}, {pipeline_mode = #tpu.pipeline_mode<synchronous>, transform_indices = @transform_3, window_bounds = array<i64: 1152, 128>}, {pipeline_mode = #tpu.pipeline_mode<synchronous>, transform_indices = @transform_4, window_bounds = array<i64: 1, 128>}, {transform_indices = @transform_5, window_bounds = array<i64: 1, 256, 128>}, {transform_indices = @transform_6, window_bounds = array<i64: 1, 256, 128>}]} {
    %c0_i32 = arith.constant 0 : i32
    %0 = arith.cmpi eq, %arg1, %c0_i32 : i32
    %1 = arith.extui %0 : i1 to i32
    %c0_i32_0 = arith.constant 0 : i32
    %2 = arith.cmpi ne, %1, %c0_i32_0 : i32
    scf.if %2 {
      %cst_45 = arith.constant 0.000000e+00 : bf16
      %62 = vector.broadcast %cst_45 : bf16 to vector<18x18x128xbf16>
      %c0_46 = arith.constant 0 : index
      %c0_47 = arith.constant 0 : index
      %c0_48 = arith.constant 0 : index
      %63 = vector.load %arg9[%c0_46, %c0_47, %c0_48] : memref<18x18x128xbf16, #tpu.memory_space<vmem>>, vector<18x18x128xbf16>
      tpu.vector_store %arg9[%c0_46, %c0_47, %c0_48], %62 {strides = array<i32>} : memref<18x18x128xbf16, #tpu.memory_space<vmem>>, vector<18x18x128xbf16>,
      %c0_49 = arith.constant 0 : index
      %c0_50 = arith.constant 0 : index
      %c0_51 = arith.constant 0 : index
      %c0_52 = arith.constant 0 : index
      %64 = vector.load %arg2[%c0_49, %c0_50, %c0_51, %c0_52] : memref<1x16x16x128xbf16, #tpu.memory_space<vmem>>, vector<1x16x16x128xbf16>
      %65 = vector.shape_cast %64 : vector<1x16x16x128xbf16> to vector<16x16x128xbf16>
      %66 = arith.extf %65 : vector<16x16x128xbf16> to vector<16x16x128xf32>
      %c0_53 = arith.constant 0 : index
      %c0_54 = arith.constant 0 : index
      %67 = vector.load %arg3[%c0_53, %c0_54] : memref<1x128xf32, #tpu.memory_space<vmem>>, vector<1x128xf32>
      %68 = vector.shape_cast %67 : vector<1x128xf32> to vector<1x1x128xf32>
      %69 = vector.broadcast %68 : vector<1x1x128xf32> to vector<16x16x128xf32>
      %70 = arith.mulf %66, %69 : vector<16x16x128xf32>
      %c0_55 = arith.constant 0 : index
      %c0_56 = arith.constant 0 : index
      %71 = vector.load %arg4[%c0_55, %c0_56] : memref<1x128xf32, #tpu.memory_space<vmem>>, vector<1x128xf32>
      %72 = vector.shape_cast %71 : vector<1x128xf32> to vector<1x1x128xf32>
      %73 = vector.broadcast %72 : vector<1x1x128xf32> to vector<16x16x128xf32>
      %74 = arith.addf %70, %73 : vector<16x16x128xf32>
      %cst_57 = arith.constant 0.000000e+00 : f32
      %75 = vector.broadcast %cst_57 : f32 to vector<16x16x128xf32>
      %76 = arith.maximumf %74, %75 : vector<16x16x128xf32>
      %77 = arith.truncf %76 : vector<16x16x128xf32> to vector<16x16x128xbf16>
      %c1_58 = arith.constant 1 : index
      %c1_59 = arith.constant 1 : index
      %c0_60 = arith.constant 0 : index
      %78 = vector.load %arg9[%c1_58, %c1_59, %c0_60] : memref<18x18x128xbf16, #tpu.memory_space<vmem>>, vector<16x16x128xbf16>
      tpu.vector_store %arg9[%c1_58, %c1_59, %c0_60], %77 {strides = array<i32>} : memref<18x18x128xbf16, #tpu.memory_space<vmem>>, vector<16x16x128xbf16>,
    } else {
    }
    %c16_i32 = arith.constant 16 : i32
    %3 = arith.muli %arg1, %c16_i32 : i32
    %4 = tpu.assume_multiple %3, 16 : i32
    %c0_i32_1 = arith.constant 0 : i32
    %5 = arith.addi %4, %c0_i32_1 : i32
    %6 = arith.index_cast %5 : i32 to index
    %c0 = arith.constant 0 : index
    %c0_2 = arith.constant 0 : index
    %7 = vector.load %arg9[%6, %c0, %c0_2] : memref<18x18x128xbf16, #tpu.memory_space<vmem>>, vector<16x16x128xbf16>
    %8 = vector.shape_cast %7 : vector<16x16x128xbf16> to vector<256x128xbf16>
    %c0_3 = arith.constant 0 : index
    %c0_4 = arith.constant 0 : index
    %9 = vector.load %arg10[%c0_3, %c0_4] : memref<256x1152xbf16, #tpu.memory_space<vmem>>, vector<256x128xbf16>
    tpu.vector_store %arg10[%c0_3, %c0_4], %8 {strides = array<i32>} : memref<256x1152xbf16, #tpu.memory_space<vmem>>, vector<256x128xbf16>,
    %c0_i32_5 = arith.constant 0 : i32
    %10 = arith.addi %4, %c0_i32_5 : i32
    %11 = arith.index_cast %10 : i32 to index
    %c1 = arith.constant 1 : index
    %c0_6 = arith.constant 0 : index
    %12 = vector.load %arg9[%11, %c1, %c0_6] : memref<18x18x128xbf16, #tpu.memory_space<vmem>>, vector<16x16x128xbf16>
    %13 = vector.shape_cast %12 : vector<16x16x128xbf16> to vector<256x128xbf16>
    %c0_7 = arith.constant 0 : index
    %c128 = arith.constant 128 : index
    %14 = vector.load %arg10[%c0_7, %c128] : memref<256x1152xbf16, #tpu.memory_space<vmem>>, vector<256x128xbf16>
    tpu.vector_store %arg10[%c0_7, %c128], %13 {strides = array<i32>} : memref<256x1152xbf16, #tpu.memory_space<vmem>>, vector<256x128xbf16>,
    %c0_i32_8 = arith.constant 0 : i32
    %15 = arith.addi %4, %c0_i32_8 : i32
    %16 = arith.index_cast %15 : i32 to index
    %c2 = arith.constant 2 : index
    %c0_9 = arith.constant 0 : index
    %17 = vector.load %arg9[%16, %c2, %c0_9] : memref<18x18x128xbf16, #tpu.memory_space<vmem>>, vector<16x16x128xbf16>
    %18 = vector.shape_cast %17 : vector<16x16x128xbf16> to vector<256x128xbf16>
    %c0_10 = arith.constant 0 : index
    %c256 = arith.constant 256 : index
    %19 = vector.load %arg10[%c0_10, %c256] : memref<256x1152xbf16, #tpu.memory_space<vmem>>, vector<256x128xbf16>
    tpu.vector_store %arg10[%c0_10, %c256], %18 {strides = array<i32>} : memref<256x1152xbf16, #tpu.memory_space<vmem>>, vector<256x128xbf16>,
    %c1_i32 = arith.constant 1 : i32
    %20 = arith.addi %4, %c1_i32 : i32
    %21 = arith.index_cast %20 : i32 to index
    %c0_11 = arith.constant 0 : index
    %c0_12 = arith.constant 0 : index
    %22 = vector.load %arg9[%21, %c0_11, %c0_12] : memref<18x18x128xbf16, #tpu.memory_space<vmem>>, vector<16x16x128xbf16>
    %23 = vector.shape_cast %22 : vector<16x16x128xbf16> to vector<256x128xbf16>
    %c0_13 = arith.constant 0 : index
    %c384 = arith.constant 384 : index
    %24 = vector.load %arg10[%c0_13, %c384] : memref<256x1152xbf16, #tpu.memory_space<vmem>>, vector<256x128xbf16>
    tpu.vector_store %arg10[%c0_13, %c384], %23 {strides = array<i32>} : memref<256x1152xbf16, #tpu.memory_space<vmem>>, vector<256x128xbf16>,
    %c1_i32_14 = arith.constant 1 : i32
    %25 = arith.addi %4, %c1_i32_14 : i32
    %26 = arith.index_cast %25 : i32 to index
    %c1_15 = arith.constant 1 : index
    %c0_16 = arith.constant 0 : index
    %27 = vector.load %arg9[%26, %c1_15, %c0_16] : memref<18x18x128xbf16, #tpu.memory_space<vmem>>, vector<16x16x128xbf16>
    %28 = vector.shape_cast %27 : vector<16x16x128xbf16> to vector<256x128xbf16>
    %c0_17 = arith.constant 0 : index
    %c512 = arith.constant 512 : index
    %29 = vector.load %arg10[%c0_17, %c512] : memref<256x1152xbf16, #tpu.memory_space<vmem>>, vector<256x128xbf16>
    tpu.vector_store %arg10[%c0_17, %c512], %28 {strides = array<i32>} : memref<256x1152xbf16, #tpu.memory_space<vmem>>, vector<256x128xbf16>,
    %c1_i32_18 = arith.constant 1 : i32
    %30 = arith.addi %4, %c1_i32_18 : i32
    %31 = arith.index_cast %30 : i32 to index
    %c2_19 = arith.constant 2 : index
    %c0_20 = arith.constant 0 : index
    %32 = vector.load %arg9[%31, %c2_19, %c0_20] : memref<18x18x128xbf16, #tpu.memory_space<vmem>>, vector<16x16x128xbf16>
    %33 = vector.shape_cast %32 : vector<16x16x128xbf16> to vector<256x128xbf16>
    %c0_21 = arith.constant 0 : index
    %c640 = arith.constant 640 : index
    %34 = vector.load %arg10[%c0_21, %c640] : memref<256x1152xbf16, #tpu.memory_space<vmem>>, vector<256x128xbf16>
    tpu.vector_store %arg10[%c0_21, %c640], %33 {strides = array<i32>} : memref<256x1152xbf16, #tpu.memory_space<vmem>>, vector<256x128xbf16>,
    %c2_i32 = arith.constant 2 : i32
    %35 = arith.addi %4, %c2_i32 : i32
    %36 = arith.index_cast %35 : i32 to index
    %c0_22 = arith.constant 0 : index
    %c0_23 = arith.constant 0 : index
    %37 = vector.load %arg9[%36, %c0_22, %c0_23] : memref<18x18x128xbf16, #tpu.memory_space<vmem>>, vector<16x16x128xbf16>
    %38 = vector.shape_cast %37 : vector<16x16x128xbf16> to vector<256x128xbf16>
    %c0_24 = arith.constant 0 : index
    %c768 = arith.constant 768 : index
    %39 = vector.load %arg10[%c0_24, %c768] : memref<256x1152xbf16, #tpu.memory_space<vmem>>, vector<256x128xbf16>
    tpu.vector_store %arg10[%c0_24, %c768], %38 {strides = array<i32>} : memref<256x1152xbf16, #tpu.memory_space<vmem>>, vector<256x128xbf16>,
    %c2_i32_25 = arith.constant 2 : i32
    %40 = arith.addi %4, %c2_i32_25 : i32
    %41 = arith.index_cast %40 : i32 to index
    %c1_26 = arith.constant 1 : index
    %c0_27 = arith.constant 0 : index
    %42 = vector.load %arg9[%41, %c1_26, %c0_27] : memref<18x18x128xbf16, #tpu.memory_space<vmem>>, vector<16x16x128xbf16>
    %43 = vector.shape_cast %42 : vector<16x16x128xbf16> to vector<256x128xbf16>
    %c0_28 = arith.constant 0 : index
    %c896 = arith.constant 896 : index
    %44 = vector.load %arg10[%c0_28, %c896] : memref<256x1152xbf16, #tpu.memory_space<vmem>>, vector<256x128xbf16>
    tpu.vector_store %arg10[%c0_28, %c896], %43 {strides = array<i32>} : memref<256x1152xbf16, #tpu.memory_space<vmem>>, vector<256x128xbf16>,
    %c2_i32_29 = arith.constant 2 : i32
    %45 = arith.addi %4, %c2_i32_29 : i32
    %46 = arith.index_cast %45 : i32 to index
    %c2_30 = arith.constant 2 : index
    %c0_31 = arith.constant 0 : index
    %47 = vector.load %arg9[%46, %c2_30, %c0_31] : memref<18x18x128xbf16, #tpu.memory_space<vmem>>, vector<16x16x128xbf16>
    %48 = vector.shape_cast %47 : vector<16x16x128xbf16> to vector<256x128xbf16>
    %c0_32 = arith.constant 0 : index
    %c1024 = arith.constant 1024 : index
    %49 = vector.load %arg10[%c0_32, %c1024] : memref<256x1152xbf16, #tpu.memory_space<vmem>>, vector<256x128xbf16>
    tpu.vector_store %arg10[%c0_32, %c1024], %48 {strides = array<i32>} : memref<256x1152xbf16, #tpu.memory_space<vmem>>, vector<256x128xbf16>,
    %c0_33 = arith.constant 0 : index
    %c0_34 = arith.constant 0 : index
    %50 = vector.load %arg10[%c0_33, %c0_34] : memref<256x1152xbf16, #tpu.memory_space<vmem>>, vector<256x1152xbf16>
    %c0_35 = arith.constant 0 : index
    %c0_36 = arith.constant 0 : index
    %51 = vector.load %arg5[%c0_35, %c0_36] : memref<1152x128xbf16, #tpu.memory_space<vmem>>, vector<1152x128xbf16>
    %cst = arith.constant dense<0.000000e+00> : vector<256x128xf32>
    %52 = tpu.matmul %50, %51, %cst {dimension_numbers = #tpu.dot_dimension_numbers<[1], [0], [0], [1], [0, 0, 1, 1], [], []>} : vector<256x1152xbf16>, vector<1152x128xbf16>, vector<256x128xf32> -> vector<256x128xf32>
    %c0_37 = arith.constant 0 : index
    %c0_38 = arith.constant 0 : index
    %53 = vector.load %arg6[%c0_37, %c0_38] : memref<1x128xf32, #tpu.memory_space<vmem>>, vector<1x128xf32>
    %54 = vector.broadcast %53 : vector<1x128xf32> to vector<256x128xf32>
    %55 = arith.addf %52, %54 : vector<256x128xf32>
    %c0_39 = arith.constant 0 : index
    %c0_40 = arith.constant 0 : index
    %c0_41 = arith.constant 0 : index
    %56 = vector.load %arg7[%c0_39, %c0_40, %c0_41] : memref<1x256x128xf32, #tpu.memory_space<vmem>>, vector<1x256x128xf32>
    %57 = vector.shape_cast %56 : vector<1x256x128xf32> to vector<256x128xf32>
    %58 = arith.addf %55, %57 : vector<256x128xf32>
    %c0_42 = arith.constant 0 : index
    %c0_43 = arith.constant 0 : index
    %c0_44 = arith.constant 0 : index
    %59 = vector.load %arg8[%c0_42, %c0_43, %c0_44] : memref<1x256x128xf32, #tpu.memory_space<vmem>>, vector<1x256x128xf32>
    %60 = vector.shape_cast %59 : vector<1x256x128xf32> to vector<256x128xf32>
    %61 = vector.shape_cast %58 : vector<256x128xf32> to vector<1x256x128xf32>
    tpu.vector_store %arg8[%c0_42, %c0_43, %c0_44], %61 {strides = array<i32>} : memref<1x256x128xf32, #tpu.memory_space<vmem>>, vector<1x256x128xf32>,
    return
  }
  func.func @transform_0(%arg0: i32, %arg1: i32) -> (i32, i32, i32, i32) {
    %c0_i32 = arith.constant 0 : i32
    %c0_i32_0 = arith.constant 0 : i32
    %c0_i32_1 = arith.constant 0 : i32
    %c0_i32_2 = arith.constant 0 : i32
    return %arg0, %c0_i32, %c0_i32_0, %c0_i32_1 : i32, i32, i32, i32
  }
  func.func @transform_1(%arg0: i32, %arg1: i32) -> (i32, i32) {
    %c0_i32 = arith.constant 0 : i32
    %c0_i32_0 = arith.constant 0 : i32
    %c0_i32_1 = arith.constant 0 : i32
    return %c0_i32, %c0_i32_0 : i32, i32
  }
  func.func @transform_2(%arg0: i32, %arg1: i32) -> (i32, i32) {
    %c0_i32 = arith.constant 0 : i32
    %c0_i32_0 = arith.constant 0 : i32
    %c0_i32_1 = arith.constant 0 : i32
    return %c0_i32, %c0_i32_0 : i32, i32
  }
  func.func @transform_3(%arg0: i32, %arg1: i32) -> (i32, i32) {
    %c0_i32 = arith.constant 0 : i32
    %c0_i32_0 = arith.constant 0 : i32
    %c0_i32_1 = arith.constant 0 : i32
    return %c0_i32, %c0_i32_0 : i32, i32
  }
  func.func @transform_4(%arg0: i32, %arg1: i32) -> (i32, i32) {
    %c0_i32 = arith.constant 0 : i32
    %c0_i32_0 = arith.constant 0 : i32
    %c0_i32_1 = arith.constant 0 : i32
    return %c0_i32, %c0_i32_0 : i32, i32
  }
  func.func @transform_5(%arg0: i32, %arg1: i32) -> (i32, i32, i32) {
    %c0_i32 = arith.constant 0 : i32
    %c0_i32_0 = arith.constant 0 : i32
    return %arg0, %arg1, %c0_i32 : i32, i32, i32
  }
  func.func @transform_6(%arg0: i32, %arg1: i32) -> (i32, i32, i32) {
    %c0_i32 = arith.constant 0 : i32
    %c0_i32_0 = arith.constant 0 : i32
    return %arg0, %arg1, %c0_i32 : i32, i32, i32
  }
}

</mosaic_0001>

<llo_original>
// kernel: residual_forward.4
$region0: #{residual_forward.4}
  #allocation0 [shape = 'u32[]', space=smem, size = 0x4, offset = 0x4, fixed_abs, tag = 'smem constant byte address 0x4 - core index']
  #allocation1 [shape = 'u32[72,128]{1,0:T(1,128)}', space=vmem, size = 0x9000, scoped, tag = 'internal scratch']
  %s0 = inlined_call_operand.vmem [shape: f32[512,128], index: 0, kind: input, shape index: {}]
  %s1 = inlined_call_operand.vmem [shape: f32[1,128], index: 1, kind: output, shape index: {0}]
  %s2 = inlined_call_operand.vmem [shape: f32[1,128], index: 2, kind: output, shape index: {1}]
  %3 = xla_tuple %s1, %s2
  %s4 = sld [smem:[#allocation0]]
  $region26: #{residual_forward.4} parent=0
    _
  %s6 = ssub.s32 1, %s4
  %s7 = scalar_select 0, %s6, %s4
  // Predicated region
  $region2: #{residual_forward.4} parent=0 // pred_check
    _
  $region3: #{residual_forward.4} parent=0 // pred_check_branch
    %9 = sbr.rel (0) target = $region5
  $region4: #{residual_forward.4} parent=0 // pred_region
    _
  $region5: #{residual_forward.4} parent=0 // pred_fallthru
    _
  %p10 = scmp.eq.s32.totalorder 0, 0
  // Predicated region
  $region6: #{residual_forward.4} parent=0 // pred_check
    %p11 = pneg %p10
  $region7: #{residual_forward.4} parent=0 // pred_check_branch
    %13 = sbr.rel (%p11) target = $region9
  $region8: #{residual_forward.4} parent=0 // pred_region
    %14 = vst [vmem:[%s1] sm:$0x1] 0.0
    %15 = vst [vmem:[%s2] sm:$0x1] 0.0
  $region9: #{residual_forward.4} parent=0 // pred_fallthru
    _
  %v16 = vld [vmem:[%s0] sm:$0xff]
  %v17 = vld [vmem:[%s0 + $0x8] sm:$0xff]
  %v18 = vld [vmem:[%s0 + $0x10] sm:$0xff]
  %v19 = vld [vmem:[%s0 + $0x18] sm:$0xff]
  %v20 = vld [vmem:[%s0 + $0x20] sm:$0xff]
  %v21 = vld [vmem:[%s0 + $0x28] sm:$0xff]
  %v22 = vld [vmem:[%s0 + $0x30] sm:$0xff]
  %v23 = vld [vmem:[%s0 + $0x38] sm:$0xff]
  %v24 = vld [vmem:[%s0 + $0x40] sm:$0xff]
  %v25 = vld [vmem:[%s0 + $0x48] sm:$0xff]
  %v26 = vld [vmem:[%s0 + $0x50] sm:$0xff]
  %v27 = vld [vmem:[%s0 + $0x58] sm:$0xff]
  %v28 = vld [vmem:[%s0 + $0x60] sm:$0xff]
  %v29 = vld [vmem:[%s0 + $0x68] sm:$0xff]
  %v30 = vld [vmem:[%s0 + $0x70] sm:$0xff]
  %v31 = vld [vmem:[%s0 + $0x78] sm:$0xff]
  %v32 = vld [vmem:[%s0 + $0x80] sm:$0xff]
  %v33 = vld [vmem:[%s0 + $0x88] sm:$0xff]
  %v34 = vld [vmem:[%s0 + $0x90] sm:$0xff]
  %v35 = vld [vmem:[%s0 + $0x98] sm:$0xff]
  %v36 = vld [vmem:[%s0 + $0xa0] sm:$0xff]
  %v37 = vld [vmem:[%s0 + $0xa8] sm:$0xff]
  %v38 = vld [vmem:[%s0 + $0xb0] sm:$0xff]
  %v39 = vld [vmem:[%s0 + $0xb8] sm:$0xff]
  %v40 = vld [vmem:[%s0 + $0xc0] sm:$0xff]
  %v41 = vld [vmem:[%s0 + $0xc8] sm:$0xff]
  %v42 = vld [vmem:[%s0 + $0xd0] sm:$0xff]
  %v43 = vld [vmem:[%s0 + $0xd8] sm:$0xff]
  %v44 = vld [vmem:[%s0 + $0xe0] sm:$0xff]
  %v45 = vld [vmem:[%s0 + $0xe8] sm:$0xff]
  %v46 = vld [vmem:[%s0 + $0xf0] sm:$0xff]
  %v47 = vld [vmem:[%s0 + $0xf8] sm:$0xff]
  %v48 = vld [vmem:[%s0 + $0x100] sm:$0xff]
  %v49 = vld [vmem:[%s0 + $0x108] sm:$0xff]
  %v50 = vld [vmem:[%s0 + $0x110] sm:$0xff]
  %v51 = vld [vmem:[%s0 + $0x118] sm:$0xff]
  %v52 = vld [vmem:[%s0 + $0x120] sm:$0xff]
  %v53 = vld [vmem:[%s0 + $0x128] sm:$0xff]
  %v54 = vld [vmem:[%s0 + $0x130] sm:$0xff]
  %v55 = vld [vmem:[%s0 + $0x138] sm:$0xff]
  %v56 = vld [vmem:[%s0 + $0x140] sm:$0xff]
  %v57 = vld [vmem:[%s0 + $0x148] sm:$0xff]
  %v58 = vld [vmem:[%s0 + $0x150] sm:$0xff]
  %v59 = vld [vmem:[%s0 + $0x158] sm:$0xff]
  %v60 = vld [vmem:[%s0 + $0x160] sm:$0xff]
  %v61 = vld [vmem:[%s0 + $0x168] sm:$0xff]
  %v62 = vld [vmem:[%s0 + $0x170] sm:$0xff]
  %v63 = vld [vmem:[%s0 + $0x178] sm:$0xff]
  %v64 = vld [vmem:[%s0 + $0x180] sm:$0xff]
  %v65 = vld [vmem:[%s0 + $0x188] sm:$0xff]
  %v66 = vld [vmem:[%s0 + $0x190] sm:$0xff]
  %v67 = vld [vmem:[%s0 + $0x198] sm:$0xff]
  %v68 = vld [vmem:[%s0 + $0x1a0] sm:$0xff]
  %v69 = vld [vmem:[%s0 + $0x1a8] sm:$0xff]
  %v70 = vld [vmem:[%s0 + $0x1b0] sm:$0xff]
  %v71 = vld [vmem:[%s0 + $0x1b8] sm:$0xff]
  %v72 = vld [vmem:[%s0 + $0x1c0] sm:$0xff]
  %v73 = vld [vmem:[%s0 + $0x1c8] sm:$0xff]
  %v74 = vld [vmem:[%s0 + $0x1d0] sm:$0xff]
  %v75 = vld [vmem:[%s0 + $0x1d8] sm:$0xff]
  %v76 = vld [vmem:[%s0 + $0x1e0] sm:$0xff]
  %v77 = vld [vmem:[%s0 + $0x1e8] sm:$0xff]
  %v78 = vld [vmem:[%s0 + $0x1f0] sm:$0xff]
  %v79 = vld [vmem:[%s0 + $0x1f8] sm:$0xff]
  %v80 = vlaneseq
  %v81 = vshrl.u32 %v80, 7
  %v82 = vadd.s32 %v81, 8
  %v83 = vadd.s32 %v81, 16
  %v84 = vadd.s32 %v81, 24
  %v85 = vadd.s32 %v81, 32
  %v86 = vadd.s32 %v81, 40
  %v87 = vadd.s32 %v81, 48
  %v88 = vadd.s32 %v81, 56
  %v89 = vadd.s32 %v81, 64
  %v90 = vadd.s32 %v81, 72
  %v91 = vadd.s32 %v81, 80
  %v92 = vadd.s32 %v81, 88
  %v93 = vadd.s32 %v81, 96
  %v94 = vadd.s32 %v81, 104
  %v95 = vadd.s32 %v81, 112
  %v96 = vadd.s32 %v81, 120
  %v97 = vadd.s32 %v81, 128
  %v98 = vadd.s32 %v81, 136
  %v99 = vadd.s32 %v81, 144
  %v100 = vadd.s32 %v81, 152
  %v101 = vadd.s32 %v81, 160
  %v102 = vadd.s32 %v81, 168
  %v103 = vadd.s32 %v81, 176
  %v104 = vadd.s32 %v81, 184
  %v105 = vadd.s32 %v81, 192
  %v106 = vadd.s32 %v81, 200
  %v107 = vadd.s32 %v81, 208
  %v108 = vadd.s32 %v81, 216
  %v109 = vadd.s32 %v81, 224
  %v110 = vadd.s32 %v81, 232
  %v111 = vadd.s32 %v81, 240
  %v112 = vadd.s32 %v81, 248
  %v113 = vadd.s32 %v81, 256
  %v114 = vadd.s32 %v81, 264
  %v115 = vadd.s32 %v81, 272
  %v116 = vadd.s32 %v81, 280
  %v117 = vadd.s32 %v81, 288
  %v118 = vadd.s32 %v81, 296
  %v119 = vadd.s32 %v81, 304
  %v120 = vadd.s32 %v81, 312
  %v121 = vadd.s32 %v81, 320
  %v122 = vadd.s32 %v81, 328
  %v123 = vadd.s32 %v81, 336
  %v124 = vadd.s32 %v81, 344
  %v125 = vadd.s32 %v81, 352
  %v126 = vadd.s32 %v81, 360
  %v127 = vadd.s32 %v81, 368
  %v128 = vadd.s32 %v81, 376
  %v129 = vadd.s32 %v81, 384
  %v130 = vadd.s32 %v81, 392
  %v131 = vadd.s32 %v81, 400
  %v132 = vadd.s32 %v81, 408
  %v133 = vadd.s32 %v81, 416
  %v134 = vadd.s32 %v81, 424
  %v135 = vadd.s32 %v81, 432
  %v136 = vadd.s32 %v81, 440
  %v137 = vadd.s32 %v81, 448
  %v138 = vadd.s32 %v81, 456
  %v139 = vadd.s32 %v81, 464
  %v140 = vadd.s32 %v81, 472
  %v141 = vadd.s32 %v81, 480
  %v142 = vadd.s32 %v81, 488
  %v143 = vadd.s32 %v81, 496
  %v144 = vadd.s32 %v81, 504
  %s145 = smul.u32 0, 512
  %v146 = vstv %s145
  %v147 = vadd.s32 %v81, %v146
  %v148 = vadd.s32 %v82, %v146
  %v149 = vadd.s32 %v83, %v146
  %v150 = vadd.s32 %v84, %v146
  %v151 = vadd.s32 %v85, %v146
  %v152 = vadd.s32 %v86, %v146
  %v153 = vadd.s32 %v87, %v146
  %v154 = vadd.s32 %v88, %v146
  %v155 = vadd.s32 %v89, %v146
  %v156 = vadd.s32 %v90, %v146
  %v157 = vadd.s32 %v91, %v146
  %v158 = vadd.s32 %v92, %v146
  %v159 = vadd.s32 %v93, %v146
  %v160 = vadd.s32 %v94, %v146
  %v161 = vadd.s32 %v95, %v146
  %v162 = vadd.s32 %v96, %v146
  %v163 = vadd.s32 %v97, %v146
  %v164 = vadd.s32 %v98, %v146
  %v165 = vadd.s32 %v99, %v146
  %v166 = vadd.s32 %v100, %v146
  %v167 = vadd.s32 %v101, %v146
  %v168 = vadd.s32 %v102, %v146
  %v169 = vadd.s32 %v103, %v146
  %v170 = vadd.s32 %v104, %v146
  %v171 = vadd.s32 %v105, %v146
  %v172 = vadd.s32 %v106, %v146
  %v173 = vadd.s32 %v107, %v146
  %v174 = vadd.s32 %v108, %v146
  %v175 = vadd.s32 %v109, %v146
  %v176 = vadd.s32 %v110, %v146
  %v177 = vadd.s32 %v111, %v146
  %v178 = vadd.s32 %v112, %v146
  %v179 = vadd.s32 %v113, %v146
  %v180 = vadd.s32 %v114, %v146
  %v181 = vadd.s32 %v115, %v146
  %v182 = vadd.s32 %v116, %v146
  %v183 = vadd.s32 %v117, %v146
  %v184 = vadd.s32 %v118, %v146
  %v185 = vadd.s32 %v119, %v146
  %v186 = vadd.s32 %v120, %v146
  %v187 = vadd.s32 %v121, %v146
  %v188 = vadd.s32 %v122, %v146
  %v189 = vadd.s32 %v123, %v146
  %v190 = vadd.s32 %v124, %v146
  %v191 = vadd.s32 %v125, %v146
  %v192 = vadd.s32 %v126, %v146
  %v193 = vadd.s32 %v127, %v146
  %v194 = vadd.s32 %v128, %v146
  %v195 = vadd.s32 %v129, %v146
  %v196 = vadd.s32 %v130, %v146
  %v197 = vadd.s32 %v131, %v146
  %v198 = vadd.s32 %v132, %v146
  %v199 = vadd.s32 %v133, %v146
  %v200 = vadd.s32 %v134, %v146
  %v201 = vadd.s32 %v135, %v146
  %v202 = vadd.s32 %v136, %v146
  %v203 = vadd.s32 %v137, %v146
  %v204 = vadd.s32 %v138, %v146
  %v205 = vadd.s32 %v139, %v146
  %v206 = vadd.s32 %v140, %v146
  %v207 = vadd.s32 %v141, %v146
  %v208 = vadd.s32 %v142, %v146
  %v209 = vadd.s32 %v143, %v146
  %v210 = vadd.s32 %v144, %v146
  %vm211 = vcmp.lt.s32.totalorder %v147, 512
  %vm212 = vcmp.lt.s32.totalorder %v148, 512
  %vm213 = vcmp.lt.s32.totalorder %v149, 512
  %vm214 = vcmp.lt.s32.totalorder %v150, 512
  %vm215 = vcmp.lt.s32.totalorder %v151, 512
  %vm216 = vcmp.lt.s32.totalorder %v152, 512
  %vm217 = vcmp.lt.s32.totalorder %v153, 512
  %vm218 = vcmp.lt.s32.totalorder %v154, 512
  %vm219 = vcmp.lt.s32.totalorder %v155, 512
  %vm220 = vcmp.lt.s32.totalorder %v156, 512
  %vm221 = vcmp.lt.s32.totalorder %v157, 512
  %vm222 = vcmp.lt.s32.totalorder %v158, 512
  %vm223 = vcmp.lt.s32.totalorder %v159, 512
  %vm224 = vcmp.lt.s32.totalorder %v160, 512
  %vm225 = vcmp.lt.s32.totalorder %v161, 512
  %vm226 = vcmp.lt.s32.totalorder %v162, 512
  %vm227 = vcmp.lt.s32.totalorder %v163, 512
  %vm228 = vcmp.lt.s32.totalorder %v164, 512
  %vm229 = vcmp.lt.s32.totalorder %v165, 512
  %vm230 = vcmp.lt.s32.totalorder %v166, 512
  %vm231 = vcmp.lt.s32.totalorder %v167, 512
  %vm232 = vcmp.lt.s32.totalorder %v168, 512
  %vm233 = vcmp.lt.s32.totalorder %v169, 512
  %vm234 = vcmp.lt.s32.totalorder %v170, 512
  %vm235 = vcmp.lt.s32.totalorder %v171, 512
  %vm236 = vcmp.lt.s32.totalorder %v172, 512
  %vm237 = vcmp.lt.s32.totalorder %v173, 512
  %vm238 = vcmp.lt.s32.totalorder %v174, 512
  %vm239 = vcmp.lt.s32.totalorder %v175, 512
  %vm240 = vcmp.lt.s32.totalorder %v176, 512
  %vm241 = vcmp.lt.s32.totalorder %v177, 512
  %vm242 = vcmp.lt.s32.totalorder %v178, 512
  %vm243 = vcmp.lt.s32.totalorder %v179, 512
  %vm244 = vcmp.lt.s32.totalorder %v180, 512
  %vm245 = vcmp.lt.s32.totalorder %v181, 512
  %vm246 = vcmp.lt.s32.totalorder %v182, 512
  %vm247 = vcmp.lt.s32.totalorder %v183, 512
  %vm248 = vcmp.lt.s32.totalorder %v184, 512
  %vm249 = vcmp.lt.s32.totalorder %v185, 512
  %vm250 = vcmp.lt.s32.totalorder %v186, 512
  %vm251 = vcmp.lt.s32.totalorder %v187, 512
  %vm252 = vcmp.lt.s32.totalorder %v188, 512
  %vm253 = vcmp.lt.s32.totalorder %v189, 512
  %vm254 = vcmp.lt.s32.totalorder %v190, 512
  %vm255 = vcmp.lt.s32.totalorder %v191, 512
  %vm256 = vcmp.lt.s32.totalorder %v192, 512
  %vm257 = vcmp.lt.s32.totalorder %v193, 512
  %vm258 = vcmp.lt.s32.totalorder %v194, 512
  %vm259 = vcmp.lt.s32.totalorder %v195, 512
  %vm260 = vcmp.lt.s32.totalorder %v196, 512
  %vm261 = vcmp.lt.s32.totalorder %v197, 512
  %vm262 = vcmp.lt.s32.totalorder %v198, 512
  %vm263 = vcmp.lt.s32.totalorder %v199, 512
  %vm264 = vcmp.lt.s32.totalorder %v200, 512
  %vm265 = vcmp.lt.s32.totalorder %v201, 512
  %vm266 = vcmp.lt.s32.totalorder %v202, 512
  %vm267 = vcmp.lt.s32.totalorder %v203, 512
  %vm268 = vcmp.lt.s32.totalorder %v204, 512
  %vm269 = vcmp.lt.s32.totalorder %v205, 512
  %vm270 = vcmp.lt.s32.totalorder %v206, 512
  %vm271 = vcmp.lt.s32.totalorder %v207, 512
  %vm272 = vcmp.lt.s32.totalorder %v208, 512
  %vm273 = vcmp.lt.s32.totalorder %v209, 512
  %vm274 = vcmp.lt.s32.totalorder %v210, 512
  %v275 = vsel %vm211, %v16, 0.0
  %v276 = vsel %vm212, %v17, 0.0
  %v277 = vsel %vm213, %v18, 0.0
  %v278 = vsel %vm214, %v19, 0.0
  %v279 = vsel %vm215, %v20, 0.0
  %v280 = vsel %vm216, %v21, 0.0
  %v281 = vsel %vm217, %v22, 0.0
  %v282 = vsel %vm218, %v23, 0.0
  %v283 = vsel %vm219, %v24, 0.0
  %v284 = vsel %vm220, %v25, 0.0
  %v285 = vsel %vm221, %v26, 0.0
  %v286 = vsel %vm222, %v27, 0.0
  %v287 = vsel %vm223, %v28, 0.0
  %v288 = vsel %vm224, %v29, 0.0
  %v289 = vsel %vm225, %v30, 0.0
  %v290 = vsel %vm226, %v31, 0.0
  %v291 = vsel %vm227, %v32, 0.0
  %v292 = vsel %vm228, %v33, 0.0
  %v293 = vsel %vm229, %v34, 0.0
  %v294 = vsel %vm230, %v35, 0.0
  %v295 = vsel %vm231, %v36, 0.0
  %v296 = vsel %vm232, %v37, 0.0
  %v297 = vsel %vm233, %v38, 0.0
  %v298 = vsel %vm234, %v39, 0.0
  %v299 = vsel %vm235, %v40, 0.0
  %v300 = vsel %vm236, %v41, 0.0
  %v301 = vsel %vm237, %v42, 0.0
  %v302 = vsel %vm238, %v43, 0.0
  %v303 = vsel %vm239, %v44, 0.0
  %v304 = vsel %vm240, %v45, 0.0
  %v305 = vsel %vm241, %v46, 0.0
  %v306 = vsel %vm242, %v47, 0.0
  %v307 = vsel %vm243, %v48, 0.0
  %v308 = vsel %vm244, %v49, 0.0
  %v309 = vsel %vm245, %v50, 0.0
  %v310 = vsel %vm246, %v51, 0.0
  %v311 = vsel %vm247, %v52, 0.0
  %v312 = vsel %vm248, %v53, 0.0
  %v313 = vsel %vm249, %v54, 0.0
  %v314 = vsel %vm250, %v55, 0.0
  %v315 = vsel %vm251, %v56, 0.0
  %v316 = vsel %vm252, %v57, 0.0
  %v317 = vsel %vm253, %v58, 0.0
  %v318 = vsel %vm254, %v59, 0.0
  %v319 = vsel %vm255, %v60, 0.0
  %v320 = vsel %vm256, %v61, 0.0
  %v321 = vsel %vm257, %v62, 0.0
  %v322 = vsel %vm258, %v63, 0.0
  %v323 = vsel %vm259, %v64, 0.0
  %v324 = vsel %vm260, %v65, 0.0
  %v325 = vsel %vm261, %v66, 0.0
  %v326 = vsel %vm262, %v67, 0.0
  %v327 = vsel %vm263, %v68, 0.0
  %v328 = vsel %vm264, %v69, 0.0
  %v329 = vsel %vm265, %v70, 0.0
  %v330 = vsel %vm266, %v71, 0.0
  %v331 = vsel %vm267, %v72, 0.0
  %v332 = vsel %vm268, %v73, 0.0
  %v333 = vsel %vm269, %v74, 0.0
  %v334 = vsel %vm270, %v75, 0.0
  %v335 = vsel %vm271, %v76, 0.0
  %v336 = vsel %vm272, %v77, 0.0
  %v337 = vsel %vm273, %v78, 0.0
  %v338 = vsel %vm274, %v79, 0.0
  %v339 = vld [vmem:[%s1] sm:$0x1]
  %v340 = vadd.f32 %v275, %v276
  %v341 = vadd.f32 %v340, %v277
  %v342 = vadd.f32 %v341, %v278
  %v343 = vadd.f32 %v342, %v279
  %v344 = vadd.f32 %v343, %v280
  %v345 = vadd.f32 %v344, %v281
  %v346 = vadd.f32 %v345, %v282
  %v347 = vadd.f32 %v346, %v283
  %v348 = vadd.f32 %v347, %v284
  %v349 = vadd.f32 %v348, %v285
  %v350 = vadd.f32 %v349, %v286
  %v351 = vadd.f32 %v350, %v287
  %v352 = vadd.f32 %v351, %v288
  %v353 = vadd.f32 %v352, %v289
  %v354 = vadd.f32 %v353, %v290
  %v355 = vadd.f32 %v354, %v291
  %v356 = vadd.f32 %v355, %v292
  %v357 = vadd.f32 %v356, %v293
  %v358 = vadd.f32 %v357, %v294
  %v359 = vadd.f32 %v358, %v295
  %v360 = vadd.f32 %v359, %v296
  %v361 = vadd.f32 %v360, %v297
  %v362 = vadd.f32 %v361, %v298
  %v363 = vadd.f32 %v362, %v299
  %v364 = vadd.f32 %v363, %v300
  %v365 = vadd.f32 %v364, %v301
  %v366 = vadd.f32 %v365, %v302
  %v367 = vadd.f32 %v366, %v303
  %v368 = vadd.f32 %v367, %v304
  %v369 = vadd.f32 %v368, %v305
  %v370 = vadd.f32 %v369, %v306
  %v371 = vadd.f32 %v370, %v307
  %v372 = vadd.f32 %v371, %v308
  %v373 = vadd.f32 %v372, %v309
  %v374 = vadd.f32 %v373, %v310
  %v375 = vadd.f32 %v374, %v311
  %v376 = vadd.f32 %v375, %v312
  %v377 = vadd.f32 %v376, %v313
  %v378 = vadd.f32 %v377, %v314
  %v379 = vadd.f32 %v378, %v315
  %v380 = vadd.f32 %v379, %v316
  %v381 = vadd.f32 %v380, %v317
  %v382 = vadd.f32 %v381, %v318
  %v383 = vadd.f32 %v382, %v319
  %v384 = vadd.f32 %v383, %v320
  %v385 = vadd.f32 %v384, %v321
  %v386 = vadd.f32 %v385, %v322
  %v387 = vadd.f32 %v386, %v323
  %v388 = vadd.f32 %v387, %v324
  %v389 = vadd.f32 %v388, %v325
  %v390 = vadd.f32 %v389, %v326
  %v391 = vadd.f32 %v390, %v327
  %v392 = vadd.f32 %v391, %v328
  %v393 = vadd.f32 %v392, %v329
  %v394 = vadd.f32 %v393, %v330
  %v395 = vadd.f32 %v394, %v331
  %v396 = vadd.f32 %v395, %v332
  %v397 = vadd.f32 %v396, %v333
  %v398 = vadd.f32 %v397, %v334
  %v399 = vadd.f32 %v398, %v335
  %v400 = vadd.f32 %v399, %v336
  %v401 = vadd.f32 %v400, %v337
  %v402 = vadd.f32 %v401, %v338
  %v403 = vrot.slane %v402, 4
  %v404 = vadd.f32 %v402, %v403
  %v405 = vrot.slane %v404, 2
  %v406 = vadd.f32 %v404, %v405
  %v407 = vrot.slane %v406, 1
  %v408 = vadd.f32 %v406, %v407
  %v409 = vadd.f32 %v339, %v408
  %410 = vst [vmem:[%s1] sm:$0x1] %v409
  %v411 = vld [vmem:[%s2] sm:$0x1]
  %v412 = vmul.f32 %v275, %v275
  %v413 = vmul.f32 %v276, %v276
  %v414 = vmul.f32 %v277, %v277
  %v415 = vmul.f32 %v278, %v278
  %v416 = vmul.f32 %v279, %v279
  %v417 = vmul.f32 %v280, %v280
  %v418 = vmul.f32 %v281, %v281
  %v419 = vmul.f32 %v282, %v282
  %v420 = vmul.f32 %v283, %v283
  %v421 = vmul.f32 %v284, %v284
  %v422 = vmul.f32 %v285, %v285
  %v423 = vmul.f32 %v286, %v286
  %v424 = vmul.f32 %v287, %v287
  %v425 = vmul.f32 %v288, %v288
  %v426 = vmul.f32 %v289, %v289
  %v427 = vmul.f32 %v290, %v290
  %v428 = vmul.f32 %v291, %v291
  %v429 = vmul.f32 %v292, %v292
  %v430 = vmul.f32 %v293, %v293
  %v431 = vmul.f32 %v294, %v294
  %v432 = vmul.f32 %v295, %v295
  %v433 = vmul.f32 %v296, %v296
  %v434 = vmul.f32 %v297, %v297
  %v435 = vmul.f32 %v298, %v298
  %v436 = vmul.f32 %v299, %v299
  %v437 = vmul.f32 %v300, %v300
  %v438 = vmul.f32 %v301, %v301
  %v439 = vmul.f32 %v302, %v302
  %v440 = vmul.f32 %v303, %v303
  %v441 = vmul.f32 %v304, %v304
  %v442 = vmul.f32 %v305, %v305
  %v443 = vmul.f32 %v306, %v306
  %v444 = vmul.f32 %v307, %v307
  %v445 = vmul.f32 %v308, %v308
  %v446 = vmul.f32 %v309, %v309
  %v447 = vmul.f32 %v310, %v310
  %v448 = vmul.f32 %v311, %v311
  %v449 = vmul.f32 %v312, %v312
  %v450 = vmul.f32 %v313, %v313
  %v451 = vmul.f32 %v314, %v314
  %v452 = vmul.f32 %v315, %v315
  %v453 = vmul.f32 %v316, %v316
  %v454 = vmul.f32 %v317, %v317
  %v455 = vmul.f32 %v318, %v318
  %v456 = vmul.f32 %v319, %v319
  %v457 = vmul.f32 %v320, %v320
  %v458 = vmul.f32 %v321, %v321
  %v459 = vmul.f32 %v322, %v322
  %v460 = vmul.f32 %v323, %v323
  %v461 = vmul.f32 %v324, %v324
  %v462 = vmul.f32 %v325, %v325
  %v463 = vmul.f32 %v326, %v326
  %v464 = vmul.f32 %v327, %v327
  %v465 = vmul.f32 %v328, %v328
  %v466 = vmul.f32 %v329, %v329
  %v467 = vmul.f32 %v330, %v330
  %v468 = vmul.f32 %v331, %v331
  %v469 = vmul.f32 %v332, %v332
  %v470 = vmul.f32 %v333, %v333
  %v471 = vmul.f32 %v334, %v334
  %v472 = vmul.f32 %v335, %v335
  %v473 = vmul.f32 %v336, %v336
  %v474 = vmul.f32 %v337, %v337
  %v475 = vmul.f32 %v338, %v338
  %v476 = vadd.f32 %v412, %v413
  %v477 = vadd.f32 %v476, %v414
  %v478 = vadd.f32 %v477, %v415
  %v479 = vadd.f32 %v478, %v416
  %v480 = vadd.f32 %v479, %v417
  %v481 = vadd.f32 %v480, %v418
  %v482 = vadd.f32 %v481, %v419
  %v483 = vadd.f32 %v482, %v420
  %v484 = vadd.f32 %v483, %v421
  %v485 = vadd.f32 %v484, %v422
  %v486 = vadd.f32 %v485, %v423
  %v487 = vadd.f32 %v486, %v424
  %v488 = vadd.f32 %v487, %v425
  %v489 = vadd.f32 %v488, %v426
  %v490 = vadd.f32 %v489, %v427
  %v491 = vadd.f32 %v490, %v428
  %v492 = vadd.f32 %v491, %v429
  %v493 = vadd.f32 %v492, %v430
  %v494 = vadd.f32 %v493, %v431
  %v495 = vadd.f32 %v494, %v432
  %v496 = vadd.f32 %v495, %v433
  %v497 = vadd.f32 %v496, %v434
  %v498 = vadd.f32 %v497, %v435
  %v499 = vadd.f32 %v498, %v436
  %v500 = vadd.f32 %v499, %v437
  %v501 = vadd.f32 %v500, %v438
  %v502 = vadd.f32 %v501, %v439
  %v503 = vadd.f32 %v502, %v440
  %v504 = vadd.f32 %v503, %v441
  %v505 = vadd.f32 %v504, %v442
  %v506 = vadd.f32 %v505, %v443
  %v507 = vadd.f32 %v506, %v444
  %v508 = vadd.f32 %v507, %v445
  %v509 = vadd.f32 %v508, %v446
  %v510 = vadd.f32 %v509, %v447
  %v511 = vadd.f32 %v510, %v448
  %v512 = vadd.f32 %v511, %v449
  %v513 = vadd.f32 %v512, %v450
  %v514 = vadd.f32 %v513, %v451
  %v515 = vadd.f32 %v514, %v452
  %v516 = vadd.f32 %v515, %v453
  %v517 = vadd.f32 %v516, %v454
  %v518 = vadd.f32 %v517, %v455
  %v519 = vadd.f32 %v518, %v456
  %v520 = vadd.f32 %v519, %v457
  %v521 = vadd.f32 %v520, %v458
  %v522 = vadd.f32 %v521, %v459
  %v523 = vadd.f32 %v522, %v460
  %v524 = vadd.f32 %v523, %v461
  %v525 = vadd.f32 %v524, %v462
  %v526 = vadd.f32 %v525, %v463
  %v527 = vadd.f32 %v526, %v464
  %v528 = vadd.f32 %v527, %v465
  %v529 = vadd.f32 %v528, %v466
  %v530 = vadd.f32 %v529, %v467
  %v531 = vadd.f32 %v530, %v468
  %v532 = vadd.f32 %v531, %v469
  %v533 = vadd.f32 %v532, %v470
  %v534 = vadd.f32 %v533, %v471
  %v535 = vadd.f32 %v534, %v472
  %v536 = vadd.f32 %v535, %v473
  %v537 = vadd.f32 %v536, %v474
  %v538 = vadd.f32 %v537, %v475
  %v539 = vrot.slane %v538, 4
  %v540 = vadd.f32 %v538, %v539
  %v541 = vrot.slane %v540, 2
  %v542 = vadd.f32 %v540, %v541
  %v543 = vrot.slane %v542, 1
  %v544 = vadd.f32 %v542, %v543
  %v545 = vadd.f32 %v411, %v544
  %546 = vst [vmem:[%s2] sm:$0x1] %v545
  // Predicated region
  $region10: #{residual_forward.4} parent=0 // pred_check
    _
  $region11: #{residual_forward.4} parent=0 // pred_check_branch
    %548 = sbr.rel (0) target = $region13
  $region12: #{residual_forward.4} parent=0 // pred_region
    _
  $region13: #{residual_forward.4} parent=0 // pred_fallthru
    _
  // Predicated region
  $region14: #{residual_forward.4} parent=0 // pred_check
    _
  $region15: #{residual_forward.4} parent=0 // pred_check_branch
    %550 = sbr.rel (0) target = $region17
  $region16: #{residual_forward.4} parent=0 // pred_region
    _
  $region17: #{residual_forward.4} parent=0 // pred_fallthru
    _
  // Predicated region
  $region18: #{residual_forward.4} parent=0 // pred_check
    _
  $region19: #{residual_forward.4} parent=0 // pred_check_branch
    %552 = sbr.rel (0) target = $region21
  $region20: #{residual_forward.4} parent=0 // pred_region
    _
  $region21: #{residual_forward.4} parent=0 // pred_fallthru
    _
  // Predicated region
  $region22: #{residual_forward.4} parent=0 // pred_check
    _
  $region23: #{residual_forward.4} parent=0 // pred_check_branch
    %554 = sbr.rel (0) target = $region25
  $region24: #{residual_forward.4} parent=0 // pred_region
    _
  $region25: #{residual_forward.4} parent=0 // pred_fallthru
    _

// kernel: residual_forward.6
$region0: #{residual_forward.6}
  #allocation0 [shape = 'u32[]', space=smem, size = 0x4, offset = 0x4, fixed_abs, tag = 'smem constant byte address 0x4 - core index']
  #allocation1 [shape = 'u32[72,128]{1,0:T(1,128)}', space=vmem, size = 0x9000, scoped, tag = 'internal scratch']
  %s0 = inlined_call_operand.vmem [shape: bf16[512,128], index: 0, kind: input, shape index: {}]
  %s1 = inlined_call_operand.vmem [shape: f32[1,128], index: 1, kind: output, shape index: {0}]
  %s2 = inlined_call_operand.vmem [shape: f32[1,128], index: 2, kind: output, shape index: {1}]
  %3 = xla_tuple %s1, %s2
  %s4 = sld [smem:[#allocation0]]
  $region26: #{residual_forward.6} parent=0
    _
  %s6 = ssub.s32 1, %s4
  %s7 = scalar_select 0, %s6, %s4
  // Predicated region
  $region2: #{residual_forward.6} parent=0 // pred_check
    _
  $region3: #{residual_forward.6} parent=0 // pred_check_branch
    %9 = sbr.rel (0) target = $region5
  $region4: #{residual_forward.6} parent=0 // pred_region
    _
  $region5: #{residual_forward.6} parent=0 // pred_fallthru
    _
  %p10 = scmp.eq.s32.totalorder 0, 0
  // Predicated region
  $region6: #{residual_forward.6} parent=0 // pred_check
    %p11 = pneg %p10
  $region7: #{residual_forward.6} parent=0 // pred_check_branch
    %13 = sbr.rel (%p11) target = $region9
  $region8: #{residual_forward.6} parent=0 // pred_region
    %14 = vst [vmem:[%s1] sm:$0x1] 0.0
    %15 = vst [vmem:[%s2] sm:$0x1] 0.0
  $region9: #{residual_forward.6} parent=0 // pred_fallthru
    _
  %v16 = vld [vmem:[%s0] sm:$0xf]
  %v17 = vld [vmem:[%s0 + $0x4] sm:$0xf]
  %v18 = vld [vmem:[%s0 + $0x8] sm:$0xf]
  %v19 = vld [vmem:[%s0 + $0xc] sm:$0xf]
  %v20 = vld [vmem:[%s0 + $0x10] sm:$0xf]
  %v21 = vld [vmem:[%s0 + $0x14] sm:$0xf]
  %v22 = vld [vmem:[%s0 + $0x18] sm:$0xf]
  %v23 = vld [vmem:[%s0 + $0x1c] sm:$0xf]
  %v24 = vld [vmem:[%s0 + $0x20] sm:$0xf]
  %v25 = vld [vmem:[%s0 + $0x24] sm:$0xf]
  %v26 = vld [vmem:[%s0 + $0x28] sm:$0xf]
  %v27 = vld [vmem:[%s0 + $0x2c] sm:$0xf]
  %v28 = vld [vmem:[%s0 + $0x30] sm:$0xf]
  %v29 = vld [vmem:[%s0 + $0x34] sm:$0xf]
  %v30 = vld [vmem:[%s0 + $0x38] sm:$0xf]
  %v31 = vld [vmem:[%s0 + $0x3c] sm:$0xf]
  %v32 = vld [vmem:[%s0 + $0x40] sm:$0xf]
  %v33 = vld [vmem:[%s0 + $0x44] sm:$0xf]
  %v34 = vld [vmem:[%s0 + $0x48] sm:$0xf]
  %v35 = vld [vmem:[%s0 + $0x4c] sm:$0xf]
  %v36 = vld [vmem:[%s0 + $0x50] sm:$0xf]
  %v37 = vld [vmem:[%s0 + $0x54] sm:$0xf]
  %v38 = vld [vmem:[%s0 + $0x58] sm:$0xf]
  %v39 = vld [vmem:[%s0 + $0x5c] sm:$0xf]
  %v40 = vld [vmem:[%s0 + $0x60] sm:$0xf]
  %v41 = vld [vmem:[%s0 + $0x64] sm:$0xf]
  %v42 = vld [vmem:[%s0 + $0x68] sm:$0xf]
  %v43 = vld [vmem:[%s0 + $0x6c] sm:$0xf]
  %v44 = vld [vmem:[%s0 + $0x70] sm:$0xf]
  %v45 = vld [vmem:[%s0 + $0x74] sm:$0xf]
  %v46 = vld [vmem:[%s0 + $0x78] sm:$0xf]
  %v47 = vld [vmem:[%s0 + $0x7c] sm:$0xf]
  %v48 = vld [vmem:[%s0 + $0x80] sm:$0xf]
  %v49 = vld [vmem:[%s0 + $0x84] sm:$0xf]
  %v50 = vld [vmem:[%s0 + $0x88] sm:$0xf]
  %v51 = vld [vmem:[%s0 + $0x8c] sm:$0xf]
  %v52 = vld [vmem:[%s0 + $0x90] sm:$0xf]
  %v53 = vld [vmem:[%s0 + $0x94] sm:$0xf]
  %v54 = vld [vmem:[%s0 + $0x98] sm:$0xf]
  %v55 = vld [vmem:[%s0 + $0x9c] sm:$0xf]
  %v56 = vld [vmem:[%s0 + $0xa0] sm:$0xf]
  %v57 = vld [vmem:[%s0 + $0xa4] sm:$0xf]
  %v58 = vld [vmem:[%s0 + $0xa8] sm:$0xf]
  %v59 = vld [vmem:[%s0 + $0xac] sm:$0xf]
  %v60 = vld [vmem:[%s0 + $0xb0] sm:$0xf]
  %v61 = vld [vmem:[%s0 + $0xb4] sm:$0xf]
  %v62 = vld [vmem:[%s0 + $0xb8] sm:$0xf]
  %v63 = vld [vmem:[%s0 + $0xbc] sm:$0xf]
  %v64 = vld [vmem:[%s0 + $0xc0] sm:$0xf]
  %v65 = vld [vmem:[%s0 + $0xc4] sm:$0xf]
  %v66 = vld [vmem:[%s0 + $0xc8] sm:$0xf]
  %v67 = vld [vmem:[%s0 + $0xcc] sm:$0xf]
  %v68 = vld [vmem:[%s0 + $0xd0] sm:$0xf]
  %v69 = vld [vmem:[%s0 + $0xd4] sm:$0xf]
  %v70 = vld [vmem:[%s0 + $0xd8] sm:$0xf]
  %v71 = vld [vmem:[%s0 + $0xdc] sm:$0xf]
  %v72 = vld [vmem:[%s0 + $0xe0] sm:$0xf]
  %v73 = vld [vmem:[%s0 + $0xe4] sm:$0xf]
  %v74 = vld [vmem:[%s0 + $0xe8] sm:$0xf]
  %v75 = vld [vmem:[%s0 + $0xec] sm:$0xf]
  %v76 = vld [vmem:[%s0 + $0xf0] sm:$0xf]
  %v77 = vld [vmem:[%s0 + $0xf4] sm:$0xf]
  %v78 = vld [vmem:[%s0 + $0xf8] sm:$0xf]
  %v79 = vld [vmem:[%s0 + $0xfc] sm:$0xf]
  %v80 = vunpack.c.l.bf16 %v16
  %v81 = vunpack.c.l.bf16 %v17
  %v82 = vunpack.c.l.bf16 %v18
  %v83 = vunpack.c.l.bf16 %v19
  %v84 = vunpack.c.l.bf16 %v20
  %v85 = vunpack.c.l.bf16 %v21
  %v86 = vunpack.c.l.bf16 %v22
  %v87 = vunpack.c.l.bf16 %v23
  %v88 = vunpack.c.l.bf16 %v24
  %v89 = vunpack.c.l.bf16 %v25
  %v90 = vunpack.c.l.bf16 %v26
  %v91 = vunpack.c.l.bf16 %v27
  %v92 = vunpack.c.l.bf16 %v28
  %v93 = vunpack.c.l.bf16 %v29
  %v94 = vunpack.c.l.bf16 %v30
  %v95 = vunpack.c.l.bf16 %v31
  %v96 = vunpack.c.l.bf16 %v32
  %v97 = vunpack.c.l.bf16 %v33
  %v98 = vunpack.c.l.bf16 %v34
  %v99 = vunpack.c.l.bf16 %v35
  %v100 = vunpack.c.l.bf16 %v36
  %v101 = vunpack.c.l.bf16 %v37
  %v102 = vunpack.c.l.bf16 %v38
  %v103 = vunpack.c.l.bf16 %v39
  %v104 = vunpack.c.l.bf16 %v40
  %v105 = vunpack.c.l.bf16 %v41
  %v106 = vunpack.c.l.bf16 %v42
  %v107 = vunpack.c.l.bf16 %v43
  %v108 = vunpack.c.l.bf16 %v44
  %v109 = vunpack.c.l.bf16 %v45
  %v110 = vunpack.c.l.bf16 %v46
  %v111 = vunpack.c.l.bf16 %v47
  %v112 = vunpack.c.l.bf16 %v48
  %v113 = vunpack.c.l.bf16 %v49
  %v114 = vunpack.c.l.bf16 %v50
  %v115 = vunpack.c.l.bf16 %v51
  %v116 = vunpack.c.l.bf16 %v52
  %v117 = vunpack.c.l.bf16 %v53
  %v118 = vunpack.c.l.bf16 %v54
  %v119 = vunpack.c.l.bf16 %v55
  %v120 = vunpack.c.l.bf16 %v56
  %v121 = vunpack.c.l.bf16 %v57
  %v122 = vunpack.c.l.bf16 %v58
  %v123 = vunpack.c.l.bf16 %v59
  %v124 = vunpack.c.l.bf16 %v60
  %v125 = vunpack.c.l.bf16 %v61
  %v126 = vunpack.c.l.bf16 %v62
  %v127 = vunpack.c.l.bf16 %v63
  %v128 = vunpack.c.l.bf16 %v64
  %v129 = vunpack.c.l.bf16 %v65
  %v130 = vunpack.c.l.bf16 %v66
  %v131 = vunpack.c.l.bf16 %v67
  %v132 = vunpack.c.l.bf16 %v68
  %v133 = vunpack.c.l.bf16 %v69
  %v134 = vunpack.c.l.bf16 %v70
  %v135 = vunpack.c.l.bf16 %v71
  %v136 = vunpack.c.l.bf16 %v72
  %v137 = vunpack.c.l.bf16 %v73
  %v138 = vunpack.c.l.bf16 %v74
  %v139 = vunpack.c.l.bf16 %v75
  %v140 = vunpack.c.l.bf16 %v76
  %v141 = vunpack.c.l.bf16 %v77
  %v142 = vunpack.c.l.bf16 %v78
  %v143 = vunpack.c.l.bf16 %v79
  %v144 = vlaneseq
  %v145 = vshrl.u32 %v144, 7
  %v146 = vadd.s32 %v145, 8
  %v147 = vadd.s32 %v145, 16
  %v148 = vadd.s32 %v145, 24
  %v149 = vadd.s32 %v145, 32
  %v150 = vadd.s32 %v145, 40
  %v151 = vadd.s32 %v145, 48
  %v152 = vadd.s32 %v145, 56
  %v153 = vadd.s32 %v145, 64
  %v154 = vadd.s32 %v145, 72
  %v155 = vadd.s32 %v145, 80
  %v156 = vadd.s32 %v145, 88
  %v157 = vadd.s32 %v145, 96
  %v158 = vadd.s32 %v145, 104
  %v159 = vadd.s32 %v145, 112
  %v160 = vadd.s32 %v145, 120
  %v161 = vadd.s32 %v145, 128
  %v162 = vadd.s32 %v145, 136
  %v163 = vadd.s32 %v145, 144
  %v164 = vadd.s32 %v145, 152
  %v165 = vadd.s32 %v145, 160
  %v166 = vadd.s32 %v145, 168
  %v167 = vadd.s32 %v145, 176
  %v168 = vadd.s32 %v145, 184
  %v169 = vadd.s32 %v145, 192
  %v170 = vadd.s32 %v145, 200
  %v171 = vadd.s32 %v145, 208
  %v172 = vadd.s32 %v145, 216
  %v173 = vadd.s32 %v145, 224
  %v174 = vadd.s32 %v145, 232
  %v175 = vadd.s32 %v145, 240
  %v176 = vadd.s32 %v145, 248
  %v177 = vadd.s32 %v145, 256
  %v178 = vadd.s32 %v145, 264
  %v179 = vadd.s32 %v145, 272
  %v180 = vadd.s32 %v145, 280
  %v181 = vadd.s32 %v145, 288
  %v182 = vadd.s32 %v145, 296
  %v183 = vadd.s32 %v145, 304
  %v184 = vadd.s32 %v145, 312
  %v185 = vadd.s32 %v145, 320
  %v186 = vadd.s32 %v145, 328
  %v187 = vadd.s32 %v145, 336
  %v188 = vadd.s32 %v145, 344
  %v189 = vadd.s32 %v145, 352
  %v190 = vadd.s32 %v145, 360
  %v191 = vadd.s32 %v145, 368
  %v192 = vadd.s32 %v145, 376
  %v193 = vadd.s32 %v145, 384
  %v194 = vadd.s32 %v145, 392
  %v195 = vadd.s32 %v145, 400
  %v196 = vadd.s32 %v145, 408
  %v197 = vadd.s32 %v145, 416
  %v198 = vadd.s32 %v145, 424
  %v199 = vadd.s32 %v145, 432
  %v200 = vadd.s32 %v145, 440
  %v201 = vadd.s32 %v145, 448
  %v202 = vadd.s32 %v145, 456
  %v203 = vadd.s32 %v145, 464
  %v204 = vadd.s32 %v145, 472
  %v205 = vadd.s32 %v145, 480
  %v206 = vadd.s32 %v145, 488
  %v207 = vadd.s32 %v145, 496
  %v208 = vadd.s32 %v145, 504
  %s209 = smul.u32 0, 512
  %v210 = vstv %s209
  %v211 = vadd.s32 %v145, %v210
  %v212 = vadd.s32 %v146, %v210
  %v213 = vadd.s32 %v147, %v210
  %v214 = vadd.s32 %v148, %v210
  %v215 = vadd.s32 %v149, %v210
  %v216 = vadd.s32 %v150, %v210
  %v217 = vadd.s32 %v151, %v210
  %v218 = vadd.s32 %v152, %v210
  %v219 = vadd.s32 %v153, %v210
  %v220 = vadd.s32 %v154, %v210
  %v221 = vadd.s32 %v155, %v210
  %v222 = vadd.s32 %v156, %v210
  %v223 = vadd.s32 %v157, %v210
  %v224 = vadd.s32 %v158, %v210
  %v225 = vadd.s32 %v159, %v210
  %v226 = vadd.s32 %v160, %v210
  %v227 = vadd.s32 %v161, %v210
  %v228 = vadd.s32 %v162, %v210
  %v229 = vadd.s32 %v163, %v210
  %v230 = vadd.s32 %v164, %v210
  %v231 = vadd.s32 %v165, %v210
  %v232 = vadd.s32 %v166, %v210
  %v233 = vadd.s32 %v167, %v210
  %v234 = vadd.s32 %v168, %v210
  %v235 = vadd.s32 %v169, %v210
  %v236 = vadd.s32 %v170, %v210
  %v237 = vadd.s32 %v171, %v210
  %v238 = vadd.s32 %v172, %v210
  %v239 = vadd.s32 %v173, %v210
  %v240 = vadd.s32 %v174, %v210
  %v241 = vadd.s32 %v175, %v210
  %v242 = vadd.s32 %v176, %v210
  %v243 = vadd.s32 %v177, %v210
  %v244 = vadd.s32 %v178, %v210
  %v245 = vadd.s32 %v179, %v210
  %v246 = vadd.s32 %v180, %v210
  %v247 = vadd.s32 %v181, %v210
  %v248 = vadd.s32 %v182, %v210
  %v249 = vadd.s32 %v183, %v210
  %v250 = vadd.s32 %v184, %v210
  %v251 = vadd.s32 %v185, %v210
  %v252 = vadd.s32 %v186, %v210
  %v253 = vadd.s32 %v187, %v210
  %v254 = vadd.s32 %v188, %v210
  %v255 = vadd.s32 %v189, %v210
  %v256 = vadd.s32 %v190, %v210
  %v257 = vadd.s32 %v191, %v210
  %v258 = vadd.s32 %v192, %v210
  %v259 = vadd.s32 %v193, %v210
  %v260 = vadd.s32 %v194, %v210
  %v261 = vadd.s32 %v195, %v210
  %v262 = vadd.s32 %v196, %v210
  %v263 = vadd.s32 %v197, %v210
  %v264 = vadd.s32 %v198, %v210
  %v265 = vadd.s32 %v199, %v210
  %v266 = vadd.s32 %v200, %v210
  %v267 = vadd.s32 %v201, %v210
  %v268 = vadd.s32 %v202, %v210
  %v269 = vadd.s32 %v203, %v210
  %v270 = vadd.s32 %v204, %v210
  %v271 = vadd.s32 %v205, %v210
  %v272 = vadd.s32 %v206, %v210
  %v273 = vadd.s32 %v207, %v210
  %v274 = vadd.s32 %v208, %v210
  %vm275 = vcmp.lt.s32.totalorder %v211, 512
  %vm276 = vcmp.lt.s32.totalorder %v212, 512
  %vm277 = vcmp.lt.s32.totalorder %v213, 512
  %vm278 = vcmp.lt.s32.totalorder %v214, 512
  %vm279 = vcmp.lt.s32.totalorder %v215, 512
  %vm280 = vcmp.lt.s32.totalorder %v216, 512
  %vm281 = vcmp.lt.s32.totalorder %v217, 512
  %vm282 = vcmp.lt.s32.totalorder %v218, 512
  %vm283 = vcmp.lt.s32.totalorder %v219, 512
  %vm284 = vcmp.lt.s32.totalorder %v220, 512
  %vm285 = vcmp.lt.s32.totalorder %v221, 512
  %vm286 = vcmp.lt.s32.totalorder %v222, 512
  %vm287 = vcmp.lt.s32.totalorder %v223, 512
  %vm288 = vcmp.lt.s32.totalorder %v224, 512
  %vm289 = vcmp.lt.s32.totalorder %v225, 512
  %vm290 = vcmp.lt.s32.totalorder %v226, 512
  %vm291 = vcmp.lt.s32.totalorder %v227, 512
  %vm292 = vcmp.lt.s32.totalorder %v228, 512
  %vm293 = vcmp.lt.s32.totalorder %v229, 512
  %vm294 = vcmp.lt.s32.totalorder %v230, 512
  %vm295 = vcmp.lt.s32.totalorder %v231, 512
  %vm296 = vcmp.lt.s32.totalorder %v232, 512
  %vm297 = vcmp.lt.s32.totalorder %v233, 512
  %vm298 = vcmp.lt.s32.totalorder %v234, 512
  %vm299 = vcmp.lt.s32.totalorder %v235, 512
  %vm300 = vcmp.lt.s32.totalorder %v236, 512
  %vm301 = vcmp.lt.s32.totalorder %v237, 512
  %vm302 = vcmp.lt.s32.totalorder %v238, 512
  %vm303 = vcmp.lt.s32.totalorder %v239, 512
  %vm304 = vcmp.lt.s32.totalorder %v240, 512
  %vm305 = vcmp.lt.s32.totalorder %v241, 512
  %vm306 = vcmp.lt.s32.totalorder %v242, 512
  %vm307 = vcmp.lt.s32.totalorder %v243, 512
  %vm308 = vcmp.lt.s32.totalorder %v244, 512
  %vm309 = vcmp.lt.s32.totalorder %v245, 512
  %vm310 = vcmp.lt.s32.totalorder %v246, 512
  %vm311 = vcmp.lt.s32.totalorder %v247, 512
  %vm312 = vcmp.lt.s32.totalorder %v248, 512
  %vm313 = vcmp.lt.s32.totalorder %v249, 512
  %vm314 = vcmp.lt.s32.totalorder %v250, 512
  %vm315 = vcmp.lt.s32.totalorder %v251, 512
  %vm316 = vcmp.lt.s32.totalorder %v252, 512
  %vm317 = vcmp.lt.s32.totalorder %v253, 512
  %vm318 = vcmp.lt.s32.totalorder %v254, 512
  %vm319 = vcmp.lt.s32.totalorder %v255, 512
  %vm320 = vcmp.lt.s32.totalorder %v256, 512
  %vm321 = vcmp.lt.s32.totalorder %v257, 512
  %vm322 = vcmp.lt.s32.totalorder %v258, 512
  %vm323 = vcmp.lt.s32.totalorder %v259, 512
  %vm324 = vcmp.lt.s32.totalorder %v260, 512
  %vm325 = vcmp.lt.s32.totalorder %v261, 512
  %vm326 = vcmp.lt.s32.totalorder %v262, 512
  %vm327 = vcmp.lt.s32.totalorder %v263, 512
  %vm328 = vcmp.lt.s32.totalorder %v264, 512
  %vm329 = vcmp.lt.s32.totalorder %v265, 512
  %vm330 = vcmp.lt.s32.totalorder %v266, 512
  %vm331 = vcmp.lt.s32.totalorder %v267, 512
  %vm332 = vcmp.lt.s32.totalorder %v268, 512
  %vm333 = vcmp.lt.s32.totalorder %v269, 512
  %vm334 = vcmp.lt.s32.totalorder %v270, 512
  %vm335 = vcmp.lt.s32.totalorder %v271, 512
  %vm336 = vcmp.lt.s32.totalorder %v272, 512
  %vm337 = vcmp.lt.s32.totalorder %v273, 512
  %vm338 = vcmp.lt.s32.totalorder %v274, 512
  %v339 = vsel %vm275, %v80, 0.0
  %v340 = vsel %vm276, %v81, 0.0
  %v341 = vsel %vm277, %v82, 0.0
  %v342 = vsel %vm278, %v83, 0.0
  %v343 = vsel %vm279, %v84, 0.0
  %v344 = vsel %vm280, %v85, 0.0
  %v345 = vsel %vm281, %v86, 0.0
  %v346 = vsel %vm282, %v87, 0.0
  %v347 = vsel %vm283, %v88, 0.0
  %v348 = vsel %vm284, %v89, 0.0
  %v349 = vsel %vm285, %v90, 0.0
  %v350 = vsel %vm286, %v91, 0.0
  %v351 = vsel %vm287, %v92, 0.0
  %v352 = vsel %vm288, %v93, 0.0
  %v353 = vsel %vm289, %v94, 0.0
  %v354 = vsel %vm290, %v95, 0.0
  %v355 = vsel %vm291, %v96, 0.0
  %v356 = vsel %vm292, %v97, 0.0
  %v357 = vsel %vm293, %v98, 0.0
  %v358 = vsel %vm294, %v99, 0.0
  %v359 = vsel %vm295, %v100, 0.0
  %v360 = vsel %vm296, %v101, 0.0
  %v361 = vsel %vm297, %v102, 0.0
  %v362 = vsel %vm298, %v103, 0.0
  %v363 = vsel %vm299, %v104, 0.0
  %v364 = vsel %vm300, %v105, 0.0
  %v365 = vsel %vm301, %v106, 0.0
  %v366 = vsel %vm302, %v107, 0.0
  %v367 = vsel %vm303, %v108, 0.0
  %v368 = vsel %vm304, %v109, 0.0
  %v369 = vsel %vm305, %v110, 0.0
  %v370 = vsel %vm306, %v111, 0.0
  %v371 = vsel %vm307, %v112, 0.0
  %v372 = vsel %vm308, %v113, 0.0
  %v373 = vsel %vm309, %v114, 0.0
  %v374 = vsel %vm310, %v115, 0.0
  %v375 = vsel %vm311, %v116, 0.0
  %v376 = vsel %vm312, %v117, 0.0
  %v377 = vsel %vm313, %v118, 0.0
  %v378 = vsel %vm314, %v119, 0.0
  %v379 = vsel %vm315, %v120, 0.0
  %v380 = vsel %vm316, %v121, 0.0
  %v381 = vsel %vm317, %v122, 0.0
  %v382 = vsel %vm318, %v123, 0.0
  %v383 = vsel %vm319, %v124, 0.0
  %v384 = vsel %vm320, %v125, 0.0
  %v385 = vsel %vm321, %v126, 0.0
  %v386 = vsel %vm322, %v127, 0.0
  %v387 = vsel %vm323, %v128, 0.0
  %v388 = vsel %vm324, %v129, 0.0
  %v389 = vsel %vm325, %v130, 0.0
  %v390 = vsel %vm326, %v131, 0.0
  %v391 = vsel %vm327, %v132, 0.0
  %v392 = vsel %vm328, %v133, 0.0
  %v393 = vsel %vm329, %v134, 0.0
  %v394 = vsel %vm330, %v135, 0.0
  %v395 = vsel %vm331, %v136, 0.0
  %v396 = vsel %vm332, %v137, 0.0
  %v397 = vsel %vm333, %v138, 0.0
  %v398 = vsel %vm334, %v139, 0.0
  %v399 = vsel %vm335, %v140, 0.0
  %v400 = vsel %vm336, %v141, 0.0
  %v401 = vsel %vm337, %v142, 0.0
  %v402 = vsel %vm338, %v143, 0.0
  %v403 = vld [vmem:[%s1] sm:$0x1]
  %v404 = vadd.f32 %v339, %v340
  %v405 = vadd.f32 %v404, %v341
  %v406 = vadd.f32 %v405, %v342
  %v407 = vadd.f32 %v406, %v343
  %v408 = vadd.f32 %v407, %v344
  %v409 = vadd.f32 %v408, %v345
  %v410 = vadd.f32 %v409, %v346
  %v411 = vadd.f32 %v410, %v347
  %v412 = vadd.f32 %v411, %v348
  %v413 = vadd.f32 %v412, %v349
  %v414 = vadd.f32 %v413, %v350
  %v415 = vadd.f32 %v414, %v351
  %v416 = vadd.f32 %v415, %v352
  %v417 = vadd.f32 %v416, %v353
  %v418 = vadd.f32 %v417, %v354
  %v419 = vadd.f32 %v418, %v355
  %v420 = vadd.f32 %v419, %v356
  %v421 = vadd.f32 %v420, %v357
  %v422 = vadd.f32 %v421, %v358
  %v423 = vadd.f32 %v422, %v359
  %v424 = vadd.f32 %v423, %v360
  %v425 = vadd.f32 %v424, %v361
  %v426 = vadd.f32 %v425, %v362
  %v427 = vadd.f32 %v426, %v363
  %v428 = vadd.f32 %v427, %v364
  %v429 = vadd.f32 %v428, %v365
  %v430 = vadd.f32 %v429, %v366
  %v431 = vadd.f32 %v430, %v367
  %v432 = vadd.f32 %v431, %v368
  %v433 = vadd.f32 %v432, %v369
  %v434 = vadd.f32 %v433, %v370
  %v435 = vadd.f32 %v434, %v371
  %v436 = vadd.f32 %v435, %v372
  %v437 = vadd.f32 %v436, %v373
  %v438 = vadd.f32 %v437, %v374
  %v439 = vadd.f32 %v438, %v375
  %v440 = vadd.f32 %v439, %v376
  %v441 = vadd.f32 %v440, %v377
  %v442 = vadd.f32 %v441, %v378
  %v443 = vadd.f32 %v442, %v379
  %v444 = vadd.f32 %v443, %v380
  %v445 = vadd.f32 %v444, %v381
  %v446 = vadd.f32 %v445, %v382
  %v447 = vadd.f32 %v446, %v383
  %v448 = vadd.f32 %v447, %v384
  %v449 = vadd.f32 %v448, %v385
  %v450 = vadd.f32 %v449, %v386
  %v451 = vadd.f32 %v450, %v387
  %v452 = vadd.f32 %v451, %v388
  %v453 = vadd.f32 %v452, %v389
  %v454 = vadd.f32 %v453, %v390
  %v455 = vadd.f32 %v454, %v391
  %v456 = vadd.f32 %v455, %v392
  %v457 = vadd.f32 %v456, %v393
  %v458 = vadd.f32 %v457, %v394
  %v459 = vadd.f32 %v458, %v395
  %v460 = vadd.f32 %v459, %v396
  %v461 = vadd.f32 %v460, %v397
  %v462 = vadd.f32 %v461, %v398
  %v463 = vadd.f32 %v462, %v399
  %v464 = vadd.f32 %v463, %v400
  %v465 = vadd.f32 %v464, %v401
  %v466 = vadd.f32 %v465, %v402
  %v467 = vrot.slane %v466, 4
  %v468 = vadd.f32 %v466, %v467
  %v469 = vrot.slane %v468, 2
  %v470 = vadd.f32 %v468, %v469
  %v471 = vrot.slane %v470, 1
  %v472 = vadd.f32 %v470, %v471
  %v473 = vadd.f32 %v403, %v472
  %474 = vst [vmem:[%s1] sm:$0x1] %v473
  %v475 = vld [vmem:[%s2] sm:$0x1]
  %v476 = vmul.f32 %v339, %v339
  %v477 = vmul.f32 %v340, %v340
  %v478 = vmul.f32 %v341, %v341
  %v479 = vmul.f32 %v342, %v342
  %v480 = vmul.f32 %v343, %v343
  %v481 = vmul.f32 %v344, %v344
  %v482 = vmul.f32 %v345, %v345
  %v483 = vmul.f32 %v346, %v346
  %v484 = vmul.f32 %v347, %v347
  %v485 = vmul.f32 %v348, %v348
  %v486 = vmul.f32 %v349, %v349
  %v487 = vmul.f32 %v350, %v350
  %v488 = vmul.f32 %v351, %v351
  %v489 = vmul.f32 %v352, %v352
  %v490 = vmul.f32 %v353, %v353
  %v491 = vmul.f32 %v354, %v354
  %v492 = vmul.f32 %v355, %v355
  %v493 = vmul.f32 %v356, %v356
  %v494 = vmul.f32 %v357, %v357
  %v495 = vmul.f32 %v358, %v358
  %v496 = vmul.f32 %v359, %v359
  %v497 = vmul.f32 %v360, %v360
  %v498 = vmul.f32 %v361, %v361
  %v499 = vmul.f32 %v362, %v362
  %v500 = vmul.f32 %v363, %v363
  %v501 = vmul.f32 %v364, %v364
  %v502 = vmul.f32 %v365, %v365
  %v503 = vmul.f32 %v366, %v366
  %v504 = vmul.f32 %v367, %v367
  %v505 = vmul.f32 %v368, %v368
  %v506 = vmul.f32 %v369, %v369
  %v507 = vmul.f32 %v370, %v370
  %v508 = vmul.f32 %v371, %v371
  %v509 = vmul.f32 %v372, %v372
  %v510 = vmul.f32 %v373, %v373
  %v511 = vmul.f32 %v374, %v374
  %v512 = vmul.f32 %v375, %v375
  %v513 = vmul.f32 %v376, %v376
  %v514 = vmul.f32 %v377, %v377
  %v515 = vmul.f32 %v378, %v378
  %v516 = vmul.f32 %v379, %v379
  %v517 = vmul.f32 %v380, %v380
  %v518 = vmul.f32 %v381, %v381
  %v519 = vmul.f32 %v382, %v382
  %v520 = vmul.f32 %v383, %v383
  %v521 = vmul.f32 %v384, %v384
  %v522 = vmul.f32 %v385, %v385
  %v523 = vmul.f32 %v386, %v386
  %v524 = vmul.f32 %v387, %v387
  %v525 = vmul.f32 %v388, %v388
  %v526 = vmul.f32 %v389, %v389
  %v527 = vmul.f32 %v390, %v390
  %v528 = vmul.f32 %v391, %v391
  %v529 = vmul.f32 %v392, %v392
  %v530 = vmul.f32 %v393, %v393
  %v531 = vmul.f32 %v394, %v394
  %v532 = vmul.f32 %v395, %v395
  %v533 = vmul.f32 %v396, %v396
  %v534 = vmul.f32 %v397, %v397
  %v535 = vmul.f32 %v398, %v398
  %v536 = vmul.f32 %v399, %v399
  %v537 = vmul.f32 %v400, %v400
  %v538 = vmul.f32 %v401, %v401
  %v539 = vmul.f32 %v402, %v402
  %v540 = vadd.f32 %v476, %v477
  %v541 = vadd.f32 %v540, %v478
  %v542 = vadd.f32 %v541, %v479
  %v543 = vadd.f32 %v542, %v480
  %v544 = vadd.f32 %v543, %v481
  %v545 = vadd.f32 %v544, %v482
  %v546 = vadd.f32 %v545, %v483
  %v547 = vadd.f32 %v546, %v484
  %v548 = vadd.f32 %v547, %v485
  %v549 = vadd.f32 %v548, %v486
  %v550 = vadd.f32 %v549, %v487
  %v551 = vadd.f32 %v550, %v488
  %v552 = vadd.f32 %v551, %v489
  %v553 = vadd.f32 %v552, %v490
  %v554 = vadd.f32 %v553, %v491
  %v555 = vadd.f32 %v554, %v492
  %v556 = vadd.f32 %v555, %v493
  %v557 = vadd.f32 %v556, %v494
  %v558 = vadd.f32 %v557, %v495
  %v559 = vadd.f32 %v558, %v496
  %v560 = vadd.f32 %v559, %v497
  %v561 = vadd.f32 %v560, %v498
  %v562 = vadd.f32 %v561, %v499
  %v563 = vadd.f32 %v562, %v500
  %v564 = vadd.f32 %v563, %v501
  %v565 = vadd.f32 %v564, %v502
  %v566 = vadd.f32 %v565, %v503
  %v567 = vadd.f32 %v566, %v504
  %v568 = vadd.f32 %v567, %v505
  %v569 = vadd.f32 %v568, %v506
  %v570 = vadd.f32 %v569, %v507
  %v571 = vadd.f32 %v570, %v508
  %v572 = vadd.f32 %v571, %v509
  %v573 = vadd.f32 %v572, %v510
  %v574 = vadd.f32 %v573, %v511
  %v575 = vadd.f32 %v574, %v512
  %v576 = vadd.f32 %v575, %v513
  %v577 = vadd.f32 %v576, %v514
  %v578 = vadd.f32 %v577, %v515
  %v579 = vadd.f32 %v578, %v516
  %v580 = vadd.f32 %v579, %v517
  %v581 = vadd.f32 %v580, %v518
  %v582 = vadd.f32 %v581, %v519
  %v583 = vadd.f32 %v582, %v520
  %v584 = vadd.f32 %v583, %v521
  %v585 = vadd.f32 %v584, %v522
  %v586 = vadd.f32 %v585, %v523
  %v587 = vadd.f32 %v586, %v524
  %v588 = vadd.f32 %v587, %v525
  %v589 = vadd.f32 %v588, %v526
  %v590 = vadd.f32 %v589, %v527
  %v591 = vadd.f32 %v590, %v528
  %v592 = vadd.f32 %v591, %v529
  %v593 = vadd.f32 %v592, %v530
  %v594 = vadd.f32 %v593, %v531
  %v595 = vadd.f32 %v594, %v532
  %v596 = vadd.f32 %v595, %v533
  %v597 = vadd.f32 %v596, %v534
  %v598 = vadd.f32 %v597, %v535
  %v599 = vadd.f32 %v598, %v536
  %v600 = vadd.f32 %v599, %v537
  %v601 = vadd.f32 %v600, %v538
  %v602 = vadd.f32 %v601, %v539
  %v603 = vrot.slane %v602, 4
  %v604 = vadd.f32 %v602, %v603
  %v605 = vrot.slane %v604, 2
  %v606 = vadd.f32 %v604, %v605
  %v607 = vrot.slane %v606, 1
  %v608 = vadd.f32 %v606, %v607
  %v609 = vadd.f32 %v475, %v608
  %610 = vst [vmem:[%s2] sm:$0x1] %v609
  // Predicated region
  $region10: #{residual_forward.6} parent=0 // pred_check
    _
  $region11: #{residual_forward.6} parent=0 // pred_check_branch
    %612 = sbr.rel (0) target = $region13
  $region12: #{residual_forward.6} parent=0 // pred_region
    _
  $region13: #{residual_forward.6} parent=0 // pred_fallthru
    _
  // Predicated region
  $region14: #{residual_forward.6} parent=0 // pred_check
    _
  $region15: #{residual_forward.6} parent=0 // pred_check_branch
    %614 = sbr.rel (0) target = $region17
  $region16: #{residual_forward.6} parent=0 // pred_region
    _
  $region17: #{residual_forward.6} parent=0 // pred_fallthru
    _
  // Predicated region
  $region18: #{residual_forward.6} parent=0 // pred_check
    _
  $region19: #{residual_forward.6} parent=0 // pred_check_branch
    %616 = sbr.rel (0) target = $region21
  $region20: #{residual_forward.6} parent=0 // pred_region
    _
  $region21: #{residual_forward.6} parent=0 // pred_fallthru
    _
  // Predicated region
  $region22: #{residual_forward.6} parent=0 // pred_check
    _
  $region23: #{residual_forward.6} parent=0 // pred_check_branch
    %618 = sbr.rel (0) target = $region25
  $region24: #{residual_forward.6} parent=0 // pred_region
    _
  $region25: #{residual_forward.6} parent=0 // pred_fallthru
    _

// kernel: residual_forward.7
$region0: #{residual_forward.7}
  #allocation0 [shape = 'u32[]', space=smem, size = 0x4, offset = 0x4, fixed_abs, tag = 'smem constant byte address 0x4 - core index']
  #allocation1 [shape = 'u32[72,128]{1,0:T(1,128)}', space=vmem, size = 0x9000, scoped, tag = 'internal scratch']
  #allocation2 [shape = 'bf16[18,18,128]{2,1,0:T(8,128)(2,1)}', space=vmem, size = 0x1b000, scoped, tag = 'scratch operand']
  #allocation3 [shape = 'bf16[256,1152]{1,0:T(8,128)(2,1)}', space=vmem, size = 0x90000, scoped, tag = 'scratch operand']
  %s0 = inlined_call_operand.vmem [shape: bf16[2,16,16,128], index: 0, kind: input, shape index: {}]
  %s1 = inlined_call_operand.vmem [shape: f32[1,128], index: 1, kind: input, shape index: {}]
  %s2 = inlined_call_operand.vmem [shape: f32[1,128], index: 2, kind: input, shape index: {}]
  %s3 = inlined_call_operand.vmem [shape: bf16[1152,128], index: 3, kind: input, shape index: {}]
  %s4 = inlined_call_operand.vmem [shape: f32[1,128], index: 4, kind: input, shape index: {}]
  %s5 = inlined_call_operand.vmem [shape: f32[2,256,128], index: 5, kind: input, shape index: {}]
  %s6 = inlined_call_operand.vmem [shape: f32[2,256,128], index: 6, kind: output, shape index: {}]
  %s7 = sld [smem:[#allocation0]]
  $region61: #{residual_forward.7} parent=0
    _
  %s9 = ssub.s32 1, %s7
  %s10 = scalar_select 0, %s9, %s7
  loop: start=0, step=1, limit=4
  $region2: #{residual_forward.7} parent=0 // loop_pre_header
    _
  $region3: #{residual_forward.7} parent=0 // loop_header
    %s12 = sphi 0, %s16
    %p13 = scmp.ge.s32.totalorder %s12, 4
    %s19 = sphi 0, %s31
    %s20 = sphi 0, %s27
    %s21 = sphi 0, %s19
    %s22 = sphi 0, %s20
    %s23 = sphi 0, %s21
    %s24 = sphi 0, %s22
    %s34 = sphi 0, %s36
    %s37 = sphi 0, %s34
    %s38 = sphi 0, %s37
    %s54 = sphi 0, %s38
    %s58 = sphi 0, %s58
    %s60 = sphi 0, %s58
    %s61 = sphi 0, %s60
    %s75 = sphi 0, %s61
    %s79 = sphi 0, %s79
    %s81 = sphi 0, %s79
    %s82 = sphi 0, %s81
    %s96 = sphi 0, %s82
    %s100 = sphi 0, %s100
    %s102 = sphi 0, %s100
    %s103 = sphi 0, %s102
    %s117 = sphi 0, %s103
    %s121 = sphi 0, %s121
    %s123 = sphi 0, %s121
    %s124 = sphi 0, %s123
    %s138 = sphi 0, %s124
    %s146 = sphi 0, %s148
    %s149 = sphi 0, %s146
    %s150 = sphi 0, %s149
    %s166 = sphi 0, %s150
    %s174 = sphi 0, %s176
    %s177 = sphi 0, %s174
    %s178 = sphi 0, %s177
    %s194 = sphi 0, %s178
  $region4: #{residual_forward.7} parent=0 // loop_header_branch
    %15 = sbr.rel (%p13) target = $region8
  $region5: #{residual_forward.7} parent=0 // loop_body
    %s17 = ssub.s32 %s12, 1
    %s18 = ssub.s32 %s12, 2
    %s25 = sadd.s32 1, %s20
    %p26 = scmp.ge.s32.totalorder %s25, 1
    %s27 = scalar_select %p26, 0, %s25
    %s28 = sadd.s32 1, %s19
    %s29 = scalar_select %p26, %s28, %s19
    %p30 = scmp.ge.s32.totalorder %s29, 2
    %s31 = scalar_select %p30, 0, %s29
    %s32 = ssub.s32 %s19, %s31
    %p33 = scmp.eq.s32.totalorder %s32, 0
    %s35 = sadd.s32 %s34, 1
    %s36 = scalar_select %p33, %s34, %s35
    %p39 = pneg %p33
    %p40 = scmp.eq.s32.totalorder %s12, 1
    %p41 = por %p39, %p40
    %p42 = scmp.ne.s32.totalorder %s34, %s37
    %p43 = scmp.eq.s32.totalorder %s12, 0
    %p44 = por %p42, %p43
    %p45 = scmp.ne.s32.totalorder %s34, %s37
    %p46 = scmp.eq.s32.totalorder %s17, 1
    %p47 = por %p45, %p46
    %p48 = scmp.ne.s32.totalorder %s37, %s38
    %p49 = scmp.eq.s32.totalorder %s17, 0
    %p50 = por %p48, %p49
    %p51 = scmp.ne.s32.totalorder %s37, %s38
    %p52 = scmp.eq.s32.totalorder %s18, 1
    %p53 = por %p51, %p52
    %p55 = scmp.ne.s32.totalorder %s38, %s54
    %p56 = scmp.eq.s32.totalorder %s18, 0
    %p57 = por %p55, %p56
    %s59 = sadd.s32 %s58, 1
    %p62 = scmp.eq.s32.totalorder %s12, 1
    %p63 = scmp.ne.s32.totalorder %s58, %s60
    %p64 = scmp.eq.s32.totalorder %s12, 0
    %p65 = por %p63, %p64
    %p66 = scmp.ne.s32.totalorder %s58, %s60
    %p67 = scmp.eq.s32.totalorder %s17, 1
    %p68 = por %p66, %p67
    %p69 = scmp.ne.s32.totalorder %s60, %s61
    %p70 = scmp.eq.s32.totalorder %s17, 0
    %p71 = por %p69, %p70
    %p72 = scmp.ne.s32.totalorder %s60, %s61
    %p73 = scmp.eq.s32.totalorder %s18, 1
    %p74 = por %p72, %p73
    %p76 = scmp.ne.s32.totalorder %s61, %s75
    %p77 = scmp.eq.s32.totalorder %s18, 0
    %p78 = por %p76, %p77
    %s80 = sadd.s32 %s79, 1
    %p83 = scmp.eq.s32.totalorder %s12, 1
    %p84 = scmp.ne.s32.totalorder %s79, %s81
    %p85 = scmp.eq.s32.totalorder %s12, 0
    %p86 = por %p84, %p85
    %p87 = scmp.ne.s32.totalorder %s79, %s81
    %p88 = scmp.eq.s32.totalorder %s17, 1
    %p89 = por %p87, %p88
    %p90 = scmp.ne.s32.totalorder %s81, %s82
    %p91 = scmp.eq.s32.totalorder %s17, 0
    %p92 = por %p90, %p91
    %p93 = scmp.ne.s32.totalorder %s81, %s82
    %p94 = scmp.eq.s32.totalorder %s18, 1
    %p95 = por %p93, %p94
    %p97 = scmp.ne.s32.totalorder %s82, %s96
    %p98 = scmp.eq.s32.totalorder %s18, 0
    %p99 = por %p97, %p98
    %s101 = sadd.s32 %s100, 1
    %p104 = scmp.eq.s32.totalorder %s12, 1
    %p105 = scmp.ne.s32.totalorder %s100, %s102
    %p106 = scmp.eq.s32.totalorder %s12, 0
    %p107 = por %p105, %p106
    %p108 = scmp.ne.s32.totalorder %s100, %s102
    %p109 = scmp.eq.s32.totalorder %s17, 1
    %p110 = por %p108, %p109
    %p111 = scmp.ne.s32.totalorder %s102, %s103
    %p112 = scmp.eq.s32.totalorder %s17, 0
    %p113 = por %p111, %p112
    %p114 = scmp.ne.s32.totalorder %s102, %s103
    %p115 = scmp.eq.s32.totalorder %s18, 1
    %p116 = por %p114, %p115
    %p118 = scmp.ne.s32.totalorder %s103, %s117
    %p119 = scmp.eq.s32.totalorder %s18, 0
    %p120 = por %p118, %p119
    %s122 = sadd.s32 %s121, 1
    %p125 = scmp.eq.s32.totalorder %s12, 1
    %p126 = scmp.ne.s32.totalorder %s121, %s123
    %p127 = scmp.eq.s32.totalorder %s12, 0
    %p128 = por %p126, %p127
    %p129 = scmp.ne.s32.totalorder %s121, %s123
    %p130 = scmp.eq.s32.totalorder %s17, 1
    %p131 = por %p129, %p130
    %p132 = scmp.ne.s32.totalorder %s123, %s124
    %p133 = scmp.eq.s32.totalorder %s17, 0
    %p134 = por %p132, %p133
    %p135 = scmp.ne.s32.totalorder %s123, %s124
    %p136 = scmp.eq.s32.totalorder %s18, 1
    %p137 = por %p135, %p136
    %p139 = scmp.ne.s32.totalorder %s124, %s138
    %p140 = scmp.eq.s32.totalorder %s18, 0
    %p141 = por %p139, %p140
    %s142 = ssub.s32 %s19, %s31
    %s143 = ssub.s32 %s20, %s27
    %s144 = sor.u32 %s142, %s143
    %p145 = scmp.eq.s32.totalorder %s144, 0
    %s147 = sadd.s32 %s146, 1
    %s148 = scalar_select %p145, %s146, %s147
    %p151 = pneg %p145
    %p152 = scmp.eq.s32.totalorder %s12, 1
    %p153 = por %p151, %p152
    %p154 = scmp.ne.s32.totalorder %s146, %s149
    %p155 = scmp.eq.s32.totalorder %s12, 0
    %p156 = por %p154, %p155
    %p157 = scmp.ne.s32.totalorder %s146, %s149
    %p158 = scmp.eq.s32.totalorder %s17, 1
    %p159 = por %p157, %p158
    %p160 = scmp.ne.s32.totalorder %s149, %s150
    %p161 = scmp.eq.s32.totalorder %s17, 0
    %p162 = por %p160, %p161
    %p163 = scmp.ne.s32.totalorder %s149, %s150
    %p164 = scmp.eq.s32.totalorder %s18, 1
    %p165 = por %p163, %p164
    %p167 = scmp.ne.s32.totalorder %s150, %s166
    %p168 = scmp.eq.s32.totalorder %s18, 0
    %p169 = por %p167, %p168
    %s170 = ssub.s32 %s19, %s31
    %s171 = ssub.s32 %s20, %s27
    %s172 = sor.u32 %s170, %s171
    %p173 = scmp.eq.s32.totalorder %s172, 0
    %s175 = sadd.s32 %s174, 1
    %s176 = scalar_select %p173, %s174, %s175
    %p179 = pneg %p173
    %p180 = scmp.eq.s32.totalorder %s12, 1
    %p181 = por %p179, %p180
    %p182 = scmp.ne.s32.totalorder %s174, %s177
    %p183 = scmp.eq.s32.totalorder %s12, 0
    %p184 = por %p182, %p183
    %p185 = scmp.ne.s32.totalorder %s174, %s177
    %p186 = scmp.eq.s32.totalorder %s17, 1
    %p187 = por %p185, %p186
    %p188 = scmp.ne.s32.totalorder %s177, %s178
    %p189 = scmp.eq.s32.totalorder %s17, 0
    %p190 = por %p188, %p189
    %p191 = scmp.ne.s32.totalorder %s177, %s178
    %p192 = scmp.eq.s32.totalorder %s18, 1
    %p193 = por %p191, %p192
    %p195 = scmp.ne.s32.totalorder %s178, %s194
    %p196 = scmp.eq.s32.totalorder %s18, 0
    %p197 = por %p195, %p196
    %p198 = scmp.le.s32.totalorder 1, %s12
    %p199 = scmp.lt.s32.totalorder %s12, 3
    %p200 = pnand %p198, %p199
    %p201 = pneg %p200
    // Predicated region
    $region9: #{residual_forward.7} parent=5 // pred_check
      _
    $region10: #{residual_forward.7} parent=5 // pred_check_branch
      %203 = sbr.rel (%p200) target = $region12
    $region11: #{residual_forward.7} parent=5 // pred_region
      %s204 = ssub.s32 %s12, 1
      // Predicated region
      $region13: #{residual_forward.7} parent=11 // pred_check
        %p205 = pneg %p71
      $region14: #{residual_forward.7} parent=11 // pred_check_branch
        %207 = sbr.rel (%p205) target = $region16
      $region15: #{residual_forward.7} parent=11 // pred_region
        _
      $region16: #{residual_forward.7} parent=11 // pred_fallthru
        _
      // Predicated region
      $region17: #{residual_forward.7} parent=11 // pred_check
        %p208 = pneg %p92
      $region18: #{residual_forward.7} parent=11 // pred_check_branch
        %210 = sbr.rel (%p208) target = $region20
      $region19: #{residual_forward.7} parent=11 // pred_region
        _
      $region20: #{residual_forward.7} parent=11 // pred_fallthru
        _
      // Predicated region
      $region21: #{residual_forward.7} parent=11 // pred_check
        %p211 = pneg %p113
      $region22: #{residual_forward.7} parent=11 // pred_check_branch
        %213 = sbr.rel (%p211) target = $region24
      $region23: #{residual_forward.7} parent=11 // pred_region
        _
      $region24: #{residual_forward.7} parent=11 // pred_fallthru
        _
      // Predicated region
      $region25: #{residual_forward.7} parent=11 // pred_check
        %p214 = pneg %p134
      $region26: #{residual_forward.7} parent=11 // pred_check_branch
        %216 = sbr.rel (%p214) target = $region28
      $region27: #{residual_forward.7} parent=11 // pred_region
        _
      $region28: #{residual_forward.7} parent=11 // pred_fallthru
        _
    $region12: #{residual_forward.7} parent=5 // pred_fallthru
      _
    %p217 = scmp.lt.s32.totalorder %s12, 2
    // Predicated region
    $region29: #{residual_forward.7} parent=5 // pred_check
      %p218 = pneg %p217
    $region30: #{residual_forward.7} parent=5 // pred_check_branch
      %220 = sbr.rel (%p218) target = $region32
    $region31: #{residual_forward.7} parent=5 // pred_region
      // Predicated region
      $region33: #{residual_forward.7} parent=31 // pred_check
        %p221 = pneg %p44
      $region34: #{residual_forward.7} parent=31 // pred_check_branch
        %223 = sbr.rel (%p221) target = $region36
      $region35: #{residual_forward.7} parent=31 // pred_region
        %p224 = scmp.lt.s32.totalorder %s19, 1
        %s225 = scalar_select %p224, %s19, 1
        %s226 = smul.addr %s225, 32
        %s227 = smul.addr %s226, 4
        %s228 = scalar_lea.vmem %s0, %s227
      $region36: #{residual_forward.7} parent=31 // pred_fallthru
        _
      // Predicated region
      $region37: #{residual_forward.7} parent=31 // pred_check
        %p229 = pneg %p156
      $region38: #{residual_forward.7} parent=31 // pred_check_branch
        %231 = sbr.rel (%p229) target = $region40
      $region39: #{residual_forward.7} parent=31 // pred_region
        %s232 = smul.u32 32, %s20
        %p233 = scmp.lt.s32.totalorder %s19, 1
        %s234 = scalar_select %p233, %s19, 1
        %p235 = scmp.lt.s32.totalorder %s232, 31
        %s236 = scalar_select %p235, %s232, 31
        %s237 = smul.addr %s234, 32
        %s238 = sadd.s32 %s236, %s237
        %s239 = smul.addr %s238, 8
        %s240 = scalar_lea.vmem %s5, %s239
        %s241 = smul.u32 32, %s20
      $region40: #{residual_forward.7} parent=31 // pred_fallthru
        _
    $region32: #{residual_forward.7} parent=5 // pred_fallthru
      _
    %p242 = scmp.le.s32.totalorder 1, %s12
    %p243 = scmp.lt.s32.totalorder %s12, 3
    %p244 = pnand %p242, %p243
    %p245 = pneg %p244
    // Predicated region
    $region41: #{residual_forward.7} parent=5 // pred_check
      _
    $region42: #{residual_forward.7} parent=5 // pred_check_branch
      %247 = sbr.rel (%p244) target = $region44
    $region43: #{residual_forward.7} parent=5 // pred_region
      %s248 = ssub.s32 %s12, 1
      %p249 = scmp.lt.s32.totalorder %s21, 1
      %s250 = scalar_select %p249, %s21, 1
      %s251 = smul.addr %s250, 32
      %s252 = smul.addr %s251, 4
      %s253 = scalar_lea.vmem %s0, %s252
      %p254 = pneg %p50
      %p255 = pneg %p47
      %p256 = pneg %p71
      %p257 = pneg %p68
      %p258 = pneg %p92
      %p259 = pneg %p89
      %p260 = pneg %p113
      %p261 = pneg %p110
      %p262 = pneg %p134
      %p263 = pneg %p131
      %s264 = smul.u32 32, %s22
      %p265 = scmp.lt.s32.totalorder %s21, 1
      %s266 = scalar_select %p265, %s21, 1
      %p267 = scmp.lt.s32.totalorder %s264, 31
      %s268 = scalar_select %p267, %s264, 31
      %s269 = smul.addr %s266, 32
      %s270 = sadd.s32 %s268, %s269
      %s271 = smul.addr %s270, 8
      %s272 = scalar_lea.vmem %s5, %s271
      %p273 = pneg %p162
      %p274 = pneg %p159
      %p275 = pneg %p190
      %p276 = pneg %p187
      %s277 = smul.u32 32, %s22
      %p278 = scmp.lt.s32.totalorder %s21, 1
      %s279 = scalar_select %p278, %s21, 1
      %p280 = scmp.lt.s32.totalorder %s277, 31
      %s281 = scalar_select %p280, %s277, 31
      %s282 = smul.addr %s279, 32
      %s283 = sadd.s32 %s281, %s282
      %s284 = smul.addr %s283, 8
      %s285 = scalar_lea.vmem %s6, %s284
      %p286 = scmp.lt.s32.totalorder %s21, 1
      %s287 = scalar_select %p286, %s21, 1
      %s288 = smul.addr %s287, 32
      %s289 = smul.addr %s288, 4
      %s290 = scalar_lea.vmem %s0, %s289
      %s291 = smul.u32 32, %s22
      %p292 = scmp.lt.s32.totalorder %s21, 1
      %s293 = scalar_select %p292, %s21, 1
      %p294 = scmp.lt.s32.totalorder %s291, 31
      %s295 = scalar_select %p294, %s291, 31
      %s296 = smul.addr %s293, 32
      %s297 = sadd.s32 %s295, %s296
      %s298 = smul.addr %s297, 8
      %s299 = scalar_lea.vmem %s5, %s298
      %s300 = smul.u32 32, %s22
      %s301 = smul.u32 32, %s22
      %p302 = scmp.lt.s32.totalorder %s21, 1
      %s303 = scalar_select %p302, %s21, 1
      %p304 = scmp.lt.s32.totalorder %s301, 31
      %s305 = scalar_select %p304, %s301, 31
      %s306 = smul.addr %s303, 32
      %s307 = sadd.s32 %s305, %s306
      %s308 = smul.addr %s307, 8
      %s309 = scalar_lea.vmem %s6, %s308
      %s310 = smul.u32 32, %s22
      %p312 = scmp.eq.s32.totalorder %s22, 0
      // Predicated region
      $region45: #{residual_forward.7} parent=43 // pred_check
        %p313 = pneg %p312
      $region46: #{residual_forward.7} parent=43 // pred_check_branch
        %315 = sbr.rel (%p313) target = $region48
      $region47: #{residual_forward.7} parent=43 // pred_region
        %316 = vst [vmem:[#allocation2] sm:$0xf] 0
        %317 = vst [vmem:[#allocation2 + $0x4] sm:$0xf] 0
        %318 = vst [vmem:[#allocation2 + $0x8] sm:$0x1] 0
        %319 = vst [vmem:[#allocation2 + $0xc] sm:$0xf] 0
        %320 = vst [vmem:[#allocation2 + $0x10] sm:$0xf] 0
        %321 = vst [vmem:[#allocation2 + $0x14] sm:$0x1] 0
        %322 = vst [vmem:[#allocation2 + $0x18] sm:$0xf] 0
        %323 = vst [vmem:[#allocation2 + $0x1c] sm:$0xf] 0
        %324 = vst [vmem:[#allocation2 + $0x20] sm:$0x1] 0
        %325 = vst [vmem:[#allocation2 + $0x24] sm:$0xf] 0
        %326 = vst [vmem:[#allocation2 + $0x28] sm:$0xf] 0
        %327 = vst [vmem:[#allocation2 + $0x2c] sm:$0x1] 0
        %328 = vst [vmem:[#allocation2 + $0x30] sm:$0xf] 0
        %329 = vst [vmem:[#allocation2 + $0x34] sm:$0xf] 0
        %330 = vst [vmem:[#allocation2 + $0x38] sm:$0x1] 0
        %331 = vst [vmem:[#allocation2 + $0x3c] sm:$0xf] 0
        %332 = vst [vmem:[#allocation2 + $0x40] sm:$0xf] 0
        %333 = vst [vmem:[#allocation2 + $0x44] sm:$0x1] 0
        %334 = vst [vmem:[#allocation2 + $0x48] sm:$0xf] 0
        %335 = vst [vmem:[#allocation2 + $0x4c] sm:$0xf] 0
        %336 = vst [vmem:[#allocation2 + $0x50] sm:$0x1] 0
        %337 = vst [vmem:[#allocation2 + $0x54] sm:$0xf] 0
        %338 = vst [vmem:[#allocation2 + $0x58] sm:$0xf] 0
        %339 = vst [vmem:[#allocation2 + $0x5c] sm:$0x1] 0
        %340 = vst [vmem:[#allocation2 + $0x60] sm:$0xf] 0
        %341 = vst [vmem:[#allocation2 + $0x64] sm:$0xf] 0
        %342 = vst [vmem:[#allocation2 + $0x68] sm:$0x1] 0
        %343 = vst [vmem:[#allocation2 + $0x6c] sm:$0xf] 0
        %344 = vst [vmem:[#allocation2 + $0x70] sm:$0xf] 0
        %345 = vst [vmem:[#allocation2 + $0x74] sm:$0x1] 0
        %346 = vst [vmem:[#allocation2 + $0x78] sm:$0xf] 0
        %347 = vst [vmem:[#allocation2 + $0x7c] sm:$0xf] 0
        %348 = vst [vmem:[#allocation2 + $0x80] sm:$0x1] 0
        %349 = vst [vmem:[#allocation2 + $0x84] sm:$0xf] 0
        %350 = vst [vmem:[#allocation2 + $0x88] sm:$0xf] 0
        %351 = vst [vmem:[#allocation2 + $0x8c] sm:$0x1] 0
        %352 = vst [vmem:[#allocation2 + $0x90] sm:$0xf] 0
        %353 = vst [vmem:[#allocation2 + $0x94] sm:$0xf] 0
        %354 = vst [vmem:[#allocation2 + $0x98] sm:$0x1] 0
        %355 = vst [vmem:[#allocation2 + $0x9c] sm:$0xf] 0
        %356 = vst [vmem:[#allocation2 + $0xa0] sm:$0xf] 0
        %357 = vst [vmem:[#allocation2 + $0xa4] sm:$0x1] 0
        %358 = vst [vmem:[#allocation2 + $0xa8] sm:$0xf] 0
        %359 = vst [vmem:[#allocation2 + $0xac] sm:$0xf] 0
        %360 = vst [vmem:[#allocation2 + $0xb0] sm:$0x1] 0
        %361 = vst [vmem:[#allocation2 + $0xb4] sm:$0xf] 0
        %362 = vst [vmem:[#allocation2 + $0xb8] sm:$0xf] 0
        %363 = vst [vmem:[#allocation2 + $0xbc] sm:$0x1] 0
        %364 = vst [vmem:[#allocation2 + $0xc0] sm:$0xf] 0
        %365 = vst [vmem:[#allocation2 + $0xc4] sm:$0xf] 0
        %366 = vst [vmem:[#allocation2 + $0xc8] sm:$0x1] 0
        %367 = vst [vmem:[#allocation2 + $0xcc] sm:$0xf] 0
        %368 = vst [vmem:[#allocation2 + $0xd0] sm:$0xf] 0
        %369 = vst [vmem:[#allocation2 + $0xd4] sm:$0x1] 0
        %v370 = vld [vmem:[%s290] sm:$0xf]
        %v371 = vld [vmem:[%s290 + $0x4] sm:$0xf]
        %v372 = vld [vmem:[%s290 + $0x8] sm:$0xf]
        %v373 = vld [vmem:[%s290 + $0xc] sm:$0xf]
        %v374 = vld [vmem:[%s290 + $0x10] sm:$0xf]
        %v375 = vld [vmem:[%s290 + $0x14] sm:$0xf]
        %v376 = vld [vmem:[%s290 + $0x18] sm:$0xf]
        %v377 = vld [vmem:[%s290 + $0x1c] sm:$0xf]
        %v378 = vld [vmem:[%s290 + $0x20] sm:$0xf]
        %v379 = vld [vmem:[%s290 + $0x24] sm:$0xf]
        %v380 = vld [vmem:[%s290 + $0x28] sm:$0xf]
        %v381 = vld [vmem:[%s290 + $0x2c] sm:$0xf]
        %v382 = vld [vmem:[%s290 + $0x30] sm:$0xf]
        %v383 = vld [vmem:[%s290 + $0x34] sm:$0xf]
        %v384 = vld [vmem:[%s290 + $0x38] sm:$0xf]
        %v385 = vld [vmem:[%s290 + $0x3c] sm:$0xf]
        %v386 = vld [vmem:[%s290 + $0x40] sm:$0xf]
        %v387 = vld [vmem:[%s290 + $0x44] sm:$0xf]
        %v388 = vld [vmem:[%s290 + $0x48] sm:$0xf]
        %v389 = vld [vmem:[%s290 + $0x4c] sm:$0xf]
        %v390 = vld [vmem:[%s290 + $0x50] sm:$0xf]
        %v391 = vld [vmem:[%s290 + $0x54] sm:$0xf]
        %v392 = vld [vmem:[%s290 + $0x58] sm:$0xf]
        %v393 = vld [vmem:[%s290 + $0x5c] sm:$0xf]
        %v394 = vld [vmem:[%s290 + $0x60] sm:$0xf]
        %v395 = vld [vmem:[%s290 + $0x64] sm:$0xf]
        %v396 = vld [vmem:[%s290 + $0x68] sm:$0xf]
        %v397 = vld [vmem:[%s290 + $0x6c] sm:$0xf]
        %v398 = vld [vmem:[%s290 + $0x70] sm:$0xf]
        %v399 = vld [vmem:[%s290 + $0x74] sm:$0xf]
        %v400 = vld [vmem:[%s290 + $0x78] sm:$0xf]
        %v401 = vld [vmem:[%s290 + $0x7c] sm:$0xf]
        %v402 = vunpack.c.l.bf16 %v370
        %v403 = vunpack.c.l.bf16 %v371
        %v404 = vunpack.c.l.bf16 %v372
        %v405 = vunpack.c.l.bf16 %v373
        %v406 = vunpack.c.l.bf16 %v374
        %v407 = vunpack.c.l.bf16 %v375
        %v408 = vunpack.c.l.bf16 %v376
        %v409 = vunpack.c.l.bf16 %v377
        %v410 = vunpack.c.l.bf16 %v378
        %v411 = vunpack.c.l.bf16 %v379
        %v412 = vunpack.c.l.bf16 %v380
        %v413 = vunpack.c.l.bf16 %v381
        %v414 = vunpack.c.l.bf16 %v382
        %v415 = vunpack.c.l.bf16 %v383
        %v416 = vunpack.c.l.bf16 %v384
        %v417 = vunpack.c.l.bf16 %v385
        %v418 = vunpack.c.l.bf16 %v386
        %v419 = vunpack.c.l.bf16 %v387
        %v420 = vunpack.c.l.bf16 %v388
        %v421 = vunpack.c.l.bf16 %v389
        %v422 = vunpack.c.l.bf16 %v390
        %v423 = vunpack.c.l.bf16 %v391
        %v424 = vunpack.c.l.bf16 %v392
        %v425 = vunpack.c.l.bf16 %v393
        %v426 = vunpack.c.l.bf16 %v394
        %v427 = vunpack.c.l.bf16 %v395
        %v428 = vunpack.c.l.bf16 %v396
        %v429 = vunpack.c.l.bf16 %v397
        %v430 = vunpack.c.l.bf16 %v398
        %v431 = vunpack.c.l.bf16 %v399
        %v432 = vunpack.c.l.bf16 %v400
        %v433 = vunpack.c.l.bf16 %v401
        %v434 = vld [vmem:[%s1] sm:$0x1]
        %v436 = vperm.slane %v434, 0
        %v438 = vmul.f32 %v402, %v436
        %v439 = vmul.f32 %v403, %v436
        %v440 = vmul.f32 %v404, %v436
        %v441 = vmul.f32 %v405, %v436
        %v442 = vmul.f32 %v406, %v436
        %v443 = vmul.f32 %v407, %v436
        %v444 = vmul.f32 %v408, %v436
        %v445 = vmul.f32 %v409, %v436
        %v446 = vmul.f32 %v410, %v436
        %v447 = vmul.f32 %v411, %v436
        %v448 = vmul.f32 %v412, %v436
        %v449 = vmul.f32 %v413, %v436
        %v450 = vmul.f32 %v414, %v436
        %v451 = vmul.f32 %v415, %v436
        %v452 = vmul.f32 %v416, %v436
        %v453 = vmul.f32 %v417, %v436
        %v454 = vmul.f32 %v418, %v436
        %v455 = vmul.f32 %v419, %v436
        %v456 = vmul.f32 %v420, %v436
        %v457 = vmul.f32 %v421, %v436
        %v458 = vmul.f32 %v422, %v436
        %v459 = vmul.f32 %v423, %v436
        %v460 = vmul.f32 %v424, %v436
        %v461 = vmul.f32 %v425, %v436
        %v462 = vmul.f32 %v426, %v436
        %v463 = vmul.f32 %v427, %v436
        %v464 = vmul.f32 %v428, %v436
        %v465 = vmul.f32 %v429, %v436
        %v466 = vmul.f32 %v430, %v436
        %v467 = vmul.f32 %v431, %v436
        %v468 = vmul.f32 %v432, %v436
        %v469 = vmul.f32 %v433, %v436
        %v470 = vld [vmem:[%s2] sm:$0x1]
        %v472 = vperm.slane %v470, 0
        %v474 = vadd.f32 %v438, %v472
        %v475 = vadd.f32 %v439, %v472
        %v476 = vadd.f32 %v440, %v472
        %v477 = vadd.f32 %v441, %v472
        %v478 = vadd.f32 %v442, %v472
        %v479 = vadd.f32 %v443, %v472
        %v480 = vadd.f32 %v444, %v472
        %v481 = vadd.f32 %v445, %v472
        %v482 = vadd.f32 %v446, %v472
        %v483 = vadd.f32 %v447, %v472
        %v484 = vadd.f32 %v448, %v472
        %v485 = vadd.f32 %v449, %v472
        %v486 = vadd.f32 %v450, %v472
        %v487 = vadd.f32 %v451, %v472
        %v488 = vadd.f32 %v452, %v472
        %v489 = vadd.f32 %v453, %v472
        %v490 = vadd.f32 %v454, %v472
        %v491 = vadd.f32 %v455, %v472
        %v492 = vadd.f32 %v456, %v472
        %v493 = vadd.f32 %v457, %v472
        %v494 = vadd.f32 %v458, %v472
        %v495 = vadd.f32 %v459, %v472
        %v496 = vadd.f32 %v460, %v472
        %v497 = vadd.f32 %v461, %v472
        %v498 = vadd.f32 %v462, %v472
        %v499 = vadd.f32 %v463, %v472
        %v500 = vadd.f32 %v464, %v472
        %v501 = vadd.f32 %v465, %v472
        %v502 = vadd.f32 %v466, %v472
        %v503 = vadd.f32 %v467, %v472
        %v504 = vadd.f32 %v468, %v472
        %v505 = vadd.f32 %v469, %v472
        %v506 = vmax.f32 %v474, 0.0
        %v507 = vmax.f32 %v475, 0.0
        %v508 = vmax.f32 %v476, 0.0
        %v509 = vmax.f32 %v477, 0.0
        %v510 = vmax.f32 %v478, 0.0
        %v511 = vmax.f32 %v479, 0.0
        %v512 = vmax.f32 %v480, 0.0
        %v513 = vmax.f32 %v481, 0.0
        %v514 = vmax.f32 %v482, 0.0
        %v515 = vmax.f32 %v483, 0.0
        %v516 = vmax.f32 %v484, 0.0
        %v517 = vmax.f32 %v485, 0.0
        %v518 = vmax.f32 %v486, 0.0
        %v519 = vmax.f32 %v487, 0.0
        %v520 = vmax.f32 %v488, 0.0
        %v521 = vmax.f32 %v489, 0.0
        %v522 = vmax.f32 %v490, 0.0
        %v523 = vmax.f32 %v491, 0.0
        %v524 = vmax.f32 %v492, 0.0
        %v525 = vmax.f32 %v493, 0.0
        %v526 = vmax.f32 %v494, 0.0
        %v527 = vmax.f32 %v495, 0.0
        %v528 = vmax.f32 %v496, 0.0
        %v529 = vmax.f32 %v497, 0.0
        %v530 = vmax.f32 %v498, 0.0
        %v531 = vmax.f32 %v499, 0.0
        %v532 = vmax.f32 %v500, 0.0
        %v533 = vmax.f32 %v501, 0.0
        %v534 = vmax.f32 %v502, 0.0
        %v535 = vmax.f32 %v503, 0.0
        %v536 = vmax.f32 %v504, 0.0
        %v537 = vmax.f32 %v505, 0.0
        %v538 = vpack.c.bf16 %v506, %v506
        %v539 = vpack.c.bf16 %v507, %v507
        %v540 = vpack.c.bf16 %v508, %v508
        %v541 = vpack.c.bf16 %v509, %v509
        %v542 = vpack.c.bf16 %v510, %v510
        %v543 = vpack.c.bf16 %v511, %v511
        %v544 = vpack.c.bf16 %v512, %v512
        %v545 = vpack.c.bf16 %v513, %v513
        %v546 = vpack.c.bf16 %v514, %v514
        %v547 = vpack.c.bf16 %v515, %v515
        %v548 = vpack.c.bf16 %v516, %v516
        %v549 = vpack.c.bf16 %v517, %v517
        %v550 = vpack.c.bf16 %v518, %v518
        %v551 = vpack.c.bf16 %v519, %v519
        %v552 = vpack.c.bf16 %v520, %v520
        %v553 = vpack.c.bf16 %v521, %v521
        %v554 = vpack.c.bf16 %v522, %v522
        %v555 = vpack.c.bf16 %v523, %v523
        %v556 = vpack.c.bf16 %v524, %v524
        %v557 = vpack.c.bf16 %v525, %v525
        %v558 = vpack.c.bf16 %v526, %v526
        %v559 = vpack.c.bf16 %v527, %v527
        %v560 = vpack.c.bf16 %v528, %v528
        %v561 = vpack.c.bf16 %v529, %v529
        %v562 = vpack.c.bf16 %v530, %v530
        %v563 = vpack.c.bf16 %v531, %v531
        %v564 = vpack.c.bf16 %v532, %v532
        %v565 = vpack.c.bf16 %v533, %v533
        %v566 = vpack.c.bf16 %v534, %v534
        %v567 = vpack.c.bf16 %v535, %v535
        %v568 = vpack.c.bf16 %v536, %v536
        %v569 = vpack.c.bf16 %v537, %v537
        %vm570 = vsmask.f32 256
        %vm571 = vsmask.f32 4368
        %vm572 = vmor %vm570, %vm571
        %v574 = vshrl.u32 %v538, 16
        %v576 = vrot.slane %v574, 7
        %v577 = vshll.u32 %v538, 16
        %v579 = vor.u32 %v576, %v577
        %v580 = vrot.slane %v576, 4
        %v582 = vshrl.u32 %v539, 16
        %v584 = vrot.slane %v582, 7
        %v585 = vshll.u32 %v539, 16
        %v587 = vor.u32 %v584, %v585
        %v588 = vsel %vm572, %v580, %v587
        %v589 = vrot.slane %v584, 4
        %v591 = vshrl.u32 %v540, 16
        %v593 = vrot.slane %v591, 7
        %v594 = vshll.u32 %v540, 16
        %v596 = vor.u32 %v593, %v594
        %v597 = vrot.slane %v593, 4
        %v599 = vshrl.u32 %v541, 16
        %v601 = vrot.slane %v599, 7
        %v602 = vshll.u32 %v541, 16
        %v604 = vor.u32 %v601, %v602
        %v605 = vsel %vm572, %v597, %v604
        %v606 = vrot.slane %v601, 4
        %v608 = vshrl.u32 %v542, 16
        %v610 = vrot.slane %v608, 7
        %v611 = vshll.u32 %v542, 16
        %v613 = vor.u32 %v610, %v611
        %v614 = vrot.slane %v610, 4
        %v616 = vshrl.u32 %v543, 16
        %v618 = vrot.slane %v616, 7
        %v619 = vshll.u32 %v543, 16
        %v621 = vor.u32 %v618, %v619
        %v622 = vsel %vm572, %v614, %v621
        %v623 = vrot.slane %v618, 4
        %v625 = vshrl.u32 %v544, 16
        %v627 = vrot.slane %v625, 7
        %v628 = vshll.u32 %v544, 16
        %v630 = vor.u32 %v627, %v628
        %v631 = vrot.slane %v627, 4
        %v633 = vshrl.u32 %v545, 16
        %v635 = vrot.slane %v633, 7
        %v636 = vshll.u32 %v545, 16
        %v638 = vor.u32 %v635, %v636
        %v639 = vsel %vm572, %v631, %v638
        %v640 = vrot.slane %v635, 4
        %v642 = vshrl.u32 %v546, 16
        %v644 = vrot.slane %v642, 7
        %v645 = vshll.u32 %v546, 16
        %v647 = vor.u32 %v644, %v645
        %v648 = vrot.slane %v644, 4
        %v650 = vshrl.u32 %v547, 16
        %v652 = vrot.slane %v650, 7
        %v653 = vshll.u32 %v547, 16
        %v655 = vor.u32 %v652, %v653
        %v656 = vsel %vm572, %v648, %v655
        %v657 = vrot.slane %v652, 4
        %v659 = vshrl.u32 %v548, 16
        %v661 = vrot.slane %v659, 7
        %v662 = vshll.u32 %v548, 16
        %v664 = vor.u32 %v661, %v662
        %v665 = vrot.slane %v661, 4
        %v667 = vshrl.u32 %v549, 16
        %v669 = vrot.slane %v667, 7
        %v670 = vshll.u32 %v549, 16
        %v672 = vor.u32 %v669, %v670
        %v673 = vsel %vm572, %v665, %v672
        %v674 = vrot.slane %v669, 4
        %v676 = vshrl.u32 %v550, 16
        %v678 = vrot.slane %v676, 7
        %v679 = vshll.u32 %v550, 16
        %v681 = vor.u32 %v678, %v679
        %v682 = vrot.slane %v678, 4
        %v684 = vshrl.u32 %v551, 16
        %v686 = vrot.slane %v684, 7
        %v687 = vshll.u32 %v551, 16
        %v689 = vor.u32 %v686, %v687
        %v690 = vsel %vm572, %v682, %v689
        %v691 = vrot.slane %v686, 4
        %v693 = vshrl.u32 %v552, 16
        %v695 = vrot.slane %v693, 7
        %v696 = vshll.u32 %v552, 16
        %v698 = vor.u32 %v695, %v696
        %v699 = vrot.slane %v695, 4
        %v701 = vshrl.u32 %v553, 16
        %v703 = vrot.slane %v701, 7
        %v704 = vshll.u32 %v553, 16
        %v706 = vor.u32 %v703, %v704
        %v707 = vsel %vm572, %v699, %v706
        %v708 = vrot.slane %v703, 4
        %v710 = vshrl.u32 %v554, 16
        %v712 = vrot.slane %v710, 7
        %v713 = vshll.u32 %v554, 16
        %v715 = vor.u32 %v712, %v713
        %v716 = vrot.slane %v712, 4
        %v718 = vshrl.u32 %v555, 16
        %v720 = vrot.slane %v718, 7
        %v721 = vshll.u32 %v555, 16
        %v723 = vor.u32 %v720, %v721
        %v724 = vsel %vm572, %v716, %v723
        %v725 = vrot.slane %v720, 4
        %v727 = vshrl.u32 %v556, 16
        %v729 = vrot.slane %v727, 7
        %v730 = vshll.u32 %v556, 16
        %v732 = vor.u32 %v729, %v730
        %v733 = vrot.slane %v729, 4
        %v735 = vshrl.u32 %v557, 16
        %v737 = vrot.slane %v735, 7
        %v738 = vshll.u32 %v557, 16
        %v740 = vor.u32 %v737, %v738
        %v741 = vsel %vm572, %v733, %v740
        %v742 = vrot.slane %v737, 4
        %v744 = vshrl.u32 %v558, 16
        %v746 = vrot.slane %v744, 7
        %v747 = vshll.u32 %v558, 16
        %v749 = vor.u32 %v746, %v747
        %v750 = vrot.slane %v746, 4
        %v752 = vshrl.u32 %v559, 16
        %v754 = vrot.slane %v752, 7
        %v755 = vshll.u32 %v559, 16
        %v757 = vor.u32 %v754, %v755
        %v758 = vsel %vm572, %v750, %v757
        %v759 = vrot.slane %v754, 4
        %v761 = vshrl.u32 %v560, 16
        %v763 = vrot.slane %v761, 7
        %v764 = vshll.u32 %v560, 16
        %v766 = vor.u32 %v763, %v764
        %v767 = vrot.slane %v763, 4
        %v769 = vshrl.u32 %v561, 16
        %v771 = vrot.slane %v769, 7
        %v772 = vshll.u32 %v561, 16
        %v774 = vor.u32 %v771, %v772
        %v775 = vsel %vm572, %v767, %v774
        %v776 = vrot.slane %v771, 4
        %v778 = vshrl.u32 %v562, 16
        %v780 = vrot.slane %v778, 7
        %v781 = vshll.u32 %v562, 16
        %v783 = vor.u32 %v780, %v781
        %v784 = vrot.slane %v780, 4
        %v786 = vshrl.u32 %v563, 16
        %v788 = vrot.slane %v786, 7
        %v789 = vshll.u32 %v563, 16
        %v791 = vor.u32 %v788, %v789
        %v792 = vsel %vm572, %v784, %v791
        %v793 = vrot.slane %v788, 4
        %v795 = vshrl.u32 %v564, 16
        %v797 = vrot.slane %v795, 7
        %v798 = vshll.u32 %v564, 16
        %v800 = vor.u32 %v797, %v798
        %v801 = vrot.slane %v797, 4
        %v803 = vshrl.u32 %v565, 16
        %v805 = vrot.slane %v803, 7
        %v806 = vshll.u32 %v565, 16
        %v808 = vor.u32 %v805, %v806
        %v809 = vsel %vm572, %v801, %v808
        %v810 = vrot.slane %v805, 4
        %v812 = vshrl.u32 %v566, 16
        %v814 = vrot.slane %v812, 7
        %v815 = vshll.u32 %v566, 16
        %v817 = vor.u32 %v814, %v815
        %v818 = vrot.slane %v814, 4
        %v820 = vshrl.u32 %v567, 16
        %v822 = vrot.slane %v820, 7
        %v823 = vshll.u32 %v567, 16
        %v825 = vor.u32 %v822, %v823
        %v826 = vsel %vm572, %v818, %v825
        %v827 = vrot.slane %v822, 4
        %v829 = vshrl.u32 %v568, 16
        %v831 = vrot.slane %v829, 7
        %v832 = vshll.u32 %v568, 16
        %v834 = vor.u32 %v831, %v832
        %v835 = vrot.slane %v831, 4
        %v837 = vshrl.u32 %v569, 16
        %v839 = vrot.slane %v837, 7
        %v840 = vshll.u32 %v569, 16
        %v842 = vor.u32 %v839, %v840
        %v843 = vsel %vm572, %v835, %v842
        %v844 = vrot.slane %v839, 4
        %s893 = scalar_lea.vmem [#allocation2], 12
        %vm894 = vcmask 1043456
        %vm895 = vsmask.f32 7938
        %vm896 = vmand %vm894, %vm895
        %v897 = vld [vmem:[%s893] sm:$0xf]
        %v898 = vsel %vm896, %v579, %v897
        %899 = vst [vmem:[%s893] sm:$0xf] %v898
        %900 = vst [vmem:[%s893 + $0x4] sm:$0xf] %v588
        %vm901 = vcmask 1040384
        %vm902 = vmand %vm901, %vm570
        %v903 = vld [vmem:[%s893 + $0x8] sm:$0x1]
        %v904 = vsel %vm902, %v589, %v903
        %905 = vst [vmem:[%s893 + $0x8] sm:$0x1] %v904
        %v906 = vld [vmem:[%s893 + $0xc] sm:$0xf]
        %v907 = vsel %vm896, %v596, %v906
        %908 = vst [vmem:[%s893 + $0xc] sm:$0xf] %v907
        %909 = vst [vmem:[%s893 + $0x10] sm:$0xf] %v605
        %v910 = vld [vmem:[%s893 + $0x14] sm:$0x1]
        %v911 = vsel %vm902, %v606, %v910
        %912 = vst [vmem:[%s893 + $0x14] sm:$0x1] %v911
        %v913 = vld [vmem:[%s893 + $0x18] sm:$0xf]
        %v914 = vsel %vm896, %v613, %v913
        %915 = vst [vmem:[%s893 + $0x18] sm:$0xf] %v914
        %916 = vst [vmem:[%s893 + $0x1c] sm:$0xf] %v622
        %v917 = vld [vmem:[%s893 + $0x20] sm:$0x1]
        %v918 = vsel %vm902, %v623, %v917
        %919 = vst [vmem:[%s893 + $0x20] sm:$0x1] %v918
        %v920 = vld [vmem:[%s893 + $0x24] sm:$0xf]
        %v921 = vsel %vm896, %v630, %v920
        %922 = vst [vmem:[%s893 + $0x24] sm:$0xf] %v921
        %923 = vst [vmem:[%s893 + $0x28] sm:$0xf] %v639
        %v924 = vld [vmem:[%s893 + $0x2c] sm:$0x1]
        %v925 = vsel %vm902, %v640, %v924
        %926 = vst [vmem:[%s893 + $0x2c] sm:$0x1] %v925
        %v927 = vld [vmem:[%s893 + $0x30] sm:$0xf]
        %v928 = vsel %vm896, %v647, %v927
        %929 = vst [vmem:[%s893 + $0x30] sm:$0xf] %v928
        %930 = vst [vmem:[%s893 + $0x34] sm:$0xf] %v656
        %v931 = vld [vmem:[%s893 + $0x38] sm:$0x1]
        %v932 = vsel %vm902, %v657, %v931
        %933 = vst [vmem:[%s893 + $0x38] sm:$0x1] %v932
        %v934 = vld [vmem:[%s893 + $0x3c] sm:$0xf]
        %v935 = vsel %vm896, %v664, %v934
        %936 = vst [vmem:[%s893 + $0x3c] sm:$0xf] %v935
        %937 = vst [vmem:[%s893 + $0x40] sm:$0xf] %v673
        %v938 = vld [vmem:[%s893 + $0x44] sm:$0x1]
        %v939 = vsel %vm902, %v674, %v938
        %940 = vst [vmem:[%s893 + $0x44] sm:$0x1] %v939
        %v941 = vld [vmem:[%s893 + $0x48] sm:$0xf]
        %v942 = vsel %vm896, %v681, %v941
        %943 = vst [vmem:[%s893 + $0x48] sm:$0xf] %v942
        %944 = vst [vmem:[%s893 + $0x4c] sm:$0xf] %v690
        %v945 = vld [vmem:[%s893 + $0x50] sm:$0x1]
        %v946 = vsel %vm902, %v691, %v945
        %947 = vst [vmem:[%s893 + $0x50] sm:$0x1] %v946
        %v948 = vld [vmem:[%s893 + $0x54] sm:$0xf]
        %v949 = vsel %vm896, %v698, %v948
        %950 = vst [vmem:[%s893 + $0x54] sm:$0xf] %v949
        %951 = vst [vmem:[%s893 + $0x58] sm:$0xf] %v707
        %v952 = vld [vmem:[%s893 + $0x5c] sm:$0x1]
        %v953 = vsel %vm902, %v708, %v952
        %954 = vst [vmem:[%s893 + $0x5c] sm:$0x1] %v953
        %v955 = vld [vmem:[%s893 + $0x60] sm:$0xf]
        %v956 = vsel %vm896, %v715, %v955
        %957 = vst [vmem:[%s893 + $0x60] sm:$0xf] %v956
        %958 = vst [vmem:[%s893 + $0x64] sm:$0xf] %v724
        %v959 = vld [vmem:[%s893 + $0x68] sm:$0x1]
        %v960 = vsel %vm902, %v725, %v959
        %961 = vst [vmem:[%s893 + $0x68] sm:$0x1] %v960
        %v962 = vld [vmem:[%s893 + $0x6c] sm:$0xf]
        %v963 = vsel %vm896, %v732, %v962
        %964 = vst [vmem:[%s893 + $0x6c] sm:$0xf] %v963
        %965 = vst [vmem:[%s893 + $0x70] sm:$0xf] %v741
        %v966 = vld [vmem:[%s893 + $0x74] sm:$0x1]
        %v967 = vsel %vm902, %v742, %v966
        %968 = vst [vmem:[%s893 + $0x74] sm:$0x1] %v967
        %v969 = vld [vmem:[%s893 + $0x78] sm:$0xf]
        %v970 = vsel %vm896, %v749, %v969
        %971 = vst [vmem:[%s893 + $0x78] sm:$0xf] %v970
        %972 = vst [vmem:[%s893 + $0x7c] sm:$0xf] %v758
        %v973 = vld [vmem:[%s893 + $0x80] sm:$0x1]
        %v974 = vsel %vm902, %v759, %v973
        %975 = vst [vmem:[%s893 + $0x80] sm:$0x1] %v974
        %v976 = vld [vmem:[%s893 + $0x84] sm:$0xf]
        %v977 = vsel %vm896, %v766, %v976
        %978 = vst [vmem:[%s893 + $0x84] sm:$0xf] %v977
        %979 = vst [vmem:[%s893 + $0x88] sm:$0xf] %v775
        %v980 = vld [vmem:[%s893 + $0x8c] sm:$0x1]
        %v981 = vsel %vm902, %v776, %v980
        %982 = vst [vmem:[%s893 + $0x8c] sm:$0x1] %v981
        %v983 = vld [vmem:[%s893 + $0x90] sm:$0xf]
        %v984 = vsel %vm896, %v783, %v983
        %985 = vst [vmem:[%s893 + $0x90] sm:$0xf] %v984
        %986 = vst [vmem:[%s893 + $0x94] sm:$0xf] %v792
        %v987 = vld [vmem:[%s893 + $0x98] sm:$0x1]
        %v988 = vsel %vm902, %v793, %v987
        %989 = vst [vmem:[%s893 + $0x98] sm:$0x1] %v988
        %v990 = vld [vmem:[%s893 + $0x9c] sm:$0xf]
        %v991 = vsel %vm896, %v800, %v990
        %992 = vst [vmem:[%s893 + $0x9c] sm:$0xf] %v991
        %993 = vst [vmem:[%s893 + $0xa0] sm:$0xf] %v809
        %v994 = vld [vmem:[%s893 + $0xa4] sm:$0x1]
        %v995 = vsel %vm902, %v810, %v994
        %996 = vst [vmem:[%s893 + $0xa4] sm:$0x1] %v995
        %v997 = vld [vmem:[%s893 + $0xa8] sm:$0xf]
        %v998 = vsel %vm896, %v817, %v997
        %999 = vst [vmem:[%s893 + $0xa8] sm:$0xf] %v998
        %1000 = vst [vmem:[%s893 + $0xac] sm:$0xf] %v826
        %v1001 = vld [vmem:[%s893 + $0xb0] sm:$0x1]
        %v1002 = vsel %vm902, %v827, %v1001
        %1003 = vst [vmem:[%s893 + $0xb0] sm:$0x1] %v1002
        %v1004 = vld [vmem:[%s893 + $0xb4] sm:$0xf]
        %v1005 = vsel %vm896, %v834, %v1004
        %1006 = vst [vmem:[%s893 + $0xb4] sm:$0xf] %v1005
        %1007 = vst [vmem:[%s893 + $0xb8] sm:$0xf] %v843
        %v1008 = vld [vmem:[%s893 + $0xbc] sm:$0x1]
        %v1009 = vsel %vm902, %v844, %v1008
        %1010 = vst [vmem:[%s893 + $0xbc] sm:$0x1] %v1009
      $region48: #{residual_forward.7} parent=43 // pred_fallthru
        _
      %s1011 = smul.u32 %s22, 16
      %s1012 = smul.u32 %s1011, 3
      %s1013 = smul.addr %s1012, 4
      %s1014 = scalar_lea.vmem [#allocation2], %s1013
      %v1015 = vld [vmem:[%s1014] sm:$0xf]
      %v1016 = vld [vmem:[%s1014 + $0x4] sm:$0xf]
      %v1017 = vld [vmem:[%s1014 + $0xc] sm:$0xf]
      %v1018 = vld [vmem:[%s1014 + $0x10] sm:$0xf]
      %v1019 = vld [vmem:[%s1014 + $0x18] sm:$0xf]
      %v1020 = vld [vmem:[%s1014 + $0x1c] sm:$0xf]
      %v1021 = vld [vmem:[%s1014 + $0x24] sm:$0xf]
      %v1022 = vld [vmem:[%s1014 + $0x28] sm:$0xf]
      %v1023 = vld [vmem:[%s1014 + $0x30] sm:$0xf]
      %v1024 = vld [vmem:[%s1014 + $0x34] sm:$0xf]
      %v1025 = vld [vmem:[%s1014 + $0x3c] sm:$0xf]
      %v1026 = vld [vmem:[%s1014 + $0x40] sm:$0xf]
      %v1027 = vld [vmem:[%s1014 + $0x48] sm:$0xf]
      %v1028 = vld [vmem:[%s1014 + $0x4c] sm:$0xf]
      %v1029 = vld [vmem:[%s1014 + $0x54] sm:$0xf]
      %v1030 = vld [vmem:[%s1014 + $0x58] sm:$0xf]
      %v1031 = vld [vmem:[%s1014 + $0x60] sm:$0xf]
      %v1032 = vld [vmem:[%s1014 + $0x64] sm:$0xf]
      %v1033 = vld [vmem:[%s1014 + $0x6c] sm:$0xf]
      %v1034 = vld [vmem:[%s1014 + $0x70] sm:$0xf]
      %v1035 = vld [vmem:[%s1014 + $0x78] sm:$0xf]
      %v1036 = vld [vmem:[%s1014 + $0x7c] sm:$0xf]
      %v1037 = vld [vmem:[%s1014 + $0x84] sm:$0xf]
      %v1038 = vld [vmem:[%s1014 + $0x88] sm:$0xf]
      %v1039 = vld [vmem:[%s1014 + $0x90] sm:$0xf]
      %v1040 = vld [vmem:[%s1014 + $0x94] sm:$0xf]
      %v1041 = vld [vmem:[%s1014 + $0x9c] sm:$0xf]
      %v1042 = vld [vmem:[%s1014 + $0xa0] sm:$0xf]
      %v1043 = vld [vmem:[%s1014 + $0xa8] sm:$0xf]
      %v1044 = vld [vmem:[%s1014 + $0xac] sm:$0xf]
      %v1045 = vld [vmem:[%s1014 + $0xb4] sm:$0xf]
      %v1046 = vld [vmem:[%s1014 + $0xb8] sm:$0xf]
      %1047 = vst [vmem:[#allocation3] sm:$0xf] %v1015
      %1048 = vst [vmem:[#allocation3 + $0x24] sm:$0xf] %v1016
      %1049 = vst [vmem:[#allocation3 + $0x48] sm:$0xf] %v1017
      %1050 = vst [vmem:[#allocation3 + $0x6c] sm:$0xf] %v1018
      %1051 = vst [vmem:[#allocation3 + $0x90] sm:$0xf] %v1019
      %1052 = vst [vmem:[#allocation3 + $0xb4] sm:$0xf] %v1020
      %1053 = vst [vmem:[#allocation3 + $0xd8] sm:$0xf] %v1021
      %1054 = vst [vmem:[#allocation3 + $0xfc] sm:$0xf] %v1022
      %1055 = vst [vmem:[#allocation3 + $0x120] sm:$0xf] %v1023
      %1056 = vst [vmem:[#allocation3 + $0x144] sm:$0xf] %v1024
      %1057 = vst [vmem:[#allocation3 + $0x168] sm:$0xf] %v1025
      %1058 = vst [vmem:[#allocation3 + $0x18c] sm:$0xf] %v1026
      %1059 = vst [vmem:[#allocation3 + $0x1b0] sm:$0xf] %v1027
      %1060 = vst [vmem:[#allocation3 + $0x1d4] sm:$0xf] %v1028
      %1061 = vst [vmem:[#allocation3 + $0x1f8] sm:$0xf] %v1029
      %1062 = vst [vmem:[#allocation3 + $0x21c] sm:$0xf] %v1030
      %1063 = vst [vmem:[#allocation3 + $0x240] sm:$0xf] %v1031
      %1064 = vst [vmem:[#allocation3 + $0x264] sm:$0xf] %v1032
      %1065 = vst [vmem:[#allocation3 + $0x288] sm:$0xf] %v1033
      %1066 = vst [vmem:[#allocation3 + $0x2ac] sm:$0xf] %v1034
      %1067 = vst [vmem:[#allocation3 + $0x2d0] sm:$0xf] %v1035
      %1068 = vst [vmem:[#allocation3 + $0x2f4] sm:$0xf] %v1036
      %1069 = vst [vmem:[#allocation3 + $0x318] sm:$0xf] %v1037
      %1070 = vst [vmem:[#allocation3 + $0x33c] sm:$0xf] %v1038
      %1071 = vst [vmem:[#allocation3 + $0x360] sm:$0xf] %v1039
      %1072 = vst [vmem:[#allocation3 + $0x384] sm:$0xf] %v1040
      %1073 = vst [vmem:[#allocation3 + $0x3a8] sm:$0xf] %v1041
      %1074 = vst [vmem:[#allocation3 + $0x3cc] sm:$0xf] %v1042
      %1075 = vst [vmem:[#allocation3 + $0x3f0] sm:$0xf] %v1043
      %1076 = vst [vmem:[#allocation3 + $0x414] sm:$0xf] %v1044
      %1077 = vst [vmem:[#allocation3 + $0x438] sm:$0xf] %v1045
      %1078 = vst [vmem:[#allocation3 + $0x45c] sm:$0xf] %v1046
      %v1079 = vld [vmem:[%s1014] sm:$0xf]
      %v1080 = vld [vmem:[%s1014 + $0x4] sm:$0xf]
      %v1081 = vld [vmem:[%s1014 + $0x8] sm:$0x1]
      %v1082 = vld [vmem:[%s1014 + $0xc] sm:$0xf]
      %v1083 = vld [vmem:[%s1014 + $0x10] sm:$0xf]
      %v1084 = vld [vmem:[%s1014 + $0x14] sm:$0x1]
      %v1085 = vld [vmem:[%s1014 + $0x18] sm:$0xf]
      %v1086 = vld [vmem:[%s1014 + $0x1c] sm:$0xf]
      %v1087 = vld [vmem:[%s1014 + $0x20] sm:$0x1]
      %v1088 = vld [vmem:[%s1014 + $0x24] sm:$0xf]
      %v1089 = vld [vmem:[%s1014 + $0x28] sm:$0xf]
      %v1090 = vld [vmem:[%s1014 + $0x2c] sm:$0x1]
      %v1091 = vld [vmem:[%s1014 + $0x30] sm:$0xf]
      %v1092 = vld [vmem:[%s1014 + $0x34] sm:$0xf]
      %v1093 = vld [vmem:[%s1014 + $0x38] sm:$0x1]
      %v1094 = vld [vmem:[%s1014 + $0x3c] sm:$0xf]
      %v1095 = vld [vmem:[%s1014 + $0x40] sm:$0xf]
      %v1096 = vld [vmem:[%s1014 + $0x44] sm:$0x1]
      %v1097 = vld [vmem:[%s1014 + $0x48] sm:$0xf]
      %v1098 = vld [vmem:[%s1014 + $0x4c] sm:$0xf]
      %v1099 = vld [vmem:[%s1014 + $0x50] sm:$0x1]
      %v1100 = vld [vmem:[%s1014 + $0x54] sm:$0xf]
      %v1101 = vld [vmem:[%s1014 + $0x58] sm:$0xf]
      %v1102 = vld [vmem:[%s1014 + $0x5c] sm:$0x1]
      %v1103 = vld [vmem:[%s1014 + $0x60] sm:$0xf]
      %v1104 = vld [vmem:[%s1014 + $0x64] sm:$0xf]
      %v1105 = vld [vmem:[%s1014 + $0x68] sm:$0x1]
      %v1106 = vld [vmem:[%s1014 + $0x6c] sm:$0xf]
      %v1107 = vld [vmem:[%s1014 + $0x70] sm:$0xf]
      %v1108 = vld [vmem:[%s1014 + $0x74] sm:$0x1]
      %v1109 = vld [vmem:[%s1014 + $0x78] sm:$0xf]
      %v1110 = vld [vmem:[%s1014 + $0x7c] sm:$0xf]
      %v1111 = vld [vmem:[%s1014 + $0x80] sm:$0x1]
      %v1112 = vld [vmem:[%s1014 + $0x84] sm:$0xf]
      %v1113 = vld [vmem:[%s1014 + $0x88] sm:$0xf]
      %v1114 = vld [vmem:[%s1014 + $0x8c] sm:$0x1]
      %v1115 = vld [vmem:[%s1014 + $0x90] sm:$0xf]
      %v1116 = vld [vmem:[%s1014 + $0x94] sm:$0xf]
      %v1117 = vld [vmem:[%s1014 + $0x98] sm:$0x1]
      %v1118 = vld [vmem:[%s1014 + $0x9c] sm:$0xf]
      %v1119 = vld [vmem:[%s1014 + $0xa0] sm:$0xf]
      %v1120 = vld [vmem:[%s1014 + $0xa4] sm:$0x1]
      %v1121 = vld [vmem:[%s1014 + $0xa8] sm:$0xf]
      %v1122 = vld [vmem:[%s1014 + $0xac] sm:$0xf]
      %v1123 = vld [vmem:[%s1014 + $0xb0] sm:$0x1]
      %v1124 = vld [vmem:[%s1014 + $0xb4] sm:$0xf]
      %v1125 = vld [vmem:[%s1014 + $0xb8] sm:$0xf]
      %v1126 = vld [vmem:[%s1014 + $0xbc] sm:$0x1]
      %vm1127 = vsmask.f32 3328
      %vm1128 = vsmask.f32 7440
      %vm1129 = vmor %vm1127, %vm1128
      %v1131 = vshrl.u32 %v1079, 16
      %v1133 = vrot.slane %v1131, 4
      %v1134 = vshll.u32 %v1079, 16
      %v1136 = vrot.slane %v1134, 5
      %v1137 = vor.u32 %v1133, %v1136
      %v1138 = vrot.slane %v1137, 4
      %v1140 = vshll.u32 %v1080, 16
      %v1142 = vrot.slane %v1140, 5
      %v1143 = vsel %vm1129, %v1138, %v1142
      %v1144 = vshrl.u32 %v1080, 16
      %v1146 = vrot.slane %v1144, 4
      %v1147 = vor.u32 %v1146, %v1142
      %v1148 = vrot.slane %v1147, 4
      %v1150 = vshll.u32 %v1081, 16
      %v1152 = vrot.slane %v1150, 5
      %v1153 = vsel %vm1129, %v1148, %v1152
      %v1155 = vshrl.u32 %v1082, 16
      %v1157 = vrot.slane %v1155, 4
      %v1158 = vshll.u32 %v1082, 16
      %v1160 = vrot.slane %v1158, 5
      %v1161 = vor.u32 %v1157, %v1160
      %v1162 = vrot.slane %v1161, 4
      %v1164 = vshll.u32 %v1083, 16
      %v1166 = vrot.slane %v1164, 5
      %v1167 = vsel %vm1129, %v1162, %v1166
      %v1168 = vshrl.u32 %v1083, 16
      %v1170 = vrot.slane %v1168, 4
      %v1171 = vor.u32 %v1170, %v1166
      %v1172 = vrot.slane %v1171, 4
      %v1174 = vshll.u32 %v1084, 16
      %v1176 = vrot.slane %v1174, 5
      %v1177 = vsel %vm1129, %v1172, %v1176
      %v1179 = vshrl.u32 %v1085, 16
      %v1181 = vrot.slane %v1179, 4
      %v1182 = vshll.u32 %v1085, 16
      %v1184 = vrot.slane %v1182, 5
      %v1185 = vor.u32 %v1181, %v1184
      %v1186 = vrot.slane %v1185, 4
      %v1188 = vshll.u32 %v1086, 16
      %v1190 = vrot.slane %v1188, 5
      %v1191 = vsel %vm1129, %v1186, %v1190
      %v1192 = vshrl.u32 %v1086, 16
      %v1194 = vrot.slane %v1192, 4
      %v1195 = vor.u32 %v1194, %v1190
      %v1196 = vrot.slane %v1195, 4
      %v1198 = vshll.u32 %v1087, 16
      %v1200 = vrot.slane %v1198, 5
      %v1201 = vsel %vm1129, %v1196, %v1200
      %v1203 = vshrl.u32 %v1088, 16
      %v1205 = vrot.slane %v1203, 4
      %v1206 = vshll.u32 %v1088, 16
      %v1208 = vrot.slane %v1206, 5
      %v1209 = vor.u32 %v1205, %v1208
      %v1210 = vrot.slane %v1209, 4
      %v1212 = vshll.u32 %v1089, 16
      %v1214 = vrot.slane %v1212, 5
      %v1215 = vsel %vm1129, %v1210, %v1214
      %v1216 = vshrl.u32 %v1089, 16
      %v1218 = vrot.slane %v1216, 4
      %v1219 = vor.u32 %v1218, %v1214
      %v1220 = vrot.slane %v1219, 4
      %v1222 = vshll.u32 %v1090, 16
      %v1224 = vrot.slane %v1222, 5
      %v1225 = vsel %vm1129, %v1220, %v1224
      %v1227 = vshrl.u32 %v1091, 16
      %v1229 = vrot.slane %v1227, 4
      %v1230 = vshll.u32 %v1091, 16
      %v1232 = vrot.slane %v1230, 5
      %v1233 = vor.u32 %v1229, %v1232
      %v1234 = vrot.slane %v1233, 4
      %v1236 = vshll.u32 %v1092, 16
      %v1238 = vrot.slane %v1236, 5
      %v1239 = vsel %vm1129, %v1234, %v1238
      %v1240 = vshrl.u32 %v1092, 16
      %v1242 = vrot.slane %v1240, 4
      %v1243 = vor.u32 %v1242, %v1238
      %v1244 = vrot.slane %v1243, 4
      %v1246 = vshll.u32 %v1093, 16
      %v1248 = vrot.slane %v1246, 5
      %v1249 = vsel %vm1129, %v1244, %v1248
      %v1251 = vshrl.u32 %v1094, 16
      %v1253 = vrot.slane %v1251, 4
      %v1254 = vshll.u32 %v1094, 16
      %v1256 = vrot.slane %v1254, 5
      %v1257 = vor.u32 %v1253, %v1256
      %v1258 = vrot.slane %v1257, 4
      %v1260 = vshll.u32 %v1095, 16
      %v1262 = vrot.slane %v1260, 5
      %v1263 = vsel %vm1129, %v1258, %v1262
      %v1264 = vshrl.u32 %v1095, 16
      %v1266 = vrot.slane %v1264, 4
      %v1267 = vor.u32 %v1266, %v1262
      %v1268 = vrot.slane %v1267, 4
      %v1270 = vshll.u32 %v1096, 16
      %v1272 = vrot.slane %v1270, 5
      %v1273 = vsel %vm1129, %v1268, %v1272
      %v1275 = vshrl.u32 %v1097, 16
      %v1277 = vrot.slane %v1275, 4
      %v1278 = vshll.u32 %v1097, 16
      %v1280 = vrot.slane %v1278, 5
      %v1281 = vor.u32 %v1277, %v1280
      %v1282 = vrot.slane %v1281, 4
      %v1284 = vshll.u32 %v1098, 16
      %v1286 = vrot.slane %v1284, 5
      %v1287 = vsel %vm1129, %v1282, %v1286
      %v1288 = vshrl.u32 %v1098, 16
      %v1290 = vrot.slane %v1288, 4
      %v1291 = vor.u32 %v1290, %v1286
      %v1292 = vrot.slane %v1291, 4
      %v1294 = vshll.u32 %v1099, 16
      %v1296 = vrot.slane %v1294, 5
      %v1297 = vsel %vm1129, %v1292, %v1296
      %v1299 = vshrl.u32 %v1100, 16
      %v1301 = vrot.slane %v1299, 4
      %v1302 = vshll.u32 %v1100, 16
      %v1304 = vrot.slane %v1302, 5
      %v1305 = vor.u32 %v1301, %v1304
      %v1306 = vrot.slane %v1305, 4
      %v1308 = vshll.u32 %v1101, 16
      %v1310 = vrot.slane %v1308, 5
      %v1311 = vsel %vm1129, %v1306, %v1310
      %v1312 = vshrl.u32 %v1101, 16
      %v1314 = vrot.slane %v1312, 4
      %v1315 = vor.u32 %v1314, %v1310
      %v1316 = vrot.slane %v1315, 4
      %v1318 = vshll.u32 %v1102, 16
      %v1320 = vrot.slane %v1318, 5
      %v1321 = vsel %vm1129, %v1316, %v1320
      %v1323 = vshrl.u32 %v1103, 16
      %v1325 = vrot.slane %v1323, 4
      %v1326 = vshll.u32 %v1103, 16
      %v1328 = vrot.slane %v1326, 5
      %v1329 = vor.u32 %v1325, %v1328
      %v1330 = vrot.slane %v1329, 4
      %v1332 = vshll.u32 %v1104, 16
      %v1334 = vrot.slane %v1332, 5
      %v1335 = vsel %vm1129, %v1330, %v1334
      %v1336 = vshrl.u32 %v1104, 16
      %v1338 = vrot.slane %v1336, 4
      %v1339 = vor.u32 %v1338, %v1334
      %v1340 = vrot.slane %v1339, 4
      %v1342 = vshll.u32 %v1105, 16
      %v1344 = vrot.slane %v1342, 5
      %v1345 = vsel %vm1129, %v1340, %v1344
      %v1347 = vshrl.u32 %v1106, 16
      %v1349 = vrot.slane %v1347, 4
      %v1350 = vshll.u32 %v1106, 16
      %v1352 = vrot.slane %v1350, 5
      %v1353 = vor.u32 %v1349, %v1352
      %v1354 = vrot.slane %v1353, 4
      %v1356 = vshll.u32 %v1107, 16
      %v1358 = vrot.slane %v1356, 5
      %v1359 = vsel %vm1129, %v1354, %v1358
      %v1360 = vshrl.u32 %v1107, 16
      %v1362 = vrot.slane %v1360, 4
      %v1363 = vor.u32 %v1362, %v1358
      %v1364 = vrot.slane %v1363, 4
      %v1366 = vshll.u32 %v1108, 16
      %v1368 = vrot.slane %v1366, 5
      %v1369 = vsel %vm1129, %v1364, %v1368
      %v1371 = vshrl.u32 %v1109, 16
      %v1373 = vrot.slane %v1371, 4
      %v1374 = vshll.u32 %v1109, 16
      %v1376 = vrot.slane %v1374, 5
      %v1377 = vor.u32 %v1373, %v1376
      %v1378 = vrot.slane %v1377, 4
      %v1380 = vshll.u32 %v1110, 16
      %v1382 = vrot.slane %v1380, 5
      %v1383 = vsel %vm1129, %v1378, %v1382
      %v1384 = vshrl.u32 %v1110, 16
      %v1386 = vrot.slane %v1384, 4
      %v1387 = vor.u32 %v1386, %v1382
      %v1388 = vrot.slane %v1387, 4
      %v1390 = vshll.u32 %v1111, 16
      %v1392 = vrot.slane %v1390, 5
      %v1393 = vsel %vm1129, %v1388, %v1392
      %v1395 = vshrl.u32 %v1112, 16
      %v1397 = vrot.slane %v1395, 4
      %v1398 = vshll.u32 %v1112, 16
      %v1400 = vrot.slane %v1398, 5
      %v1401 = vor.u32 %v1397, %v1400
      %v1402 = vrot.slane %v1401, 4
      %v1404 = vshll.u32 %v1113, 16
      %v1406 = vrot.slane %v1404, 5
      %v1407 = vsel %vm1129, %v1402, %v1406
      %v1408 = vshrl.u32 %v1113, 16
      %v1410 = vrot.slane %v1408, 4
      %v1411 = vor.u32 %v1410, %v1406
      %v1412 = vrot.slane %v1411, 4
      %v1414 = vshll.u32 %v1114, 16
      %v1416 = vrot.slane %v1414, 5
      %v1417 = vsel %vm1129, %v1412, %v1416
      %v1419 = vshrl.u32 %v1115, 16
      %v1421 = vrot.slane %v1419, 4
      %v1422 = vshll.u32 %v1115, 16
      %v1424 = vrot.slane %v1422, 5
      %v1425 = vor.u32 %v1421, %v1424
      %v1426 = vrot.slane %v1425, 4
      %v1428 = vshll.u32 %v1116, 16
      %v1430 = vrot.slane %v1428, 5
      %v1431 = vsel %vm1129, %v1426, %v1430
      %v1432 = vshrl.u32 %v1116, 16
      %v1434 = vrot.slane %v1432, 4
      %v1435 = vor.u32 %v1434, %v1430
      %v1436 = vrot.slane %v1435, 4
      %v1438 = vshll.u32 %v1117, 16
      %v1440 = vrot.slane %v1438, 5
      %v1441 = vsel %vm1129, %v1436, %v1440
      %v1443 = vshrl.u32 %v1118, 16
      %v1445 = vrot.slane %v1443, 4
      %v1446 = vshll.u32 %v1118, 16
      %v1448 = vrot.slane %v1446, 5
      %v1449 = vor.u32 %v1445, %v1448
      %v1450 = vrot.slane %v1449, 4
      %v1452 = vshll.u32 %v1119, 16
      %v1454 = vrot.slane %v1452, 5
      %v1455 = vsel %vm1129, %v1450, %v1454
      %v1456 = vshrl.u32 %v1119, 16
      %v1458 = vrot.slane %v1456, 4
      %v1459 = vor.u32 %v1458, %v1454
      %v1460 = vrot.slane %v1459, 4
      %v1462 = vshll.u32 %v1120, 16
      %v1464 = vrot.slane %v1462, 5
      %v1465 = vsel %vm1129, %v1460, %v1464
      %v1467 = vshrl.u32 %v1121, 16
      %v1469 = vrot.slane %v1467, 4
      %v1470 = vshll.u32 %v1121, 16
      %v1472 = vrot.slane %v1470, 5
      %v1473 = vor.u32 %v1469, %v1472
      %v1474 = vrot.slane %v1473, 4
      %v1476 = vshll.u32 %v1122, 16
      %v1478 = vrot.slane %v1476, 5
      %v1479 = vsel %vm1129, %v1474, %v1478
      %v1480 = vshrl.u32 %v1122, 16
      %v1482 = vrot.slane %v1480, 4
      %v1483 = vor.u32 %v1482, %v1478
      %v1484 = vrot.slane %v1483, 4
      %v1486 = vshll.u32 %v1123, 16
      %v1488 = vrot.slane %v1486, 5
      %v1489 = vsel %vm1129, %v1484, %v1488
      %v1491 = vshrl.u32 %v1124, 16
      %v1493 = vrot.slane %v1491, 4
      %v1494 = vshll.u32 %v1124, 16
      %v1496 = vrot.slane %v1494, 5
      %v1497 = vor.u32 %v1493, %v1496
      %v1498 = vrot.slane %v1497, 4
      %v1500 = vshll.u32 %v1125, 16
      %v1502 = vrot.slane %v1500, 5
      %v1503 = vsel %vm1129, %v1498, %v1502
      %v1504 = vshrl.u32 %v1125, 16
      %v1506 = vrot.slane %v1504, 4
      %v1507 = vor.u32 %v1506, %v1502
      %v1508 = vrot.slane %v1507, 4
      %v1510 = vshll.u32 %v1126, 16
      %v1512 = vrot.slane %v1510, 5
      %v1513 = vsel %vm1129, %v1508, %v1512
      %1546 = vst [vmem:[#allocation3 + $0x4] sm:$0xf] %v1143
      %1547 = vst [vmem:[#allocation3 + $0x28] sm:$0xf] %v1153
      %1548 = vst [vmem:[#allocation3 + $0x4c] sm:$0xf] %v1167
      %1549 = vst [vmem:[#allocation3 + $0x70] sm:$0xf] %v1177
      %1550 = vst [vmem:[#allocation3 + $0x94] sm:$0xf] %v1191
      %1551 = vst [vmem:[#allocation3 + $0xb8] sm:$0xf] %v1201
      %1552 = vst [vmem:[#allocation3 + $0xdc] sm:$0xf] %v1215
      %1553 = vst [vmem:[#allocation3 + $0x100] sm:$0xf] %v1225
      %1554 = vst [vmem:[#allocation3 + $0x124] sm:$0xf] %v1239
      %1555 = vst [vmem:[#allocation3 + $0x148] sm:$0xf] %v1249
      %1556 = vst [vmem:[#allocation3 + $0x16c] sm:$0xf] %v1263
      %1557 = vst [vmem:[#allocation3 + $0x190] sm:$0xf] %v1273
      %1558 = vst [vmem:[#allocation3 + $0x1b4] sm:$0xf] %v1287
      %1559 = vst [vmem:[#allocation3 + $0x1d8] sm:$0xf] %v1297
      %1560 = vst [vmem:[#allocation3 + $0x1fc] sm:$0xf] %v1311
      %1561 = vst [vmem:[#allocation3 + $0x220] sm:$0xf] %v1321
      %1562 = vst [vmem:[#allocation3 + $0x244] sm:$0xf] %v1335
      %1563 = vst [vmem:[#allocation3 + $0x268] sm:$0xf] %v1345
      %1564 = vst [vmem:[#allocation3 + $0x28c] sm:$0xf] %v1359
      %1565 = vst [vmem:[#allocation3 + $0x2b0] sm:$0xf] %v1369
      %1566 = vst [vmem:[#allocation3 + $0x2d4] sm:$0xf] %v1383
      %1567 = vst [vmem:[#allocation3 + $0x2f8] sm:$0xf] %v1393
      %1568 = vst [vmem:[#allocation3 + $0x31c] sm:$0xf] %v1407
      %1569 = vst [vmem:[#allocation3 + $0x340] sm:$0xf] %v1417
      %1570 = vst [vmem:[#allocation3 + $0x364] sm:$0xf] %v1431
      %1571 = vst [vmem:[#allocation3 + $0x388] sm:$0xf] %v1441
      %1572 = vst [vmem:[#allocation3 + $0x3ac] sm:$0xf] %v1455
      %1573 = vst [vmem:[#allocation3 + $0x3d0] sm:$0xf] %v1465
      %1574 = vst [vmem:[#allocation3 + $0x3f4] sm:$0xf] %v1479
      %1575 = vst [vmem:[#allocation3 + $0x418] sm:$0xf] %v1489
      %1576 = vst [vmem:[#allocation3 + $0x43c] sm:$0xf] %v1503
      %1577 = vst [vmem:[#allocation3 + $0x460] sm:$0xf] %v1513
      %v1578 = vld [vmem:[%s1014] sm:$0xe]
      %v1579 = vld [vmem:[%s1014 + $0x4] sm:$0xf]
      %v1580 = vld [vmem:[%s1014 + $0x8] sm:$0x1]
      %v1581 = vld [vmem:[%s1014 + $0xc] sm:$0xe]
      %v1582 = vld [vmem:[%s1014 + $0x10] sm:$0xf]
      %v1583 = vld [vmem:[%s1014 + $0x14] sm:$0x1]
      %v1584 = vld [vmem:[%s1014 + $0x18] sm:$0xe]
      %v1585 = vld [vmem:[%s1014 + $0x1c] sm:$0xf]
      %v1586 = vld [vmem:[%s1014 + $0x20] sm:$0x1]
      %v1587 = vld [vmem:[%s1014 + $0x24] sm:$0xe]
      %v1588 = vld [vmem:[%s1014 + $0x28] sm:$0xf]
      %v1589 = vld [vmem:[%s1014 + $0x2c] sm:$0x1]
      %v1590 = vld [vmem:[%s1014 + $0x30] sm:$0xe]
      %v1591 = vld [vmem:[%s1014 + $0x34] sm:$0xf]
      %v1592 = vld [vmem:[%s1014 + $0x38] sm:$0x1]
      %v1593 = vld [vmem:[%s1014 + $0x3c] sm:$0xe]
      %v1594 = vld [vmem:[%s1014 + $0x40] sm:$0xf]
      %v1595 = vld [vmem:[%s1014 + $0x44] sm:$0x1]
      %v1596 = vld [vmem:[%s1014 + $0x48] sm:$0xe]
      %v1597 = vld [vmem:[%s1014 + $0x4c] sm:$0xf]
      %v1598 = vld [vmem:[%s1014 + $0x50] sm:$0x1]
      %v1599 = vld [vmem:[%s1014 + $0x54] sm:$0xe]
      %v1600 = vld [vmem:[%s1014 + $0x58] sm:$0xf]
      %v1601 = vld [vmem:[%s1014 + $0x5c] sm:$0x1]
      %v1602 = vld [vmem:[%s1014 + $0x60] sm:$0xe]
      %v1603 = vld [vmem:[%s1014 + $0x64] sm:$0xf]
      %v1604 = vld [vmem:[%s1014 + $0x68] sm:$0x1]
      %v1605 = vld [vmem:[%s1014 + $0x6c] sm:$0xe]
      %v1606 = vld [vmem:[%s1014 + $0x70] sm:$0xf]
      %v1607 = vld [vmem:[%s1014 + $0x74] sm:$0x1]
      %v1608 = vld [vmem:[%s1014 + $0x78] sm:$0xe]
      %v1609 = vld [vmem:[%s1014 + $0x7c] sm:$0xf]
      %v1610 = vld [vmem:[%s1014 + $0x80] sm:$0x1]
      %v1611 = vld [vmem:[%s1014 + $0x84] sm:$0xe]
      %v1612 = vld [vmem:[%s1014 + $0x88] sm:$0xf]
      %v1613 = vld [vmem:[%s1014 + $0x8c] sm:$0x1]
      %v1614 = vld [vmem:[%s1014 + $0x90] sm:$0xe]
      %v1615 = vld [vmem:[%s1014 + $0x94] sm:$0xf]
      %v1616 = vld [vmem:[%s1014 + $0x98] sm:$0x1]
      %v1617 = vld [vmem:[%s1014 + $0x9c] sm:$0xe]
      %v1618 = vld [vmem:[%s1014 + $0xa0] sm:$0xf]
      %v1619 = vld [vmem:[%s1014 + $0xa4] sm:$0x1]
      %v1620 = vld [vmem:[%s1014 + $0xa8] sm:$0xe]
      %v1621 = vld [vmem:[%s1014 + $0xac] sm:$0xf]
      %v1622 = vld [vmem:[%s1014 + $0xb0] sm:$0x1]
      %v1623 = vld [vmem:[%s1014 + $0xb4] sm:$0xe]
      %v1624 = vld [vmem:[%s1014 + $0xb8] sm:$0xf]
      %v1625 = vld [vmem:[%s1014 + $0xbc] sm:$0x1]
      %vm1674 = vcmask 1042432
      %vm1675 = vcmask 1046532
      %vm1676 = vmor %vm1674, %vm1675
      %v1677 = vrot.slane %v1578, 5
      %v1678 = vrot.slane %v1677, 4
      %v1679 = vrot.slane %v1579, 5
      %v1680 = vsel %vm1676, %v1678, %v1679
      %v1681 = vrot.slane %v1679, 4
      %v1682 = vrot.slane %v1580, 5
      %v1683 = vsel %vm1676, %v1681, %v1682
      %v1684 = vrot.slane %v1581, 5
      %v1685 = vrot.slane %v1684, 4
      %v1686 = vrot.slane %v1582, 5
      %v1687 = vsel %vm1676, %v1685, %v1686
      %v1688 = vrot.slane %v1686, 4
      %v1689 = vrot.slane %v1583, 5
      %v1690 = vsel %vm1676, %v1688, %v1689
      %v1691 = vrot.slane %v1584, 5
      %v1692 = vrot.slane %v1691, 4
      %v1693 = vrot.slane %v1585, 5
      %v1694 = vsel %vm1676, %v1692, %v1693
      %v1695 = vrot.slane %v1693, 4
      %v1696 = vrot.slane %v1586, 5
      %v1697 = vsel %vm1676, %v1695, %v1696
      %v1698 = vrot.slane %v1587, 5
      %v1699 = vrot.slane %v1698, 4
      %v1700 = vrot.slane %v1588, 5
      %v1701 = vsel %vm1676, %v1699, %v1700
      %v1702 = vrot.slane %v1700, 4
      %v1703 = vrot.slane %v1589, 5
      %v1704 = vsel %vm1676, %v1702, %v1703
      %v1705 = vrot.slane %v1590, 5
      %v1706 = vrot.slane %v1705, 4
      %v1707 = vrot.slane %v1591, 5
      %v1708 = vsel %vm1676, %v1706, %v1707
      %v1709 = vrot.slane %v1707, 4
      %v1710 = vrot.slane %v1592, 5
      %v1711 = vsel %vm1676, %v1709, %v1710
      %v1712 = vrot.slane %v1593, 5
      %v1713 = vrot.slane %v1712, 4
      %v1714 = vrot.slane %v1594, 5
      %v1715 = vsel %vm1676, %v1713, %v1714
      %v1716 = vrot.slane %v1714, 4
      %v1717 = vrot.slane %v1595, 5
      %v1718 = vsel %vm1676, %v1716, %v1717
      %v1719 = vrot.slane %v1596, 5
      %v1720 = vrot.slane %v1719, 4
      %v1721 = vrot.slane %v1597, 5
      %v1722 = vsel %vm1676, %v1720, %v1721
      %v1723 = vrot.slane %v1721, 4
      %v1724 = vrot.slane %v1598, 5
      %v1725 = vsel %vm1676, %v1723, %v1724
      %v1726 = vrot.slane %v1599, 5
      %v1727 = vrot.slane %v1726, 4
      %v1728 = vrot.slane %v1600, 5
      %v1729 = vsel %vm1676, %v1727, %v1728
      %v1730 = vrot.slane %v1728, 4
      %v1731 = vrot.slane %v1601, 5
      %v1732 = vsel %vm1676, %v1730, %v1731
      %v1733 = vrot.slane %v1602, 5
      %v1734 = vrot.slane %v1733, 4
      %v1735 = vrot.slane %v1603, 5
      %v1736 = vsel %vm1676, %v1734, %v1735
      %v1737 = vrot.slane %v1735, 4
      %v1738 = vrot.slane %v1604, 5
      %v1739 = vsel %vm1676, %v1737, %v1738
      %v1740 = vrot.slane %v1605, 5
      %v1741 = vrot.slane %v1740, 4
      %v1742 = vrot.slane %v1606, 5
      %v1743 = vsel %vm1676, %v1741, %v1742
      %v1744 = vrot.slane %v1742, 4
      %v1745 = vrot.slane %v1607, 5
      %v1746 = vsel %vm1676, %v1744, %v1745
      %v1747 = vrot.slane %v1608, 5
      %v1748 = vrot.slane %v1747, 4
      %v1749 = vrot.slane %v1609, 5
      %v1750 = vsel %vm1676, %v1748, %v1749
      %v1751 = vrot.slane %v1749, 4
      %v1752 = vrot.slane %v1610, 5
      %v1753 = vsel %vm1676, %v1751, %v1752
      %v1754 = vrot.slane %v1611, 5
      %v1755 = vrot.slane %v1754, 4
      %v1756 = vrot.slane %v1612, 5
      %v1757 = vsel %vm1676, %v1755, %v1756
      %v1758 = vrot.slane %v1756, 4
      %v1759 = vrot.slane %v1613, 5
      %v1760 = vsel %vm1676, %v1758, %v1759
      %v1761 = vrot.slane %v1614, 5
      %v1762 = vrot.slane %v1761, 4
      %v1763 = vrot.slane %v1615, 5
      %v1764 = vsel %vm1676, %v1762, %v1763
      %v1765 = vrot.slane %v1763, 4
      %v1766 = vrot.slane %v1616, 5
      %v1767 = vsel %vm1676, %v1765, %v1766
      %v1768 = vrot.slane %v1617, 5
      %v1769 = vrot.slane %v1768, 4
      %v1770 = vrot.slane %v1618, 5
      %v1771 = vsel %vm1676, %v1769, %v1770
      %v1772 = vrot.slane %v1770, 4
      %v1773 = vrot.slane %v1619, 5
      %v1774 = vsel %vm1676, %v1772, %v1773
      %v1775 = vrot.slane %v1620, 5
      %v1776 = vrot.slane %v1775, 4
      %v1777 = vrot.slane %v1621, 5
      %v1778 = vsel %vm1676, %v1776, %v1777
      %v1779 = vrot.slane %v1777, 4
      %v1780 = vrot.slane %v1622, 5
      %v1781 = vsel %vm1676, %v1779, %v1780
      %v1782 = vrot.slane %v1623, 5
      %v1783 = vrot.slane %v1782, 4
      %v1784 = vrot.slane %v1624, 5
      %v1785 = vsel %vm1676, %v1783, %v1784
      %v1786 = vrot.slane %v1784, 4
      %v1787 = vrot.slane %v1625, 5
      %v1788 = vsel %vm1676, %v1786, %v1787
      %1821 = vst [vmem:[#allocation3 + $0x8] sm:$0xf] %v1680
      %1822 = vst [vmem:[#allocation3 + $0x2c] sm:$0xf] %v1683
      %1823 = vst [vmem:[#allocation3 + $0x50] sm:$0xf] %v1687
      %1824 = vst [vmem:[#allocation3 + $0x74] sm:$0xf] %v1690
      %1825 = vst [vmem:[#allocation3 + $0x98] sm:$0xf] %v1694
      %1826 = vst [vmem:[#allocation3 + $0xbc] sm:$0xf] %v1697
      %1827 = vst [vmem:[#allocation3 + $0xe0] sm:$0xf] %v1701
      %1828 = vst [vmem:[#allocation3 + $0x104] sm:$0xf] %v1704
      %1829 = vst [vmem:[#allocation3 + $0x128] sm:$0xf] %v1708
      %1830 = vst [vmem:[#allocation3 + $0x14c] sm:$0xf] %v1711
      %1831 = vst [vmem:[#allocation3 + $0x170] sm:$0xf] %v1715
      %1832 = vst [vmem:[#allocation3 + $0x194] sm:$0xf] %v1718
      %1833 = vst [vmem:[#allocation3 + $0x1b8] sm:$0xf] %v1722
      %1834 = vst [vmem:[#allocation3 + $0x1dc] sm:$0xf] %v1725
      %1835 = vst [vmem:[#allocation3 + $0x200] sm:$0xf] %v1729
      %1836 = vst [vmem:[#allocation3 + $0x224] sm:$0xf] %v1732
      %1837 = vst [vmem:[#allocation3 + $0x248] sm:$0xf] %v1736
      %1838 = vst [vmem:[#allocation3 + $0x26c] sm:$0xf] %v1739
      %1839 = vst [vmem:[#allocation3 + $0x290] sm:$0xf] %v1743
      %1840 = vst [vmem:[#allocation3 + $0x2b4] sm:$0xf] %v1746
      %1841 = vst [vmem:[#allocation3 + $0x2d8] sm:$0xf] %v1750
      %1842 = vst [vmem:[#allocation3 + $0x2fc] sm:$0xf] %v1753
      %1843 = vst [vmem:[#allocation3 + $0x320] sm:$0xf] %v1757
      %1844 = vst [vmem:[#allocation3 + $0x344] sm:$0xf] %v1760
      %1845 = vst [vmem:[#allocation3 + $0x368] sm:$0xf] %v1764
      %1846 = vst [vmem:[#allocation3 + $0x38c] sm:$0xf] %v1767
      %1847 = vst [vmem:[#allocation3 + $0x3b0] sm:$0xf] %v1771
      %1848 = vst [vmem:[#allocation3 + $0x3d4] sm:$0xf] %v1774
      %1849 = vst [vmem:[#allocation3 + $0x3f8] sm:$0xf] %v1778
      %1850 = vst [vmem:[#allocation3 + $0x41c] sm:$0xf] %v1781
      %1851 = vst [vmem:[#allocation3 + $0x440] sm:$0xf] %v1785
      %1852 = vst [vmem:[#allocation3 + $0x464] sm:$0xf] %v1788
      %s1853 = sadd.s32 %s1011, 1
      %s1854 = smul.u32 %s1853, 3
      %s1855 = smul.addr %s1854, 4
      %s1856 = scalar_lea.vmem [#allocation2], %s1855
      %v1857 = vld [vmem:[%s1856] sm:$0xf]
      %v1858 = vld [vmem:[%s1856 + $0x4] sm:$0xf]
      %v1859 = vld [vmem:[%s1856 + $0xc] sm:$0xf]
      %v1860 = vld [vmem:[%s1856 + $0x10] sm:$0xf]
      %v1861 = vld [vmem:[%s1856 + $0x18] sm:$0xf]
      %v1862 = vld [vmem:[%s1856 + $0x1c] sm:$0xf]
      %v1863 = vld [vmem:[%s1856 + $0x24] sm:$0xf]
      %v1864 = vld [vmem:[%s1856 + $0x28] sm:$0xf]
      %v1865 = vld [vmem:[%s1856 + $0x30] sm:$0xf]
      %v1866 = vld [vmem:[%s1856 + $0x34] sm:$0xf]
      %v1867 = vld [vmem:[%s1856 + $0x3c] sm:$0xf]
      %v1868 = vld [vmem:[%s1856 + $0x40] sm:$0xf]
      %v1869 = vld [vmem:[%s1856 + $0x48] sm:$0xf]
      %v1870 = vld [vmem:[%s1856 + $0x4c] sm:$0xf]
      %v1871 = vld [vmem:[%s1856 + $0x54] sm:$0xf]
      %v1872 = vld [vmem:[%s1856 + $0x58] sm:$0xf]
      %v1873 = vld [vmem:[%s1856 + $0x60] sm:$0xf]
      %v1874 = vld [vmem:[%s1856 + $0x64] sm:$0xf]
      %v1875 = vld [vmem:[%s1856 + $0x6c] sm:$0xf]
      %v1876 = vld [vmem:[%s1856 + $0x70] sm:$0xf]
      %v1877 = vld [vmem:[%s1856 + $0x78] sm:$0xf]
      %v1878 = vld [vmem:[%s1856 + $0x7c] sm:$0xf]
      %v1879 = vld [vmem:[%s1856 + $0x84] sm:$0xf]
      %v1880 = vld [vmem:[%s1856 + $0x88] sm:$0xf]
      %v1881 = vld [vmem:[%s1856 + $0x90] sm:$0xf]
      %v1882 = vld [vmem:[%s1856 + $0x94] sm:$0xf]
      %v1883 = vld [vmem:[%s1856 + $0x9c] sm:$0xf]
      %v1884 = vld [vmem:[%s1856 + $0xa0] sm:$0xf]
      %v1885 = vld [vmem:[%s1856 + $0xa8] sm:$0xf]
      %v1886 = vld [vmem:[%s1856 + $0xac] sm:$0xf]
      %v1887 = vld [vmem:[%s1856 + $0xb4] sm:$0xf]
      %v1888 = vld [vmem:[%s1856 + $0xb8] sm:$0xf]
      %1889 = vst [vmem:[#allocation3 + $0xc] sm:$0xf] %v1857
      %1890 = vst [vmem:[#allocation3 + $0x30] sm:$0xf] %v1858
      %1891 = vst [vmem:[#allocation3 + $0x54] sm:$0xf] %v1859
      %1892 = vst [vmem:[#allocation3 + $0x78] sm:$0xf] %v1860
      %1893 = vst [vmem:[#allocation3 + $0x9c] sm:$0xf] %v1861
      %1894 = vst [vmem:[#allocation3 + $0xc0] sm:$0xf] %v1862
      %1895 = vst [vmem:[#allocation3 + $0xe4] sm:$0xf] %v1863
      %1896 = vst [vmem:[#allocation3 + $0x108] sm:$0xf] %v1864
      %1897 = vst [vmem:[#allocation3 + $0x12c] sm:$0xf] %v1865
      %1898 = vst [vmem:[#allocation3 + $0x150] sm:$0xf] %v1866
      %1899 = vst [vmem:[#allocation3 + $0x174] sm:$0xf] %v1867
      %1900 = vst [vmem:[#allocation3 + $0x198] sm:$0xf] %v1868
      %1901 = vst [vmem:[#allocation3 + $0x1bc] sm:$0xf] %v1869
      %1902 = vst [vmem:[#allocation3 + $0x1e0] sm:$0xf] %v1870
      %1903 = vst [vmem:[#allocation3 + $0x204] sm:$0xf] %v1871
      %1904 = vst [vmem:[#allocation3 + $0x228] sm:$0xf] %v1872
      %1905 = vst [vmem:[#allocation3 + $0x24c] sm:$0xf] %v1873
      %1906 = vst [vmem:[#allocation3 + $0x270] sm:$0xf] %v1874
      %1907 = vst [vmem:[#allocation3 + $0x294] sm:$0xf] %v1875
      %1908 = vst [vmem:[#allocation3 + $0x2b8] sm:$0xf] %v1876
      %1909 = vst [vmem:[#allocation3 + $0x2dc] sm:$0xf] %v1877
      %1910 = vst [vmem:[#allocation3 + $0x300] sm:$0xf] %v1878
      %1911 = vst [vmem:[#allocation3 + $0x324] sm:$0xf] %v1879
      %1912 = vst [vmem:[#allocation3 + $0x348] sm:$0xf] %v1880
      %1913 = vst [vmem:[#allocation3 + $0x36c] sm:$0xf] %v1881
      %1914 = vst [vmem:[#allocation3 + $0x390] sm:$0xf] %v1882
      %1915 = vst [vmem:[#allocation3 + $0x3b4] sm:$0xf] %v1883
      %1916 = vst [vmem:[#allocation3 + $0x3d8] sm:$0xf] %v1884
      %1917 = vst [vmem:[#allocation3 + $0x3fc] sm:$0xf] %v1885
      %1918 = vst [vmem:[#allocation3 + $0x420] sm:$0xf] %v1886
      %1919 = vst [vmem:[#allocation3 + $0x444] sm:$0xf] %v1887
      %1920 = vst [vmem:[#allocation3 + $0x468] sm:$0xf] %v1888
      %v1921 = vld [vmem:[%s1856] sm:$0xf]
      %v1922 = vld [vmem:[%s1856 + $0x4] sm:$0xf]
      %v1923 = vld [vmem:[%s1856 + $0x8] sm:$0x1]
      %v1924 = vld [vmem:[%s1856 + $0xc] sm:$0xf]
      %v1925 = vld [vmem:[%s1856 + $0x10] sm:$0xf]
      %v1926 = vld [vmem:[%s1856 + $0x14] sm:$0x1]
      %v1927 = vld [vmem:[%s1856 + $0x18] sm:$0xf]
      %v1928 = vld [vmem:[%s1856 + $0x1c] sm:$0xf]
      %v1929 = vld [vmem:[%s1856 + $0x20] sm:$0x1]
      %v1930 = vld [vmem:[%s1856 + $0x24] sm:$0xf]
      %v1931 = vld [vmem:[%s1856 + $0x28] sm:$0xf]
      %v1932 = vld [vmem:[%s1856 + $0x2c] sm:$0x1]
      %v1933 = vld [vmem:[%s1856 + $0x30] sm:$0xf]
      %v1934 = vld [vmem:[%s1856 + $0x34] sm:$0xf]
      %v1935 = vld [vmem:[%s1856 + $0x38] sm:$0x1]
      %v1936 = vld [vmem:[%s1856 + $0x3c] sm:$0xf]
      %v1937 = vld [vmem:[%s1856 + $0x40] sm:$0xf]
      %v1938 = vld [vmem:[%s1856 + $0x44] sm:$0x1]
      %v1939 = vld [vmem:[%s1856 + $0x48] sm:$0xf]
      %v1940 = vld [vmem:[%s1856 + $0x4c] sm:$0xf]
      %v1941 = vld [vmem:[%s1856 + $0x50] sm:$0x1]
      %v1942 = vld [vmem:[%s1856 + $0x54] sm:$0xf]
      %v1943 = vld [vmem:[%s1856 + $0x58] sm:$0xf]
      %v1944 = vld [vmem:[%s1856 + $0x5c] sm:$0x1]
      %v1945 = vld [vmem:[%s1856 + $0x60] sm:$0xf]
      %v1946 = vld [vmem:[%s1856 + $0x64] sm:$0xf]
      %v1947 = vld [vmem:[%s1856 + $0x68] sm:$0x1]
      %v1948 = vld [vmem:[%s1856 + $0x6c] sm:$0xf]
      %v1949 = vld [vmem:[%s1856 + $0x70] sm:$0xf]
      %v1950 = vld [vmem:[%s1856 + $0x74] sm:$0x1]
      %v1951 = vld [vmem:[%s1856 + $0x78] sm:$0xf]
      %v1952 = vld [vmem:[%s1856 + $0x7c] sm:$0xf]
      %v1953 = vld [vmem:[%s1856 + $0x80] sm:$0x1]
      %v1954 = vld [vmem:[%s1856 + $0x84] sm:$0xf]
      %v1955 = vld [vmem:[%s1856 + $0x88] sm:$0xf]
      %v1956 = vld [vmem:[%s1856 + $0x8c] sm:$0x1]
      %v1957 = vld [vmem:[%s1856 + $0x90] sm:$0xf]
      %v1958 = vld [vmem:[%s1856 + $0x94] sm:$0xf]
      %v1959 = vld [vmem:[%s1856 + $0x98] sm:$0x1]
      %v1960 = vld [vmem:[%s1856 + $0x9c] sm:$0xf]
      %v1961 = vld [vmem:[%s1856 + $0xa0] sm:$0xf]
      %v1962 = vld [vmem:[%s1856 + $0xa4] sm:$0x1]
      %v1963 = vld [vmem:[%s1856 + $0xa8] sm:$0xf]
      %v1964 = vld [vmem:[%s1856 + $0xac] sm:$0xf]
      %v1965 = vld [vmem:[%s1856 + $0xb0] sm:$0x1]
      %v1966 = vld [vmem:[%s1856 + $0xb4] sm:$0xf]
      %v1967 = vld [vmem:[%s1856 + $0xb8] sm:$0xf]
      %v1968 = vld [vmem:[%s1856 + $0xbc] sm:$0x1]
      %v1970 = vshrl.u32 %v1921, 16
      %v1972 = vrot.slane %v1970, 4
      %v1973 = vshll.u32 %v1921, 16
      %v1975 = vrot.slane %v1973, 5
      %v1976 = vor.u32 %v1972, %v1975
      %v1977 = vrot.slane %v1976, 4
      %v1979 = vshll.u32 %v1922, 16
      %v1981 = vrot.slane %v1979, 5
      %v1982 = vsel %vm1129, %v1977, %v1981
      %v1983 = vshrl.u32 %v1922, 16
      %v1985 = vrot.slane %v1983, 4
      %v1986 = vor.u32 %v1985, %v1981
      %v1987 = vrot.slane %v1986, 4
      %v1989 = vshll.u32 %v1923, 16
      %v1991 = vrot.slane %v1989, 5
      %v1992 = vsel %vm1129, %v1987, %v1991
      %v1994 = vshrl.u32 %v1924, 16
      %v1996 = vrot.slane %v1994, 4
      %v1997 = vshll.u32 %v1924, 16
      %v1999 = vrot.slane %v1997, 5
      %v2000 = vor.u32 %v1996, %v1999
      %v2001 = vrot.slane %v2000, 4
      %v2003 = vshll.u32 %v1925, 16
      %v2005 = vrot.slane %v2003, 5
      %v2006 = vsel %vm1129, %v2001, %v2005
      %v2007 = vshrl.u32 %v1925, 16
      %v2009 = vrot.slane %v2007, 4
      %v2010 = vor.u32 %v2009, %v2005
      %v2011 = vrot.slane %v2010, 4
      %v2013 = vshll.u32 %v1926, 16
      %v2015 = vrot.slane %v2013, 5
      %v2016 = vsel %vm1129, %v2011, %v2015
      %v2018 = vshrl.u32 %v1927, 16
      %v2020 = vrot.slane %v2018, 4
      %v2021 = vshll.u32 %v1927, 16
      %v2023 = vrot.slane %v2021, 5
      %v2024 = vor.u32 %v2020, %v2023
      %v2025 = vrot.slane %v2024, 4
      %v2027 = vshll.u32 %v1928, 16
      %v2029 = vrot.slane %v2027, 5
      %v2030 = vsel %vm1129, %v2025, %v2029
      %v2031 = vshrl.u32 %v1928, 16
      %v2033 = vrot.slane %v2031, 4
      %v2034 = vor.u32 %v2033, %v2029
      %v2035 = vrot.slane %v2034, 4
      %v2037 = vshll.u32 %v1929, 16
      %v2039 = vrot.slane %v2037, 5
      %v2040 = vsel %vm1129, %v2035, %v2039
      %v2042 = vshrl.u32 %v1930, 16
      %v2044 = vrot.slane %v2042, 4
      %v2045 = vshll.u32 %v1930, 16
      %v2047 = vrot.slane %v2045, 5
      %v2048 = vor.u32 %v2044, %v2047
      %v2049 = vrot.slane %v2048, 4
      %v2051 = vshll.u32 %v1931, 16
      %v2053 = vrot.slane %v2051, 5
      %v2054 = vsel %vm1129, %v2049, %v2053
      %v2055 = vshrl.u32 %v1931, 16
      %v2057 = vrot.slane %v2055, 4
      %v2058 = vor.u32 %v2057, %v2053
      %v2059 = vrot.slane %v2058, 4
      %v2061 = vshll.u32 %v1932, 16
      %v2063 = vrot.slane %v2061, 5
      %v2064 = vsel %vm1129, %v2059, %v2063
      %v2066 = vshrl.u32 %v1933, 16
      %v2068 = vrot.slane %v2066, 4
      %v2069 = vshll.u32 %v1933, 16
      %v2071 = vrot.slane %v2069, 5
      %v2072 = vor.u32 %v2068, %v2071
      %v2073 = vrot.slane %v2072, 4
      %v2075 = vshll.u32 %v1934, 16
      %v2077 = vrot.slane %v2075, 5
      %v2078 = vsel %vm1129, %v2073, %v2077
      %v2079 = vshrl.u32 %v1934, 16
      %v2081 = vrot.slane %v2079, 4
      %v2082 = vor.u32 %v2081, %v2077
      %v2083 = vrot.slane %v2082, 4
      %v2085 = vshll.u32 %v1935, 16
      %v2087 = vrot.slane %v2085, 5
      %v2088 = vsel %vm1129, %v2083, %v2087
      %v2090 = vshrl.u32 %v1936, 16
      %v2092 = vrot.slane %v2090, 4
      %v2093 = vshll.u32 %v1936, 16
      %v2095 = vrot.slane %v2093, 5
      %v2096 = vor.u32 %v2092, %v2095
      %v2097 = vrot.slane %v2096, 4
      %v2099 = vshll.u32 %v1937, 16
      %v2101 = vrot.slane %v2099, 5
      %v2102 = vsel %vm1129, %v2097, %v2101
      %v2103 = vshrl.u32 %v1937, 16
      %v2105 = vrot.slane %v2103, 4
      %v2106 = vor.u32 %v2105, %v2101
      %v2107 = vrot.slane %v2106, 4
      %v2109 = vshll.u32 %v1938, 16
      %v2111 = vrot.slane %v2109, 5
      %v2112 = vsel %vm1129, %v2107, %v2111
      %v2114 = vshrl.u32 %v1939, 16
      %v2116 = vrot.slane %v2114, 4
      %v2117 = vshll.u32 %v1939, 16
      %v2119 = vrot.slane %v2117, 5
      %v2120 = vor.u32 %v2116, %v2119
      %v2121 = vrot.slane %v2120, 4
      %v2123 = vshll.u32 %v1940, 16
      %v2125 = vrot.slane %v2123, 5
      %v2126 = vsel %vm1129, %v2121, %v2125
      %v2127 = vshrl.u32 %v1940, 16
      %v2129 = vrot.slane %v2127, 4
      %v2130 = vor.u32 %v2129, %v2125
      %v2131 = vrot.slane %v2130, 4
      %v2133 = vshll.u32 %v1941, 16
      %v2135 = vrot.slane %v2133, 5
      %v2136 = vsel %vm1129, %v2131, %v2135
      %v2138 = vshrl.u32 %v1942, 16
      %v2140 = vrot.slane %v2138, 4
      %v2141 = vshll.u32 %v1942, 16
      %v2143 = vrot.slane %v2141, 5
      %v2144 = vor.u32 %v2140, %v2143
      %v2145 = vrot.slane %v2144, 4
      %v2147 = vshll.u32 %v1943, 16
      %v2149 = vrot.slane %v2147, 5
      %v2150 = vsel %vm1129, %v2145, %v2149
      %v2151 = vshrl.u32 %v1943, 16
      %v2153 = vrot.slane %v2151, 4
      %v2154 = vor.u32 %v2153, %v2149
      %v2155 = vrot.slane %v2154, 4
      %v2157 = vshll.u32 %v1944, 16
      %v2159 = vrot.slane %v2157, 5
      %v2160 = vsel %vm1129, %v2155, %v2159
      %v2162 = vshrl.u32 %v1945, 16
      %v2164 = vrot.slane %v2162, 4
      %v2165 = vshll.u32 %v1945, 16
      %v2167 = vrot.slane %v2165, 5
      %v2168 = vor.u32 %v2164, %v2167
      %v2169 = vrot.slane %v2168, 4
      %v2171 = vshll.u32 %v1946, 16
      %v2173 = vrot.slane %v2171, 5
      %v2174 = vsel %vm1129, %v2169, %v2173
      %v2175 = vshrl.u32 %v1946, 16
      %v2177 = vrot.slane %v2175, 4
      %v2178 = vor.u32 %v2177, %v2173
      %v2179 = vrot.slane %v2178, 4
      %v2181 = vshll.u32 %v1947, 16
      %v2183 = vrot.slane %v2181, 5
      %v2184 = vsel %vm1129, %v2179, %v2183
      %v2186 = vshrl.u32 %v1948, 16
      %v2188 = vrot.slane %v2186, 4
      %v2189 = vshll.u32 %v1948, 16
      %v2191 = vrot.slane %v2189, 5
      %v2192 = vor.u32 %v2188, %v2191
      %v2193 = vrot.slane %v2192, 4
      %v2195 = vshll.u32 %v1949, 16
      %v2197 = vrot.slane %v2195, 5
      %v2198 = vsel %vm1129, %v2193, %v2197
      %v2199 = vshrl.u32 %v1949, 16
      %v2201 = vrot.slane %v2199, 4
      %v2202 = vor.u32 %v2201, %v2197
      %v2203 = vrot.slane %v2202, 4
      %v2205 = vshll.u32 %v1950, 16
      %v2207 = vrot.slane %v2205, 5
      %v2208 = vsel %vm1129, %v2203, %v2207
      %v2210 = vshrl.u32 %v1951, 16
      %v2212 = vrot.slane %v2210, 4
      %v2213 = vshll.u32 %v1951, 16
      %v2215 = vrot.slane %v2213, 5
      %v2216 = vor.u32 %v2212, %v2215
      %v2217 = vrot.slane %v2216, 4
      %v2219 = vshll.u32 %v1952, 16
      %v2221 = vrot.slane %v2219, 5
      %v2222 = vsel %vm1129, %v2217, %v2221
      %v2223 = vshrl.u32 %v1952, 16
      %v2225 = vrot.slane %v2223, 4
      %v2226 = vor.u32 %v2225, %v2221
      %v2227 = vrot.slane %v2226, 4
      %v2229 = vshll.u32 %v1953, 16
      %v2231 = vrot.slane %v2229, 5
      %v2232 = vsel %vm1129, %v2227, %v2231
      %v2234 = vshrl.u32 %v1954, 16
      %v2236 = vrot.slane %v2234, 4
      %v2237 = vshll.u32 %v1954, 16
      %v2239 = vrot.slane %v2237, 5
      %v2240 = vor.u32 %v2236, %v2239
      %v2241 = vrot.slane %v2240, 4
      %v2243 = vshll.u32 %v1955, 16
      %v2245 = vrot.slane %v2243, 5
      %v2246 = vsel %vm1129, %v2241, %v2245
      %v2247 = vshrl.u32 %v1955, 16
      %v2249 = vrot.slane %v2247, 4
      %v2250 = vor.u32 %v2249, %v2245
      %v2251 = vrot.slane %v2250, 4
      %v2253 = vshll.u32 %v1956, 16
      %v2255 = vrot.slane %v2253, 5
      %v2256 = vsel %vm1129, %v2251, %v2255
      %v2258 = vshrl.u32 %v1957, 16
      %v2260 = vrot.slane %v2258, 4
      %v2261 = vshll.u32 %v1957, 16
      %v2263 = vrot.slane %v2261, 5
      %v2264 = vor.u32 %v2260, %v2263
      %v2265 = vrot.slane %v2264, 4
      %v2267 = vshll.u32 %v1958, 16
      %v2269 = vrot.slane %v2267, 5
      %v2270 = vsel %vm1129, %v2265, %v2269
      %v2271 = vshrl.u32 %v1958, 16
      %v2273 = vrot.slane %v2271, 4
      %v2274 = vor.u32 %v2273, %v2269
      %v2275 = vrot.slane %v2274, 4
      %v2277 = vshll.u32 %v1959, 16
      %v2279 = vrot.slane %v2277, 5
      %v2280 = vsel %vm1129, %v2275, %v2279
      %v2282 = vshrl.u32 %v1960, 16
      %v2284 = vrot.slane %v2282, 4
      %v2285 = vshll.u32 %v1960, 16
      %v2287 = vrot.slane %v2285, 5
      %v2288 = vor.u32 %v2284, %v2287
      %v2289 = vrot.slane %v2288, 4
      %v2291 = vshll.u32 %v1961, 16
      %v2293 = vrot.slane %v2291, 5
      %v2294 = vsel %vm1129, %v2289, %v2293
      %v2295 = vshrl.u32 %v1961, 16
      %v2297 = vrot.slane %v2295, 4
      %v2298 = vor.u32 %v2297, %v2293
      %v2299 = vrot.slane %v2298, 4
      %v2301 = vshll.u32 %v1962, 16
      %v2303 = vrot.slane %v2301, 5
      %v2304 = vsel %vm1129, %v2299, %v2303
      %v2306 = vshrl.u32 %v1963, 16
      %v2308 = vrot.slane %v2306, 4
      %v2309 = vshll.u32 %v1963, 16
      %v2311 = vrot.slane %v2309, 5
      %v2312 = vor.u32 %v2308, %v2311
      %v2313 = vrot.slane %v2312, 4
      %v2315 = vshll.u32 %v1964, 16
      %v2317 = vrot.slane %v2315, 5
      %v2318 = vsel %vm1129, %v2313, %v2317
      %v2319 = vshrl.u32 %v1964, 16
      %v2321 = vrot.slane %v2319, 4
      %v2322 = vor.u32 %v2321, %v2317
      %v2323 = vrot.slane %v2322, 4
      %v2325 = vshll.u32 %v1965, 16
      %v2327 = vrot.slane %v2325, 5
      %v2328 = vsel %vm1129, %v2323, %v2327
      %v2330 = vshrl.u32 %v1966, 16
      %v2332 = vrot.slane %v2330, 4
      %v2333 = vshll.u32 %v1966, 16
      %v2335 = vrot.slane %v2333, 5
      %v2336 = vor.u32 %v2332, %v2335
      %v2337 = vrot.slane %v2336, 4
      %v2339 = vshll.u32 %v1967, 16
      %v2341 = vrot.slane %v2339, 5
      %v2342 = vsel %vm1129, %v2337, %v2341
      %v2343 = vshrl.u32 %v1967, 16
      %v2345 = vrot.slane %v2343, 4
      %v2346 = vor.u32 %v2345, %v2341
      %v2347 = vrot.slane %v2346, 4
      %v2349 = vshll.u32 %v1968, 16
      %v2351 = vrot.slane %v2349, 5
      %v2352 = vsel %vm1129, %v2347, %v2351
      %2385 = vst [vmem:[#allocation3 + $0x10] sm:$0xf] %v1982
      %2386 = vst [vmem:[#allocation3 + $0x34] sm:$0xf] %v1992
      %2387 = vst [vmem:[#allocation3 + $0x58] sm:$0xf] %v2006
      %2388 = vst [vmem:[#allocation3 + $0x7c] sm:$0xf] %v2016
      %2389 = vst [vmem:[#allocation3 + $0xa0] sm:$0xf] %v2030
      %2390 = vst [vmem:[#allocation3 + $0xc4] sm:$0xf] %v2040
      %2391 = vst [vmem:[#allocation3 + $0xe8] sm:$0xf] %v2054
      %2392 = vst [vmem:[#allocation3 + $0x10c] sm:$0xf] %v2064
      %2393 = vst [vmem:[#allocation3 + $0x130] sm:$0xf] %v2078
      %2394 = vst [vmem:[#allocation3 + $0x154] sm:$0xf] %v2088
      %2395 = vst [vmem:[#allocation3 + $0x178] sm:$0xf] %v2102
      %2396 = vst [vmem:[#allocation3 + $0x19c] sm:$0xf] %v2112
      %2397 = vst [vmem:[#allocation3 + $0x1c0] sm:$0xf] %v2126
      %2398 = vst [vmem:[#allocation3 + $0x1e4] sm:$0xf] %v2136
      %2399 = vst [vmem:[#allocation3 + $0x208] sm:$0xf] %v2150
      %2400 = vst [vmem:[#allocation3 + $0x22c] sm:$0xf] %v2160
      %2401 = vst [vmem:[#allocation3 + $0x250] sm:$0xf] %v2174
      %2402 = vst [vmem:[#allocation3 + $0x274] sm:$0xf] %v2184
      %2403 = vst [vmem:[#allocation3 + $0x298] sm:$0xf] %v2198
      %2404 = vst [vmem:[#allocation3 + $0x2bc] sm:$0xf] %v2208
      %2405 = vst [vmem:[#allocation3 + $0x2e0] sm:$0xf] %v2222
      %2406 = vst [vmem:[#allocation3 + $0x304] sm:$0xf] %v2232
      %2407 = vst [vmem:[#allocation3 + $0x328] sm:$0xf] %v2246
      %2408 = vst [vmem:[#allocation3 + $0x34c] sm:$0xf] %v2256
      %2409 = vst [vmem:[#allocation3 + $0x370] sm:$0xf] %v2270
      %2410 = vst [vmem:[#allocation3 + $0x394] sm:$0xf] %v2280
      %2411 = vst [vmem:[#allocation3 + $0x3b8] sm:$0xf] %v2294
      %2412 = vst [vmem:[#allocation3 + $0x3dc] sm:$0xf] %v2304
      %2413 = vst [vmem:[#allocation3 + $0x400] sm:$0xf] %v2318
      %2414 = vst [vmem:[#allocation3 + $0x424] sm:$0xf] %v2328
      %2415 = vst [vmem:[#allocation3 + $0x448] sm:$0xf] %v2342
      %2416 = vst [vmem:[#allocation3 + $0x46c] sm:$0xf] %v2352
      %v2417 = vld [vmem:[%s1856] sm:$0xe]
      %v2418 = vld [vmem:[%s1856 + $0x4] sm:$0xf]
      %v2419 = vld [vmem:[%s1856 + $0x8] sm:$0x1]
      %v2420 = vld [vmem:[%s1856 + $0xc] sm:$0xe]
      %v2421 = vld [vmem:[%s1856 + $0x10] sm:$0xf]
      %v2422 = vld [vmem:[%s1856 + $0x14] sm:$0x1]
      %v2423 = vld [vmem:[%s1856 + $0x18] sm:$0xe]
      %v2424 = vld [vmem:[%s1856 + $0x1c] sm:$0xf]
      %v2425 = vld [vmem:[%s1856 + $0x20] sm:$0x1]
      %v2426 = vld [vmem:[%s1856 + $0x24] sm:$0xe]
      %v2427 = vld [vmem:[%s1856 + $0x28] sm:$0xf]
      %v2428 = vld [vmem:[%s1856 + $0x2c] sm:$0x1]
      %v2429 = vld [vmem:[%s1856 + $0x30] sm:$0xe]
      %v2430 = vld [vmem:[%s1856 + $0x34] sm:$0xf]
      %v2431 = vld [vmem:[%s1856 + $0x38] sm:$0x1]
      %v2432 = vld [vmem:[%s1856 + $0x3c] sm:$0xe]
      %v2433 = vld [vmem:[%s1856 + $0x40] sm:$0xf]
      %v2434 = vld [vmem:[%s1856 + $0x44] sm:$0x1]
      %v2435 = vld [vmem:[%s1856 + $0x48] sm:$0xe]
      %v2436 = vld [vmem:[%s1856 + $0x4c] sm:$0xf]
      %v2437 = vld [vmem:[%s1856 + $0x50] sm:$0x1]
      %v2438 = vld [vmem:[%s1856 + $0x54] sm:$0xe]
      %v2439 = vld [vmem:[%s1856 + $0x58] sm:$0xf]
      %v2440 = vld [vmem:[%s1856 + $0x5c] sm:$0x1]
      %v2441 = vld [vmem:[%s1856 + $0x60] sm:$0xe]
      %v2442 = vld [vmem:[%s1856 + $0x64] sm:$0xf]
      %v2443 = vld [vmem:[%s1856 + $0x68] sm:$0x1]
      %v2444 = vld [vmem:[%s1856 + $0x6c] sm:$0xe]
      %v2445 = vld [vmem:[%s1856 + $0x70] sm:$0xf]
      %v2446 = vld [vmem:[%s1856 + $0x74] sm:$0x1]
      %v2447 = vld [vmem:[%s1856 + $0x78] sm:$0xe]
      %v2448 = vld [vmem:[%s1856 + $0x7c] sm:$0xf]
      %v2449 = vld [vmem:[%s1856 + $0x80] sm:$0x1]
      %v2450 = vld [vmem:[%s1856 + $0x84] sm:$0xe]
      %v2451 = vld [vmem:[%s1856 + $0x88] sm:$0xf]
      %v2452 = vld [vmem:[%s1856 + $0x8c] sm:$0x1]
      %v2453 = vld [vmem:[%s1856 + $0x90] sm:$0xe]
      %v2454 = vld [vmem:[%s1856 + $0x94] sm:$0xf]
      %v2455 = vld [vmem:[%s1856 + $0x98] sm:$0x1]
      %v2456 = vld [vmem:[%s1856 + $0x9c] sm:$0xe]
      %v2457 = vld [vmem:[%s1856 + $0xa0] sm:$0xf]
      %v2458 = vld [vmem:[%s1856 + $0xa4] sm:$0x1]
      %v2459 = vld [vmem:[%s1856 + $0xa8] sm:$0xe]
      %v2460 = vld [vmem:[%s1856 + $0xac] sm:$0xf]
      %v2461 = vld [vmem:[%s1856 + $0xb0] sm:$0x1]
      %v2462 = vld [vmem:[%s1856 + $0xb4] sm:$0xe]
      %v2463 = vld [vmem:[%s1856 + $0xb8] sm:$0xf]
      %v2464 = vld [vmem:[%s1856 + $0xbc] sm:$0x1]
      %v2513 = vrot.slane %v2417, 5
      %v2514 = vrot.slane %v2513, 4
      %v2515 = vrot.slane %v2418, 5
      %v2516 = vsel %vm1676, %v2514, %v2515
      %v2517 = vrot.slane %v2515, 4
      %v2518 = vrot.slane %v2419, 5
      %v2519 = vsel %vm1676, %v2517, %v2518
      %v2520 = vrot.slane %v2420, 5
      %v2521 = vrot.slane %v2520, 4
      %v2522 = vrot.slane %v2421, 5
      %v2523 = vsel %vm1676, %v2521, %v2522
      %v2524 = vrot.slane %v2522, 4
      %v2525 = vrot.slane %v2422, 5
      %v2526 = vsel %vm1676, %v2524, %v2525
      %v2527 = vrot.slane %v2423, 5
      %v2528 = vrot.slane %v2527, 4
      %v2529 = vrot.slane %v2424, 5
      %v2530 = vsel %vm1676, %v2528, %v2529
      %v2531 = vrot.slane %v2529, 4
      %v2532 = vrot.slane %v2425, 5
      %v2533 = vsel %vm1676, %v2531, %v2532
      %v2534 = vrot.slane %v2426, 5
      %v2535 = vrot.slane %v2534, 4
      %v2536 = vrot.slane %v2427, 5
      %v2537 = vsel %vm1676, %v2535, %v2536
      %v2538 = vrot.slane %v2536, 4
      %v2539 = vrot.slane %v2428, 5
      %v2540 = vsel %vm1676, %v2538, %v2539
      %v2541 = vrot.slane %v2429, 5
      %v2542 = vrot.slane %v2541, 4
      %v2543 = vrot.slane %v2430, 5
      %v2544 = vsel %vm1676, %v2542, %v2543
      %v2545 = vrot.slane %v2543, 4
      %v2546 = vrot.slane %v2431, 5
      %v2547 = vsel %vm1676, %v2545, %v2546
      %v2548 = vrot.slane %v2432, 5
      %v2549 = vrot.slane %v2548, 4
      %v2550 = vrot.slane %v2433, 5
      %v2551 = vsel %vm1676, %v2549, %v2550
      %v2552 = vrot.slane %v2550, 4
      %v2553 = vrot.slane %v2434, 5
      %v2554 = vsel %vm1676, %v2552, %v2553
      %v2555 = vrot.slane %v2435, 5
      %v2556 = vrot.slane %v2555, 4
      %v2557 = vrot.slane %v2436, 5
      %v2558 = vsel %vm1676, %v2556, %v2557
      %v2559 = vrot.slane %v2557, 4
      %v2560 = vrot.slane %v2437, 5
      %v2561 = vsel %vm1676, %v2559, %v2560
      %v2562 = vrot.slane %v2438, 5
      %v2563 = vrot.slane %v2562, 4
      %v2564 = vrot.slane %v2439, 5
      %v2565 = vsel %vm1676, %v2563, %v2564
      %v2566 = vrot.slane %v2564, 4
      %v2567 = vrot.slane %v2440, 5
      %v2568 = vsel %vm1676, %v2566, %v2567
      %v2569 = vrot.slane %v2441, 5
      %v2570 = vrot.slane %v2569, 4
      %v2571 = vrot.slane %v2442, 5
      %v2572 = vsel %vm1676, %v2570, %v2571
      %v2573 = vrot.slane %v2571, 4
      %v2574 = vrot.slane %v2443, 5
      %v2575 = vsel %vm1676, %v2573, %v2574
      %v2576 = vrot.slane %v2444, 5
      %v2577 = vrot.slane %v2576, 4
      %v2578 = vrot.slane %v2445, 5
      %v2579 = vsel %vm1676, %v2577, %v2578
      %v2580 = vrot.slane %v2578, 4
      %v2581 = vrot.slane %v2446, 5
      %v2582 = vsel %vm1676, %v2580, %v2581
      %v2583 = vrot.slane %v2447, 5
      %v2584 = vrot.slane %v2583, 4
      %v2585 = vrot.slane %v2448, 5
      %v2586 = vsel %vm1676, %v2584, %v2585
      %v2587 = vrot.slane %v2585, 4
      %v2588 = vrot.slane %v2449, 5
      %v2589 = vsel %vm1676, %v2587, %v2588
      %v2590 = vrot.slane %v2450, 5
      %v2591 = vrot.slane %v2590, 4
      %v2592 = vrot.slane %v2451, 5
      %v2593 = vsel %vm1676, %v2591, %v2592
      %v2594 = vrot.slane %v2592, 4
      %v2595 = vrot.slane %v2452, 5
      %v2596 = vsel %vm1676, %v2594, %v2595
      %v2597 = vrot.slane %v2453, 5
      %v2598 = vrot.slane %v2597, 4
      %v2599 = vrot.slane %v2454, 5
      %v2600 = vsel %vm1676, %v2598, %v2599
      %v2601 = vrot.slane %v2599, 4
      %v2602 = vrot.slane %v2455, 5
      %v2603 = vsel %vm1676, %v2601, %v2602
      %v2604 = vrot.slane %v2456, 5
      %v2605 = vrot.slane %v2604, 4
      %v2606 = vrot.slane %v2457, 5
      %v2607 = vsel %vm1676, %v2605, %v2606
      %v2608 = vrot.slane %v2606, 4
      %v2609 = vrot.slane %v2458, 5
      %v2610 = vsel %vm1676, %v2608, %v2609
      %v2611 = vrot.slane %v2459, 5
      %v2612 = vrot.slane %v2611, 4
      %v2613 = vrot.slane %v2460, 5
      %v2614 = vsel %vm1676, %v2612, %v2613
      %v2615 = vrot.slane %v2613, 4
      %v2616 = vrot.slane %v2461, 5
      %v2617 = vsel %vm1676, %v2615, %v2616
      %v2618 = vrot.slane %v2462, 5
      %v2619 = vrot.slane %v2618, 4
      %v2620 = vrot.slane %v2463, 5
      %v2621 = vsel %vm1676, %v2619, %v2620
      %v2622 = vrot.slane %v2620, 4
      %v2623 = vrot.slane %v2464, 5
      %v2624 = vsel %vm1676, %v2622, %v2623
      %2657 = vst [vmem:[#allocation3 + $0x14] sm:$0xf] %v2516
      %2658 = vst [vmem:[#allocation3 + $0x38] sm:$0xf] %v2519
      %2659 = vst [vmem:[#allocation3 + $0x5c] sm:$0xf] %v2523
      %2660 = vst [vmem:[#allocation3 + $0x80] sm:$0xf] %v2526
      %2661 = vst [vmem:[#allocation3 + $0xa4] sm:$0xf] %v2530
      %2662 = vst [vmem:[#allocation3 + $0xc8] sm:$0xf] %v2533
      %2663 = vst [vmem:[#allocation3 + $0xec] sm:$0xf] %v2537
      %2664 = vst [vmem:[#allocation3 + $0x110] sm:$0xf] %v2540
      %2665 = vst [vmem:[#allocation3 + $0x134] sm:$0xf] %v2544
      %2666 = vst [vmem:[#allocation3 + $0x158] sm:$0xf] %v2547
      %2667 = vst [vmem:[#allocation3 + $0x17c] sm:$0xf] %v2551
      %2668 = vst [vmem:[#allocation3 + $0x1a0] sm:$0xf] %v2554
      %2669 = vst [vmem:[#allocation3 + $0x1c4] sm:$0xf] %v2558
      %2670 = vst [vmem:[#allocation3 + $0x1e8] sm:$0xf] %v2561
      %2671 = vst [vmem:[#allocation3 + $0x20c] sm:$0xf] %v2565
      %2672 = vst [vmem:[#allocation3 + $0x230] sm:$0xf] %v2568
      %2673 = vst [vmem:[#allocation3 + $0x254] sm:$0xf] %v2572
      %2674 = vst [vmem:[#allocation3 + $0x278] sm:$0xf] %v2575
      %2675 = vst [vmem:[#allocation3 + $0x29c] sm:$0xf] %v2579
      %2676 = vst [vmem:[#allocation3 + $0x2c0] sm:$0xf] %v2582
      %2677 = vst [vmem:[#allocation3 + $0x2e4] sm:$0xf] %v2586
      %2678 = vst [vmem:[#allocation3 + $0x308] sm:$0xf] %v2589
      %2679 = vst [vmem:[#allocation3 + $0x32c] sm:$0xf] %v2593
      %2680 = vst [vmem:[#allocation3 + $0x350] sm:$0xf] %v2596
      %2681 = vst [vmem:[#allocation3 + $0x374] sm:$0xf] %v2600
      %2682 = vst [vmem:[#allocation3 + $0x398] sm:$0xf] %v2603
      %2683 = vst [vmem:[#allocation3 + $0x3bc] sm:$0xf] %v2607
      %2684 = vst [vmem:[#allocation3 + $0x3e0] sm:$0xf] %v2610
      %2685 = vst [vmem:[#allocation3 + $0x404] sm:$0xf] %v2614
      %2686 = vst [vmem:[#allocation3 + $0x428] sm:$0xf] %v2617
      %2687 = vst [vmem:[#allocation3 + $0x44c] sm:$0xf] %v2621
      %2688 = vst [vmem:[#allocation3 + $0x470] sm:$0xf] %v2624
      %s2689 = sadd.s32 %s1011, 2
      %s2690 = smul.u32 %s2689, 3
      %s2691 = smul.addr %s2690, 4
      %s2692 = scalar_lea.vmem [#allocation2], %s2691
      %v2693 = vld [vmem:[%s2692] sm:$0xf]
      %v2694 = vld [vmem:[%s2692 + $0x4] sm:$0xf]
      %v2695 = vld [vmem:[%s2692 + $0xc] sm:$0xf]
      %v2696 = vld [vmem:[%s2692 + $0x10] sm:$0xf]
      %v2697 = vld [vmem:[%s2692 + $0x18] sm:$0xf]
      %v2698 = vld [vmem:[%s2692 + $0x1c] sm:$0xf]
      %v2699 = vld [vmem:[%s2692 + $0x24] sm:$0xf]
      %v2700 = vld [vmem:[%s2692 + $0x28] sm:$0xf]
      %v2701 = vld [vmem:[%s2692 + $0x30] sm:$0xf]
      %v2702 = vld [vmem:[%s2692 + $0x34] sm:$0xf]
      %v2703 = vld [vmem:[%s2692 + $0x3c] sm:$0xf]
      %v2704 = vld [vmem:[%s2692 + $0x40] sm:$0xf]
      %v2705 = vld [vmem:[%s2692 + $0x48] sm:$0xf]
      %v2706 = vld [vmem:[%s2692 + $0x4c] sm:$0xf]
      %v2707 = vld [vmem:[%s2692 + $0x54] sm:$0xf]
      %v2708 = vld [vmem:[%s2692 + $0x58] sm:$0xf]
      %v2709 = vld [vmem:[%s2692 + $0x60] sm:$0xf]
      %v2710 = vld [vmem:[%s2692 + $0x64] sm:$0xf]
      %v2711 = vld [vmem:[%s2692 + $0x6c] sm:$0xf]
      %v2712 = vld [vmem:[%s2692 + $0x70] sm:$0xf]
      %v2713 = vld [vmem:[%s2692 + $0x78] sm:$0xf]
      %v2714 = vld [vmem:[%s2692 + $0x7c] sm:$0xf]
      %v2715 = vld [vmem:[%s2692 + $0x84] sm:$0xf]
      %v2716 = vld [vmem:[%s2692 + $0x88] sm:$0xf]
      %v2717 = vld [vmem:[%s2692 + $0x90] sm:$0xf]
      %v2718 = vld [vmem:[%s2692 + $0x94] sm:$0xf]
      %v2719 = vld [vmem:[%s2692 + $0x9c] sm:$0xf]
      %v2720 = vld [vmem:[%s2692 + $0xa0] sm:$0xf]
      %v2721 = vld [vmem:[%s2692 + $0xa8] sm:$0xf]
      %v2722 = vld [vmem:[%s2692 + $0xac] sm:$0xf]
      %v2723 = vld [vmem:[%s2692 + $0xb4] sm:$0xf]
      %v2724 = vld [vmem:[%s2692 + $0xb8] sm:$0xf]
      %2725 = vst [vmem:[#allocation3 + $0x18] sm:$0xf] %v2693
      %2726 = vst [vmem:[#allocation3 + $0x3c] sm:$0xf] %v2694
      %2727 = vst [vmem:[#allocation3 + $0x60] sm:$0xf] %v2695
      %2728 = vst [vmem:[#allocation3 + $0x84] sm:$0xf] %v2696
      %2729 = vst [vmem:[#allocation3 + $0xa8] sm:$0xf] %v2697
      %2730 = vst [vmem:[#allocation3 + $0xcc] sm:$0xf] %v2698
      %2731 = vst [vmem:[#allocation3 + $0xf0] sm:$0xf] %v2699
      %2732 = vst [vmem:[#allocation3 + $0x114] sm:$0xf] %v2700
      %2733 = vst [vmem:[#allocation3 + $0x138] sm:$0xf] %v2701
      %2734 = vst [vmem:[#allocation3 + $0x15c] sm:$0xf] %v2702
      %2735 = vst [vmem:[#allocation3 + $0x180] sm:$0xf] %v2703
      %2736 = vst [vmem:[#allocation3 + $0x1a4] sm:$0xf] %v2704
      %2737 = vst [vmem:[#allocation3 + $0x1c8] sm:$0xf] %v2705
      %2738 = vst [vmem:[#allocation3 + $0x1ec] sm:$0xf] %v2706
      %2739 = vst [vmem:[#allocation3 + $0x210] sm:$0xf] %v2707
      %2740 = vst [vmem:[#allocation3 + $0x234] sm:$0xf] %v2708
      %2741 = vst [vmem:[#allocation3 + $0x258] sm:$0xf] %v2709
      %2742 = vst [vmem:[#allocation3 + $0x27c] sm:$0xf] %v2710
      %2743 = vst [vmem:[#allocation3 + $0x2a0] sm:$0xf] %v2711
      %2744 = vst [vmem:[#allocation3 + $0x2c4] sm:$0xf] %v2712
      %2745 = vst [vmem:[#allocation3 + $0x2e8] sm:$0xf] %v2713
      %2746 = vst [vmem:[#allocation3 + $0x30c] sm:$0xf] %v2714
      %2747 = vst [vmem:[#allocation3 + $0x330] sm:$0xf] %v2715
      %2748 = vst [vmem:[#allocation3 + $0x354] sm:$0xf] %v2716
      %2749 = vst [vmem:[#allocation3 + $0x378] sm:$0xf] %v2717
      %2750 = vst [vmem:[#allocation3 + $0x39c] sm:$0xf] %v2718
      %2751 = vst [vmem:[#allocation3 + $0x3c0] sm:$0xf] %v2719
      %2752 = vst [vmem:[#allocation3 + $0x3e4] sm:$0xf] %v2720
      %2753 = vst [vmem:[#allocation3 + $0x408] sm:$0xf] %v2721
      %2754 = vst [vmem:[#allocation3 + $0x42c] sm:$0xf] %v2722
      %2755 = vst [vmem:[#allocation3 + $0x450] sm:$0xf] %v2723
      %2756 = vst [vmem:[#allocation3 + $0x474] sm:$0xf] %v2724
      %v2757 = vld [vmem:[%s2692] sm:$0xf]
      %v2758 = vld [vmem:[%s2692 + $0x4] sm:$0xf]
      %v2759 = vld [vmem:[%s2692 + $0x8] sm:$0x1]
      %v2760 = vld [vmem:[%s2692 + $0xc] sm:$0xf]
      %v2761 = vld [vmem:[%s2692 + $0x10] sm:$0xf]
      %v2762 = vld [vmem:[%s2692 + $0x14] sm:$0x1]
      %v2763 = vld [vmem:[%s2692 + $0x18] sm:$0xf]
      %v2764 = vld [vmem:[%s2692 + $0x1c] sm:$0xf]
      %v2765 = vld [vmem:[%s2692 + $0x20] sm:$0x1]
      %v2766 = vld [vmem:[%s2692 + $0x24] sm:$0xf]
      %v2767 = vld [vmem:[%s2692 + $0x28] sm:$0xf]
      %v2768 = vld [vmem:[%s2692 + $0x2c] sm:$0x1]
      %v2769 = vld [vmem:[%s2692 + $0x30] sm:$0xf]
      %v2770 = vld [vmem:[%s2692 + $0x34] sm:$0xf]
      %v2771 = vld [vmem:[%s2692 + $0x38] sm:$0x1]
      %v2772 = vld [vmem:[%s2692 + $0x3c] sm:$0xf]
      %v2773 = vld [vmem:[%s2692 + $0x40] sm:$0xf]
      %v2774 = vld [vmem:[%s2692 + $0x44] sm:$0x1]
      %v2775 = vld [vmem:[%s2692 + $0x48] sm:$0xf]
      %v2776 = vld [vmem:[%s2692 + $0x4c] sm:$0xf]
      %v2777 = vld [vmem:[%s2692 + $0x50] sm:$0x1]
      %v2778 = vld [vmem:[%s2692 + $0x54] sm:$0xf]
      %v2779 = vld [vmem:[%s2692 + $0x58] sm:$0xf]
      %v2780 = vld [vmem:[%s2692 + $0x5c] sm:$0x1]
      %v2781 = vld [vmem:[%s2692 + $0x60] sm:$0xf]
      %v2782 = vld [vmem:[%s2692 + $0x64] sm:$0xf]
      %v2783 = vld [vmem:[%s2692 + $0x68] sm:$0x1]
      %v2784 = vld [vmem:[%s2692 + $0x6c] sm:$0xf]
      %v2785 = vld [vmem:[%s2692 + $0x70] sm:$0xf]
      %v2786 = vld [vmem:[%s2692 + $0x74] sm:$0x1]
      %v2787 = vld [vmem:[%s2692 + $0x78] sm:$0xf]
      %v2788 = vld [vmem:[%s2692 + $0x7c] sm:$0xf]
      %v2789 = vld [vmem:[%s2692 + $0x80] sm:$0x1]
      %v2790 = vld [vmem:[%s2692 + $0x84] sm:$0xf]
      %v2791 = vld [vmem:[%s2692 + $0x88] sm:$0xf]
      %v2792 = vld [vmem:[%s2692 + $0x8c] sm:$0x1]
      %v2793 = vld [vmem:[%s2692 + $0x90] sm:$0xf]
      %v2794 = vld [vmem:[%s2692 + $0x94] sm:$0xf]
      %v2795 = vld [vmem:[%s2692 + $0x98] sm:$0x1]
      %v2796 = vld [vmem:[%s2692 + $0x9c] sm:$0xf]
      %v2797 = vld [vmem:[%s2692 + $0xa0] sm:$0xf]
      %v2798 = vld [vmem:[%s2692 + $0xa4] sm:$0x1]
      %v2799 = vld [vmem:[%s2692 + $0xa8] sm:$0xf]
      %v2800 = vld [vmem:[%s2692 + $0xac] sm:$0xf]
      %v2801 = vld [vmem:[%s2692 + $0xb0] sm:$0x1]
      %v2802 = vld [vmem:[%s2692 + $0xb4] sm:$0xf]
      %v2803 = vld [vmem:[%s2692 + $0xb8] sm:$0xf]
      %v2804 = vld [vmem:[%s2692 + $0xbc] sm:$0x1]
      %v2806 = vshrl.u32 %v2757, 16
      %v2808 = vrot.slane %v2806, 4
      %v2809 = vshll.u32 %v2757, 16
      %v2811 = vrot.slane %v2809, 5
      %v2812 = vor.u32 %v2808, %v2811
      %v2813 = vrot.slane %v2812, 4
      %v2815 = vshll.u32 %v2758, 16
      %v2817 = vrot.slane %v2815, 5
      %v2818 = vsel %vm1129, %v2813, %v2817
      %v2819 = vshrl.u32 %v2758, 16
      %v2821 = vrot.slane %v2819, 4
      %v2822 = vor.u32 %v2821, %v2817
      %v2823 = vrot.slane %v2822, 4
      %v2825 = vshll.u32 %v2759, 16
      %v2827 = vrot.slane %v2825, 5
      %v2828 = vsel %vm1129, %v2823, %v2827
      %v2830 = vshrl.u32 %v2760, 16
      %v2832 = vrot.slane %v2830, 4
      %v2833 = vshll.u32 %v2760, 16
      %v2835 = vrot.slane %v2833, 5
      %v2836 = vor.u32 %v2832, %v2835
      %v2837 = vrot.slane %v2836, 4
      %v2839 = vshll.u32 %v2761, 16
      %v2841 = vrot.slane %v2839, 5
      %v2842 = vsel %vm1129, %v2837, %v2841
      %v2843 = vshrl.u32 %v2761, 16
      %v2845 = vrot.slane %v2843, 4
      %v2846 = vor.u32 %v2845, %v2841
      %v2847 = vrot.slane %v2846, 4
      %v2849 = vshll.u32 %v2762, 16
      %v2851 = vrot.slane %v2849, 5
      %v2852 = vsel %vm1129, %v2847, %v2851
      %v2854 = vshrl.u32 %v2763, 16
      %v2856 = vrot.slane %v2854, 4
      %v2857 = vshll.u32 %v2763, 16
      %v2859 = vrot.slane %v2857, 5
      %v2860 = vor.u32 %v2856, %v2859
      %v2861 = vrot.slane %v2860, 4
      %v2863 = vshll.u32 %v2764, 16
      %v2865 = vrot.slane %v2863, 5
      %v2866 = vsel %vm1129, %v2861, %v2865
      %v2867 = vshrl.u32 %v2764, 16
      %v2869 = vrot.slane %v2867, 4
      %v2870 = vor.u32 %v2869, %v2865
      %v2871 = vrot.slane %v2870, 4
      %v2873 = vshll.u32 %v2765, 16
      %v2875 = vrot.slane %v2873, 5
      %v2876 = vsel %vm1129, %v2871, %v2875
      %v2878 = vshrl.u32 %v2766, 16
      %v2880 = vrot.slane %v2878, 4
      %v2881 = vshll.u32 %v2766, 16
      %v2883 = vrot.slane %v2881, 5
      %v2884 = vor.u32 %v2880, %v2883
      %v2885 = vrot.slane %v2884, 4
      %v2887 = vshll.u32 %v2767, 16
      %v2889 = vrot.slane %v2887, 5
      %v2890 = vsel %vm1129, %v2885, %v2889
      %v2891 = vshrl.u32 %v2767, 16
      %v2893 = vrot.slane %v2891, 4
      %v2894 = vor.u32 %v2893, %v2889
      %v2895 = vrot.slane %v2894, 4
      %v2897 = vshll.u32 %v2768, 16
      %v2899 = vrot.slane %v2897, 5
      %v2900 = vsel %vm1129, %v2895, %v2899
      %v2902 = vshrl.u32 %v2769, 16
      %v2904 = vrot.slane %v2902, 4
      %v2905 = vshll.u32 %v2769, 16
      %v2907 = vrot.slane %v2905, 5
      %v2908 = vor.u32 %v2904, %v2907
      %v2909 = vrot.slane %v2908, 4
      %v2911 = vshll.u32 %v2770, 16
      %v2913 = vrot.slane %v2911, 5
      %v2914 = vsel %vm1129, %v2909, %v2913
      %v2915 = vshrl.u32 %v2770, 16
      %v2917 = vrot.slane %v2915, 4
      %v2918 = vor.u32 %v2917, %v2913
      %v2919 = vrot.slane %v2918, 4
      %v2921 = vshll.u32 %v2771, 16
      %v2923 = vrot.slane %v2921, 5
      %v2924 = vsel %vm1129, %v2919, %v2923
      %v2926 = vshrl.u32 %v2772, 16
      %v2928 = vrot.slane %v2926, 4
      %v2929 = vshll.u32 %v2772, 16
      %v2931 = vrot.slane %v2929, 5
      %v2932 = vor.u32 %v2928, %v2931
      %v2933 = vrot.slane %v2932, 4
      %v2935 = vshll.u32 %v2773, 16
      %v2937 = vrot.slane %v2935, 5
      %v2938 = vsel %vm1129, %v2933, %v2937
      %v2939 = vshrl.u32 %v2773, 16
      %v2941 = vrot.slane %v2939, 4
      %v2942 = vor.u32 %v2941, %v2937
      %v2943 = vrot.slane %v2942, 4
      %v2945 = vshll.u32 %v2774, 16
      %v2947 = vrot.slane %v2945, 5
      %v2948 = vsel %vm1129, %v2943, %v2947
      %v2950 = vshrl.u32 %v2775, 16
      %v2952 = vrot.slane %v2950, 4
      %v2953 = vshll.u32 %v2775, 16
      %v2955 = vrot.slane %v2953, 5
      %v2956 = vor.u32 %v2952, %v2955
      %v2957 = vrot.slane %v2956, 4
      %v2959 = vshll.u32 %v2776, 16
      %v2961 = vrot.slane %v2959, 5
      %v2962 = vsel %vm1129, %v2957, %v2961
      %v2963 = vshrl.u32 %v2776, 16
      %v2965 = vrot.slane %v2963, 4
      %v2966 = vor.u32 %v2965, %v2961
      %v2967 = vrot.slane %v2966, 4
      %v2969 = vshll.u32 %v2777, 16
      %v2971 = vrot.slane %v2969, 5
      %v2972 = vsel %vm1129, %v2967, %v2971
      %v2974 = vshrl.u32 %v2778, 16
      %v2976 = vrot.slane %v2974, 4
      %v2977 = vshll.u32 %v2778, 16
      %v2979 = vrot.slane %v2977, 5
      %v2980 = vor.u32 %v2976, %v2979
      %v2981 = vrot.slane %v2980, 4
      %v2983 = vshll.u32 %v2779, 16
      %v2985 = vrot.slane %v2983, 5
      %v2986 = vsel %vm1129, %v2981, %v2985
      %v2987 = vshrl.u32 %v2779, 16
      %v2989 = vrot.slane %v2987, 4
      %v2990 = vor.u32 %v2989, %v2985
      %v2991 = vrot.slane %v2990, 4
      %v2993 = vshll.u32 %v2780, 16
      %v2995 = vrot.slane %v2993, 5
      %v2996 = vsel %vm1129, %v2991, %v2995
      %v2998 = vshrl.u32 %v2781, 16
      %v3000 = vrot.slane %v2998, 4
      %v3001 = vshll.u32 %v2781, 16
      %v3003 = vrot.slane %v3001, 5
      %v3004 = vor.u32 %v3000, %v3003
      %v3005 = vrot.slane %v3004, 4
      %v3007 = vshll.u32 %v2782, 16
      %v3009 = vrot.slane %v3007, 5
      %v3010 = vsel %vm1129, %v3005, %v3009
      %v3011 = vshrl.u32 %v2782, 16
      %v3013 = vrot.slane %v3011, 4
      %v3014 = vor.u32 %v3013, %v3009
      %v3015 = vrot.slane %v3014, 4
      %v3017 = vshll.u32 %v2783, 16
      %v3019 = vrot.slane %v3017, 5
      %v3020 = vsel %vm1129, %v3015, %v3019
      %v3022 = vshrl.u32 %v2784, 16
      %v3024 = vrot.slane %v3022, 4
      %v3025 = vshll.u32 %v2784, 16
      %v3027 = vrot.slane %v3025, 5
      %v3028 = vor.u32 %v3024, %v3027
      %v3029 = vrot.slane %v3028, 4
      %v3031 = vshll.u32 %v2785, 16
      %v3033 = vrot.slane %v3031, 5
      %v3034 = vsel %vm1129, %v3029, %v3033
      %v3035 = vshrl.u32 %v2785, 16
      %v3037 = vrot.slane %v3035, 4
      %v3038 = vor.u32 %v3037, %v3033
      %v3039 = vrot.slane %v3038, 4
      %v3041 = vshll.u32 %v2786, 16
      %v3043 = vrot.slane %v3041, 5
      %v3044 = vsel %vm1129, %v3039, %v3043
      %v3046 = vshrl.u32 %v2787, 16
      %v3048 = vrot.slane %v3046, 4
      %v3049 = vshll.u32 %v2787, 16
      %v3051 = vrot.slane %v3049, 5
      %v3052 = vor.u32 %v3048, %v3051
      %v3053 = vrot.slane %v3052, 4
      %v3055 = vshll.u32 %v2788, 16
      %v3057 = vrot.slane %v3055, 5
      %v3058 = vsel %vm1129, %v3053, %v3057
      %v3059 = vshrl.u32 %v2788, 16
      %v3061 = vrot.slane %v3059, 4
      %v3062 = vor.u32 %v3061, %v3057
      %v3063 = vrot.slane %v3062, 4
      %v3065 = vshll.u32 %v2789, 16
      %v3067 = vrot.slane %v3065, 5
      %v3068 = vsel %vm1129, %v3063, %v3067
      %v3070 = vshrl.u32 %v2790, 16
      %v3072 = vrot.slane %v3070, 4
      %v3073 = vshll.u32 %v2790, 16
      %v3075 = vrot.slane %v3073, 5
      %v3076 = vor.u32 %v3072, %v3075
      %v3077 = vrot.slane %v3076, 4
      %v3079 = vshll.u32 %v2791, 16
      %v3081 = vrot.slane %v3079, 5
      %v3082 = vsel %vm1129, %v3077, %v3081
      %v3083 = vshrl.u32 %v2791, 16
      %v3085 = vrot.slane %v3083, 4
      %v3086 = vor.u32 %v3085, %v3081
      %v3087 = vrot.slane %v3086, 4
      %v3089 = vshll.u32 %v2792, 16
      %v3091 = vrot.slane %v3089, 5
      %v3092 = vsel %vm1129, %v3087, %v3091
      %v3094 = vshrl.u32 %v2793, 16
      %v3096 = vrot.slane %v3094, 4
      %v3097 = vshll.u32 %v2793, 16
      %v3099 = vrot.slane %v3097, 5
      %v3100 = vor.u32 %v3096, %v3099
      %v3101 = vrot.slane %v3100, 4
      %v3103 = vshll.u32 %v2794, 16
      %v3105 = vrot.slane %v3103, 5
      %v3106 = vsel %vm1129, %v3101, %v3105
      %v3107 = vshrl.u32 %v2794, 16
      %v3109 = vrot.slane %v3107, 4
      %v3110 = vor.u32 %v3109, %v3105
      %v3111 = vrot.slane %v3110, 4
      %v3113 = vshll.u32 %v2795, 16
      %v3115 = vrot.slane %v3113, 5
      %v3116 = vsel %vm1129, %v3111, %v3115
      %v3118 = vshrl.u32 %v2796, 16
      %v3120 = vrot.slane %v3118, 4
      %v3121 = vshll.u32 %v2796, 16
      %v3123 = vrot.slane %v3121, 5
      %v3124 = vor.u32 %v3120, %v3123
      %v3125 = vrot.slane %v3124, 4
      %v3127 = vshll.u32 %v2797, 16
      %v3129 = vrot.slane %v3127, 5
      %v3130 = vsel %vm1129, %v3125, %v3129
      %v3131 = vshrl.u32 %v2797, 16
      %v3133 = vrot.slane %v3131, 4
      %v3134 = vor.u32 %v3133, %v3129
      %v3135 = vrot.slane %v3134, 4
      %v3137 = vshll.u32 %v2798, 16
      %v3139 = vrot.slane %v3137, 5
      %v3140 = vsel %vm1129, %v3135, %v3139
      %v3142 = vshrl.u32 %v2799, 16
      %v3144 = vrot.slane %v3142, 4
      %v3145 = vshll.u32 %v2799, 16
      %v3147 = vrot.slane %v3145, 5
      %v3148 = vor.u32 %v3144, %v3147
      %v3149 = vrot.slane %v3148, 4
      %v3151 = vshll.u32 %v2800, 16
      %v3153 = vrot.slane %v3151, 5
      %v3154 = vsel %vm1129, %v3149, %v3153
      %v3155 = vshrl.u32 %v2800, 16
      %v3157 = vrot.slane %v3155, 4
      %v3158 = vor.u32 %v3157, %v3153
      %v3159 = vrot.slane %v3158, 4
      %v3161 = vshll.u32 %v2801, 16
      %v3163 = vrot.slane %v3161, 5
      %v3164 = vsel %vm1129, %v3159, %v3163
      %v3166 = vshrl.u32 %v2802, 16
      %v3168 = vrot.slane %v3166, 4
      %v3169 = vshll.u32 %v2802, 16
      %v3171 = vrot.slane %v3169, 5
      %v3172 = vor.u32 %v3168, %v3171
      %v3173 = vrot.slane %v3172, 4
      %v3175 = vshll.u32 %v2803, 16
      %v3177 = vrot.slane %v3175, 5
      %v3178 = vsel %vm1129, %v3173, %v3177
      %v3179 = vshrl.u32 %v2803, 16
      %v3181 = vrot.slane %v3179, 4
      %v3182 = vor.u32 %v3181, %v3177
      %v3183 = vrot.slane %v3182, 4
      %v3185 = vshll.u32 %v2804, 16
      %v3187 = vrot.slane %v3185, 5
      %v3188 = vsel %vm1129, %v3183, %v3187
      %3221 = vst [vmem:[#allocation3 + $0x1c] sm:$0xf] %v2818
      %3222 = vst [vmem:[#allocation3 + $0x40] sm:$0xf] %v2828
      %3223 = vst [vmem:[#allocation3 + $0x64] sm:$0xf] %v2842
      %3224 = vst [vmem:[#allocation3 + $0x88] sm:$0xf] %v2852
      %3225 = vst [vmem:[#allocation3 + $0xac] sm:$0xf] %v2866
      %3226 = vst [vmem:[#allocation3 + $0xd0] sm:$0xf] %v2876
      %3227 = vst [vmem:[#allocation3 + $0xf4] sm:$0xf] %v2890
      %3228 = vst [vmem:[#allocation3 + $0x118] sm:$0xf] %v2900
      %3229 = vst [vmem:[#allocation3 + $0x13c] sm:$0xf] %v2914
      %3230 = vst [vmem:[#allocation3 + $0x160] sm:$0xf] %v2924
      %3231 = vst [vmem:[#allocation3 + $0x184] sm:$0xf] %v2938
      %3232 = vst [vmem:[#allocation3 + $0x1a8] sm:$0xf] %v2948
      %3233 = vst [vmem:[#allocation3 + $0x1cc] sm:$0xf] %v2962
      %3234 = vst [vmem:[#allocation3 + $0x1f0] sm:$0xf] %v2972
      %3235 = vst [vmem:[#allocation3 + $0x214] sm:$0xf] %v2986
      %3236 = vst [vmem:[#allocation3 + $0x238] sm:$0xf] %v2996
      %3237 = vst [vmem:[#allocation3 + $0x25c] sm:$0xf] %v3010
      %3238 = vst [vmem:[#allocation3 + $0x280] sm:$0xf] %v3020
      %3239 = vst [vmem:[#allocation3 + $0x2a4] sm:$0xf] %v3034
      %3240 = vst [vmem:[#allocation3 + $0x2c8] sm:$0xf] %v3044
      %3241 = vst [vmem:[#allocation3 + $0x2ec] sm:$0xf] %v3058
      %3242 = vst [vmem:[#allocation3 + $0x310] sm:$0xf] %v3068
      %3243 = vst [vmem:[#allocation3 + $0x334] sm:$0xf] %v3082
      %3244 = vst [vmem:[#allocation3 + $0x358] sm:$0xf] %v3092
      %3245 = vst [vmem:[#allocation3 + $0x37c] sm:$0xf] %v3106
      %3246 = vst [vmem:[#allocation3 + $0x3a0] sm:$0xf] %v3116
      %3247 = vst [vmem:[#allocation3 + $0x3c4] sm:$0xf] %v3130
      %3248 = vst [vmem:[#allocation3 + $0x3e8] sm:$0xf] %v3140
      %3249 = vst [vmem:[#allocation3 + $0x40c] sm:$0xf] %v3154
      %3250 = vst [vmem:[#allocation3 + $0x430] sm:$0xf] %v3164
      %3251 = vst [vmem:[#allocation3 + $0x454] sm:$0xf] %v3178
      %3252 = vst [vmem:[#allocation3 + $0x478] sm:$0xf] %v3188
      %v3253 = vld [vmem:[%s2692] sm:$0xe]
      %v3254 = vld [vmem:[%s2692 + $0x4] sm:$0xf]
      %v3255 = vld [vmem:[%s2692 + $0x8] sm:$0x1]
      %v3256 = vld [vmem:[%s2692 + $0xc] sm:$0xe]
      %v3257 = vld [vmem:[%s2692 + $0x10] sm:$0xf]
      %v3258 = vld [vmem:[%s2692 + $0x14] sm:$0x1]
      %v3259 = vld [vmem:[%s2692 + $0x18] sm:$0xe]
      %v3260 = vld [vmem:[%s2692 + $0x1c] sm:$0xf]
      %v3261 = vld [vmem:[%s2692 + $0x20] sm:$0x1]
      %v3262 = vld [vmem:[%s2692 + $0x24] sm:$0xe]
      %v3263 = vld [vmem:[%s2692 + $0x28] sm:$0xf]
      %v3264 = vld [vmem:[%s2692 + $0x2c] sm:$0x1]
      %v3265 = vld [vmem:[%s2692 + $0x30] sm:$0xe]
      %v3266 = vld [vmem:[%s2692 + $0x34] sm:$0xf]
      %v3267 = vld [vmem:[%s2692 + $0x38] sm:$0x1]
      %v3268 = vld [vmem:[%s2692 + $0x3c] sm:$0xe]
      %v3269 = vld [vmem:[%s2692 + $0x40] sm:$0xf]
      %v3270 = vld [vmem:[%s2692 + $0x44] sm:$0x1]
      %v3271 = vld [vmem:[%s2692 + $0x48] sm:$0xe]
      %v3272 = vld [vmem:[%s2692 + $0x4c] sm:$0xf]
      %v3273 = vld [vmem:[%s2692 + $0x50] sm:$0x1]
      %v3274 = vld [vmem:[%s2692 + $0x54] sm:$0xe]
      %v3275 = vld [vmem:[%s2692 + $0x58] sm:$0xf]
      %v3276 = vld [vmem:[%s2692 + $0x5c] sm:$0x1]
      %v3277 = vld [vmem:[%s2692 + $0x60] sm:$0xe]
      %v3278 = vld [vmem:[%s2692 + $0x64] sm:$0xf]
      %v3279 = vld [vmem:[%s2692 + $0x68] sm:$0x1]
      %v3280 = vld [vmem:[%s2692 + $0x6c] sm:$0xe]
      %v3281 = vld [vmem:[%s2692 + $0x70] sm:$0xf]
      %v3282 = vld [vmem:[%s2692 + $0x74] sm:$0x1]
      %v3283 = vld [vmem:[%s2692 + $0x78] sm:$0xe]
      %v3284 = vld [vmem:[%s2692 + $0x7c] sm:$0xf]
      %v3285 = vld [vmem:[%s2692 + $0x80] sm:$0x1]
      %v3286 = vld [vmem:[%s2692 + $0x84] sm:$0xe]
      %v3287 = vld [vmem:[%s2692 + $0x88] sm:$0xf]
      %v3288 = vld [vmem:[%s2692 + $0x8c] sm:$0x1]
      %v3289 = vld [vmem:[%s2692 + $0x90] sm:$0xe]
      %v3290 = vld [vmem:[%s2692 + $0x94] sm:$0xf]
      %v3291 = vld [vmem:[%s2692 + $0x98] sm:$0x1]
      %v3292 = vld [vmem:[%s2692 + $0x9c] sm:$0xe]
      %v3293 = vld [vmem:[%s2692 + $0xa0] sm:$0xf]
      %v3294 = vld [vmem:[%s2692 + $0xa4] sm:$0x1]
      %v3295 = vld [vmem:[%s2692 + $0xa8] sm:$0xe]
      %v3296 = vld [vmem:[%s2692 + $0xac] sm:$0xf]
      %v3297 = vld [vmem:[%s2692 + $0xb0] sm:$0x1]
      %v3298 = vld [vmem:[%s2692 + $0xb4] sm:$0xe]
      %v3299 = vld [vmem:[%s2692 + $0xb8] sm:$0xf]
      %v3300 = vld [vmem:[%s2692 + $0xbc] sm:$0x1]
      %v3349 = vrot.slane %v3253, 5
      %v3350 = vrot.slane %v3349, 4
      %v3351 = vrot.slane %v3254, 5
      %v3352 = vsel %vm1676, %v3350, %v3351
      %v3353 = vrot.slane %v3351, 4
      %v3354 = vrot.slane %v3255, 5
      %v3355 = vsel %vm1676, %v3353, %v3354
      %v3356 = vrot.slane %v3256, 5
      %v3357 = vrot.slane %v3356, 4
      %v3358 = vrot.slane %v3257, 5
      %v3359 = vsel %vm1676, %v3357, %v3358
      %v3360 = vrot.slane %v3358, 4
      %v3361 = vrot.slane %v3258, 5
      %v3362 = vsel %vm1676, %v3360, %v3361
      %v3363 = vrot.slane %v3259, 5
      %v3364 = vrot.slane %v3363, 4
      %v3365 = vrot.slane %v3260, 5
      %v3366 = vsel %vm1676, %v3364, %v3365
      %v3367 = vrot.slane %v3365, 4
      %v3368 = vrot.slane %v3261, 5
      %v3369 = vsel %vm1676, %v3367, %v3368
      %v3370 = vrot.slane %v3262, 5
      %v3371 = vrot.slane %v3370, 4
      %v3372 = vrot.slane %v3263, 5
      %v3373 = vsel %vm1676, %v3371, %v3372
      %v3374 = vrot.slane %v3372, 4
      %v3375 = vrot.slane %v3264, 5
      %v3376 = vsel %vm1676, %v3374, %v3375
      %v3377 = vrot.slane %v3265, 5
      %v3378 = vrot.slane %v3377, 4
      %v3379 = vrot.slane %v3266, 5
      %v3380 = vsel %vm1676, %v3378, %v3379
      %v3381 = vrot.slane %v3379, 4
      %v3382 = vrot.slane %v3267, 5
      %v3383 = vsel %vm1676, %v3381, %v3382
      %v3384 = vrot.slane %v3268, 5
      %v3385 = vrot.slane %v3384, 4
      %v3386 = vrot.slane %v3269, 5
      %v3387 = vsel %vm1676, %v3385, %v3386
      %v3388 = vrot.slane %v3386, 4
      %v3389 = vrot.slane %v3270, 5
      %v3390 = vsel %vm1676, %v3388, %v3389
      %v3391 = vrot.slane %v3271, 5
      %v3392 = vrot.slane %v3391, 4
      %v3393 = vrot.slane %v3272, 5
      %v3394 = vsel %vm1676, %v3392, %v3393
      %v3395 = vrot.slane %v3393, 4
      %v3396 = vrot.slane %v3273, 5
      %v3397 = vsel %vm1676, %v3395, %v3396
      %v3398 = vrot.slane %v3274, 5
      %v3399 = vrot.slane %v3398, 4
      %v3400 = vrot.slane %v3275, 5
      %v3401 = vsel %vm1676, %v3399, %v3400
      %v3402 = vrot.slane %v3400, 4
      %v3403 = vrot.slane %v3276, 5
      %v3404 = vsel %vm1676, %v3402, %v3403
      %v3405 = vrot.slane %v3277, 5
      %v3406 = vrot.slane %v3405, 4
      %v3407 = vrot.slane %v3278, 5
      %v3408 = vsel %vm1676, %v3406, %v3407
      %v3409 = vrot.slane %v3407, 4
      %v3410 = vrot.slane %v3279, 5
      %v3411 = vsel %vm1676, %v3409, %v3410
      %v3412 = vrot.slane %v3280, 5
      %v3413 = vrot.slane %v3412, 4
      %v3414 = vrot.slane %v3281, 5
      %v3415 = vsel %vm1676, %v3413, %v3414
      %v3416 = vrot.slane %v3414, 4
      %v3417 = vrot.slane %v3282, 5
      %v3418 = vsel %vm1676, %v3416, %v3417
      %v3419 = vrot.slane %v3283, 5
      %v3420 = vrot.slane %v3419, 4
      %v3421 = vrot.slane %v3284, 5
      %v3422 = vsel %vm1676, %v3420, %v3421
      %v3423 = vrot.slane %v3421, 4
      %v3424 = vrot.slane %v3285, 5
      %v3425 = vsel %vm1676, %v3423, %v3424
      %v3426 = vrot.slane %v3286, 5
      %v3427 = vrot.slane %v3426, 4
      %v3428 = vrot.slane %v3287, 5
      %v3429 = vsel %vm1676, %v3427, %v3428
      %v3430 = vrot.slane %v3428, 4
      %v3431 = vrot.slane %v3288, 5
      %v3432 = vsel %vm1676, %v3430, %v3431
      %v3433 = vrot.slane %v3289, 5
      %v3434 = vrot.slane %v3433, 4
      %v3435 = vrot.slane %v3290, 5
      %v3436 = vsel %vm1676, %v3434, %v3435
      %v3437 = vrot.slane %v3435, 4
      %v3438 = vrot.slane %v3291, 5
      %v3439 = vsel %vm1676, %v3437, %v3438
      %v3440 = vrot.slane %v3292, 5
      %v3441 = vrot.slane %v3440, 4
      %v3442 = vrot.slane %v3293, 5
      %v3443 = vsel %vm1676, %v3441, %v3442
      %v3444 = vrot.slane %v3442, 4
      %v3445 = vrot.slane %v3294, 5
      %v3446 = vsel %vm1676, %v3444, %v3445
      %v3447 = vrot.slane %v3295, 5
      %v3448 = vrot.slane %v3447, 4
      %v3449 = vrot.slane %v3296, 5
      %v3450 = vsel %vm1676, %v3448, %v3449
      %v3451 = vrot.slane %v3449, 4
      %v3452 = vrot.slane %v3297, 5
      %v3453 = vsel %vm1676, %v3451, %v3452
      %v3454 = vrot.slane %v3298, 5
      %v3455 = vrot.slane %v3454, 4
      %v3456 = vrot.slane %v3299, 5
      %v3457 = vsel %vm1676, %v3455, %v3456
      %v3458 = vrot.slane %v3456, 4
      %v3459 = vrot.slane %v3300, 5
      %v3460 = vsel %vm1676, %v3458, %v3459
      %3493 = vst [vmem:[#allocation3 + $0x20] sm:$0xf] %v3352
      %3494 = vst [vmem:[#allocation3 + $0x44] sm:$0xf] %v3355
      %3495 = vst [vmem:[#allocation3 + $0x68] sm:$0xf] %v3359
      %3496 = vst [vmem:[#allocation3 + $0x8c] sm:$0xf] %v3362
      %3497 = vst [vmem:[#allocation3 + $0xb0] sm:$0xf] %v3366
      %3498 = vst [vmem:[#allocation3 + $0xd4] sm:$0xf] %v3369
      %3499 = vst [vmem:[#allocation3 + $0xf8] sm:$0xf] %v3373
      %3500 = vst [vmem:[#allocation3 + $0x11c] sm:$0xf] %v3376
      %3501 = vst [vmem:[#allocation3 + $0x140] sm:$0xf] %v3380
      %3502 = vst [vmem:[#allocation3 + $0x164] sm:$0xf] %v3383
      %3503 = vst [vmem:[#allocation3 + $0x188] sm:$0xf] %v3387
      %3504 = vst [vmem:[#allocation3 + $0x1ac] sm:$0xf] %v3390
      %3505 = vst [vmem:[#allocation3 + $0x1d0] sm:$0xf] %v3394
      %3506 = vst [vmem:[#allocation3 + $0x1f4] sm:$0xf] %v3397
      %3507 = vst [vmem:[#allocation3 + $0x218] sm:$0xf] %v3401
      %3508 = vst [vmem:[#allocation3 + $0x23c] sm:$0xf] %v3404
      %3509 = vst [vmem:[#allocation3 + $0x260] sm:$0xf] %v3408
      %3510 = vst [vmem:[#allocation3 + $0x284] sm:$0xf] %v3411
      %3511 = vst [vmem:[#allocation3 + $0x2a8] sm:$0xf] %v3415
      %3512 = vst [vmem:[#allocation3 + $0x2cc] sm:$0xf] %v3418
      %3513 = vst [vmem:[#allocation3 + $0x2f0] sm:$0xf] %v3422
      %3514 = vst [vmem:[#allocation3 + $0x314] sm:$0xf] %v3425
      %3515 = vst [vmem:[#allocation3 + $0x338] sm:$0xf] %v3429
      %3516 = vst [vmem:[#allocation3 + $0x35c] sm:$0xf] %v3432
      %3517 = vst [vmem:[#allocation3 + $0x380] sm:$0xf] %v3436
      %3518 = vst [vmem:[#allocation3 + $0x3a4] sm:$0xf] %v3439
      %3519 = vst [vmem:[#allocation3 + $0x3c8] sm:$0xf] %v3443
      %3520 = vst [vmem:[#allocation3 + $0x3ec] sm:$0xf] %v3446
      %3521 = vst [vmem:[#allocation3 + $0x410] sm:$0xf] %v3450
      %3522 = vst [vmem:[#allocation3 + $0x434] sm:$0xf] %v3453
      %3523 = vst [vmem:[#allocation3 + $0x458] sm:$0xf] %v3457
      %3524 = vst [vmem:[#allocation3 + $0x47c] sm:$0xf] %v3460
      %v3525 = vld [vmem:[#allocation3] sm:$0xff]
      %v3526 = vld [vmem:[#allocation3 + $0x8] sm:$0xff]
      %v3527 = vld [vmem:[#allocation3 + $0x10] sm:$0xff]
      %v3528 = vld [vmem:[#allocation3 + $0x18] sm:$0xff]
      %v3529 = vld [vmem:[#allocation3 + $0x20] sm:$0xf]
      %v3530 = vld [vmem:[#allocation3 + $0x24] sm:$0xff]
      %v3531 = vld [vmem:[#allocation3 + $0x2c] sm:$0xff]
      %v3532 = vld [vmem:[#allocation3 + $0x34] sm:$0xff]
      %v3533 = vld [vmem:[#allocation3 + $0x3c] sm:$0xff]
      %v3534 = vld [vmem:[#allocation3 + $0x44] sm:$0xf]
      %v3535 = vld [vmem:[#allocation3 + $0x48] sm:$0xff]
      %v3536 = vld [vmem:[#allocation3 + $0x50] sm:$0xff]
      %v3537 = vld [vmem:[#allocation3 + $0x58] sm:$0xff]
      %v3538 = vld [vmem:[#allocation3 + $0x60] sm:$0xff]
      %v3539 = vld [vmem:[#allocation3 + $0x68] sm:$0xf]
      %v3540 = vld [vmem:[#allocation3 + $0x6c] sm:$0xff]
      %v3541 = vld [vmem:[#allocation3 + $0x74] sm:$0xff]
      %v3542 = vld [vmem:[#allocation3 + $0x7c] sm:$0xff]
      %v3543 = vld [vmem:[#allocation3 + $0x84] sm:$0xff]
      %v3544 = vld [vmem:[#allocation3 + $0x8c] sm:$0xf]
      %v3545 = vld [vmem:[#allocation3 + $0x90] sm:$0xff]
      %v3546 = vld [vmem:[#allocation3 + $0x98] sm:$0xff]
      %v3547 = vld [vmem:[#allocation3 + $0xa0] sm:$0xff]
      %v3548 = vld [vmem:[#allocation3 + $0xa8] sm:$0xff]
      %v3549 = vld [vmem:[#allocation3 + $0xb0] sm:$0xf]
      %v3550 = vld [vmem:[#allocation3 + $0xb4] sm:$0xff]
      %v3551 = vld [vmem:[#allocation3 + $0xbc] sm:$0xff]
      %v3552 = vld [vmem:[#allocation3 + $0xc4] sm:$0xff]
      %v3553 = vld [vmem:[#allocation3 + $0xcc] sm:$0xff]
      %v3554 = vld [vmem:[#allocation3 + $0xd4] sm:$0xf]
      %v3555 = vld [vmem:[#allocation3 + $0xd8] sm:$0xff]
      %v3556 = vld [vmem:[#allocation3 + $0xe0] sm:$0xff]
      %v3557 = vld [vmem:[#allocation3 + $0xe8] sm:$0xff]
      %v3558 = vld [vmem:[#allocation3 + $0xf0] sm:$0xff]
      %v3559 = vld [vmem:[#allocation3 + $0xf8] sm:$0xf]
      %v3560 = vld [vmem:[#allocation3 + $0xfc] sm:$0xff]
      %v3561 = vld [vmem:[#allocation3 + $0x104] sm:$0xff]
      %v3562 = vld [vmem:[#allocation3 + $0x10c] sm:$0xff]
      %v3563 = vld [vmem:[#allocation3 + $0x114] sm:$0xff]
      %v3564 = vld [vmem:[#allocation3 + $0x11c] sm:$0xf]
      %v3565 = vld [vmem:[#allocation3 + $0x120] sm:$0xff]
      %v3566 = vld [vmem:[#allocation3 + $0x128] sm:$0xff]
      %v3567 = vld [vmem:[#allocation3 + $0x130] sm:$0xff]
      %v3568 = vld [vmem:[#allocation3 + $0x138] sm:$0xff]
      %v3569 = vld [vmem:[#allocation3 + $0x140] sm:$0xf]
      %v3570 = vld [vmem:[#allocation3 + $0x144] sm:$0xff]
      %v3571 = vld [vmem:[#allocation3 + $0x14c] sm:$0xff]
      %v3572 = vld [vmem:[#allocation3 + $0x154] sm:$0xff]
      %v3573 = vld [vmem:[#allocation3 + $0x15c] sm:$0xff]
      %v3574 = vld [vmem:[#allocation3 + $0x164] sm:$0xf]
      %v3575 = vld [vmem:[#allocation3 + $0x168] sm:$0xff]
      %v3576 = vld [vmem:[#allocation3 + $0x170] sm:$0xff]
      %v3577 = vld [vmem:[#allocation3 + $0x178] sm:$0xff]
      %v3578 = vld [vmem:[#allocation3 + $0x180] sm:$0xff]
      %v3579 = vld [vmem:[#allocation3 + $0x188] sm:$0xf]
      %v3580 = vld [vmem:[#allocation3 + $0x18c] sm:$0xff]
      %v3581 = vld [vmem:[#allocation3 + $0x194] sm:$0xff]
      %v3582 = vld [vmem:[#allocation3 + $0x19c] sm:$0xff]
      %v3583 = vld [vmem:[#allocation3 + $0x1a4] sm:$0xff]
      %v3584 = vld [vmem:[#allocation3 + $0x1ac] sm:$0xf]
      %v3585 = vld [vmem:[#allocation3 + $0x1b0] sm:$0xff]
      %v3586 = vld [vmem:[#allocation3 + $0x1b8] sm:$0xff]
      %v3587 = vld [vmem:[#allocation3 + $0x1c0] sm:$0xff]
      %v3588 = vld [vmem:[#allocation3 + $0x1c8] sm:$0xff]
      %v3589 = vld [vmem:[#allocation3 + $0x1d0] sm:$0xf]
      %v3590 = vld [vmem:[#allocation3 + $0x1d4] sm:$0xff]
      %v3591 = vld [vmem:[#allocation3 + $0x1dc] sm:$0xff]
      %v3592 = vld [vmem:[#allocation3 + $0x1e4] sm:$0xff]
      %v3593 = vld [vmem:[#allocation3 + $0x1ec] sm:$0xff]
      %v3594 = vld [vmem:[#allocation3 + $0x1f4] sm:$0xf]
      %v3595 = vld [vmem:[#allocation3 + $0x1f8] sm:$0xff]
      %v3596 = vld [vmem:[#allocation3 + $0x200] sm:$0xff]
      %v3597 = vld [vmem:[#allocation3 + $0x208] sm:$0xff]
      %v3598 = vld [vmem:[#allocation3 + $0x210] sm:$0xff]
      %v3599 = vld [vmem:[#allocation3 + $0x218] sm:$0xf]
      %v3600 = vld [vmem:[#allocation3 + $0x21c] sm:$0xff]
      %v3601 = vld [vmem:[#allocation3 + $0x224] sm:$0xff]
      %v3602 = vld [vmem:[#allocation3 + $0x22c] sm:$0xff]
      %v3603 = vld [vmem:[#allocation3 + $0x234] sm:$0xff]
      %v3604 = vld [vmem:[#allocation3 + $0x23c] sm:$0xf]
      %v3605 = vld [vmem:[#allocation3 + $0x240] sm:$0xff]
      %v3606 = vld [vmem:[#allocation3 + $0x248] sm:$0xff]
      %v3607 = vld [vmem:[#allocation3 + $0x250] sm:$0xff]
      %v3608 = vld [vmem:[#allocation3 + $0x258] sm:$0xff]
      %v3609 = vld [vmem:[#allocation3 + $0x260] sm:$0xf]
      %v3610 = vld [vmem:[#allocation3 + $0x264] sm:$0xff]
      %v3611 = vld [vmem:[#allocation3 + $0x26c] sm:$0xff]
      %v3612 = vld [vmem:[#allocation3 + $0x274] sm:$0xff]
      %v3613 = vld [vmem:[#allocation3 + $0x27c] sm:$0xff]
      %v3614 = vld [vmem:[#allocation3 + $0x284] sm:$0xf]
      %v3615 = vld [vmem:[#allocation3 + $0x288] sm:$0xff]
      %v3616 = vld [vmem:[#allocation3 + $0x290] sm:$0xff]
      %v3617 = vld [vmem:[#allocation3 + $0x298] sm:$0xff]
      %v3618 = vld [vmem:[#allocation3 + $0x2a0] sm:$0xff]
      %v3619 = vld [vmem:[#allocation3 + $0x2a8] sm:$0xf]
      %v3620 = vld [vmem:[#allocation3 + $0x2ac] sm:$0xff]
      %v3621 = vld [vmem:[#allocation3 + $0x2b4] sm:$0xff]
      %v3622 = vld [vmem:[#allocation3 + $0x2bc] sm:$0xff]
      %v3623 = vld [vmem:[#allocation3 + $0x2c4] sm:$0xff]
      %v3624 = vld [vmem:[#allocation3 + $0x2cc] sm:$0xf]
      %v3625 = vld [vmem:[#allocation3 + $0x2d0] sm:$0xff]
      %v3626 = vld [vmem:[#allocation3 + $0x2d8] sm:$0xff]
      %v3627 = vld [vmem:[#allocation3 + $0x2e0] sm:$0xff]
      %v3628 = vld [vmem:[#allocation3 + $0x2e8] sm:$0xff]
      %v3629 = vld [vmem:[#allocation3 + $0x2f0] sm:$0xf]
      %v3630 = vld [vmem:[#allocation3 + $0x2f4] sm:$0xff]
      %v3631 = vld [vmem:[#allocation3 + $0x2fc] sm:$0xff]
      %v3632 = vld [vmem:[#allocation3 + $0x304] sm:$0xff]
      %v3633 = vld [vmem:[#allocation3 + $0x30c] sm:$0xff]
      %v3634 = vld [vmem:[#allocation3 + $0x314] sm:$0xf]
      %v3635 = vld [vmem:[#allocation3 + $0x318] sm:$0xff]
      %v3636 = vld [vmem:[#allocation3 + $0x320] sm:$0xff]
      %v3637 = vld [vmem:[#allocation3 + $0x328] sm:$0xff]
      %v3638 = vld [vmem:[#allocation3 + $0x330] sm:$0xff]
      %v3639 = vld [vmem:[#allocation3 + $0x338] sm:$0xf]
      %v3640 = vld [vmem:[#allocation3 + $0x33c] sm:$0xff]
      %v3641 = vld [vmem:[#allocation3 + $0x344] sm:$0xff]
      %v3642 = vld [vmem:[#allocation3 + $0x34c] sm:$0xff]
      %v3643 = vld [vmem:[#allocation3 + $0x354] sm:$0xff]
      %v3644 = vld [vmem:[#allocation3 + $0x35c] sm:$0xf]
      %v3645 = vld [vmem:[#allocation3 + $0x360] sm:$0xff]
      %v3646 = vld [vmem:[#allocation3 + $0x368] sm:$0xff]
      %v3647 = vld [vmem:[#allocation3 + $0x370] sm:$0xff]
      %v3648 = vld [vmem:[#allocation3 + $0x378] sm:$0xff]
      %v3649 = vld [vmem:[#allocation3 + $0x380] sm:$0xf]
      %v3650 = vld [vmem:[#allocation3 + $0x384] sm:$0xff]
      %v3651 = vld [vmem:[#allocation3 + $0x38c] sm:$0xff]
      %v3652 = vld [vmem:[#allocation3 + $0x394] sm:$0xff]
      %v3653 = vld [vmem:[#allocation3 + $0x39c] sm:$0xff]
      %v3654 = vld [vmem:[#allocation3 + $0x3a4] sm:$0xf]
      %v3655 = vld [vmem:[#allocation3 + $0x3a8] sm:$0xff]
      %v3656 = vld [vmem:[#allocation3 + $0x3b0] sm:$0xff]
      %v3657 = vld [vmem:[#allocation3 + $0x3b8] sm:$0xff]
      %v3658 = vld [vmem:[#allocation3 + $0x3c0] sm:$0xff]
      %v3659 = vld [vmem:[#allocation3 + $0x3c8] sm:$0xf]
      %v3660 = vld [vmem:[#allocation3 + $0x3cc] sm:$0xff]
      %v3661 = vld [vmem:[#allocation3 + $0x3d4] sm:$0xff]
      %v3662 = vld [vmem:[#allocation3 + $0x3dc] sm:$0xff]
      %v3663 = vld [vmem:[#allocation3 + $0x3e4] sm:$0xff]
      %v3664 = vld [vmem:[#allocation3 + $0x3ec] sm:$0xf]
      %v3665 = vld [vmem:[#allocation3 + $0x3f0] sm:$0xff]
      %v3666 = vld [vmem:[#allocation3 + $0x3f8] sm:$0xff]
      %v3667 = vld [vmem:[#allocation3 + $0x400] sm:$0xff]
      %v3668 = vld [vmem:[#allocation3 + $0x408] sm:$0xff]
      %v3669 = vld [vmem:[#allocation3 + $0x410] sm:$0xf]
      %v3670 = vld [vmem:[#allocation3 + $0x414] sm:$0xff]
      %v3671 = vld [vmem:[#allocation3 + $0x41c] sm:$0xff]
      %v3672 = vld [vmem:[#allocation3 + $0x424] sm:$0xff]
      %v3673 = vld [vmem:[#allocation3 + $0x42c] sm:$0xff]
      %v3674 = vld [vmem:[#allocation3 + $0x434] sm:$0xf]
      %v3675 = vld [vmem:[#allocation3 + $0x438] sm:$0xff]
      %v3676 = vld [vmem:[#allocation3 + $0x440] sm:$0xff]
      %v3677 = vld [vmem:[#allocation3 + $0x448] sm:$0xff]
      %v3678 = vld [vmem:[#allocation3 + $0x450] sm:$0xff]
      %v3679 = vld [vmem:[#allocation3 + $0x458] sm:$0xf]
      %v3680 = vld [vmem:[#allocation3 + $0x45c] sm:$0xff]
      %v3681 = vld [vmem:[#allocation3 + $0x464] sm:$0xff]
      %v3682 = vld [vmem:[#allocation3 + $0x46c] sm:$0xff]
      %v3683 = vld [vmem:[#allocation3 + $0x474] sm:$0xff]
      %v3684 = vld [vmem:[#allocation3 + $0x47c] sm:$0xf]
      %v3685 = vld [vmem:[%s3] sm:$0xf]
      %v3686 = vld [vmem:[%s3 + $0x4] sm:$0xf]
      %v3687 = vld [vmem:[%s3 + $0x8] sm:$0xf]
      %v3688 = vld [vmem:[%s3 + $0xc] sm:$0xf]
      %v3689 = vld [vmem:[%s3 + $0x10] sm:$0xf]
      %v3690 = vld [vmem:[%s3 + $0x14] sm:$0xf]
      %v3691 = vld [vmem:[%s3 + $0x18] sm:$0xf]
      %v3692 = vld [vmem:[%s3 + $0x1c] sm:$0xf]
      %v3693 = vld [vmem:[%s3 + $0x20] sm:$0xf]
      %v3694 = vld [vmem:[%s3 + $0x24] sm:$0xf]
      %v3695 = vld [vmem:[%s3 + $0x28] sm:$0xf]
      %v3696 = vld [vmem:[%s3 + $0x2c] sm:$0xf]
      %v3697 = vld [vmem:[%s3 + $0x30] sm:$0xf]
      %v3698 = vld [vmem:[%s3 + $0x34] sm:$0xf]
      %v3699 = vld [vmem:[%s3 + $0x38] sm:$0xf]
      %v3700 = vld [vmem:[%s3 + $0x3c] sm:$0xf]
      %v3701 = vld [vmem:[%s3 + $0x40] sm:$0xf]
      %v3702 = vld [vmem:[%s3 + $0x44] sm:$0xf]
      %v3703 = vld [vmem:[%s3 + $0x48] sm:$0xf]
      %v3704 = vld [vmem:[%s3 + $0x4c] sm:$0xf]
      %v3705 = vld [vmem:[%s3 + $0x50] sm:$0xf]
      %v3706 = vld [vmem:[%s3 + $0x54] sm:$0xf]
      %v3707 = vld [vmem:[%s3 + $0x58] sm:$0xf]
      %v3708 = vld [vmem:[%s3 + $0x5c] sm:$0xf]
      %v3709 = vld [vmem:[%s3 + $0x60] sm:$0xf]
      %v3710 = vld [vmem:[%s3 + $0x64] sm:$0xf]
      %v3711 = vld [vmem:[%s3 + $0x68] sm:$0xf]
      %v3712 = vld [vmem:[%s3 + $0x6c] sm:$0xf]
      %v3713 = vld [vmem:[%s3 + $0x70] sm:$0xf]
      %v3714 = vld [vmem:[%s3 + $0x74] sm:$0xf]
      %v3715 = vld [vmem:[%s3 + $0x78] sm:$0xf]
      %v3716 = vld [vmem:[%s3 + $0x7c] sm:$0xf]
      %v3717 = vld [vmem:[%s3 + $0x80] sm:$0xf]
      %v3718 = vld [vmem:[%s3 + $0x84] sm:$0xf]
      %v3719 = vld [vmem:[%s3 + $0x88] sm:$0xf]
      %v3720 = vld [vmem:[%s3 + $0x8c] sm:$0xf]
      %v3721 = vld [vmem:[%s3 + $0x90] sm:$0xf]
      %v3722 = vld [vmem:[%s3 + $0x94] sm:$0xf]
      %v3723 = vld [vmem:[%s3 + $0x98] sm:$0xf]
      %v3724 = vld [vmem:[%s3 + $0x9c] sm:$0xf]
      %v3725 = vld [vmem:[%s3 + $0xa0] sm:$0xf]
      %v3726 = vld [vmem:[%s3 + $0xa4] sm:$0xf]
      %v3727 = vld [vmem:[%s3 + $0xa8] sm:$0xf]
      %v3728 = vld [vmem:[%s3 + $0xac] sm:$0xf]
      %v3729 = vld [vmem:[%s3 + $0xb0] sm:$0xf]
      %v3730 = vld [vmem:[%s3 + $0xb4] sm:$0xf]
      %v3731 = vld [vmem:[%s3 + $0xb8] sm:$0xf]
      %v3732 = vld [vmem:[%s3 + $0xbc] sm:$0xf]
      %v3733 = vld [vmem:[%s3 + $0xc0] sm:$0xf]
      %v3734 = vld [vmem:[%s3 + $0xc4] sm:$0xf]
      %v3735 = vld [vmem:[%s3 + $0xc8] sm:$0xf]
      %v3736 = vld [vmem:[%s3 + $0xcc] sm:$0xf]
      %v3737 = vld [vmem:[%s3 + $0xd0] sm:$0xf]
      %v3738 = vld [vmem:[%s3 + $0xd4] sm:$0xf]
      %v3739 = vld [vmem:[%s3 + $0xd8] sm:$0xf]
      %v3740 = vld [vmem:[%s3 + $0xdc] sm:$0xf]
      %v3741 = vld [vmem:[%s3 + $0xe0] sm:$0xf]
      %v3742 = vld [vmem:[%s3 + $0xe4] sm:$0xf]
      %v3743 = vld [vmem:[%s3 + $0xe8] sm:$0xf]
      %v3744 = vld [vmem:[%s3 + $0xec] sm:$0xf]
      %v3745 = vld [vmem:[%s3 + $0xf0] sm:$0xf]
      %v3746 = vld [vmem:[%s3 + $0xf4] sm:$0xf]
      %v3747 = vld [vmem:[%s3 + $0xf8] sm:$0xf]
      %v3748 = vld [vmem:[%s3 + $0xfc] sm:$0xf]
      %v3749 = vld [vmem:[%s3 + $0x100] sm:$0xf]
      %v3750 = vld [vmem:[%s3 + $0x104] sm:$0xf]
      %v3751 = vld [vmem:[%s3 + $0x108] sm:$0xf]
      %v3752 = vld [vmem:[%s3 + $0x10c] sm:$0xf]
      %v3753 = vld [vmem:[%s3 + $0x110] sm:$0xf]
      %v3754 = vld [vmem:[%s3 + $0x114] sm:$0xf]
      %v3755 = vld [vmem:[%s3 + $0x118] sm:$0xf]
      %v3756 = vld [vmem:[%s3 + $0x11c] sm:$0xf]
      %v3757 = vld [vmem:[%s3 + $0x120] sm:$0xf]
      %v3758 = vld [vmem:[%s3 + $0x124] sm:$0xf]
      %v3759 = vld [vmem:[%s3 + $0x128] sm:$0xf]
      %v3760 = vld [vmem:[%s3 + $0x12c] sm:$0xf]
      %v3761 = vld [vmem:[%s3 + $0x130] sm:$0xf]
      %v3762 = vld [vmem:[%s3 + $0x134] sm:$0xf]
      %v3763 = vld [vmem:[%s3 + $0x138] sm:$0xf]
      %v3764 = vld [vmem:[%s3 + $0x13c] sm:$0xf]
      %v3765 = vld [vmem:[%s3 + $0x140] sm:$0xf]
      %v3766 = vld [vmem:[%s3 + $0x144] sm:$0xf]
      %v3767 = vld [vmem:[%s3 + $0x148] sm:$0xf]
      %v3768 = vld [vmem:[%s3 + $0x14c] sm:$0xf]
      %v3769 = vld [vmem:[%s3 + $0x150] sm:$0xf]
      %v3770 = vld [vmem:[%s3 + $0x154] sm:$0xf]
      %v3771 = vld [vmem:[%s3 + $0x158] sm:$0xf]
      %v3772 = vld [vmem:[%s3 + $0x15c] sm:$0xf]
      %v3773 = vld [vmem:[%s3 + $0x160] sm:$0xf]
      %v3774 = vld [vmem:[%s3 + $0x164] sm:$0xf]
      %v3775 = vld [vmem:[%s3 + $0x168] sm:$0xf]
      %v3776 = vld [vmem:[%s3 + $0x16c] sm:$0xf]
      %v3777 = vld [vmem:[%s3 + $0x170] sm:$0xf]
      %v3778 = vld [vmem:[%s3 + $0x174] sm:$0xf]
      %v3779 = vld [vmem:[%s3 + $0x178] sm:$0xf]
      %v3780 = vld [vmem:[%s3 + $0x17c] sm:$0xf]
      %v3781 = vld [vmem:[%s3 + $0x180] sm:$0xf]
      %v3782 = vld [vmem:[%s3 + $0x184] sm:$0xf]
      %v3783 = vld [vmem:[%s3 + $0x188] sm:$0xf]
      %v3784 = vld [vmem:[%s3 + $0x18c] sm:$0xf]
      %v3785 = vld [vmem:[%s3 + $0x190] sm:$0xf]
      %v3786 = vld [vmem:[%s3 + $0x194] sm:$0xf]
      %v3787 = vld [vmem:[%s3 + $0x198] sm:$0xf]
      %v3788 = vld [vmem:[%s3 + $0x19c] sm:$0xf]
      %v3789 = vld [vmem:[%s3 + $0x1a0] sm:$0xf]
      %v3790 = vld [vmem:[%s3 + $0x1a4] sm:$0xf]
      %v3791 = vld [vmem:[%s3 + $0x1a8] sm:$0xf]
      %v3792 = vld [vmem:[%s3 + $0x1ac] sm:$0xf]
      %v3793 = vld [vmem:[%s3 + $0x1b0] sm:$0xf]
      %v3794 = vld [vmem:[%s3 + $0x1b4] sm:$0xf]
      %v3795 = vld [vmem:[%s3 + $0x1b8] sm:$0xf]
      %v3796 = vld [vmem:[%s3 + $0x1bc] sm:$0xf]
      %v3797 = vld [vmem:[%s3 + $0x1c0] sm:$0xf]
      %v3798 = vld [vmem:[%s3 + $0x1c4] sm:$0xf]
      %v3799 = vld [vmem:[%s3 + $0x1c8] sm:$0xf]
      %v3800 = vld [vmem:[%s3 + $0x1cc] sm:$0xf]
      %v3801 = vld [vmem:[%s3 + $0x1d0] sm:$0xf]
      %v3802 = vld [vmem:[%s3 + $0x1d4] sm:$0xf]
      %v3803 = vld [vmem:[%s3 + $0x1d8] sm:$0xf]
      %v3804 = vld [vmem:[%s3 + $0x1dc] sm:$0xf]
      %v3805 = vld [vmem:[%s3 + $0x1e0] sm:$0xf]
      %v3806 = vld [vmem:[%s3 + $0x1e4] sm:$0xf]
      %v3807 = vld [vmem:[%s3 + $0x1e8] sm:$0xf]
      %v3808 = vld [vmem:[%s3 + $0x1ec] sm:$0xf]
      %v3809 = vld [vmem:[%s3 + $0x1f0] sm:$0xf]
      %v3810 = vld [vmem:[%s3 + $0x1f4] sm:$0xf]
      %v3811 = vld [vmem:[%s3 + $0x1f8] sm:$0xf]
      %v3812 = vld [vmem:[%s3 + $0x1fc] sm:$0xf]
      %v3813 = vld [vmem:[%s3 + $0x200] sm:$0xf]
      %v3814 = vld [vmem:[%s3 + $0x204] sm:$0xf]
      %v3815 = vld [vmem:[%s3 + $0x208] sm:$0xf]
      %v3816 = vld [vmem:[%s3 + $0x20c] sm:$0xf]
      %v3817 = vld [vmem:[%s3 + $0x210] sm:$0xf]
      %v3818 = vld [vmem:[%s3 + $0x214] sm:$0xf]
      %v3819 = vld [vmem:[%s3 + $0x218] sm:$0xf]
      %v3820 = vld [vmem:[%s3 + $0x21c] sm:$0xf]
      %v3821 = vld [vmem:[%s3 + $0x220] sm:$0xf]
      %v3822 = vld [vmem:[%s3 + $0x224] sm:$0xf]
      %v3823 = vld [vmem:[%s3 + $0x228] sm:$0xf]
      %v3824 = vld [vmem:[%s3 + $0x22c] sm:$0xf]
      %v3825 = vld [vmem:[%s3 + $0x230] sm:$0xf]
      %v3826 = vld [vmem:[%s3 + $0x234] sm:$0xf]
      %v3827 = vld [vmem:[%s3 + $0x238] sm:$0xf]
      %v3828 = vld [vmem:[%s3 + $0x23c] sm:$0xf]
      %v3829 = vld [vmem:[%s4] sm:$0x1]
      %v3831 = vperm.slane %v3829, 0
      %v3993 = vunpack.c.l.b16 %v3525
      %v3994 = vunpack.c.h.b16 %v3525
      %v3995 = vunpack.c.l.b16 %v3526
      %v3996 = vunpack.c.h.b16 %v3526
      %v3997 = vunpack.c.l.b16 %v3527
      %v3998 = vunpack.c.h.b16 %v3527
      %v3999 = vunpack.c.l.b16 %v3528
      %v4000 = vunpack.c.h.b16 %v3528
      %v4001 = vunpack.c.l.b16 %v3529
      %v4002 = vunpack.c.l.b16 %v3530
      %v4003 = vunpack.c.h.b16 %v3530
      %v4004 = vunpack.c.l.b16 %v3531
      %v4005 = vunpack.c.h.b16 %v3531
      %v4006 = vunpack.c.l.b16 %v3532
      %v4007 = vunpack.c.h.b16 %v3532
      %v4008 = vunpack.c.l.b16 %v3533
      %v4009 = vunpack.c.h.b16 %v3533
      %v4010 = vunpack.c.l.b16 %v3534
      %v4011 = vunpack.c.l.b16 %v3535
      %v4012 = vunpack.c.h.b16 %v3535
      %v4013 = vunpack.c.l.b16 %v3536
      %v4014 = vunpack.c.h.b16 %v3536
      %v4015 = vunpack.c.l.b16 %v3537
      %v4016 = vunpack.c.h.b16 %v3537
      %v4017 = vunpack.c.l.b16 %v3538
      %v4018 = vunpack.c.h.b16 %v3538
      %v4019 = vunpack.c.l.b16 %v3539
      %v4020 = vunpack.c.l.b16 %v3540
      %v4021 = vunpack.c.h.b16 %v3540
      %v4022 = vunpack.c.l.b16 %v3541
      %v4023 = vunpack.c.h.b16 %v3541
      %v4024 = vunpack.c.l.b16 %v3542
      %v4025 = vunpack.c.h.b16 %v3542
      %v4026 = vunpack.c.l.b16 %v3543
      %v4027 = vunpack.c.h.b16 %v3543
      %v4028 = vunpack.c.l.b16 %v3544
      %v4029 = vunpack.c.l.b16 %v3545
      %v4030 = vunpack.c.h.b16 %v3545
      %v4031 = vunpack.c.l.b16 %v3546
      %v4032 = vunpack.c.h.b16 %v3546
      %v4033 = vunpack.c.l.b16 %v3547
      %v4034 = vunpack.c.h.b16 %v3547
      %v4035 = vunpack.c.l.b16 %v3548
      %v4036 = vunpack.c.h.b16 %v3548
      %v4037 = vunpack.c.l.b16 %v3549
      %v4038 = vunpack.c.l.b16 %v3550
      %v4039 = vunpack.c.h.b16 %v3550
      %v4040 = vunpack.c.l.b16 %v3551
      %v4041 = vunpack.c.h.b16 %v3551
      %v4042 = vunpack.c.l.b16 %v3552
      %v4043 = vunpack.c.h.b16 %v3552
      %v4044 = vunpack.c.l.b16 %v3553
      %v4045 = vunpack.c.h.b16 %v3553
      %v4046 = vunpack.c.l.b16 %v3554
      %v4047 = vunpack.c.l.b16 %v3555
      %v4048 = vunpack.c.h.b16 %v3555
      %v4049 = vunpack.c.l.b16 %v3556
      %v4050 = vunpack.c.h.b16 %v3556
      %v4051 = vunpack.c.l.b16 %v3557
      %v4052 = vunpack.c.h.b16 %v3557
      %v4053 = vunpack.c.l.b16 %v3558
      %v4054 = vunpack.c.h.b16 %v3558
      %v4055 = vunpack.c.l.b16 %v3559
      %v4056 = vunpack.c.l.b16 %v3560
      %v4057 = vunpack.c.h.b16 %v3560
      %v4058 = vunpack.c.l.b16 %v3561
      %v4059 = vunpack.c.h.b16 %v3561
      %v4060 = vunpack.c.l.b16 %v3562
      %v4061 = vunpack.c.h.b16 %v3562
      %v4062 = vunpack.c.l.b16 %v3563
      %v4063 = vunpack.c.h.b16 %v3563
      %v4064 = vunpack.c.l.b16 %v3564
      %v4065 = vunpack.c.l.b16 %v3565
      %v4066 = vunpack.c.h.b16 %v3565
      %v4067 = vunpack.c.l.b16 %v3566
      %v4068 = vunpack.c.h.b16 %v3566
      %v4069 = vunpack.c.l.b16 %v3567
      %v4070 = vunpack.c.h.b16 %v3567
      %v4071 = vunpack.c.l.b16 %v3568
      %v4072 = vunpack.c.h.b16 %v3568
      %v4073 = vunpack.c.l.b16 %v3569
      %v4074 = vunpack.c.l.b16 %v3570
      %v4075 = vunpack.c.h.b16 %v3570
      %v4076 = vunpack.c.l.b16 %v3571
      %v4077 = vunpack.c.h.b16 %v3571
      %v4078 = vunpack.c.l.b16 %v3572
      %v4079 = vunpack.c.h.b16 %v3572
      %v4080 = vunpack.c.l.b16 %v3573
      %v4081 = vunpack.c.h.b16 %v3573
      %v4082 = vunpack.c.l.b16 %v3574
      %v4083 = vunpack.c.l.b16 %v3575
      %v4084 = vunpack.c.h.b16 %v3575
      %v4085 = vunpack.c.l.b16 %v3576
      %v4086 = vunpack.c.h.b16 %v3576
      %v4087 = vunpack.c.l.b16 %v3577
      %v4088 = vunpack.c.h.b16 %v3577
      %v4089 = vunpack.c.l.b16 %v3578
      %v4090 = vunpack.c.h.b16 %v3578
      %v4091 = vunpack.c.l.b16 %v3579
      %v4092 = vunpack.c.l.b16 %v3580
      %v4093 = vunpack.c.h.b16 %v3580
      %v4094 = vunpack.c.l.b16 %v3581
      %v4095 = vunpack.c.h.b16 %v3581
      %v4096 = vunpack.c.l.b16 %v3582
      %v4097 = vunpack.c.h.b16 %v3582
      %v4098 = vunpack.c.l.b16 %v3583
      %v4099 = vunpack.c.h.b16 %v3583
      %v4100 = vunpack.c.l.b16 %v3584
      %v4101 = vunpack.c.l.b16 %v3585
      %v4102 = vunpack.c.h.b16 %v3585
      %v4103 = vunpack.c.l.b16 %v3586
      %v4104 = vunpack.c.h.b16 %v3586
      %v4105 = vunpack.c.l.b16 %v3587
      %v4106 = vunpack.c.h.b16 %v3587
      %v4107 = vunpack.c.l.b16 %v3588
      %v4108 = vunpack.c.h.b16 %v3588
      %v4109 = vunpack.c.l.b16 %v3589
      %v4110 = vunpack.c.l.b16 %v3590
      %v4111 = vunpack.c.h.b16 %v3590
      %v4112 = vunpack.c.l.b16 %v3591
      %v4113 = vunpack.c.h.b16 %v3591
      %v4114 = vunpack.c.l.b16 %v3592
      %v4115 = vunpack.c.h.b16 %v3592
      %v4116 = vunpack.c.l.b16 %v3593
      %v4117 = vunpack.c.h.b16 %v3593
      %v4118 = vunpack.c.l.b16 %v3594
      %v4119 = vunpack.c.l.b16 %v3595
      %v4120 = vunpack.c.h.b16 %v3595
      %v4121 = vunpack.c.l.b16 %v3596
      %v4122 = vunpack.c.h.b16 %v3596
      %v4123 = vunpack.c.l.b16 %v3597
      %v4124 = vunpack.c.h.b16 %v3597
      %v4125 = vunpack.c.l.b16 %v3598
      %v4126 = vunpack.c.h.b16 %v3598
      %v4127 = vunpack.c.l.b16 %v3599
      %v4128 = vunpack.c.l.b16 %v3600
      %v4129 = vunpack.c.h.b16 %v3600
      %v4130 = vunpack.c.l.b16 %v3601
      %v4131 = vunpack.c.h.b16 %v3601
      %v4132 = vunpack.c.l.b16 %v3602
      %v4133 = vunpack.c.h.b16 %v3602
      %v4134 = vunpack.c.l.b16 %v3603
      %v4135 = vunpack.c.h.b16 %v3603
      %v4136 = vunpack.c.l.b16 %v3604
      %v4137 = vunpack.c.l.b16 %v3605
      %v4138 = vunpack.c.h.b16 %v3605
      %v4139 = vunpack.c.l.b16 %v3606
      %v4140 = vunpack.c.h.b16 %v3606
      %v4141 = vunpack.c.l.b16 %v3607
      %v4142 = vunpack.c.h.b16 %v3607
      %v4143 = vunpack.c.l.b16 %v3608
      %v4144 = vunpack.c.h.b16 %v3608
      %v4145 = vunpack.c.l.b16 %v3609
      %v4146 = vunpack.c.l.b16 %v3610
      %v4147 = vunpack.c.h.b16 %v3610
      %v4148 = vunpack.c.l.b16 %v3611
      %v4149 = vunpack.c.h.b16 %v3611
      %v4150 = vunpack.c.l.b16 %v3612
      %v4151 = vunpack.c.h.b16 %v3612
      %v4152 = vunpack.c.l.b16 %v3613
      %v4153 = vunpack.c.h.b16 %v3613
      %v4154 = vunpack.c.l.b16 %v3614
      %v4155 = vunpack.c.l.b16 %v3615
      %v4156 = vunpack.c.h.b16 %v3615
      %v4157 = vunpack.c.l.b16 %v3616
      %v4158 = vunpack.c.h.b16 %v3616
      %v4159 = vunpack.c.l.b16 %v3617
      %v4160 = vunpack.c.h.b16 %v3617
      %v4161 = vunpack.c.l.b16 %v3618
      %v4162 = vunpack.c.h.b16 %v3618
      %v4163 = vunpack.c.l.b16 %v3619
      %v4164 = vunpack.c.l.b16 %v3620
      %v4165 = vunpack.c.h.b16 %v3620
      %v4166 = vunpack.c.l.b16 %v3621
      %v4167 = vunpack.c.h.b16 %v3621
      %v4168 = vunpack.c.l.b16 %v3622
      %v4169 = vunpack.c.h.b16 %v3622
      %v4170 = vunpack.c.l.b16 %v3623
      %v4171 = vunpack.c.h.b16 %v3623
      %v4172 = vunpack.c.l.b16 %v3624
      %v4173 = vunpack.c.l.b16 %v3625
      %v4174 = vunpack.c.h.b16 %v3625
      %v4175 = vunpack.c.l.b16 %v3626
      %v4176 = vunpack.c.h.b16 %v3626
      %v4177 = vunpack.c.l.b16 %v3627
      %v4178 = vunpack.c.h.b16 %v3627
      %v4179 = vunpack.c.l.b16 %v3628
      %v4180 = vunpack.c.h.b16 %v3628
      %v4181 = vunpack.c.l.b16 %v3629
      %v4182 = vunpack.c.l.b16 %v3630
      %v4183 = vunpack.c.h.b16 %v3630
      %v4184 = vunpack.c.l.b16 %v3631
      %v4185 = vunpack.c.h.b16 %v3631
      %v4186 = vunpack.c.l.b16 %v3632
      %v4187 = vunpack.c.h.b16 %v3632
      %v4188 = vunpack.c.l.b16 %v3633
      %v4189 = vunpack.c.h.b16 %v3633
      %v4190 = vunpack.c.l.b16 %v3634
      %v4191 = vunpack.c.l.b16 %v3635
      %v4192 = vunpack.c.h.b16 %v3635
      %v4193 = vunpack.c.l.b16 %v3636
      %v4194 = vunpack.c.h.b16 %v3636
      %v4195 = vunpack.c.l.b16 %v3637
      %v4196 = vunpack.c.h.b16 %v3637
      %v4197 = vunpack.c.l.b16 %v3638
      %v4198 = vunpack.c.h.b16 %v3638
      %v4199 = vunpack.c.l.b16 %v3639
      %v4200 = vunpack.c.l.b16 %v3640
      %v4201 = vunpack.c.h.b16 %v3640
      %v4202 = vunpack.c.l.b16 %v3641
      %v4203 = vunpack.c.h.b16 %v3641
      %v4204 = vunpack.c.l.b16 %v3642
      %v4205 = vunpack.c.h.b16 %v3642
      %v4206 = vunpack.c.l.b16 %v3643
      %v4207 = vunpack.c.h.b16 %v3643
      %v4208 = vunpack.c.l.b16 %v3644
      %v4209 = vunpack.c.l.b16 %v3645
      %v4210 = vunpack.c.h.b16 %v3645
      %v4211 = vunpack.c.l.b16 %v3646
      %v4212 = vunpack.c.h.b16 %v3646
      %v4213 = vunpack.c.l.b16 %v3647
      %v4214 = vunpack.c.h.b16 %v3647
      %v4215 = vunpack.c.l.b16 %v3648
      %v4216 = vunpack.c.h.b16 %v3648
      %v4217 = vunpack.c.l.b16 %v3649
      %v4218 = vunpack.c.l.b16 %v3650
      %v4219 = vunpack.c.h.b16 %v3650
      %v4220 = vunpack.c.l.b16 %v3651
      %v4221 = vunpack.c.h.b16 %v3651
      %v4222 = vunpack.c.l.b16 %v3652
      %v4223 = vunpack.c.h.b16 %v3652
      %v4224 = vunpack.c.l.b16 %v3653
      %v4225 = vunpack.c.h.b16 %v3653
      %v4226 = vunpack.c.l.b16 %v3654
      %v4227 = vunpack.c.l.b16 %v3655
      %v4228 = vunpack.c.h.b16 %v3655
      %v4229 = vunpack.c.l.b16 %v3656
      %v4230 = vunpack.c.h.b16 %v3656
      %v4231 = vunpack.c.l.b16 %v3657
      %v4232 = vunpack.c.h.b16 %v3657
      %v4233 = vunpack.c.l.b16 %v3658
      %v4234 = vunpack.c.h.b16 %v3658
      %v4235 = vunpack.c.l.b16 %v3659
      %v4236 = vunpack.c.l.b16 %v3660
      %v4237 = vunpack.c.h.b16 %v3660
      %v4238 = vunpack.c.l.b16 %v3661
      %v4239 = vunpack.c.h.b16 %v3661
      %v4240 = vunpack.c.l.b16 %v3662
      %v4241 = vunpack.c.h.b16 %v3662
      %v4242 = vunpack.c.l.b16 %v3663
      %v4243 = vunpack.c.h.b16 %v3663
      %v4244 = vunpack.c.l.b16 %v3664
      %v4245 = vunpack.c.l.b16 %v3665
      %v4246 = vunpack.c.h.b16 %v3665
      %v4247 = vunpack.c.l.b16 %v3666
      %v4248 = vunpack.c.h.b16 %v3666
      %v4249 = vunpack.c.l.b16 %v3667
      %v4250 = vunpack.c.h.b16 %v3667
      %v4251 = vunpack.c.l.b16 %v3668
      %v4252 = vunpack.c.h.b16 %v3668
      %v4253 = vunpack.c.l.b16 %v3669
      %v4254 = vunpack.c.l.b16 %v3670
      %v4255 = vunpack.c.h.b16 %v3670
      %v4256 = vunpack.c.l.b16 %v3671
      %v4257 = vunpack.c.h.b16 %v3671
      %v4258 = vunpack.c.l.b16 %v3672
      %v4259 = vunpack.c.h.b16 %v3672
      %v4260 = vunpack.c.l.b16 %v3673
      %v4261 = vunpack.c.h.b16 %v3673
      %v4262 = vunpack.c.l.b16 %v3674
      %v4263 = vunpack.c.l.b16 %v3675
      %v4264 = vunpack.c.h.b16 %v3675
      %v4265 = vunpack.c.l.b16 %v3676
      %v4266 = vunpack.c.h.b16 %v3676
      %v4267 = vunpack.c.l.b16 %v3677
      %v4268 = vunpack.c.h.b16 %v3677
      %v4269 = vunpack.c.l.b16 %v3678
      %v4270 = vunpack.c.h.b16 %v3678
      %v4271 = vunpack.c.l.b16 %v3679
      %v4272 = vunpack.c.l.b16 %v3680
      %v4273 = vunpack.c.h.b16 %v3680
      %v4274 = vunpack.c.l.b16 %v3681
      %v4275 = vunpack.c.h.b16 %v3681
      %v4276 = vunpack.c.l.b16 %v3682
      %v4277 = vunpack.c.h.b16 %v3682
      %v4278 = vunpack.c.l.b16 %v3683
      %v4279 = vunpack.c.h.b16 %v3683
      %v4280 = vunpack.c.l.b16 %v3684
      %v4281 = vpack.c.b16 %v4002, %v3993
      %v4282 = vpack.c.b16 %v4003, %v3994
      %v4283 = vpack.c.b16 %v4004, %v3995
      %v4284 = vpack.c.b16 %v4005, %v3996
      %v4285 = vpack.c.b16 %v4006, %v3997
      %v4286 = vpack.c.b16 %v4007, %v3998
      %v4287 = vpack.c.b16 %v4008, %v3999
      %v4288 = vpack.c.b16 %v4009, %v4000
      %v4289 = vpack.c.b16 %v4010, %v4001
      %v4290 = vpack.c.b16 %v4020, %v4011
      %v4291 = vpack.c.b16 %v4021, %v4012
      %v4292 = vpack.c.b16 %v4022, %v4013
      %v4293 = vpack.c.b16 %v4023, %v4014
      %v4294 = vpack.c.b16 %v4024, %v4015
      %v4295 = vpack.c.b16 %v4025, %v4016
      %v4296 = vpack.c.b16 %v4026, %v4017
      %v4297 = vpack.c.b16 %v4027, %v4018
      %v4298 = vpack.c.b16 %v4028, %v4019
      %v4299 = vpack.c.b16 %v4038, %v4029
      %v4300 = vpack.c.b16 %v4039, %v4030
      %v4301 = vpack.c.b16 %v4040, %v4031
      %v4302 = vpack.c.b16 %v4041, %v4032
      %v4303 = vpack.c.b16 %v4042, %v4033
      %v4304 = vpack.c.b16 %v4043, %v4034
      %v4305 = vpack.c.b16 %v4044, %v4035
      %v4306 = vpack.c.b16 %v4045, %v4036
      %v4307 = vpack.c.b16 %v4046, %v4037
      %v4308 = vpack.c.b16 %v4056, %v4047
      %v4309 = vpack.c.b16 %v4057, %v4048
      %v4310 = vpack.c.b16 %v4058, %v4049
      %v4311 = vpack.c.b16 %v4059, %v4050
      %v4312 = vpack.c.b16 %v4060, %v4051
      %v4313 = vpack.c.b16 %v4061, %v4052
      %v4314 = vpack.c.b16 %v4062, %v4053
      %v4315 = vpack.c.b16 %v4063, %v4054
      %v4316 = vpack.c.b16 %v4064, %v4055
      %v4317 = vpack.c.b16 %v4074, %v4065
      %v4318 = vpack.c.b16 %v4075, %v4066
      %v4319 = vpack.c.b16 %v4076, %v4067
      %v4320 = vpack.c.b16 %v4077, %v4068
      %v4321 = vpack.c.b16 %v4078, %v4069
      %v4322 = vpack.c.b16 %v4079, %v4070
      %v4323 = vpack.c.b16 %v4080, %v4071
      %v4324 = vpack.c.b16 %v4081, %v4072
      %v4325 = vpack.c.b16 %v4082, %v4073
      %v4326 = vpack.c.b16 %v4092, %v4083
      %v4327 = vpack.c.b16 %v4093, %v4084
      %v4328 = vpack.c.b16 %v4094, %v4085
      %v4329 = vpack.c.b16 %v4095, %v4086
      %v4330 = vpack.c.b16 %v4096, %v4087
      %v4331 = vpack.c.b16 %v4097, %v4088
      %v4332 = vpack.c.b16 %v4098, %v4089
      %v4333 = vpack.c.b16 %v4099, %v4090
      %v4334 = vpack.c.b16 %v4100, %v4091
      %v4335 = vpack.c.b16 %v4110, %v4101
      %v4336 = vpack.c.b16 %v4111, %v4102
      %v4337 = vpack.c.b16 %v4112, %v4103
      %v4338 = vpack.c.b16 %v4113, %v4104
      %v4339 = vpack.c.b16 %v4114, %v4105
      %v4340 = vpack.c.b16 %v4115, %v4106
      %v4341 = vpack.c.b16 %v4116, %v4107
      %v4342 = vpack.c.b16 %v4117, %v4108
      %v4343 = vpack.c.b16 %v4118, %v4109
      %v4344 = vpack.c.b16 %v4128, %v4119
      %v4345 = vpack.c.b16 %v4129, %v4120
      %v4346 = vpack.c.b16 %v4130, %v4121
      %v4347 = vpack.c.b16 %v4131, %v4122
      %v4348 = vpack.c.b16 %v4132, %v4123
      %v4349 = vpack.c.b16 %v4133, %v4124
      %v4350 = vpack.c.b16 %v4134, %v4125
      %v4351 = vpack.c.b16 %v4135, %v4126
      %v4352 = vpack.c.b16 %v4136, %v4127
      %v4353 = vpack.c.b16 %v4146, %v4137
      %v4354 = vpack.c.b16 %v4147, %v4138
      %v4355 = vpack.c.b16 %v4148, %v4139
      %v4356 = vpack.c.b16 %v4149, %v4140
      %v4357 = vpack.c.b16 %v4150, %v4141
      %v4358 = vpack.c.b16 %v4151, %v4142
      %v4359 = vpack.c.b16 %v4152, %v4143
      %v4360 = vpack.c.b16 %v4153, %v4144
      %v4361 = vpack.c.b16 %v4154, %v4145
      %v4362 = vpack.c.b16 %v4164, %v4155
      %v4363 = vpack.c.b16 %v4165, %v4156
      %v4364 = vpack.c.b16 %v4166, %v4157
      %v4365 = vpack.c.b16 %v4167, %v4158
      %v4366 = vpack.c.b16 %v4168, %v4159
      %v4367 = vpack.c.b16 %v4169, %v4160
      %v4368 = vpack.c.b16 %v4170, %v4161
      %v4369 = vpack.c.b16 %v4171, %v4162
      %v4370 = vpack.c.b16 %v4172, %v4163
      %v4371 = vpack.c.b16 %v4182, %v4173
      %v4372 = vpack.c.b16 %v4183, %v4174
      %v4373 = vpack.c.b16 %v4184, %v4175
      %v4374 = vpack.c.b16 %v4185, %v4176
      %v4375 = vpack.c.b16 %v4186, %v4177
      %v4376 = vpack.c.b16 %v4187, %v4178
      %v4377 = vpack.c.b16 %v4188, %v4179
      %v4378 = vpack.c.b16 %v4189, %v4180
      %v4379 = vpack.c.b16 %v4190, %v4181
      %v4380 = vpack.c.b16 %v4200, %v4191
      %v4381 = vpack.c.b16 %v4201, %v4192
      %v4382 = vpack.c.b16 %v4202, %v4193
      %v4383 = vpack.c.b16 %v4203, %v4194
      %v4384 = vpack.c.b16 %v4204, %v4195
      %v4385 = vpack.c.b16 %v4205, %v4196
      %v4386 = vpack.c.b16 %v4206, %v4197
      %v4387 = vpack.c.b16 %v4207, %v4198
      %v4388 = vpack.c.b16 %v4208, %v4199
      %v4389 = vpack.c.b16 %v4218, %v4209
      %v4390 = vpack.c.b16 %v4219, %v4210
      %v4391 = vpack.c.b16 %v4220, %v4211
      %v4392 = vpack.c.b16 %v4221, %v4212
      %v4393 = vpack.c.b16 %v4222, %v4213
      %v4394 = vpack.c.b16 %v4223, %v4214
      %v4395 = vpack.c.b16 %v4224, %v4215
      %v4396 = vpack.c.b16 %v4225, %v4216
      %v4397 = vpack.c.b16 %v4226, %v4217
      %v4398 = vpack.c.b16 %v4236, %v4227
      %v4399 = vpack.c.b16 %v4237, %v4228
      %v4400 = vpack.c.b16 %v4238, %v4229
      %v4401 = vpack.c.b16 %v4239, %v4230
      %v4402 = vpack.c.b16 %v4240, %v4231
      %v4403 = vpack.c.b16 %v4241, %v4232
      %v4404 = vpack.c.b16 %v4242, %v4233
      %v4405 = vpack.c.b16 %v4243, %v4234
      %v4406 = vpack.c.b16 %v4244, %v4235
      %v4407 = vpack.c.b16 %v4254, %v4245
      %v4408 = vpack.c.b16 %v4255, %v4246
      %v4409 = vpack.c.b16 %v4256, %v4247
      %v4410 = vpack.c.b16 %v4257, %v4248
      %v4411 = vpack.c.b16 %v4258, %v4249
      %v4412 = vpack.c.b16 %v4259, %v4250
      %v4413 = vpack.c.b16 %v4260, %v4251
      %v4414 = vpack.c.b16 %v4261, %v4252
      %v4415 = vpack.c.b16 %v4262, %v4253
      %v4416 = vpack.c.b16 %v4272, %v4263
      %v4417 = vpack.c.b16 %v4273, %v4264
      %v4418 = vpack.c.b16 %v4274, %v4265
      %v4419 = vpack.c.b16 %v4275, %v4266
      %v4420 = vpack.c.b16 %v4276, %v4267
      %v4421 = vpack.c.b16 %v4277, %v4268
      %v4422 = vpack.c.b16 %v4278, %v4269
      %v4423 = vpack.c.b16 %v4279, %v4270
      %v4424 = vpack.c.b16 %v4280, %v4271
      %v4713 = vunpack.c.l.b16 %v3685
      %v4714 = vunpack.c.l.b16 %v3686
      %v4715 = vunpack.c.l.b16 %v3687
      %v4716 = vunpack.c.l.b16 %v3688
      %v4717 = vunpack.c.l.b16 %v3689
      %v4718 = vunpack.c.l.b16 %v3690
      %v4719 = vunpack.c.l.b16 %v3691
      %v4720 = vunpack.c.l.b16 %v3692
      %v4721 = vunpack.c.l.b16 %v3693
      %v4722 = vunpack.c.l.b16 %v3694
      %v4723 = vunpack.c.l.b16 %v3695
      %v4724 = vunpack.c.l.b16 %v3696
      %v4725 = vunpack.c.l.b16 %v3697
      %v4726 = vunpack.c.l.b16 %v3698
      %v4727 = vunpack.c.l.b16 %v3699
      %v4728 = vunpack.c.l.b16 %v3700
      %v4729 = vunpack.c.l.b16 %v3701
      %v4730 = vunpack.c.l.b16 %v3702
      %v4731 = vunpack.c.l.b16 %v3703
      %v4732 = vunpack.c.l.b16 %v3704
      %v4733 = vunpack.c.l.b16 %v3705
      %v4734 = vunpack.c.l.b16 %v3706
      %v4735 = vunpack.c.l.b16 %v3707
      %v4736 = vunpack.c.l.b16 %v3708
      %v4737 = vunpack.c.l.b16 %v3709
      %v4738 = vunpack.c.l.b16 %v3710
      %v4739 = vunpack.c.l.b16 %v3711
      %v4740 = vunpack.c.l.b16 %v3712
      %v4741 = vunpack.c.l.b16 %v3713
      %v4742 = vunpack.c.l.b16 %v3714
      %v4743 = vunpack.c.l.b16 %v3715
      %v4744 = vunpack.c.l.b16 %v3716
      %v4745 = vunpack.c.l.b16 %v3717
      %v4746 = vunpack.c.l.b16 %v3718
      %v4747 = vunpack.c.l.b16 %v3719
      %v4748 = vunpack.c.l.b16 %v3720
      %v4749 = vunpack.c.l.b16 %v3721
      %v4750 = vunpack.c.l.b16 %v3722
      %v4751 = vunpack.c.l.b16 %v3723
      %v4752 = vunpack.c.l.b16 %v3724
      %v4753 = vunpack.c.l.b16 %v3725
      %v4754 = vunpack.c.l.b16 %v3726
      %v4755 = vunpack.c.l.b16 %v3727
      %v4756 = vunpack.c.l.b16 %v3728
      %v4757 = vunpack.c.l.b16 %v3729
      %v4758 = vunpack.c.l.b16 %v3730
      %v4759 = vunpack.c.l.b16 %v3731
      %v4760 = vunpack.c.l.b16 %v3732
      %v4761 = vunpack.c.l.b16 %v3733
      %v4762 = vunpack.c.l.b16 %v3734
      %v4763 = vunpack.c.l.b16 %v3735
      %v4764 = vunpack.c.l.b16 %v3736
      %v4765 = vunpack.c.l.b16 %v3737
      %v4766 = vunpack.c.l.b16 %v3738
      %v4767 = vunpack.c.l.b16 %v3739
      %v4768 = vunpack.c.l.b16 %v3740
      %v4769 = vunpack.c.l.b16 %v3741
      %v4770 = vunpack.c.l.b16 %v3742
      %v4771 = vunpack.c.l.b16 %v3743
      %v4772 = vunpack.c.l.b16 %v3744
      %v4773 = vunpack.c.l.b16 %v3745
      %v4774 = vunpack.c.l.b16 %v3746
      %v4775 = vunpack.c.l.b16 %v3747
      %v4776 = vunpack.c.l.b16 %v3748
      %v4777 = vunpack.c.l.b16 %v3749
      %v4778 = vunpack.c.l.b16 %v3750
      %v4779 = vunpack.c.l.b16 %v3751
      %v4780 = vunpack.c.l.b16 %v3752
      %v4781 = vunpack.c.l.b16 %v3753
      %v4782 = vunpack.c.l.b16 %v3754
      %v4783 = vunpack.c.l.b16 %v3755
      %v4784 = vunpack.c.l.b16 %v3756
      %v4785 = vunpack.c.l.b16 %v3757
      %v4786 = vunpack.c.l.b16 %v3758
      %v4787 = vunpack.c.l.b16 %v3759
      %v4788 = vunpack.c.l.b16 %v3760
      %v4789 = vunpack.c.l.b16 %v3761
      %v4790 = vunpack.c.l.b16 %v3762
      %v4791 = vunpack.c.l.b16 %v3763
      %v4792 = vunpack.c.l.b16 %v3764
      %v4793 = vunpack.c.l.b16 %v3765
      %v4794 = vunpack.c.l.b16 %v3766
      %v4795 = vunpack.c.l.b16 %v3767
      %v4796 = vunpack.c.l.b16 %v3768
      %v4797 = vunpack.c.l.b16 %v3769
      %v4798 = vunpack.c.l.b16 %v3770
      %v4799 = vunpack.c.l.b16 %v3771
      %v4800 = vunpack.c.l.b16 %v3772
      %v4801 = vunpack.c.l.b16 %v3773
      %v4802 = vunpack.c.l.b16 %v3774
      %v4803 = vunpack.c.l.b16 %v3775
      %v4804 = vunpack.c.l.b16 %v3776
      %v4805 = vunpack.c.l.b16 %v3777
      %v4806 = vunpack.c.l.b16 %v3778
      %v4807 = vunpack.c.l.b16 %v3779
      %v4808 = vunpack.c.l.b16 %v3780
      %v4809 = vunpack.c.l.b16 %v3781
      %v4810 = vunpack.c.l.b16 %v3782
      %v4811 = vunpack.c.l.b16 %v3783
      %v4812 = vunpack.c.l.b16 %v3784
      %v4813 = vunpack.c.l.b16 %v3785
      %v4814 = vunpack.c.l.b16 %v3786
      %v4815 = vunpack.c.l.b16 %v3787
      %v4816 = vunpack.c.l.b16 %v3788
      %v4817 = vunpack.c.l.b16 %v3789
      %v4818 = vunpack.c.l.b16 %v3790
      %v4819 = vunpack.c.l.b16 %v3791
      %v4820 = vunpack.c.l.b16 %v3792
      %v4821 = vunpack.c.l.b16 %v3793
      %v4822 = vunpack.c.l.b16 %v3794
      %v4823 = vunpack.c.l.b16 %v3795
      %v4824 = vunpack.c.l.b16 %v3796
      %v4825 = vunpack.c.l.b16 %v3797
      %v4826 = vunpack.c.l.b16 %v3798
      %v4827 = vunpack.c.l.b16 %v3799
      %v4828 = vunpack.c.l.b16 %v3800
      %v4829 = vunpack.c.l.b16 %v3801
      %v4830 = vunpack.c.l.b16 %v3802
      %v4831 = vunpack.c.l.b16 %v3803
      %v4832 = vunpack.c.l.b16 %v3804
      %v4833 = vunpack.c.l.b16 %v3805
      %v4834 = vunpack.c.l.b16 %v3806
      %v4835 = vunpack.c.l.b16 %v3807
      %v4836 = vunpack.c.l.b16 %v3808
      %v4837 = vunpack.c.l.b16 %v3809
      %v4838 = vunpack.c.l.b16 %v3810
      %v4839 = vunpack.c.l.b16 %v3811
      %v4840 = vunpack.c.l.b16 %v3812
      %v4841 = vunpack.c.l.b16 %v3813
      %v4842 = vunpack.c.l.b16 %v3814
      %v4843 = vunpack.c.l.b16 %v3815
      %v4844 = vunpack.c.l.b16 %v3816
      %v4845 = vunpack.c.l.b16 %v3817
      %v4846 = vunpack.c.l.b16 %v3818
      %v4847 = vunpack.c.l.b16 %v3819
      %v4848 = vunpack.c.l.b16 %v3820
      %v4849 = vunpack.c.l.b16 %v3821
      %v4850 = vunpack.c.l.b16 %v3822
      %v4851 = vunpack.c.l.b16 %v3823
      %v4852 = vunpack.c.l.b16 %v3824
      %v4853 = vunpack.c.l.b16 %v3825
      %v4854 = vunpack.c.l.b16 %v3826
      %v4855 = vunpack.c.l.b16 %v3827
      %v4856 = vunpack.c.l.b16 %v3828
      %v4857 = vpack.c.b16 %v4714, %v4713
      %v4858 = vpack.c.b16 %v4716, %v4715
      %v4859 = vpack.c.b16 %v4718, %v4717
      %v4860 = vpack.c.b16 %v4720, %v4719
      %v4861 = vpack.c.b16 %v4722, %v4721
      %v4862 = vpack.c.b16 %v4724, %v4723
      %v4863 = vpack.c.b16 %v4726, %v4725
      %v4864 = vpack.c.b16 %v4728, %v4727
      %v4865 = vpack.c.b16 %v4730, %v4729
      %v4866 = vpack.c.b16 %v4732, %v4731
      %v4867 = vpack.c.b16 %v4734, %v4733
      %v4868 = vpack.c.b16 %v4736, %v4735
      %v4869 = vpack.c.b16 %v4738, %v4737
      %v4870 = vpack.c.b16 %v4740, %v4739
      %v4871 = vpack.c.b16 %v4742, %v4741
      %v4872 = vpack.c.b16 %v4744, %v4743
      %v4873 = vpack.c.b16 %v4746, %v4745
      %v4874 = vpack.c.b16 %v4748, %v4747
      %v4875 = vpack.c.b16 %v4750, %v4749
      %v4876 = vpack.c.b16 %v4752, %v4751
      %v4877 = vpack.c.b16 %v4754, %v4753
      %v4878 = vpack.c.b16 %v4756, %v4755
      %v4879 = vpack.c.b16 %v4758, %v4757
      %v4880 = vpack.c.b16 %v4760, %v4759
      %v4881 = vpack.c.b16 %v4762, %v4761
      %v4882 = vpack.c.b16 %v4764, %v4763
      %v4883 = vpack.c.b16 %v4766, %v4765
      %v4884 = vpack.c.b16 %v4768, %v4767
      %v4885 = vpack.c.b16 %v4770, %v4769
      %v4886 = vpack.c.b16 %v4772, %v4771
      %v4887 = vpack.c.b16 %v4774, %v4773
      %v4888 = vpack.c.b16 %v4776, %v4775
      %v4889 = vpack.c.b16 %v4778, %v4777
      %v4890 = vpack.c.b16 %v4780, %v4779
      %v4891 = vpack.c.b16 %v4782, %v4781
      %v4892 = vpack.c.b16 %v4784, %v4783
      %v4893 = vpack.c.b16 %v4786, %v4785
      %v4894 = vpack.c.b16 %v4788, %v4787
      %v4895 = vpack.c.b16 %v4790, %v4789
      %v4896 = vpack.c.b16 %v4792, %v4791
      %v4897 = vpack.c.b16 %v4794, %v4793
      %v4898 = vpack.c.b16 %v4796, %v4795
      %v4899 = vpack.c.b16 %v4798, %v4797
      %v4900 = vpack.c.b16 %v4800, %v4799
      %v4901 = vpack.c.b16 %v4802, %v4801
      %v4902 = vpack.c.b16 %v4804, %v4803
      %v4903 = vpack.c.b16 %v4806, %v4805
      %v4904 = vpack.c.b16 %v4808, %v4807
      %v4905 = vpack.c.b16 %v4810, %v4809
      %v4906 = vpack.c.b16 %v4812, %v4811
      %v4907 = vpack.c.b16 %v4814, %v4813
      %v4908 = vpack.c.b16 %v4816, %v4815
      %v4909 = vpack.c.b16 %v4818, %v4817
      %v4910 = vpack.c.b16 %v4820, %v4819
      %v4911 = vpack.c.b16 %v4822, %v4821
      %v4912 = vpack.c.b16 %v4824, %v4823
      %v4913 = vpack.c.b16 %v4826, %v4825
      %v4914 = vpack.c.b16 %v4828, %v4827
      %v4915 = vpack.c.b16 %v4830, %v4829
      %v4916 = vpack.c.b16 %v4832, %v4831
      %v4917 = vpack.c.b16 %v4834, %v4833
      %v4918 = vpack.c.b16 %v4836, %v4835
      %v4919 = vpack.c.b16 %v4838, %v4837
      %v4920 = vpack.c.b16 %v4840, %v4839
      %v4921 = vpack.c.b16 %v4842, %v4841
      %v4922 = vpack.c.b16 %v4844, %v4843
      %v4923 = vpack.c.b16 %v4846, %v4845
      %v4924 = vpack.c.b16 %v4848, %v4847
      %v4925 = vpack.c.b16 %v4850, %v4849
      %v4926 = vpack.c.b16 %v4852, %v4851
      %v4927 = vpack.c.b16 %v4854, %v4853
      %v4928 = vpack.c.b16 %v4856, %v4855
      %5001 = vmatpush.bf16.msra.mxu0 %v4864
      %5002 = vmatpush.bf16.msra.mxu0 %v4863
      %5003 = vmatpush.bf16.msra.mxu0 %v4862
      %5004 = vmatpush.bf16.msra.mxu0 %v4861
      %5005 = vmatpush.bf16.msra.mxu0 %v4860
      %5006 = vmatpush.bf16.msra.mxu0 %v4859
      %5007 = vmatpush.bf16.msra.mxu0 %v4858
      %5008 = vmatpush.bf16.msra.mxu0 %v4857
      %5009 = vmatmul.bf16.gmra.mxu0 %v4281
      %v5010 = vpop.f32.mrf.mxu0
      %v5011 = vadd.f32 %v3831, %v5010
      %v5012 = vpop.f32.mrf.mxu0
      %v5013 = vadd.f32 %v3831, %v5012
      %5014 = vmatmul.bf16.gmra.mxu0 %v4290
      %v5015 = vpop.f32.mrf.mxu0
      %v5016 = vadd.f32 %v3831, %v5015
      %v5017 = vpop.f32.mrf.mxu0
      %v5018 = vadd.f32 %v3831, %v5017
      %5019 = vmatmul.bf16.gmra.mxu0 %v4299
      %v5020 = vpop.f32.mrf.mxu0
      %v5021 = vadd.f32 %v3831, %v5020
      %v5022 = vpop.f32.mrf.mxu0
      %v5023 = vadd.f32 %v3831, %v5022
      %5024 = vmatmul.bf16.gmra.mxu0 %v4308
      %v5025 = vpop.f32.mrf.mxu0
      %v5026 = vadd.f32 %v3831, %v5025
      %v5027 = vpop.f32.mrf.mxu0
      %v5028 = vadd.f32 %v3831, %v5027
      %5029 = vmatmul.bf16.gmra.mxu0 %v4317
      %v5030 = vpop.f32.mrf.mxu0
      %v5031 = vadd.f32 %v3831, %v5030
      %v5032 = vpop.f32.mrf.mxu0
      %v5033 = vadd.f32 %v3831, %v5032
      %5034 = vmatmul.bf16.gmra.mxu0 %v4326
      %v5035 = vpop.f32.mrf.mxu0
      %v5036 = vadd.f32 %v3831, %v5035
      %v5037 = vpop.f32.mrf.mxu0
      %v5038 = vadd.f32 %v3831, %v5037
      %5039 = vmatmul.bf16.gmra.mxu0 %v4335
      %v5040 = vpop.f32.mrf.mxu0
      %v5041 = vadd.f32 %v3831, %v5040
      %v5042 = vpop.f32.mrf.mxu0
      %v5043 = vadd.f32 %v3831, %v5042
      %5044 = vmatmul.bf16.gmra.mxu0 %v4344
      %v5045 = vpop.f32.mrf.mxu0
      %v5046 = vadd.f32 %v3831, %v5045
      %v5047 = vpop.f32.mrf.mxu0
      %v5048 = vadd.f32 %v3831, %v5047
      %5049 = vmatmul.bf16.gmra.mxu0 %v4353
      %v5050 = vpop.f32.mrf.mxu0
      %v5051 = vadd.f32 %v3831, %v5050
      %v5052 = vpop.f32.mrf.mxu0
      %v5053 = vadd.f32 %v3831, %v5052
      %5054 = vmatmul.bf16.gmra.mxu0 %v4362
      %v5055 = vpop.f32.mrf.mxu0
      %v5056 = vadd.f32 %v3831, %v5055
      %v5057 = vpop.f32.mrf.mxu0
      %v5058 = vadd.f32 %v3831, %v5057
      %5059 = vmatmul.bf16.gmra.mxu0 %v4371
      %v5060 = vpop.f32.mrf.mxu0
      %v5061 = vadd.f32 %v3831, %v5060
      %v5062 = vpop.f32.mrf.mxu0
      %v5063 = vadd.f32 %v3831, %v5062
      %5064 = vmatmul.bf16.gmra.mxu0 %v4380
      %v5065 = vpop.f32.mrf.mxu0
      %v5066 = vadd.f32 %v3831, %v5065
      %v5067 = vpop.f32.mrf.mxu0
      %v5068 = vadd.f32 %v3831, %v5067
      %5069 = vmatmul.bf16.gmra.mxu0 %v4389
      %v5070 = vpop.f32.mrf.mxu0
      %v5071 = vadd.f32 %v3831, %v5070
      %v5072 = vpop.f32.mrf.mxu0
      %v5073 = vadd.f32 %v3831, %v5072
      %5074 = vmatmul.bf16.gmra.mxu0 %v4398
      %v5075 = vpop.f32.mrf.mxu0
      %v5076 = vadd.f32 %v3831, %v5075
      %v5077 = vpop.f32.mrf.mxu0
      %v5078 = vadd.f32 %v3831, %v5077
      %5079 = vmatmul.bf16.gmra.mxu0 %v4407
      %v5080 = vpop.f32.mrf.mxu0
      %v5081 = vadd.f32 %v3831, %v5080
      %v5082 = vpop.f32.mrf.mxu0
      %v5083 = vadd.f32 %v3831, %v5082
      %5084 = vmatmul.bf16.gmra.mxu0 %v4416
      %v5085 = vpop.f32.mrf.mxu0
      %v5086 = vadd.f32 %v3831, %v5085
      %v5087 = vpop.f32.mrf.mxu0
      %v5088 = vadd.f32 %v3831, %v5087
      %5089 = vdwg.mxu0
      %5090 = vmatpush.bf16.msra.mxu0 %v4872
      %5091 = vmatpush.bf16.msra.mxu0 %v4871
      %5092 = vmatpush.bf16.msra.mxu0 %v4870
      %5093 = vmatpush.bf16.msra.mxu0 %v4869
      %5094 = vmatpush.bf16.msra.mxu0 %v4868
      %5095 = vmatpush.bf16.msra.mxu0 %v4867
      %5096 = vmatpush.bf16.msra.mxu0 %v4866
      %5097 = vmatpush.bf16.msra.mxu0 %v4865
      %5098 = vmatmul.bf16.gmra.mxu0 %v4282
      %v5099 = vpop.f32.mrf.mxu0
      %v5100 = vadd.f32 %v5011, %v5099
      %v5101 = vpop.f32.mrf.mxu0
      %v5102 = vadd.f32 %v5013, %v5101
      %5103 = vmatmul.bf16.gmra.mxu0 %v4291
      %v5104 = vpop.f32.mrf.mxu0
      %v5105 = vadd.f32 %v5016, %v5104
      %v5106 = vpop.f32.mrf.mxu0
      %v5107 = vadd.f32 %v5018, %v5106
      %5108 = vmatmul.bf16.gmra.mxu0 %v4300
      %v5109 = vpop.f32.mrf.mxu0
      %v5110 = vadd.f32 %v5021, %v5109
      %v5111 = vpop.f32.mrf.mxu0
      %v5112 = vadd.f32 %v5023, %v5111
      %5113 = vmatmul.bf16.gmra.mxu0 %v4309
      %v5114 = vpop.f32.mrf.mxu0
      %v5115 = vadd.f32 %v5026, %v5114
      %v5116 = vpop.f32.mrf.mxu0
      %v5117 = vadd.f32 %v5028, %v5116
      %5118 = vmatmul.bf16.gmra.mxu0 %v4318
      %v5119 = vpop.f32.mrf.mxu0
      %v5120 = vadd.f32 %v5031, %v5119
      %v5121 = vpop.f32.mrf.mxu0
      %v5122 = vadd.f32 %v5033, %v5121
      %5123 = vmatmul.bf16.gmra.mxu0 %v4327
      %v5124 = vpop.f32.mrf.mxu0
      %v5125 = vadd.f32 %v5036, %v5124
      %v5126 = vpop.f32.mrf.mxu0
      %v5127 = vadd.f32 %v5038, %v5126
      %5128 = vmatmul.bf16.gmra.mxu0 %v4336
      %v5129 = vpop.f32.mrf.mxu0
      %v5130 = vadd.f32 %v5041, %v5129
      %v5131 = vpop.f32.mrf.mxu0
      %v5132 = vadd.f32 %v5043, %v5131
      %5133 = vmatmul.bf16.gmra.mxu0 %v4345
      %v5134 = vpop.f32.mrf.mxu0
      %v5135 = vadd.f32 %v5046, %v5134
      %v5136 = vpop.f32.mrf.mxu0
      %v5137 = vadd.f32 %v5048, %v5136
      %5138 = vmatmul.bf16.gmra.mxu0 %v4354
      %v5139 = vpop.f32.mrf.mxu0
      %v5140 = vadd.f32 %v5051, %v5139
      %v5141 = vpop.f32.mrf.mxu0
      %v5142 = vadd.f32 %v5053, %v5141
      %5143 = vmatmul.bf16.gmra.mxu0 %v4363
      %v5144 = vpop.f32.mrf.mxu0
      %v5145 = vadd.f32 %v5056, %v5144
      %v5146 = vpop.f32.mrf.mxu0
      %v5147 = vadd.f32 %v5058, %v5146
      %5148 = vmatmul.bf16.gmra.mxu0 %v4372
      %v5149 = vpop.f32.mrf.mxu0
      %v5150 = vadd.f32 %v5061, %v5149
      %v5151 = vpop.f32.mrf.mxu0
      %v5152 = vadd.f32 %v5063, %v5151
      %5153 = vmatmul.bf16.gmra.mxu0 %v4381
      %v5154 = vpop.f32.mrf.mxu0
      %v5155 = vadd.f32 %v5066, %v5154
      %v5156 = vpop.f32.mrf.mxu0
      %v5157 = vadd.f32 %v5068, %v5156
      %5158 = vmatmul.bf16.gmra.mxu0 %v4390
      %v5159 = vpop.f32.mrf.mxu0
      %v5160 = vadd.f32 %v5071, %v5159
      %v5161 = vpop.f32.mrf.mxu0
      %v5162 = vadd.f32 %v5073, %v5161
      %5163 = vmatmul.bf16.gmra.mxu0 %v4399
      %v5164 = vpop.f32.mrf.mxu0
      %v5165 = vadd.f32 %v5076, %v5164
      %v5166 = vpop.f32.mrf.mxu0
      %v5167 = vadd.f32 %v5078, %v5166
      %5168 = vmatmul.bf16.gmra.mxu0 %v4408
      %v5169 = vpop.f32.mrf.mxu0
      %v5170 = vadd.f32 %v5081, %v5169
      %v5171 = vpop.f32.mrf.mxu0
      %v5172 = vadd.f32 %v5083, %v5171
      %5173 = vmatmul.bf16.gmra.mxu0 %v4417
      %v5174 = vpop.f32.mrf.mxu0
      %v5175 = vadd.f32 %v5086, %v5174
      %v5176 = vpop.f32.mrf.mxu0
      %v5177 = vadd.f32 %v5088, %v5176
      %5178 = vdwg.mxu0
      %5179 = vmatpush.bf16.msra.mxu0 %v4880
      %5180 = vmatpush.bf16.msra.mxu0 %v4879
      %5181 = vmatpush.bf16.msra.mxu0 %v4878
      %5182 = vmatpush.bf16.msra.mxu0 %v4877
      %5183 = vmatpush.bf16.msra.mxu0 %v4876
      %5184 = vmatpush.bf16.msra.mxu0 %v4875
      %5185 = vmatpush.bf16.msra.mxu0 %v4874
      %5186 = vmatpush.bf16.msra.mxu0 %v4873
      %5187 = vmatmul.bf16.gmra.mxu0 %v4283
      %v5188 = vpop.f32.mrf.mxu0
      %v5189 = vadd.f32 %v5100, %v5188
      %v5190 = vpop.f32.mrf.mxu0
      %v5191 = vadd.f32 %v5102, %v5190
      %5192 = vmatmul.bf16.gmra.mxu0 %v4292
      %v5193 = vpop.f32.mrf.mxu0
      %v5194 = vadd.f32 %v5105, %v5193
      %v5195 = vpop.f32.mrf.mxu0
      %v5196 = vadd.f32 %v5107, %v5195
      %5197 = vmatmul.bf16.gmra.mxu0 %v4301
      %v5198 = vpop.f32.mrf.mxu0
      %v5199 = vadd.f32 %v5110, %v5198
      %v5200 = vpop.f32.mrf.mxu0
      %v5201 = vadd.f32 %v5112, %v5200
      %5202 = vmatmul.bf16.gmra.mxu0 %v4310
      %v5203 = vpop.f32.mrf.mxu0
      %v5204 = vadd.f32 %v5115, %v5203
      %v5205 = vpop.f32.mrf.mxu0
      %v5206 = vadd.f32 %v5117, %v5205
      %5207 = vmatmul.bf16.gmra.mxu0 %v4319
      %v5208 = vpop.f32.mrf.mxu0
      %v5209 = vadd.f32 %v5120, %v5208
      %v5210 = vpop.f32.mrf.mxu0
      %v5211 = vadd.f32 %v5122, %v5210
      %5212 = vmatmul.bf16.gmra.mxu0 %v4328
      %v5213 = vpop.f32.mrf.mxu0
      %v5214 = vadd.f32 %v5125, %v5213
      %v5215 = vpop.f32.mrf.mxu0
      %v5216 = vadd.f32 %v5127, %v5215
      %5217 = vmatmul.bf16.gmra.mxu0 %v4337
      %v5218 = vpop.f32.mrf.mxu0
      %v5219 = vadd.f32 %v5130, %v5218
      %v5220 = vpop.f32.mrf.mxu0
      %v5221 = vadd.f32 %v5132, %v5220
      %5222 = vmatmul.bf16.gmra.mxu0 %v4346
      %v5223 = vpop.f32.mrf.mxu0
      %v5224 = vadd.f32 %v5135, %v5223
      %v5225 = vpop.f32.mrf.mxu0
      %v5226 = vadd.f32 %v5137, %v5225
      %5227 = vmatmul.bf16.gmra.mxu0 %v4355
      %v5228 = vpop.f32.mrf.mxu0
      %v5229 = vadd.f32 %v5140, %v5228
      %v5230 = vpop.f32.mrf.mxu0
      %v5231 = vadd.f32 %v5142, %v5230
      %5232 = vmatmul.bf16.gmra.mxu0 %v4364
      %v5233 = vpop.f32.mrf.mxu0
      %v5234 = vadd.f32 %v5145, %v5233
      %v5235 = vpop.f32.mrf.mxu0
      %v5236 = vadd.f32 %v5147, %v5235
      %5237 = vmatmul.bf16.gmra.mxu0 %v4373
      %v5238 = vpop.f32.mrf.mxu0
      %v5239 = vadd.f32 %v5150, %v5238
      %v5240 = vpop.f32.mrf.mxu0
      %v5241 = vadd.f32 %v5152, %v5240
      %5242 = vmatmul.bf16.gmra.mxu0 %v4382
      %v5243 = vpop.f32.mrf.mxu0
      %v5244 = vadd.f32 %v5155, %v5243
      %v5245 = vpop.f32.mrf.mxu0
      %v5246 = vadd.f32 %v5157, %v5245
      %5247 = vmatmul.bf16.gmra.mxu0 %v4391
      %v5248 = vpop.f32.mrf.mxu0
      %v5249 = vadd.f32 %v5160, %v5248
      %v5250 = vpop.f32.mrf.mxu0
      %v5251 = vadd.f32 %v5162, %v5250
      %5252 = vmatmul.bf16.gmra.mxu0 %v4400
      %v5253 = vpop.f32.mrf.mxu0
      %v5254 = vadd.f32 %v5165, %v5253
      %v5255 = vpop.f32.mrf.mxu0
      %v5256 = vadd.f32 %v5167, %v5255
      %5257 = vmatmul.bf16.gmra.mxu0 %v4409
      %v5258 = vpop.f32.mrf.mxu0
      %v5259 = vadd.f32 %v5170, %v5258
      %v5260 = vpop.f32.mrf.mxu0
      %v5261 = vadd.f32 %v5172, %v5260
      %5262 = vmatmul.bf16.gmra.mxu0 %v4418
      %v5263 = vpop.f32.mrf.mxu0
      %v5264 = vadd.f32 %v5175, %v5263
      %v5265 = vpop.f32.mrf.mxu0
      %v5266 = vadd.f32 %v5177, %v5265
      %5267 = vdwg.mxu0
      %5268 = vmatpush.bf16.msra.mxu0 %v4888
      %5269 = vmatpush.bf16.msra.mxu0 %v4887
      %5270 = vmatpush.bf16.msra.mxu0 %v4886
      %5271 = vmatpush.bf16.msra.mxu0 %v4885
      %5272 = vmatpush.bf16.msra.mxu0 %v4884
      %5273 = vmatpush.bf16.msra.mxu0 %v4883
      %5274 = vmatpush.bf16.msra.mxu0 %v4882
      %5275 = vmatpush.bf16.msra.mxu0 %v4881
      %5276 = vmatmul.bf16.gmra.mxu0 %v4284
      %v5277 = vpop.f32.mrf.mxu0
      %v5278 = vadd.f32 %v5189, %v5277
      %v5279 = vpop.f32.mrf.mxu0
      %v5280 = vadd.f32 %v5191, %v5279
      %5281 = vmatmul.bf16.gmra.mxu0 %v4293
      %v5282 = vpop.f32.mrf.mxu0
      %v5283 = vadd.f32 %v5194, %v5282
      %v5284 = vpop.f32.mrf.mxu0
      %v5285 = vadd.f32 %v5196, %v5284
      %5286 = vmatmul.bf16.gmra.mxu0 %v4302
      %v5287 = vpop.f32.mrf.mxu0
      %v5288 = vadd.f32 %v5199, %v5287
      %v5289 = vpop.f32.mrf.mxu0
      %v5290 = vadd.f32 %v5201, %v5289
      %5291 = vmatmul.bf16.gmra.mxu0 %v4311
      %v5292 = vpop.f32.mrf.mxu0
      %v5293 = vadd.f32 %v5204, %v5292
      %v5294 = vpop.f32.mrf.mxu0
      %v5295 = vadd.f32 %v5206, %v5294
      %5296 = vmatmul.bf16.gmra.mxu0 %v4320
      %v5297 = vpop.f32.mrf.mxu0
      %v5298 = vadd.f32 %v5209, %v5297
      %v5299 = vpop.f32.mrf.mxu0
      %v5300 = vadd.f32 %v5211, %v5299
      %5301 = vmatmul.bf16.gmra.mxu0 %v4329
      %v5302 = vpop.f32.mrf.mxu0
      %v5303 = vadd.f32 %v5214, %v5302
      %v5304 = vpop.f32.mrf.mxu0
      %v5305 = vadd.f32 %v5216, %v5304
      %5306 = vmatmul.bf16.gmra.mxu0 %v4338
      %v5307 = vpop.f32.mrf.mxu0
      %v5308 = vadd.f32 %v5219, %v5307
      %v5309 = vpop.f32.mrf.mxu0
      %v5310 = vadd.f32 %v5221, %v5309
      %5311 = vmatmul.bf16.gmra.mxu0 %v4347
      %v5312 = vpop.f32.mrf.mxu0
      %v5313 = vadd.f32 %v5224, %v5312
      %v5314 = vpop.f32.mrf.mxu0
      %v5315 = vadd.f32 %v5226, %v5314
      %5316 = vmatmul.bf16.gmra.mxu0 %v4356
      %v5317 = vpop.f32.mrf.mxu0
      %v5318 = vadd.f32 %v5229, %v5317
      %v5319 = vpop.f32.mrf.mxu0
      %v5320 = vadd.f32 %v5231, %v5319
      %5321 = vmatmul.bf16.gmra.mxu0 %v4365
      %v5322 = vpop.f32.mrf.mxu0
      %v5323 = vadd.f32 %v5234, %v5322
      %v5324 = vpop.f32.mrf.mxu0
      %v5325 = vadd.f32 %v5236, %v5324
      %5326 = vmatmul.bf16.gmra.mxu0 %v4374
      %v5327 = vpop.f32.mrf.mxu0
      %v5328 = vadd.f32 %v5239, %v5327
      %v5329 = vpop.f32.mrf.mxu0
      %v5330 = vadd.f32 %v5241, %v5329
      %5331 = vmatmul.bf16.gmra.mxu0 %v4383
      %v5332 = vpop.f32.mrf.mxu0
      %v5333 = vadd.f32 %v5244, %v5332
      %v5334 = vpop.f32.mrf.mxu0
      %v5335 = vadd.f32 %v5246, %v5334
      %5336 = vmatmul.bf16.gmra.mxu0 %v4392
      %v5337 = vpop.f32.mrf.mxu0
      %v5338 = vadd.f32 %v5249, %v5337
      %v5339 = vpop.f32.mrf.mxu0
      %v5340 = vadd.f32 %v5251, %v5339
      %5341 = vmatmul.bf16.gmra.mxu0 %v4401
      %v5342 = vpop.f32.mrf.mxu0
      %v5343 = vadd.f32 %v5254, %v5342
      %v5344 = vpop.f32.mrf.mxu0
      %v5345 = vadd.f32 %v5256, %v5344
      %5346 = vmatmul.bf16.gmra.mxu0 %v4410
      %v5347 = vpop.f32.mrf.mxu0
      %v5348 = vadd.f32 %v5259, %v5347
      %v5349 = vpop.f32.mrf.mxu0
      %v5350 = vadd.f32 %v5261, %v5349
      %5351 = vmatmul.bf16.gmra.mxu0 %v4419
      %v5352 = vpop.f32.mrf.mxu0
      %v5353 = vadd.f32 %v5264, %v5352
      %v5354 = vpop.f32.mrf.mxu0
      %v5355 = vadd.f32 %v5266, %v5354
      %5356 = vdwg.mxu0
      %5357 = vmatpush.bf16.msra.mxu0 %v4896
      %5358 = vmatpush.bf16.msra.mxu0 %v4895
      %5359 = vmatpush.bf16.msra.mxu0 %v4894
      %5360 = vmatpush.bf16.msra.mxu0 %v4893
      %5361 = vmatpush.bf16.msra.mxu0 %v4892
      %5362 = vmatpush.bf16.msra.mxu0 %v4891
      %5363 = vmatpush.bf16.msra.mxu0 %v4890
      %5364 = vmatpush.bf16.msra.mxu0 %v4889
      %5365 = vmatmul.bf16.gmra.mxu0 %v4285
      %v5366 = vpop.f32.mrf.mxu0
      %v5367 = vadd.f32 %v5278, %v5366
      %v5368 = vpop.f32.mrf.mxu0
      %v5369 = vadd.f32 %v5280, %v5368
      %5370 = vmatmul.bf16.gmra.mxu0 %v4294
      %v5371 = vpop.f32.mrf.mxu0
      %v5372 = vadd.f32 %v5283, %v5371
      %v5373 = vpop.f32.mrf.mxu0
      %v5374 = vadd.f32 %v5285, %v5373
      %5375 = vmatmul.bf16.gmra.mxu0 %v4303
      %v5376 = vpop.f32.mrf.mxu0
      %v5377 = vadd.f32 %v5288, %v5376
      %v5378 = vpop.f32.mrf.mxu0
      %v5379 = vadd.f32 %v5290, %v5378
      %5380 = vmatmul.bf16.gmra.mxu0 %v4312
      %v5381 = vpop.f32.mrf.mxu0
      %v5382 = vadd.f32 %v5293, %v5381
      %v5383 = vpop.f32.mrf.mxu0
      %v5384 = vadd.f32 %v5295, %v5383
      %5385 = vmatmul.bf16.gmra.mxu0 %v4321
      %v5386 = vpop.f32.mrf.mxu0
      %v5387 = vadd.f32 %v5298, %v5386
      %v5388 = vpop.f32.mrf.mxu0
      %v5389 = vadd.f32 %v5300, %v5388
      %5390 = vmatmul.bf16.gmra.mxu0 %v4330
      %v5391 = vpop.f32.mrf.mxu0
      %v5392 = vadd.f32 %v5303, %v5391
      %v5393 = vpop.f32.mrf.mxu0
      %v5394 = vadd.f32 %v5305, %v5393
      %5395 = vmatmul.bf16.gmra.mxu0 %v4339
      %v5396 = vpop.f32.mrf.mxu0
      %v5397 = vadd.f32 %v5308, %v5396
      %v5398 = vpop.f32.mrf.mxu0
      %v5399 = vadd.f32 %v5310, %v5398
      %5400 = vmatmul.bf16.gmra.mxu0 %v4348
      %v5401 = vpop.f32.mrf.mxu0
      %v5402 = vadd.f32 %v5313, %v5401
      %v5403 = vpop.f32.mrf.mxu0
      %v5404 = vadd.f32 %v5315, %v5403
      %5405 = vmatmul.bf16.gmra.mxu0 %v4357
      %v5406 = vpop.f32.mrf.mxu0
      %v5407 = vadd.f32 %v5318, %v5406
      %v5408 = vpop.f32.mrf.mxu0
      %v5409 = vadd.f32 %v5320, %v5408
      %5410 = vmatmul.bf16.gmra.mxu0 %v4366
      %v5411 = vpop.f32.mrf.mxu0
      %v5412 = vadd.f32 %v5323, %v5411
      %v5413 = vpop.f32.mrf.mxu0
      %v5414 = vadd.f32 %v5325, %v5413
      %5415 = vmatmul.bf16.gmra.mxu0 %v4375
      %v5416 = vpop.f32.mrf.mxu0
      %v5417 = vadd.f32 %v5328, %v5416
      %v5418 = vpop.f32.mrf.mxu0
      %v5419 = vadd.f32 %v5330, %v5418
      %5420 = vmatmul.bf16.gmra.mxu0 %v4384
      %v5421 = vpop.f32.mrf.mxu0
      %v5422 = vadd.f32 %v5333, %v5421
      %v5423 = vpop.f32.mrf.mxu0
      %v5424 = vadd.f32 %v5335, %v5423
      %5425 = vmatmul.bf16.gmra.mxu0 %v4393
      %v5426 = vpop.f32.mrf.mxu0
      %v5427 = vadd.f32 %v5338, %v5426
      %v5428 = vpop.f32.mrf.mxu0
      %v5429 = vadd.f32 %v5340, %v5428
      %5430 = vmatmul.bf16.gmra.mxu0 %v4402
      %v5431 = vpop.f32.mrf.mxu0
      %v5432 = vadd.f32 %v5343, %v5431
      %v5433 = vpop.f32.mrf.mxu0
      %v5434 = vadd.f32 %v5345, %v5433
      %5435 = vmatmul.bf16.gmra.mxu0 %v4411
      %v5436 = vpop.f32.mrf.mxu0
      %v5437 = vadd.f32 %v5348, %v5436
      %v5438 = vpop.f32.mrf.mxu0
      %v5439 = vadd.f32 %v5350, %v5438
      %5440 = vmatmul.bf16.gmra.mxu0 %v4420
      %v5441 = vpop.f32.mrf.mxu0
      %v5442 = vadd.f32 %v5353, %v5441
      %v5443 = vpop.f32.mrf.mxu0
      %v5444 = vadd.f32 %v5355, %v5443
      %5445 = vdwg.mxu0
      %5446 = vmatpush.bf16.msra.mxu0 %v4904
      %5447 = vmatpush.bf16.msra.mxu0 %v4903
      %5448 = vmatpush.bf16.msra.mxu0 %v4902
      %5449 = vmatpush.bf16.msra.mxu0 %v4901
      %5450 = vmatpush.bf16.msra.mxu0 %v4900
      %5451 = vmatpush.bf16.msra.mxu0 %v4899
      %5452 = vmatpush.bf16.msra.mxu0 %v4898
      %5453 = vmatpush.bf16.msra.mxu0 %v4897
      %5454 = vmatmul.bf16.gmra.mxu0 %v4286
      %v5455 = vpop.f32.mrf.mxu0
      %v5456 = vadd.f32 %v5367, %v5455
      %v5457 = vpop.f32.mrf.mxu0
      %v5458 = vadd.f32 %v5369, %v5457
      %5459 = vmatmul.bf16.gmra.mxu0 %v4295
      %v5460 = vpop.f32.mrf.mxu0
      %v5461 = vadd.f32 %v5372, %v5460
      %v5462 = vpop.f32.mrf.mxu0
      %v5463 = vadd.f32 %v5374, %v5462
      %5464 = vmatmul.bf16.gmra.mxu0 %v4304
      %v5465 = vpop.f32.mrf.mxu0
      %v5466 = vadd.f32 %v5377, %v5465
      %v5467 = vpop.f32.mrf.mxu0
      %v5468 = vadd.f32 %v5379, %v5467
      %5469 = vmatmul.bf16.gmra.mxu0 %v4313
      %v5470 = vpop.f32.mrf.mxu0
      %v5471 = vadd.f32 %v5382, %v5470
      %v5472 = vpop.f32.mrf.mxu0
      %v5473 = vadd.f32 %v5384, %v5472
      %5474 = vmatmul.bf16.gmra.mxu0 %v4322
      %v5475 = vpop.f32.mrf.mxu0
      %v5476 = vadd.f32 %v5387, %v5475
      %v5477 = vpop.f32.mrf.mxu0
      %v5478 = vadd.f32 %v5389, %v5477
      %5479 = vmatmul.bf16.gmra.mxu0 %v4331
      %v5480 = vpop.f32.mrf.mxu0
      %v5481 = vadd.f32 %v5392, %v5480
      %v5482 = vpop.f32.mrf.mxu0
      %v5483 = vadd.f32 %v5394, %v5482
      %5484 = vmatmul.bf16.gmra.mxu0 %v4340
      %v5485 = vpop.f32.mrf.mxu0
      %v5486 = vadd.f32 %v5397, %v5485
      %v5487 = vpop.f32.mrf.mxu0
      %v5488 = vadd.f32 %v5399, %v5487
      %5489 = vmatmul.bf16.gmra.mxu0 %v4349
      %v5490 = vpop.f32.mrf.mxu0
      %v5491 = vadd.f32 %v5402, %v5490
      %v5492 = vpop.f32.mrf.mxu0
      %v5493 = vadd.f32 %v5404, %v5492
      %5494 = vmatmul.bf16.gmra.mxu0 %v4358
      %v5495 = vpop.f32.mrf.mxu0
      %v5496 = vadd.f32 %v5407, %v5495
      %v5497 = vpop.f32.mrf.mxu0
      %v5498 = vadd.f32 %v5409, %v5497
      %5499 = vmatmul.bf16.gmra.mxu0 %v4367
      %v5500 = vpop.f32.mrf.mxu0
      %v5501 = vadd.f32 %v5412, %v5500
      %v5502 = vpop.f32.mrf.mxu0
      %v5503 = vadd.f32 %v5414, %v5502
      %5504 = vmatmul.bf16.gmra.mxu0 %v4376
      %v5505 = vpop.f32.mrf.mxu0
      %v5506 = vadd.f32 %v5417, %v5505
      %v5507 = vpop.f32.mrf.mxu0
      %v5508 = vadd.f32 %v5419, %v5507
      %5509 = vmatmul.bf16.gmra.mxu0 %v4385
      %v5510 = vpop.f32.mrf.mxu0
      %v5511 = vadd.f32 %v5422, %v5510
      %v5512 = vpop.f32.mrf.mxu0
      %v5513 = vadd.f32 %v5424, %v5512
      %5514 = vmatmul.bf16.gmra.mxu0 %v4394
      %v5515 = vpop.f32.mrf.mxu0
      %v5516 = vadd.f32 %v5427, %v5515
      %v5517 = vpop.f32.mrf.mxu0
      %v5518 = vadd.f32 %v5429, %v5517
      %5519 = vmatmul.bf16.gmra.mxu0 %v4403
      %v5520 = vpop.f32.mrf.mxu0
      %v5521 = vadd.f32 %v5432, %v5520
      %v5522 = vpop.f32.mrf.mxu0
      %v5523 = vadd.f32 %v5434, %v5522
      %5524 = vmatmul.bf16.gmra.mxu0 %v4412
      %v5525 = vpop.f32.mrf.mxu0
      %v5526 = vadd.f32 %v5437, %v5525
      %v5527 = vpop.f32.mrf.mxu0
      %v5528 = vadd.f32 %v5439, %v5527
      %5529 = vmatmul.bf16.gmra.mxu0 %v4421
      %v5530 = vpop.f32.mrf.mxu0
      %v5531 = vadd.f32 %v5442, %v5530
      %v5532 = vpop.f32.mrf.mxu0
      %v5533 = vadd.f32 %v5444, %v5532
      %5534 = vdwg.mxu0
      %5535 = vmatpush.bf16.msra.mxu0 %v4912
      %5536 = vmatpush.bf16.msra.mxu0 %v4911
      %5537 = vmatpush.bf16.msra.mxu0 %v4910
      %5538 = vmatpush.bf16.msra.mxu0 %v4909
      %5539 = vmatpush.bf16.msra.mxu0 %v4908
      %5540 = vmatpush.bf16.msra.mxu0 %v4907
      %5541 = vmatpush.bf16.msra.mxu0 %v4906
      %5542 = vmatpush.bf16.msra.mxu0 %v4905
      %5543 = vmatmul.bf16.gmra.mxu0 %v4287
      %v5544 = vpop.f32.mrf.mxu0
      %v5545 = vadd.f32 %v5456, %v5544
      %v5546 = vpop.f32.mrf.mxu0
      %v5547 = vadd.f32 %v5458, %v5546
      %5548 = vmatmul.bf16.gmra.mxu0 %v4296
      %v5549 = vpop.f32.mrf.mxu0
      %v5550 = vadd.f32 %v5461, %v5549
      %v5551 = vpop.f32.mrf.mxu0
      %v5552 = vadd.f32 %v5463, %v5551
      %5553 = vmatmul.bf16.gmra.mxu0 %v4305
      %v5554 = vpop.f32.mrf.mxu0
      %v5555 = vadd.f32 %v5466, %v5554
      %v5556 = vpop.f32.mrf.mxu0
      %v5557 = vadd.f32 %v5468, %v5556
      %5558 = vmatmul.bf16.gmra.mxu0 %v4314
      %v5559 = vpop.f32.mrf.mxu0
      %v5560 = vadd.f32 %v5471, %v5559
      %v5561 = vpop.f32.mrf.mxu0
      %v5562 = vadd.f32 %v5473, %v5561
      %5563 = vmatmul.bf16.gmra.mxu0 %v4323
      %v5564 = vpop.f32.mrf.mxu0
      %v5565 = vadd.f32 %v5476, %v5564
      %v5566 = vpop.f32.mrf.mxu0
      %v5567 = vadd.f32 %v5478, %v5566
      %5568 = vmatmul.bf16.gmra.mxu0 %v4332
      %v5569 = vpop.f32.mrf.mxu0
      %v5570 = vadd.f32 %v5481, %v5569
      %v5571 = vpop.f32.mrf.mxu0
      %v5572 = vadd.f32 %v5483, %v5571
      %5573 = vmatmul.bf16.gmra.mxu0 %v4341
      %v5574 = vpop.f32.mrf.mxu0
      %v5575 = vadd.f32 %v5486, %v5574
      %v5576 = vpop.f32.mrf.mxu0
      %v5577 = vadd.f32 %v5488, %v5576
      %5578 = vmatmul.bf16.gmra.mxu0 %v4350
      %v5579 = vpop.f32.mrf.mxu0
      %v5580 = vadd.f32 %v5491, %v5579
      %v5581 = vpop.f32.mrf.mxu0
      %v5582 = vadd.f32 %v5493, %v5581
      %5583 = vmatmul.bf16.gmra.mxu0 %v4359
      %v5584 = vpop.f32.mrf.mxu0
      %v5585 = vadd.f32 %v5496, %v5584
      %v5586 = vpop.f32.mrf.mxu0
      %v5587 = vadd.f32 %v5498, %v5586
      %5588 = vmatmul.bf16.gmra.mxu0 %v4368
      %v5589 = vpop.f32.mrf.mxu0
      %v5590 = vadd.f32 %v5501, %v5589
      %v5591 = vpop.f32.mrf.mxu0
      %v5592 = vadd.f32 %v5503, %v5591
      %5593 = vmatmul.bf16.gmra.mxu0 %v4377
      %v5594 = vpop.f32.mrf.mxu0
      %v5595 = vadd.f32 %v5506, %v5594
      %v5596 = vpop.f32.mrf.mxu0
      %v5597 = vadd.f32 %v5508, %v5596
      %5598 = vmatmul.bf16.gmra.mxu0 %v4386
      %v5599 = vpop.f32.mrf.mxu0
      %v5600 = vadd.f32 %v5511, %v5599
      %v5601 = vpop.f32.mrf.mxu0
      %v5602 = vadd.f32 %v5513, %v5601
      %5603 = vmatmul.bf16.gmra.mxu0 %v4395
      %v5604 = vpop.f32.mrf.mxu0
      %v5605 = vadd.f32 %v5516, %v5604
      %v5606 = vpop.f32.mrf.mxu0
      %v5607 = vadd.f32 %v5518, %v5606
      %5608 = vmatmul.bf16.gmra.mxu0 %v4404
      %v5609 = vpop.f32.mrf.mxu0
      %v5610 = vadd.f32 %v5521, %v5609
      %v5611 = vpop.f32.mrf.mxu0
      %v5612 = vadd.f32 %v5523, %v5611
      %5613 = vmatmul.bf16.gmra.mxu0 %v4413
      %v5614 = vpop.f32.mrf.mxu0
      %v5615 = vadd.f32 %v5526, %v5614
      %v5616 = vpop.f32.mrf.mxu0
      %v5617 = vadd.f32 %v5528, %v5616
      %5618 = vmatmul.bf16.gmra.mxu0 %v4422
      %v5619 = vpop.f32.mrf.mxu0
      %v5620 = vadd.f32 %v5531, %v5619
      %v5621 = vpop.f32.mrf.mxu0
      %v5622 = vadd.f32 %v5533, %v5621
      %5623 = vdwg.mxu0
      %5624 = vmatpush.bf16.msra.mxu0 %v4920
      %5625 = vmatpush.bf16.msra.mxu0 %v4919
      %5626 = vmatpush.bf16.msra.mxu0 %v4918
      %5627 = vmatpush.bf16.msra.mxu0 %v4917
      %5628 = vmatpush.bf16.msra.mxu0 %v4916
      %5629 = vmatpush.bf16.msra.mxu0 %v4915
      %5630 = vmatpush.bf16.msra.mxu0 %v4914
      %5631 = vmatpush.bf16.msra.mxu0 %v4913
      %5632 = vmatmul.bf16.gmra.mxu0 %v4288
      %v5633 = vpop.f32.mrf.mxu0
      %v5634 = vadd.f32 %v5545, %v5633
      %v5635 = vpop.f32.mrf.mxu0
      %v5636 = vadd.f32 %v5547, %v5635
      %5637 = vmatmul.bf16.gmra.mxu0 %v4297
      %v5638 = vpop.f32.mrf.mxu0
      %v5639 = vadd.f32 %v5550, %v5638
      %v5640 = vpop.f32.mrf.mxu0
      %v5641 = vadd.f32 %v5552, %v5640
      %5642 = vmatmul.bf16.gmra.mxu0 %v4306
      %v5643 = vpop.f32.mrf.mxu0
      %v5644 = vadd.f32 %v5555, %v5643
      %v5645 = vpop.f32.mrf.mxu0
      %v5646 = vadd.f32 %v5557, %v5645
      %5647 = vmatmul.bf16.gmra.mxu0 %v4315
      %v5648 = vpop.f32.mrf.mxu0
      %v5649 = vadd.f32 %v5560, %v5648
      %v5650 = vpop.f32.mrf.mxu0
      %v5651 = vadd.f32 %v5562, %v5650
      %5652 = vmatmul.bf16.gmra.mxu0 %v4324
      %v5653 = vpop.f32.mrf.mxu0
      %v5654 = vadd.f32 %v5565, %v5653
      %v5655 = vpop.f32.mrf.mxu0
      %v5656 = vadd.f32 %v5567, %v5655
      %5657 = vmatmul.bf16.gmra.mxu0 %v4333
      %v5658 = vpop.f32.mrf.mxu0
      %v5659 = vadd.f32 %v5570, %v5658
      %v5660 = vpop.f32.mrf.mxu0
      %v5661 = vadd.f32 %v5572, %v5660
      %5662 = vmatmul.bf16.gmra.mxu0 %v4342
      %v5663 = vpop.f32.mrf.mxu0
      %v5664 = vadd.f32 %v5575, %v5663
      %v5665 = vpop.f32.mrf.mxu0
      %v5666 = vadd.f32 %v5577, %v5665
      %5667 = vmatmul.bf16.gmra.mxu0 %v4351
      %v5668 = vpop.f32.mrf.mxu0
      %v5669 = vadd.f32 %v5580, %v5668
      %v5670 = vpop.f32.mrf.mxu0
      %v5671 = vadd.f32 %v5582, %v5670
      %5672 = vmatmul.bf16.gmra.mxu0 %v4360
      %v5673 = vpop.f32.mrf.mxu0
      %v5674 = vadd.f32 %v5585, %v5673
      %v5675 = vpop.f32.mrf.mxu0
      %v5676 = vadd.f32 %v5587, %v5675
      %5677 = vmatmul.bf16.gmra.mxu0 %v4369
      %v5678 = vpop.f32.mrf.mxu0
      %v5679 = vadd.f32 %v5590, %v5678
      %v5680 = vpop.f32.mrf.mxu0
      %v5681 = vadd.f32 %v5592, %v5680
      %5682 = vmatmul.bf16.gmra.mxu0 %v4378
      %v5683 = vpop.f32.mrf.mxu0
      %v5684 = vadd.f32 %v5595, %v5683
      %v5685 = vpop.f32.mrf.mxu0
      %v5686 = vadd.f32 %v5597, %v5685
      %5687 = vmatmul.bf16.gmra.mxu0 %v4387
      %v5688 = vpop.f32.mrf.mxu0
      %v5689 = vadd.f32 %v5600, %v5688
      %v5690 = vpop.f32.mrf.mxu0
      %v5691 = vadd.f32 %v5602, %v5690
      %5692 = vmatmul.bf16.gmra.mxu0 %v4396
      %v5693 = vpop.f32.mrf.mxu0
      %v5694 = vadd.f32 %v5605, %v5693
      %v5695 = vpop.f32.mrf.mxu0
      %v5696 = vadd.f32 %v5607, %v5695
      %5697 = vmatmul.bf16.gmra.mxu0 %v4405
      %v5698 = vpop.f32.mrf.mxu0
      %v5699 = vadd.f32 %v5610, %v5698
      %v5700 = vpop.f32.mrf.mxu0
      %v5701 = vadd.f32 %v5612, %v5700
      %5702 = vmatmul.bf16.gmra.mxu0 %v4414
      %v5703 = vpop.f32.mrf.mxu0
      %v5704 = vadd.f32 %v5615, %v5703
      %v5705 = vpop.f32.mrf.mxu0
      %v5706 = vadd.f32 %v5617, %v5705
      %5707 = vmatmul.bf16.gmra.mxu0 %v4423
      %v5708 = vpop.f32.mrf.mxu0
      %v5709 = vadd.f32 %v5620, %v5708
      %v5710 = vpop.f32.mrf.mxu0
      %v5711 = vadd.f32 %v5622, %v5710
      %5712 = vdwg.mxu0
      %5713 = vmatpush.bf16.msra.mxu0 %v4928
      %5714 = vmatpush.bf16.msra.mxu0 %v4927
      %5715 = vmatpush.bf16.msra.mxu0 %v4926
      %5716 = vmatpush.bf16.msra.mxu0 %v4925
      %5717 = vmatpush.bf16.msra.mxu0 %v4924
      %5718 = vmatpush.bf16.msra.mxu0 %v4923
      %5719 = vmatpush.bf16.msra.mxu0 %v4922
      %5720 = vmatpush.bf16.msra.mxu0 %v4921
      %5721 = vmatmul.bf16.gmra.mxu0 %v4289
      %v5722 = vpop.f32.mrf.mxu0
      %v5723 = vadd.f32 %v5634, %v5722
      %v5724 = vpop.f32.mrf.mxu0
      %v5725 = vadd.f32 %v5636, %v5724
      %5726 = vmatmul.bf16.gmra.mxu0 %v4298
      %v5727 = vpop.f32.mrf.mxu0
      %v5728 = vadd.f32 %v5639, %v5727
      %v5729 = vpop.f32.mrf.mxu0
      %v5730 = vadd.f32 %v5641, %v5729
      %5731 = vmatmul.bf16.gmra.mxu0 %v4307
      %v5732 = vpop.f32.mrf.mxu0
      %v5733 = vadd.f32 %v5644, %v5732
      %v5734 = vpop.f32.mrf.mxu0
      %v5735 = vadd.f32 %v5646, %v5734
      %5736 = vmatmul.bf16.gmra.mxu0 %v4316
      %v5737 = vpop.f32.mrf.mxu0
      %v5738 = vadd.f32 %v5649, %v5737
      %v5739 = vpop.f32.mrf.mxu0
      %v5740 = vadd.f32 %v5651, %v5739
      %5741 = vmatmul.bf16.gmra.mxu0 %v4325
      %v5742 = vpop.f32.mrf.mxu0
      %v5743 = vadd.f32 %v5654, %v5742
      %v5744 = vpop.f32.mrf.mxu0
      %v5745 = vadd.f32 %v5656, %v5744
      %5746 = vmatmul.bf16.gmra.mxu0 %v4334
      %v5747 = vpop.f32.mrf.mxu0
      %v5748 = vadd.f32 %v5659, %v5747
      %v5749 = vpop.f32.mrf.mxu0
      %v5750 = vadd.f32 %v5661, %v5749
      %5751 = vmatmul.bf16.gmra.mxu0 %v4343
      %v5752 = vpop.f32.mrf.mxu0
      %v5753 = vadd.f32 %v5664, %v5752
      %v5754 = vpop.f32.mrf.mxu0
      %v5755 = vadd.f32 %v5666, %v5754
      %5756 = vmatmul.bf16.gmra.mxu0 %v4352
      %v5757 = vpop.f32.mrf.mxu0
      %v5758 = vadd.f32 %v5669, %v5757
      %v5759 = vpop.f32.mrf.mxu0
      %v5760 = vadd.f32 %v5671, %v5759
      %5761 = vmatmul.bf16.gmra.mxu0 %v4361
      %v5762 = vpop.f32.mrf.mxu0
      %v5763 = vadd.f32 %v5674, %v5762
      %v5764 = vpop.f32.mrf.mxu0
      %v5765 = vadd.f32 %v5676, %v5764
      %5766 = vmatmul.bf16.gmra.mxu0 %v4370
      %v5767 = vpop.f32.mrf.mxu0
      %v5768 = vadd.f32 %v5679, %v5767
      %v5769 = vpop.f32.mrf.mxu0
      %v5770 = vadd.f32 %v5681, %v5769
      %5771 = vmatmul.bf16.gmra.mxu0 %v4379
      %v5772 = vpop.f32.mrf.mxu0
      %v5773 = vadd.f32 %v5684, %v5772
      %v5774 = vpop.f32.mrf.mxu0
      %v5775 = vadd.f32 %v5686, %v5774
      %5776 = vmatmul.bf16.gmra.mxu0 %v4388
      %v5777 = vpop.f32.mrf.mxu0
      %v5778 = vadd.f32 %v5689, %v5777
      %v5779 = vpop.f32.mrf.mxu0
      %v5780 = vadd.f32 %v5691, %v5779
      %5781 = vmatmul.bf16.gmra.mxu0 %v4397
      %v5782 = vpop.f32.mrf.mxu0
      %v5783 = vadd.f32 %v5694, %v5782
      %v5784 = vpop.f32.mrf.mxu0
      %v5785 = vadd.f32 %v5696, %v5784
      %5786 = vmatmul.bf16.gmra.mxu0 %v4406
      %v5787 = vpop.f32.mrf.mxu0
      %v5788 = vadd.f32 %v5699, %v5787
      %v5789 = vpop.f32.mrf.mxu0
      %v5790 = vadd.f32 %v5701, %v5789
      %5791 = vmatmul.bf16.gmra.mxu0 %v4415
      %v5792 = vpop.f32.mrf.mxu0
      %v5793 = vadd.f32 %v5704, %v5792
      %v5794 = vpop.f32.mrf.mxu0
      %v5795 = vadd.f32 %v5706, %v5794
      %5796 = vmatmul.bf16.gmra.mxu0 %v4424
      %v5797 = vpop.f32.mrf.mxu0
      %v5798 = vadd.f32 %v5709, %v5797
      %v5799 = vpop.f32.mrf.mxu0
      %v5800 = vadd.f32 %v5711, %v5799
      %5801 = vdwg.mxu0
      %v5802 = vld [vmem:[%s299] sm:$0xff]
      %v5803 = vld [vmem:[%s299 + $0x8] sm:$0xff]
      %v5804 = vld [vmem:[%s299 + $0x10] sm:$0xff]
      %v5805 = vld [vmem:[%s299 + $0x18] sm:$0xff]
      %v5806 = vld [vmem:[%s299 + $0x20] sm:$0xff]
      %v5807 = vld [vmem:[%s299 + $0x28] sm:$0xff]
      %v5808 = vld [vmem:[%s299 + $0x30] sm:$0xff]
      %v5809 = vld [vmem:[%s299 + $0x38] sm:$0xff]
      %v5810 = vld [vmem:[%s299 + $0x40] sm:$0xff]
      %v5811 = vld [vmem:[%s299 + $0x48] sm:$0xff]
      %v5812 = vld [vmem:[%s299 + $0x50] sm:$0xff]
      %v5813 = vld [vmem:[%s299 + $0x58] sm:$0xff]
      %v5814 = vld [vmem:[%s299 + $0x60] sm:$0xff]
      %v5815 = vld [vmem:[%s299 + $0x68] sm:$0xff]
      %v5816 = vld [vmem:[%s299 + $0x70] sm:$0xff]
      %v5817 = vld [vmem:[%s299 + $0x78] sm:$0xff]
      %v5818 = vld [vmem:[%s299 + $0x80] sm:$0xff]
      %v5819 = vld [vmem:[%s299 + $0x88] sm:$0xff]
      %v5820 = vld [vmem:[%s299 + $0x90] sm:$0xff]
      %v5821 = vld [vmem:[%s299 + $0x98] sm:$0xff]
      %v5822 = vld [vmem:[%s299 + $0xa0] sm:$0xff]
      %v5823 = vld [vmem:[%s299 + $0xa8] sm:$0xff]
      %v5824 = vld [vmem:[%s299 + $0xb0] sm:$0xff]
      %v5825 = vld [vmem:[%s299 + $0xb8] sm:$0xff]
      %v5826 = vld [vmem:[%s299 + $0xc0] sm:$0xff]
      %v5827 = vld [vmem:[%s299 + $0xc8] sm:$0xff]
      %v5828 = vld [vmem:[%s299 + $0xd0] sm:$0xff]
      %v5829 = vld [vmem:[%s299 + $0xd8] sm:$0xff]
      %v5830 = vld [vmem:[%s299 + $0xe0] sm:$0xff]
      %v5831 = vld [vmem:[%s299 + $0xe8] sm:$0xff]
      %v5832 = vld [vmem:[%s299 + $0xf0] sm:$0xff]
      %v5833 = vld [vmem:[%s299 + $0xf8] sm:$0xff]
      %v5834 = vadd.f32 %v5723, %v5802
      %v5835 = vadd.f32 %v5725, %v5803
      %v5836 = vadd.f32 %v5728, %v5804
      %v5837 = vadd.f32 %v5730, %v5805
      %v5838 = vadd.f32 %v5733, %v5806
      %v5839 = vadd.f32 %v5735, %v5807
      %v5840 = vadd.f32 %v5738, %v5808
      %v5841 = vadd.f32 %v5740, %v5809
      %v5842 = vadd.f32 %v5743, %v5810
      %v5843 = vadd.f32 %v5745, %v5811
      %v5844 = vadd.f32 %v5748, %v5812
      %v5845 = vadd.f32 %v5750, %v5813
      %v5846 = vadd.f32 %v5753, %v5814
      %v5847 = vadd.f32 %v5755, %v5815
      %v5848 = vadd.f32 %v5758, %v5816
      %v5849 = vadd.f32 %v5760, %v5817
      %v5850 = vadd.f32 %v5763, %v5818
      %v5851 = vadd.f32 %v5765, %v5819
      %v5852 = vadd.f32 %v5768, %v5820
      %v5853 = vadd.f32 %v5770, %v5821
      %v5854 = vadd.f32 %v5773, %v5822
      %v5855 = vadd.f32 %v5775, %v5823
      %v5856 = vadd.f32 %v5778, %v5824
      %v5857 = vadd.f32 %v5780, %v5825
      %v5858 = vadd.f32 %v5783, %v5826
      %v5859 = vadd.f32 %v5785, %v5827
      %v5860 = vadd.f32 %v5788, %v5828
      %v5861 = vadd.f32 %v5790, %v5829
      %v5862 = vadd.f32 %v5793, %v5830
      %v5863 = vadd.f32 %v5795, %v5831
      %v5864 = vadd.f32 %v5798, %v5832
      %v5865 = vadd.f32 %v5800, %v5833
      %5866 = vst [vmem:[%s309] sm:$0xff] %v5834
      %5867 = vst [vmem:[%s309 + $0x8] sm:$0xff] %v5835
      %5868 = vst [vmem:[%s309 + $0x10] sm:$0xff] %v5836
      %5869 = vst [vmem:[%s309 + $0x18] sm:$0xff] %v5837
      %5870 = vst [vmem:[%s309 + $0x20] sm:$0xff] %v5838
      %5871 = vst [vmem:[%s309 + $0x28] sm:$0xff] %v5839
      %5872 = vst [vmem:[%s309 + $0x30] sm:$0xff] %v5840
      %5873 = vst [vmem:[%s309 + $0x38] sm:$0xff] %v5841
      %5874 = vst [vmem:[%s309 + $0x40] sm:$0xff] %v5842
      %5875 = vst [vmem:[%s309 + $0x48] sm:$0xff] %v5843
      %5876 = vst [vmem:[%s309 + $0x50] sm:$0xff] %v5844
      %5877 = vst [vmem:[%s309 + $0x58] sm:$0xff] %v5845
      %5878 = vst [vmem:[%s309 + $0x60] sm:$0xff] %v5846
      %5879 = vst [vmem:[%s309 + $0x68] sm:$0xff] %v5847
      %5880 = vst [vmem:[%s309 + $0x70] sm:$0xff] %v5848
      %5881 = vst [vmem:[%s309 + $0x78] sm:$0xff] %v5849
      %5882 = vst [vmem:[%s309 + $0x80] sm:$0xff] %v5850
      %5883 = vst [vmem:[%s309 + $0x88] sm:$0xff] %v5851
      %5884 = vst [vmem:[%s309 + $0x90] sm:$0xff] %v5852
      %5885 = vst [vmem:[%s309 + $0x98] sm:$0xff] %v5853
      %5886 = vst [vmem:[%s309 + $0xa0] sm:$0xff] %v5854
      %5887 = vst [vmem:[%s309 + $0xa8] sm:$0xff] %v5855
      %5888 = vst [vmem:[%s309 + $0xb0] sm:$0xff] %v5856
      %5889 = vst [vmem:[%s309 + $0xb8] sm:$0xff] %v5857
      %5890 = vst [vmem:[%s309 + $0xc0] sm:$0xff] %v5858
      %5891 = vst [vmem:[%s309 + $0xc8] sm:$0xff] %v5859
      %5892 = vst [vmem:[%s309 + $0xd0] sm:$0xff] %v5860
      %5893 = vst [vmem:[%s309 + $0xd8] sm:$0xff] %v5861
      %5894 = vst [vmem:[%s309 + $0xe0] sm:$0xff] %v5862
      %5895 = vst [vmem:[%s309 + $0xe8] sm:$0xff] %v5863
      %5896 = vst [vmem:[%s309 + $0xf0] sm:$0xff] %v5864
      %5897 = vst [vmem:[%s309 + $0xf8] sm:$0xff] %v5865
      %s5898 = smul.u32 32, %s22
      %p5899 = scmp.lt.s32.totalorder %s21, 1
      %s5900 = scalar_select %p5899, %s21, 1
      %p5901 = scmp.lt.s32.totalorder %s5898, 31
      %s5902 = scalar_select %p5901, %s5898, 31
      %s5903 = smul.addr %s5900, 32
      %s5904 = sadd.s32 %s5902, %s5903
      %s5905 = smul.addr %s5904, 8
      %s5906 = scalar_lea.vmem %s6, %s5905
      // Predicated region
      $region49: #{residual_forward.7} parent=43 // pred_check
        %p5907 = pneg %p187
      $region50: #{residual_forward.7} parent=43 // pred_check_branch
        %5909 = sbr.rel (%p5907) target = $region52
      $region51: #{residual_forward.7} parent=43 // pred_region
        %s5910 = smul.u32 32, %s22
      $region52: #{residual_forward.7} parent=43 // pred_fallthru
        _
    $region44: #{residual_forward.7} parent=5 // pred_fallthru
      _
    %p5911 = scmp.le.s32.totalorder 2, %s12
    // Predicated region
    $region53: #{residual_forward.7} parent=5 // pred_check
      %p5912 = pneg %p5911
    $region54: #{residual_forward.7} parent=5 // pred_check_branch
      %5914 = sbr.rel (%p5912) target = $region56
    $region55: #{residual_forward.7} parent=5 // pred_region
      %s5915 = ssub.s32 %s12, 2
      // Predicated region
      $region57: #{residual_forward.7} parent=55 // pred_check
        %p5916 = pneg %p193
      $region58: #{residual_forward.7} parent=55 // pred_check_branch
        %5918 = sbr.rel (%p5916) target = $region60
      $region59: #{residual_forward.7} parent=55 // pred_region
        %s5919 = smul.u32 32, %s24
        %p5920 = scmp.lt.s32.totalorder %s23, 1
        %s5921 = scalar_select %p5920, %s23, 1
        %p5922 = scmp.lt.s32.totalorder %s5919, 31
        %s5923 = scalar_select %p5922, %s5919, 31
        %s5924 = smul.addr %s5921, 32
        %s5925 = sadd.s32 %s5923, %s5924
        %s5926 = smul.addr %s5925, 8
        %s5927 = scalar_lea.vmem %s6, %s5926
      $region60: #{residual_forward.7} parent=55 // pred_fallthru
        _
    $region56: #{residual_forward.7} parent=5 // pred_fallthru
      _
  $region6: #{residual_forward.7} parent=0 // loop_footer
    %s16 = sadd.s32 1, %s12
  $region7: #{residual_forward.7} parent=0 // loop_footer_branch
    %11 = sbr.rel target = $region3
  $region8: #{residual_forward.7} parent=0 // loop_exit
    _

// kernel: residual_forward.5
$region0: #{residual_forward.5}
  #allocation0 [shape = 'u32[]', space=smem, size = 0x4, offset = 0x4, fixed_abs, tag = 'smem constant byte address 0x4 - core index']
  #allocation1 [shape = 'u32[72,128]{1,0:T(1,128)}', space=vmem, size = 0x9000, scoped, tag = 'internal scratch']
  #allocation2 [shape = 'bf16[18,18,128]{2,1,0:T(8,128)(2,1)}', space=vmem, size = 0x1b000, scoped, tag = 'scratch operand']
  #allocation3 [shape = 'bf16[256,1152]{1,0:T(8,128)(2,1)}', space=vmem, size = 0x90000, scoped, tag = 'scratch operand']
  %s0 = inlined_call_operand.vmem [shape: f32[2,16,16,128], index: 0, kind: input, shape index: {}]
  %s1 = inlined_call_operand.vmem [shape: f32[1,128], index: 1, kind: input, shape index: {}]
  %s2 = inlined_call_operand.vmem [shape: f32[1,128], index: 2, kind: input, shape index: {}]
  %s3 = inlined_call_operand.vmem [shape: bf16[1152,128], index: 3, kind: input, shape index: {}]
  %s4 = inlined_call_operand.vmem [shape: f32[1,128], index: 4, kind: input, shape index: {}]
  %s5 = inlined_call_operand.vmem [shape: bf16[2,256,128], index: 5, kind: output, shape index: {}]
  %s6 = sld [smem:[#allocation0]]
  $region57: #{residual_forward.5} parent=0
    _
  %s8 = ssub.s32 1, %s6
  %s9 = scalar_select 0, %s8, %s6
  loop: start=0, step=1, limit=4
  $region2: #{residual_forward.5} parent=0 // loop_pre_header
    _
  $region3: #{residual_forward.5} parent=0 // loop_header
    %s11 = sphi 0, %s15
    %p12 = scmp.ge.s32.totalorder %s11, 4
    %s18 = sphi 0, %s30
    %s19 = sphi 0, %s26
    %s20 = sphi 0, %s18
    %s21 = sphi 0, %s19
    %s22 = sphi 0, %s20
    %s23 = sphi 0, %s21
    %s33 = sphi 0, %s35
    %s36 = sphi 0, %s33
    %s37 = sphi 0, %s36
    %s53 = sphi 0, %s37
    %s57 = sphi 0, %s57
    %s59 = sphi 0, %s57
    %s60 = sphi 0, %s59
    %s74 = sphi 0, %s60
    %s78 = sphi 0, %s78
    %s80 = sphi 0, %s78
    %s81 = sphi 0, %s80
    %s95 = sphi 0, %s81
    %s99 = sphi 0, %s99
    %s101 = sphi 0, %s99
    %s102 = sphi 0, %s101
    %s116 = sphi 0, %s102
    %s120 = sphi 0, %s120
    %s122 = sphi 0, %s120
    %s123 = sphi 0, %s122
    %s137 = sphi 0, %s123
    %s145 = sphi 0, %s147
    %s148 = sphi 0, %s145
    %s149 = sphi 0, %s148
    %s165 = sphi 0, %s149
  $region4: #{residual_forward.5} parent=0 // loop_header_branch
    %14 = sbr.rel (%p12) target = $region8
  $region5: #{residual_forward.5} parent=0 // loop_body
    %s16 = ssub.s32 %s11, 1
    %s17 = ssub.s32 %s11, 2
    %s24 = sadd.s32 1, %s19
    %p25 = scmp.ge.s32.totalorder %s24, 1
    %s26 = scalar_select %p25, 0, %s24
    %s27 = sadd.s32 1, %s18
    %s28 = scalar_select %p25, %s27, %s18
    %p29 = scmp.ge.s32.totalorder %s28, 2
    %s30 = scalar_select %p29, 0, %s28
    %s31 = ssub.s32 %s18, %s30
    %p32 = scmp.eq.s32.totalorder %s31, 0
    %s34 = sadd.s32 %s33, 1
    %s35 = scalar_select %p32, %s33, %s34
    %p38 = pneg %p32
    %p39 = scmp.eq.s32.totalorder %s11, 1
    %p40 = por %p38, %p39
    %p41 = scmp.ne.s32.totalorder %s33, %s36
    %p42 = scmp.eq.s32.totalorder %s11, 0
    %p43 = por %p41, %p42
    %p44 = scmp.ne.s32.totalorder %s33, %s36
    %p45 = scmp.eq.s32.totalorder %s16, 1
    %p46 = por %p44, %p45
    %p47 = scmp.ne.s32.totalorder %s36, %s37
    %p48 = scmp.eq.s32.totalorder %s16, 0
    %p49 = por %p47, %p48
    %p50 = scmp.ne.s32.totalorder %s36, %s37
    %p51 = scmp.eq.s32.totalorder %s17, 1
    %p52 = por %p50, %p51
    %p54 = scmp.ne.s32.totalorder %s37, %s53
    %p55 = scmp.eq.s32.totalorder %s17, 0
    %p56 = por %p54, %p55
    %s58 = sadd.s32 %s57, 1
    %p61 = scmp.eq.s32.totalorder %s11, 1
    %p62 = scmp.ne.s32.totalorder %s57, %s59
    %p63 = scmp.eq.s32.totalorder %s11, 0
    %p64 = por %p62, %p63
    %p65 = scmp.ne.s32.totalorder %s57, %s59
    %p66 = scmp.eq.s32.totalorder %s16, 1
    %p67 = por %p65, %p66
    %p68 = scmp.ne.s32.totalorder %s59, %s60
    %p69 = scmp.eq.s32.totalorder %s16, 0
    %p70 = por %p68, %p69
    %p71 = scmp.ne.s32.totalorder %s59, %s60
    %p72 = scmp.eq.s32.totalorder %s17, 1
    %p73 = por %p71, %p72
    %p75 = scmp.ne.s32.totalorder %s60, %s74
    %p76 = scmp.eq.s32.totalorder %s17, 0
    %p77 = por %p75, %p76
    %s79 = sadd.s32 %s78, 1
    %p82 = scmp.eq.s32.totalorder %s11, 1
    %p83 = scmp.ne.s32.totalorder %s78, %s80
    %p84 = scmp.eq.s32.totalorder %s11, 0
    %p85 = por %p83, %p84
    %p86 = scmp.ne.s32.totalorder %s78, %s80
    %p87 = scmp.eq.s32.totalorder %s16, 1
    %p88 = por %p86, %p87
    %p89 = scmp.ne.s32.totalorder %s80, %s81
    %p90 = scmp.eq.s32.totalorder %s16, 0
    %p91 = por %p89, %p90
    %p92 = scmp.ne.s32.totalorder %s80, %s81
    %p93 = scmp.eq.s32.totalorder %s17, 1
    %p94 = por %p92, %p93
    %p96 = scmp.ne.s32.totalorder %s81, %s95
    %p97 = scmp.eq.s32.totalorder %s17, 0
    %p98 = por %p96, %p97
    %s100 = sadd.s32 %s99, 1
    %p103 = scmp.eq.s32.totalorder %s11, 1
    %p104 = scmp.ne.s32.totalorder %s99, %s101
    %p105 = scmp.eq.s32.totalorder %s11, 0
    %p106 = por %p104, %p105
    %p107 = scmp.ne.s32.totalorder %s99, %s101
    %p108 = scmp.eq.s32.totalorder %s16, 1
    %p109 = por %p107, %p108
    %p110 = scmp.ne.s32.totalorder %s101, %s102
    %p111 = scmp.eq.s32.totalorder %s16, 0
    %p112 = por %p110, %p111
    %p113 = scmp.ne.s32.totalorder %s101, %s102
    %p114 = scmp.eq.s32.totalorder %s17, 1
    %p115 = por %p113, %p114
    %p117 = scmp.ne.s32.totalorder %s102, %s116
    %p118 = scmp.eq.s32.totalorder %s17, 0
    %p119 = por %p117, %p118
    %s121 = sadd.s32 %s120, 1
    %p124 = scmp.eq.s32.totalorder %s11, 1
    %p125 = scmp.ne.s32.totalorder %s120, %s122
    %p126 = scmp.eq.s32.totalorder %s11, 0
    %p127 = por %p125, %p126
    %p128 = scmp.ne.s32.totalorder %s120, %s122
    %p129 = scmp.eq.s32.totalorder %s16, 1
    %p130 = por %p128, %p129
    %p131 = scmp.ne.s32.totalorder %s122, %s123
    %p132 = scmp.eq.s32.totalorder %s16, 0
    %p133 = por %p131, %p132
    %p134 = scmp.ne.s32.totalorder %s122, %s123
    %p135 = scmp.eq.s32.totalorder %s17, 1
    %p136 = por %p134, %p135
    %p138 = scmp.ne.s32.totalorder %s123, %s137
    %p139 = scmp.eq.s32.totalorder %s17, 0
    %p140 = por %p138, %p139
    %s141 = ssub.s32 %s18, %s30
    %s142 = ssub.s32 %s19, %s26
    %s143 = sor.u32 %s141, %s142
    %p144 = scmp.eq.s32.totalorder %s143, 0
    %s146 = sadd.s32 %s145, 1
    %s147 = scalar_select %p144, %s145, %s146
    %p150 = pneg %p144
    %p151 = scmp.eq.s32.totalorder %s11, 1
    %p152 = por %p150, %p151
    %p153 = scmp.ne.s32.totalorder %s145, %s148
    %p154 = scmp.eq.s32.totalorder %s11, 0
    %p155 = por %p153, %p154
    %p156 = scmp.ne.s32.totalorder %s145, %s148
    %p157 = scmp.eq.s32.totalorder %s16, 1
    %p158 = por %p156, %p157
    %p159 = scmp.ne.s32.totalorder %s148, %s149
    %p160 = scmp.eq.s32.totalorder %s16, 0
    %p161 = por %p159, %p160
    %p162 = scmp.ne.s32.totalorder %s148, %s149
    %p163 = scmp.eq.s32.totalorder %s17, 1
    %p164 = por %p162, %p163
    %p166 = scmp.ne.s32.totalorder %s149, %s165
    %p167 = scmp.eq.s32.totalorder %s17, 0
    %p168 = por %p166, %p167
    %p169 = scmp.le.s32.totalorder 1, %s11
    %p170 = scmp.lt.s32.totalorder %s11, 3
    %p171 = pnand %p169, %p170
    %p172 = pneg %p171
    // Predicated region
    $region9: #{residual_forward.5} parent=5 // pred_check
      _
    $region10: #{residual_forward.5} parent=5 // pred_check_branch
      %174 = sbr.rel (%p171) target = $region12
    $region11: #{residual_forward.5} parent=5 // pred_region
      %s175 = ssub.s32 %s11, 1
      // Predicated region
      $region13: #{residual_forward.5} parent=11 // pred_check
        %p176 = pneg %p70
      $region14: #{residual_forward.5} parent=11 // pred_check_branch
        %178 = sbr.rel (%p176) target = $region16
      $region15: #{residual_forward.5} parent=11 // pred_region
        _
      $region16: #{residual_forward.5} parent=11 // pred_fallthru
        _
      // Predicated region
      $region17: #{residual_forward.5} parent=11 // pred_check
        %p179 = pneg %p91
      $region18: #{residual_forward.5} parent=11 // pred_check_branch
        %181 = sbr.rel (%p179) target = $region20
      $region19: #{residual_forward.5} parent=11 // pred_region
        _
      $region20: #{residual_forward.5} parent=11 // pred_fallthru
        _
      // Predicated region
      $region21: #{residual_forward.5} parent=11 // pred_check
        %p182 = pneg %p112
      $region22: #{residual_forward.5} parent=11 // pred_check_branch
        %184 = sbr.rel (%p182) target = $region24
      $region23: #{residual_forward.5} parent=11 // pred_region
        _
      $region24: #{residual_forward.5} parent=11 // pred_fallthru
        _
      // Predicated region
      $region25: #{residual_forward.5} parent=11 // pred_check
        %p185 = pneg %p133
      $region26: #{residual_forward.5} parent=11 // pred_check_branch
        %187 = sbr.rel (%p185) target = $region28
      $region27: #{residual_forward.5} parent=11 // pred_region
        _
      $region28: #{residual_forward.5} parent=11 // pred_fallthru
        _
    $region12: #{residual_forward.5} parent=5 // pred_fallthru
      _
    %p188 = scmp.lt.s32.totalorder %s11, 2
    // Predicated region
    $region29: #{residual_forward.5} parent=5 // pred_check
      %p189 = pneg %p188
    $region30: #{residual_forward.5} parent=5 // pred_check_branch
      %191 = sbr.rel (%p189) target = $region32
    $region31: #{residual_forward.5} parent=5 // pred_region
      // Predicated region
      $region33: #{residual_forward.5} parent=31 // pred_check
        %p192 = pneg %p43
      $region34: #{residual_forward.5} parent=31 // pred_check_branch
        %194 = sbr.rel (%p192) target = $region36
      $region35: #{residual_forward.5} parent=31 // pred_region
        %p195 = scmp.lt.s32.totalorder %s18, 1
        %s196 = scalar_select %p195, %s18, 1
        %s197 = smul.addr %s196, 32
        %s198 = smul.addr %s197, 8
        %s199 = scalar_lea.vmem %s0, %s198
      $region36: #{residual_forward.5} parent=31 // pred_fallthru
        _
    $region32: #{residual_forward.5} parent=5 // pred_fallthru
      _
    %p200 = scmp.le.s32.totalorder 1, %s11
    %p201 = scmp.lt.s32.totalorder %s11, 3
    %p202 = pnand %p200, %p201
    %p203 = pneg %p202
    // Predicated region
    $region37: #{residual_forward.5} parent=5 // pred_check
      _
    $region38: #{residual_forward.5} parent=5 // pred_check_branch
      %205 = sbr.rel (%p202) target = $region40
    $region39: #{residual_forward.5} parent=5 // pred_region
      %s206 = ssub.s32 %s11, 1
      %p207 = scmp.lt.s32.totalorder %s20, 1
      %s208 = scalar_select %p207, %s20, 1
      %s209 = smul.addr %s208, 32
      %s210 = smul.addr %s209, 8
      %s211 = scalar_lea.vmem %s0, %s210
      %p212 = pneg %p49
      %p213 = pneg %p46
      %p214 = pneg %p70
      %p215 = pneg %p67
      %p216 = pneg %p91
      %p217 = pneg %p88
      %p218 = pneg %p112
      %p219 = pneg %p109
      %p220 = pneg %p133
      %p221 = pneg %p130
      %p222 = pneg %p161
      %p223 = pneg %p158
      %s224 = smul.u32 32, %s21
      %p225 = scmp.lt.s32.totalorder %s20, 1
      %s226 = scalar_select %p225, %s20, 1
      %p227 = scmp.lt.s32.totalorder %s224, 31
      %s228 = scalar_select %p227, %s224, 31
      %s229 = smul.addr %s226, 32
      %s230 = sadd.s32 %s228, %s229
      %s231 = smul.addr %s230, 4
      %s232 = scalar_lea.vmem %s5, %s231
      %p233 = scmp.lt.s32.totalorder %s20, 1
      %s234 = scalar_select %p233, %s20, 1
      %s235 = smul.addr %s234, 32
      %s236 = smul.addr %s235, 8
      %s237 = scalar_lea.vmem %s0, %s236
      %s238 = smul.u32 32, %s21
      %p239 = scmp.lt.s32.totalorder %s20, 1
      %s240 = scalar_select %p239, %s20, 1
      %p241 = scmp.lt.s32.totalorder %s238, 31
      %s242 = scalar_select %p241, %s238, 31
      %s243 = smul.addr %s240, 32
      %s244 = sadd.s32 %s242, %s243
      %s245 = smul.addr %s244, 4
      %s246 = scalar_lea.vmem %s5, %s245
      %s247 = smul.u32 32, %s21
      %p249 = scmp.eq.s32.totalorder %s21, 0
      // Predicated region
      $region41: #{residual_forward.5} parent=39 // pred_check
        %p250 = pneg %p249
      $region42: #{residual_forward.5} parent=39 // pred_check_branch
        %252 = sbr.rel (%p250) target = $region44
      $region43: #{residual_forward.5} parent=39 // pred_region
        %253 = vst [vmem:[#allocation2] sm:$0xf] 0
        %254 = vst [vmem:[#allocation2 + $0x4] sm:$0xf] 0
        %255 = vst [vmem:[#allocation2 + $0x8] sm:$0x1] 0
        %256 = vst [vmem:[#allocation2 + $0xc] sm:$0xf] 0
        %257 = vst [vmem:[#allocation2 + $0x10] sm:$0xf] 0
        %258 = vst [vmem:[#allocation2 + $0x14] sm:$0x1] 0
        %259 = vst [vmem:[#allocation2 + $0x18] sm:$0xf] 0
        %260 = vst [vmem:[#allocation2 + $0x1c] sm:$0xf] 0
        %261 = vst [vmem:[#allocation2 + $0x20] sm:$0x1] 0
        %262 = vst [vmem:[#allocation2 + $0x24] sm:$0xf] 0
        %263 = vst [vmem:[#allocation2 + $0x28] sm:$0xf] 0
        %264 = vst [vmem:[#allocation2 + $0x2c] sm:$0x1] 0
        %265 = vst [vmem:[#allocation2 + $0x30] sm:$0xf] 0
        %266 = vst [vmem:[#allocation2 + $0x34] sm:$0xf] 0
        %267 = vst [vmem:[#allocation2 + $0x38] sm:$0x1] 0
        %268 = vst [vmem:[#allocation2 + $0x3c] sm:$0xf] 0
        %269 = vst [vmem:[#allocation2 + $0x40] sm:$0xf] 0
        %270 = vst [vmem:[#allocation2 + $0x44] sm:$0x1] 0
        %271 = vst [vmem:[#allocation2 + $0x48] sm:$0xf] 0
        %272 = vst [vmem:[#allocation2 + $0x4c] sm:$0xf] 0
        %273 = vst [vmem:[#allocation2 + $0x50] sm:$0x1] 0
        %274 = vst [vmem:[#allocation2 + $0x54] sm:$0xf] 0
        %275 = vst [vmem:[#allocation2 + $0x58] sm:$0xf] 0
        %276 = vst [vmem:[#allocation2 + $0x5c] sm:$0x1] 0
        %277 = vst [vmem:[#allocation2 + $0x60] sm:$0xf] 0
        %278 = vst [vmem:[#allocation2 + $0x64] sm:$0xf] 0
        %279 = vst [vmem:[#allocation2 + $0x68] sm:$0x1] 0
        %280 = vst [vmem:[#allocation2 + $0x6c] sm:$0xf] 0
        %281 = vst [vmem:[#allocation2 + $0x70] sm:$0xf] 0
        %282 = vst [vmem:[#allocation2 + $0x74] sm:$0x1] 0
        %283 = vst [vmem:[#allocation2 + $0x78] sm:$0xf] 0
        %284 = vst [vmem:[#allocation2 + $0x7c] sm:$0xf] 0
        %285 = vst [vmem:[#allocation2 + $0x80] sm:$0x1] 0
        %286 = vst [vmem:[#allocation2 + $0x84] sm:$0xf] 0
        %287 = vst [vmem:[#allocation2 + $0x88] sm:$0xf] 0
        %288 = vst [vmem:[#allocation2 + $0x8c] sm:$0x1] 0
        %289 = vst [vmem:[#allocation2 + $0x90] sm:$0xf] 0
        %290 = vst [vmem:[#allocation2 + $0x94] sm:$0xf] 0
        %291 = vst [vmem:[#allocation2 + $0x98] sm:$0x1] 0
        %292 = vst [vmem:[#allocation2 + $0x9c] sm:$0xf] 0
        %293 = vst [vmem:[#allocation2 + $0xa0] sm:$0xf] 0
        %294 = vst [vmem:[#allocation2 + $0xa4] sm:$0x1] 0
        %295 = vst [vmem:[#allocation2 + $0xa8] sm:$0xf] 0
        %296 = vst [vmem:[#allocation2 + $0xac] sm:$0xf] 0
        %297 = vst [vmem:[#allocation2 + $0xb0] sm:$0x1] 0
        %298 = vst [vmem:[#allocation2 + $0xb4] sm:$0xf] 0
        %299 = vst [vmem:[#allocation2 + $0xb8] sm:$0xf] 0
        %300 = vst [vmem:[#allocation2 + $0xbc] sm:$0x1] 0
        %301 = vst [vmem:[#allocation2 + $0xc0] sm:$0xf] 0
        %302 = vst [vmem:[#allocation2 + $0xc4] sm:$0xf] 0
        %303 = vst [vmem:[#allocation2 + $0xc8] sm:$0x1] 0
        %304 = vst [vmem:[#allocation2 + $0xcc] sm:$0xf] 0
        %305 = vst [vmem:[#allocation2 + $0xd0] sm:$0xf] 0
        %306 = vst [vmem:[#allocation2 + $0xd4] sm:$0x1] 0
        %v307 = vld [vmem:[%s237] sm:$0xff]
        %v308 = vld [vmem:[%s237 + $0x8] sm:$0xff]
        %v309 = vld [vmem:[%s237 + $0x10] sm:$0xff]
        %v310 = vld [vmem:[%s237 + $0x18] sm:$0xff]
        %v311 = vld [vmem:[%s237 + $0x20] sm:$0xff]
        %v312 = vld [vmem:[%s237 + $0x28] sm:$0xff]
        %v313 = vld [vmem:[%s237 + $0x30] sm:$0xff]
        %v314 = vld [vmem:[%s237 + $0x38] sm:$0xff]
        %v315 = vld [vmem:[%s237 + $0x40] sm:$0xff]
        %v316 = vld [vmem:[%s237 + $0x48] sm:$0xff]
        %v317 = vld [vmem:[%s237 + $0x50] sm:$0xff]
        %v318 = vld [vmem:[%s237 + $0x58] sm:$0xff]
        %v319 = vld [vmem:[%s237 + $0x60] sm:$0xff]
        %v320 = vld [vmem:[%s237 + $0x68] sm:$0xff]
        %v321 = vld [vmem:[%s237 + $0x70] sm:$0xff]
        %v322 = vld [vmem:[%s237 + $0x78] sm:$0xff]
        %v323 = vld [vmem:[%s237 + $0x80] sm:$0xff]
        %v324 = vld [vmem:[%s237 + $0x88] sm:$0xff]
        %v325 = vld [vmem:[%s237 + $0x90] sm:$0xff]
        %v326 = vld [vmem:[%s237 + $0x98] sm:$0xff]
        %v327 = vld [vmem:[%s237 + $0xa0] sm:$0xff]
        %v328 = vld [vmem:[%s237 + $0xa8] sm:$0xff]
        %v329 = vld [vmem:[%s237 + $0xb0] sm:$0xff]
        %v330 = vld [vmem:[%s237 + $0xb8] sm:$0xff]
        %v331 = vld [vmem:[%s237 + $0xc0] sm:$0xff]
        %v332 = vld [vmem:[%s237 + $0xc8] sm:$0xff]
        %v333 = vld [vmem:[%s237 + $0xd0] sm:$0xff]
        %v334 = vld [vmem:[%s237 + $0xd8] sm:$0xff]
        %v335 = vld [vmem:[%s237 + $0xe0] sm:$0xff]
        %v336 = vld [vmem:[%s237 + $0xe8] sm:$0xff]
        %v337 = vld [vmem:[%s237 + $0xf0] sm:$0xff]
        %v338 = vld [vmem:[%s237 + $0xf8] sm:$0xff]
        %v339 = vld [vmem:[%s1] sm:$0x1]
        %v341 = vperm.slane %v339, 0
        %v343 = vmul.f32 %v307, %v341
        %v344 = vmul.f32 %v308, %v341
        %v345 = vmul.f32 %v309, %v341
        %v346 = vmul.f32 %v310, %v341
        %v347 = vmul.f32 %v311, %v341
        %v348 = vmul.f32 %v312, %v341
        %v349 = vmul.f32 %v313, %v341
        %v350 = vmul.f32 %v314, %v341
        %v351 = vmul.f32 %v315, %v341
        %v352 = vmul.f32 %v316, %v341
        %v353 = vmul.f32 %v317, %v341
        %v354 = vmul.f32 %v318, %v341
        %v355 = vmul.f32 %v319, %v341
        %v356 = vmul.f32 %v320, %v341
        %v357 = vmul.f32 %v321, %v341
        %v358 = vmul.f32 %v322, %v341
        %v359 = vmul.f32 %v323, %v341
        %v360 = vmul.f32 %v324, %v341
        %v361 = vmul.f32 %v325, %v341
        %v362 = vmul.f32 %v326, %v341
        %v363 = vmul.f32 %v327, %v341
        %v364 = vmul.f32 %v328, %v341
        %v365 = vmul.f32 %v329, %v341
        %v366 = vmul.f32 %v330, %v341
        %v367 = vmul.f32 %v331, %v341
        %v368 = vmul.f32 %v332, %v341
        %v369 = vmul.f32 %v333, %v341
        %v370 = vmul.f32 %v334, %v341
        %v371 = vmul.f32 %v335, %v341
        %v372 = vmul.f32 %v336, %v341
        %v373 = vmul.f32 %v337, %v341
        %v374 = vmul.f32 %v338, %v341
        %v375 = vld [vmem:[%s2] sm:$0x1]
        %v377 = vperm.slane %v375, 0
        %v379 = vadd.f32 %v343, %v377
        %v380 = vadd.f32 %v344, %v377
        %v381 = vadd.f32 %v345, %v377
        %v382 = vadd.f32 %v346, %v377
        %v383 = vadd.f32 %v347, %v377
        %v384 = vadd.f32 %v348, %v377
        %v385 = vadd.f32 %v349, %v377
        %v386 = vadd.f32 %v350, %v377
        %v387 = vadd.f32 %v351, %v377
        %v388 = vadd.f32 %v352, %v377
        %v389 = vadd.f32 %v353, %v377
        %v390 = vadd.f32 %v354, %v377
        %v391 = vadd.f32 %v355, %v377
        %v392 = vadd.f32 %v356, %v377
        %v393 = vadd.f32 %v357, %v377
        %v394 = vadd.f32 %v358, %v377
        %v395 = vadd.f32 %v359, %v377
        %v396 = vadd.f32 %v360, %v377
        %v397 = vadd.f32 %v361, %v377
        %v398 = vadd.f32 %v362, %v377
        %v399 = vadd.f32 %v363, %v377
        %v400 = vadd.f32 %v364, %v377
        %v401 = vadd.f32 %v365, %v377
        %v402 = vadd.f32 %v366, %v377
        %v403 = vadd.f32 %v367, %v377
        %v404 = vadd.f32 %v368, %v377
        %v405 = vadd.f32 %v369, %v377
        %v406 = vadd.f32 %v370, %v377
        %v407 = vadd.f32 %v371, %v377
        %v408 = vadd.f32 %v372, %v377
        %v409 = vadd.f32 %v373, %v377
        %v410 = vadd.f32 %v374, %v377
        %v411 = vmax.f32 %v379, 0.0
        %v412 = vmax.f32 %v380, 0.0
        %v413 = vmax.f32 %v381, 0.0
        %v414 = vmax.f32 %v382, 0.0
        %v415 = vmax.f32 %v383, 0.0
        %v416 = vmax.f32 %v384, 0.0
        %v417 = vmax.f32 %v385, 0.0
        %v418 = vmax.f32 %v386, 0.0
        %v419 = vmax.f32 %v387, 0.0
        %v420 = vmax.f32 %v388, 0.0
        %v421 = vmax.f32 %v389, 0.0
        %v422 = vmax.f32 %v390, 0.0
        %v423 = vmax.f32 %v391, 0.0
        %v424 = vmax.f32 %v392, 0.0
        %v425 = vmax.f32 %v393, 0.0
        %v426 = vmax.f32 %v394, 0.0
        %v427 = vmax.f32 %v395, 0.0
        %v428 = vmax.f32 %v396, 0.0
        %v429 = vmax.f32 %v397, 0.0
        %v430 = vmax.f32 %v398, 0.0
        %v431 = vmax.f32 %v399, 0.0
        %v432 = vmax.f32 %v400, 0.0
        %v433 = vmax.f32 %v401, 0.0
        %v434 = vmax.f32 %v402, 0.0
        %v435 = vmax.f32 %v403, 0.0
        %v436 = vmax.f32 %v404, 0.0
        %v437 = vmax.f32 %v405, 0.0
        %v438 = vmax.f32 %v406, 0.0
        %v439 = vmax.f32 %v407, 0.0
        %v440 = vmax.f32 %v408, 0.0
        %v441 = vmax.f32 %v409, 0.0
        %v442 = vmax.f32 %v410, 0.0
        %v443 = vpack.c.bf16 %v411, %v411
        %v444 = vpack.c.bf16 %v412, %v412
        %v445 = vpack.c.bf16 %v413, %v413
        %v446 = vpack.c.bf16 %v414, %v414
        %v447 = vpack.c.bf16 %v415, %v415
        %v448 = vpack.c.bf16 %v416, %v416
        %v449 = vpack.c.bf16 %v417, %v417
        %v450 = vpack.c.bf16 %v418, %v418
        %v451 = vpack.c.bf16 %v419, %v419
        %v452 = vpack.c.bf16 %v420, %v420
        %v453 = vpack.c.bf16 %v421, %v421
        %v454 = vpack.c.bf16 %v422, %v422
        %v455 = vpack.c.bf16 %v423, %v423
        %v456 = vpack.c.bf16 %v424, %v424
        %v457 = vpack.c.bf16 %v425, %v425
        %v458 = vpack.c.bf16 %v426, %v426
        %v459 = vpack.c.bf16 %v427, %v427
        %v460 = vpack.c.bf16 %v428, %v428
        %v461 = vpack.c.bf16 %v429, %v429
        %v462 = vpack.c.bf16 %v430, %v430
        %v463 = vpack.c.bf16 %v431, %v431
        %v464 = vpack.c.bf16 %v432, %v432
        %v465 = vpack.c.bf16 %v433, %v433
        %v466 = vpack.c.bf16 %v434, %v434
        %v467 = vpack.c.bf16 %v435, %v435
        %v468 = vpack.c.bf16 %v436, %v436
        %v469 = vpack.c.bf16 %v437, %v437
        %v470 = vpack.c.bf16 %v438, %v438
        %v471 = vpack.c.bf16 %v439, %v439
        %v472 = vpack.c.bf16 %v440, %v440
        %v473 = vpack.c.bf16 %v441, %v441
        %v474 = vpack.c.bf16 %v442, %v442
        %vm475 = vsmask.f32 256
        %vm476 = vsmask.f32 4368
        %vm477 = vmor %vm475, %vm476
        %v479 = vshrl.u32 %v443, 16
        %v481 = vrot.slane %v479, 7
        %v482 = vshll.u32 %v443, 16
        %v484 = vor.u32 %v481, %v482
        %v485 = vrot.slane %v481, 4
        %v487 = vshrl.u32 %v444, 16
        %v489 = vrot.slane %v487, 7
        %v490 = vshll.u32 %v444, 16
        %v492 = vor.u32 %v489, %v490
        %v493 = vsel %vm477, %v485, %v492
        %v494 = vrot.slane %v489, 4
        %v496 = vshrl.u32 %v445, 16
        %v498 = vrot.slane %v496, 7
        %v499 = vshll.u32 %v445, 16
        %v501 = vor.u32 %v498, %v499
        %v502 = vrot.slane %v498, 4
        %v504 = vshrl.u32 %v446, 16
        %v506 = vrot.slane %v504, 7
        %v507 = vshll.u32 %v446, 16
        %v509 = vor.u32 %v506, %v507
        %v510 = vsel %vm477, %v502, %v509
        %v511 = vrot.slane %v506, 4
        %v513 = vshrl.u32 %v447, 16
        %v515 = vrot.slane %v513, 7
        %v516 = vshll.u32 %v447, 16
        %v518 = vor.u32 %v515, %v516
        %v519 = vrot.slane %v515, 4
        %v521 = vshrl.u32 %v448, 16
        %v523 = vrot.slane %v521, 7
        %v524 = vshll.u32 %v448, 16
        %v526 = vor.u32 %v523, %v524
        %v527 = vsel %vm477, %v519, %v526
        %v528 = vrot.slane %v523, 4
        %v530 = vshrl.u32 %v449, 16
        %v532 = vrot.slane %v530, 7
        %v533 = vshll.u32 %v449, 16
        %v535 = vor.u32 %v532, %v533
        %v536 = vrot.slane %v532, 4
        %v538 = vshrl.u32 %v450, 16
        %v540 = vrot.slane %v538, 7
        %v541 = vshll.u32 %v450, 16
        %v543 = vor.u32 %v540, %v541
        %v544 = vsel %vm477, %v536, %v543
        %v545 = vrot.slane %v540, 4
        %v547 = vshrl.u32 %v451, 16
        %v549 = vrot.slane %v547, 7
        %v550 = vshll.u32 %v451, 16
        %v552 = vor.u32 %v549, %v550
        %v553 = vrot.slane %v549, 4
        %v555 = vshrl.u32 %v452, 16
        %v557 = vrot.slane %v555, 7
        %v558 = vshll.u32 %v452, 16
        %v560 = vor.u32 %v557, %v558
        %v561 = vsel %vm477, %v553, %v560
        %v562 = vrot.slane %v557, 4
        %v564 = vshrl.u32 %v453, 16
        %v566 = vrot.slane %v564, 7
        %v567 = vshll.u32 %v453, 16
        %v569 = vor.u32 %v566, %v567
        %v570 = vrot.slane %v566, 4
        %v572 = vshrl.u32 %v454, 16
        %v574 = vrot.slane %v572, 7
        %v575 = vshll.u32 %v454, 16
        %v577 = vor.u32 %v574, %v575
        %v578 = vsel %vm477, %v570, %v577
        %v579 = vrot.slane %v574, 4
        %v581 = vshrl.u32 %v455, 16
        %v583 = vrot.slane %v581, 7
        %v584 = vshll.u32 %v455, 16
        %v586 = vor.u32 %v583, %v584
        %v587 = vrot.slane %v583, 4
        %v589 = vshrl.u32 %v456, 16
        %v591 = vrot.slane %v589, 7
        %v592 = vshll.u32 %v456, 16
        %v594 = vor.u32 %v591, %v592
        %v595 = vsel %vm477, %v587, %v594
        %v596 = vrot.slane %v591, 4
        %v598 = vshrl.u32 %v457, 16
        %v600 = vrot.slane %v598, 7
        %v601 = vshll.u32 %v457, 16
        %v603 = vor.u32 %v600, %v601
        %v604 = vrot.slane %v600, 4
        %v606 = vshrl.u32 %v458, 16
        %v608 = vrot.slane %v606, 7
        %v609 = vshll.u32 %v458, 16
        %v611 = vor.u32 %v608, %v609
        %v612 = vsel %vm477, %v604, %v611
        %v613 = vrot.slane %v608, 4
        %v615 = vshrl.u32 %v459, 16
        %v617 = vrot.slane %v615, 7
        %v618 = vshll.u32 %v459, 16
        %v620 = vor.u32 %v617, %v618
        %v621 = vrot.slane %v617, 4
        %v623 = vshrl.u32 %v460, 16
        %v625 = vrot.slane %v623, 7
        %v626 = vshll.u32 %v460, 16
        %v628 = vor.u32 %v625, %v626
        %v629 = vsel %vm477, %v621, %v628
        %v630 = vrot.slane %v625, 4
        %v632 = vshrl.u32 %v461, 16
        %v634 = vrot.slane %v632, 7
        %v635 = vshll.u32 %v461, 16
        %v637 = vor.u32 %v634, %v635
        %v638 = vrot.slane %v634, 4
        %v640 = vshrl.u32 %v462, 16
        %v642 = vrot.slane %v640, 7
        %v643 = vshll.u32 %v462, 16
        %v645 = vor.u32 %v642, %v643
        %v646 = vsel %vm477, %v638, %v645
        %v647 = vrot.slane %v642, 4
        %v649 = vshrl.u32 %v463, 16
        %v651 = vrot.slane %v649, 7
        %v652 = vshll.u32 %v463, 16
        %v654 = vor.u32 %v651, %v652
        %v655 = vrot.slane %v651, 4
        %v657 = vshrl.u32 %v464, 16
        %v659 = vrot.slane %v657, 7
        %v660 = vshll.u32 %v464, 16
        %v662 = vor.u32 %v659, %v660
        %v663 = vsel %vm477, %v655, %v662
        %v664 = vrot.slane %v659, 4
        %v666 = vshrl.u32 %v465, 16
        %v668 = vrot.slane %v666, 7
        %v669 = vshll.u32 %v465, 16
        %v671 = vor.u32 %v668, %v669
        %v672 = vrot.slane %v668, 4
        %v674 = vshrl.u32 %v466, 16
        %v676 = vrot.slane %v674, 7
        %v677 = vshll.u32 %v466, 16
        %v679 = vor.u32 %v676, %v677
        %v680 = vsel %vm477, %v672, %v679
        %v681 = vrot.slane %v676, 4
        %v683 = vshrl.u32 %v467, 16
        %v685 = vrot.slane %v683, 7
        %v686 = vshll.u32 %v467, 16
        %v688 = vor.u32 %v685, %v686
        %v689 = vrot.slane %v685, 4
        %v691 = vshrl.u32 %v468, 16
        %v693 = vrot.slane %v691, 7
        %v694 = vshll.u32 %v468, 16
        %v696 = vor.u32 %v693, %v694
        %v697 = vsel %vm477, %v689, %v696
        %v698 = vrot.slane %v693, 4
        %v700 = vshrl.u32 %v469, 16
        %v702 = vrot.slane %v700, 7
        %v703 = vshll.u32 %v469, 16
        %v705 = vor.u32 %v702, %v703
        %v706 = vrot.slane %v702, 4
        %v708 = vshrl.u32 %v470, 16
        %v710 = vrot.slane %v708, 7
        %v711 = vshll.u32 %v470, 16
        %v713 = vor.u32 %v710, %v711
        %v714 = vsel %vm477, %v706, %v713
        %v715 = vrot.slane %v710, 4
        %v717 = vshrl.u32 %v471, 16
        %v719 = vrot.slane %v717, 7
        %v720 = vshll.u32 %v471, 16
        %v722 = vor.u32 %v719, %v720
        %v723 = vrot.slane %v719, 4
        %v725 = vshrl.u32 %v472, 16
        %v727 = vrot.slane %v725, 7
        %v728 = vshll.u32 %v472, 16
        %v730 = vor.u32 %v727, %v728
        %v731 = vsel %vm477, %v723, %v730
        %v732 = vrot.slane %v727, 4
        %v734 = vshrl.u32 %v473, 16
        %v736 = vrot.slane %v734, 7
        %v737 = vshll.u32 %v473, 16
        %v739 = vor.u32 %v736, %v737
        %v740 = vrot.slane %v736, 4
        %v742 = vshrl.u32 %v474, 16
        %v744 = vrot.slane %v742, 7
        %v745 = vshll.u32 %v474, 16
        %v747 = vor.u32 %v744, %v745
        %v748 = vsel %vm477, %v740, %v747
        %v749 = vrot.slane %v744, 4
        %s798 = scalar_lea.vmem [#allocation2], 12
        %vm799 = vcmask 1043456
        %vm800 = vsmask.f32 7938
        %vm801 = vmand %vm799, %vm800
        %v802 = vld [vmem:[%s798] sm:$0xf]
        %v803 = vsel %vm801, %v484, %v802
        %804 = vst [vmem:[%s798] sm:$0xf] %v803
        %805 = vst [vmem:[%s798 + $0x4] sm:$0xf] %v493
        %vm806 = vcmask 1040384
        %vm807 = vmand %vm806, %vm475
        %v808 = vld [vmem:[%s798 + $0x8] sm:$0x1]
        %v809 = vsel %vm807, %v494, %v808
        %810 = vst [vmem:[%s798 + $0x8] sm:$0x1] %v809
        %v811 = vld [vmem:[%s798 + $0xc] sm:$0xf]
        %v812 = vsel %vm801, %v501, %v811
        %813 = vst [vmem:[%s798 + $0xc] sm:$0xf] %v812
        %814 = vst [vmem:[%s798 + $0x10] sm:$0xf] %v510
        %v815 = vld [vmem:[%s798 + $0x14] sm:$0x1]
        %v816 = vsel %vm807, %v511, %v815
        %817 = vst [vmem:[%s798 + $0x14] sm:$0x1] %v816
        %v818 = vld [vmem:[%s798 + $0x18] sm:$0xf]
        %v819 = vsel %vm801, %v518, %v818
        %820 = vst [vmem:[%s798 + $0x18] sm:$0xf] %v819
        %821 = vst [vmem:[%s798 + $0x1c] sm:$0xf] %v527
        %v822 = vld [vmem:[%s798 + $0x20] sm:$0x1]
        %v823 = vsel %vm807, %v528, %v822
        %824 = vst [vmem:[%s798 + $0x20] sm:$0x1] %v823
        %v825 = vld [vmem:[%s798 + $0x24] sm:$0xf]
        %v826 = vsel %vm801, %v535, %v825
        %827 = vst [vmem:[%s798 + $0x24] sm:$0xf] %v826
        %828 = vst [vmem:[%s798 + $0x28] sm:$0xf] %v544
        %v829 = vld [vmem:[%s798 + $0x2c] sm:$0x1]
        %v830 = vsel %vm807, %v545, %v829
        %831 = vst [vmem:[%s798 + $0x2c] sm:$0x1] %v830
        %v832 = vld [vmem:[%s798 + $0x30] sm:$0xf]
        %v833 = vsel %vm801, %v552, %v832
        %834 = vst [vmem:[%s798 + $0x30] sm:$0xf] %v833
        %835 = vst [vmem:[%s798 + $0x34] sm:$0xf] %v561
        %v836 = vld [vmem:[%s798 + $0x38] sm:$0x1]
        %v837 = vsel %vm807, %v562, %v836
        %838 = vst [vmem:[%s798 + $0x38] sm:$0x1] %v837
        %v839 = vld [vmem:[%s798 + $0x3c] sm:$0xf]
        %v840 = vsel %vm801, %v569, %v839
        %841 = vst [vmem:[%s798 + $0x3c] sm:$0xf] %v840
        %842 = vst [vmem:[%s798 + $0x40] sm:$0xf] %v578
        %v843 = vld [vmem:[%s798 + $0x44] sm:$0x1]
        %v844 = vsel %vm807, %v579, %v843
        %845 = vst [vmem:[%s798 + $0x44] sm:$0x1] %v844
        %v846 = vld [vmem:[%s798 + $0x48] sm:$0xf]
        %v847 = vsel %vm801, %v586, %v846
        %848 = vst [vmem:[%s798 + $0x48] sm:$0xf] %v847
        %849 = vst [vmem:[%s798 + $0x4c] sm:$0xf] %v595
        %v850 = vld [vmem:[%s798 + $0x50] sm:$0x1]
        %v851 = vsel %vm807, %v596, %v850
        %852 = vst [vmem:[%s798 + $0x50] sm:$0x1] %v851
        %v853 = vld [vmem:[%s798 + $0x54] sm:$0xf]
        %v854 = vsel %vm801, %v603, %v853
        %855 = vst [vmem:[%s798 + $0x54] sm:$0xf] %v854
        %856 = vst [vmem:[%s798 + $0x58] sm:$0xf] %v612
        %v857 = vld [vmem:[%s798 + $0x5c] sm:$0x1]
        %v858 = vsel %vm807, %v613, %v857
        %859 = vst [vmem:[%s798 + $0x5c] sm:$0x1] %v858
        %v860 = vld [vmem:[%s798 + $0x60] sm:$0xf]
        %v861 = vsel %vm801, %v620, %v860
        %862 = vst [vmem:[%s798 + $0x60] sm:$0xf] %v861
        %863 = vst [vmem:[%s798 + $0x64] sm:$0xf] %v629
        %v864 = vld [vmem:[%s798 + $0x68] sm:$0x1]
        %v865 = vsel %vm807, %v630, %v864
        %866 = vst [vmem:[%s798 + $0x68] sm:$0x1] %v865
        %v867 = vld [vmem:[%s798 + $0x6c] sm:$0xf]
        %v868 = vsel %vm801, %v637, %v867
        %869 = vst [vmem:[%s798 + $0x6c] sm:$0xf] %v868
        %870 = vst [vmem:[%s798 + $0x70] sm:$0xf] %v646
        %v871 = vld [vmem:[%s798 + $0x74] sm:$0x1]
        %v872 = vsel %vm807, %v647, %v871
        %873 = vst [vmem:[%s798 + $0x74] sm:$0x1] %v872
        %v874 = vld [vmem:[%s798 + $0x78] sm:$0xf]
        %v875 = vsel %vm801, %v654, %v874
        %876 = vst [vmem:[%s798 + $0x78] sm:$0xf] %v875
        %877 = vst [vmem:[%s798 + $0x7c] sm:$0xf] %v663
        %v878 = vld [vmem:[%s798 + $0x80] sm:$0x1]
        %v879 = vsel %vm807, %v664, %v878
        %880 = vst [vmem:[%s798 + $0x80] sm:$0x1] %v879
        %v881 = vld [vmem:[%s798 + $0x84] sm:$0xf]
        %v882 = vsel %vm801, %v671, %v881
        %883 = vst [vmem:[%s798 + $0x84] sm:$0xf] %v882
        %884 = vst [vmem:[%s798 + $0x88] sm:$0xf] %v680
        %v885 = vld [vmem:[%s798 + $0x8c] sm:$0x1]
        %v886 = vsel %vm807, %v681, %v885
        %887 = vst [vmem:[%s798 + $0x8c] sm:$0x1] %v886
        %v888 = vld [vmem:[%s798 + $0x90] sm:$0xf]
        %v889 = vsel %vm801, %v688, %v888
        %890 = vst [vmem:[%s798 + $0x90] sm:$0xf] %v889
        %891 = vst [vmem:[%s798 + $0x94] sm:$0xf] %v697
        %v892 = vld [vmem:[%s798 + $0x98] sm:$0x1]
        %v893 = vsel %vm807, %v698, %v892
        %894 = vst [vmem:[%s798 + $0x98] sm:$0x1] %v893
        %v895 = vld [vmem:[%s798 + $0x9c] sm:$0xf]
        %v896 = vsel %vm801, %v705, %v895
        %897 = vst [vmem:[%s798 + $0x9c] sm:$0xf] %v896
        %898 = vst [vmem:[%s798 + $0xa0] sm:$0xf] %v714
        %v899 = vld [vmem:[%s798 + $0xa4] sm:$0x1]
        %v900 = vsel %vm807, %v715, %v899
        %901 = vst [vmem:[%s798 + $0xa4] sm:$0x1] %v900
        %v902 = vld [vmem:[%s798 + $0xa8] sm:$0xf]
        %v903 = vsel %vm801, %v722, %v902
        %904 = vst [vmem:[%s798 + $0xa8] sm:$0xf] %v903
        %905 = vst [vmem:[%s798 + $0xac] sm:$0xf] %v731
        %v906 = vld [vmem:[%s798 + $0xb0] sm:$0x1]
        %v907 = vsel %vm807, %v732, %v906
        %908 = vst [vmem:[%s798 + $0xb0] sm:$0x1] %v907
        %v909 = vld [vmem:[%s798 + $0xb4] sm:$0xf]
        %v910 = vsel %vm801, %v739, %v909
        %911 = vst [vmem:[%s798 + $0xb4] sm:$0xf] %v910
        %912 = vst [vmem:[%s798 + $0xb8] sm:$0xf] %v748
        %v913 = vld [vmem:[%s798 + $0xbc] sm:$0x1]
        %v914 = vsel %vm807, %v749, %v913
        %915 = vst [vmem:[%s798 + $0xbc] sm:$0x1] %v914
      $region44: #{residual_forward.5} parent=39 // pred_fallthru
        _
      %s916 = smul.u32 %s21, 16
      %s917 = smul.u32 %s916, 3
      %s918 = smul.addr %s917, 4
      %s919 = scalar_lea.vmem [#allocation2], %s918
      %v920 = vld [vmem:[%s919] sm:$0xf]
      %v921 = vld [vmem:[%s919 + $0x4] sm:$0xf]
      %v922 = vld [vmem:[%s919 + $0xc] sm:$0xf]
      %v923 = vld [vmem:[%s919 + $0x10] sm:$0xf]
      %v924 = vld [vmem:[%s919 + $0x18] sm:$0xf]
      %v925 = vld [vmem:[%s919 + $0x1c] sm:$0xf]
      %v926 = vld [vmem:[%s919 + $0x24] sm:$0xf]
      %v927 = vld [vmem:[%s919 + $0x28] sm:$0xf]
      %v928 = vld [vmem:[%s919 + $0x30] sm:$0xf]
      %v929 = vld [vmem:[%s919 + $0x34] sm:$0xf]
      %v930 = vld [vmem:[%s919 + $0x3c] sm:$0xf]
      %v931 = vld [vmem:[%s919 + $0x40] sm:$0xf]
      %v932 = vld [vmem:[%s919 + $0x48] sm:$0xf]
      %v933 = vld [vmem:[%s919 + $0x4c] sm:$0xf]
      %v934 = vld [vmem:[%s919 + $0x54] sm:$0xf]
      %v935 = vld [vmem:[%s919 + $0x58] sm:$0xf]
      %v936 = vld [vmem:[%s919 + $0x60] sm:$0xf]
      %v937 = vld [vmem:[%s919 + $0x64] sm:$0xf]
      %v938 = vld [vmem:[%s919 + $0x6c] sm:$0xf]
      %v939 = vld [vmem:[%s919 + $0x70] sm:$0xf]
      %v940 = vld [vmem:[%s919 + $0x78] sm:$0xf]
      %v941 = vld [vmem:[%s919 + $0x7c] sm:$0xf]
      %v942 = vld [vmem:[%s919 + $0x84] sm:$0xf]
      %v943 = vld [vmem:[%s919 + $0x88] sm:$0xf]
      %v944 = vld [vmem:[%s919 + $0x90] sm:$0xf]
      %v945 = vld [vmem:[%s919 + $0x94] sm:$0xf]
      %v946 = vld [vmem:[%s919 + $0x9c] sm:$0xf]
      %v947 = vld [vmem:[%s919 + $0xa0] sm:$0xf]
      %v948 = vld [vmem:[%s919 + $0xa8] sm:$0xf]
      %v949 = vld [vmem:[%s919 + $0xac] sm:$0xf]
      %v950 = vld [vmem:[%s919 + $0xb4] sm:$0xf]
      %v951 = vld [vmem:[%s919 + $0xb8] sm:$0xf]
      %952 = vst [vmem:[#allocation3] sm:$0xf] %v920
      %953 = vst [vmem:[#allocation3 + $0x24] sm:$0xf] %v921
      %954 = vst [vmem:[#allocation3 + $0x48] sm:$0xf] %v922
      %955 = vst [vmem:[#allocation3 + $0x6c] sm:$0xf] %v923
      %956 = vst [vmem:[#allocation3 + $0x90] sm:$0xf] %v924
      %957 = vst [vmem:[#allocation3 + $0xb4] sm:$0xf] %v925
      %958 = vst [vmem:[#allocation3 + $0xd8] sm:$0xf] %v926
      %959 = vst [vmem:[#allocation3 + $0xfc] sm:$0xf] %v927
      %960 = vst [vmem:[#allocation3 + $0x120] sm:$0xf] %v928
      %961 = vst [vmem:[#allocation3 + $0x144] sm:$0xf] %v929
      %962 = vst [vmem:[#allocation3 + $0x168] sm:$0xf] %v930
      %963 = vst [vmem:[#allocation3 + $0x18c] sm:$0xf] %v931
      %964 = vst [vmem:[#allocation3 + $0x1b0] sm:$0xf] %v932
      %965 = vst [vmem:[#allocation3 + $0x1d4] sm:$0xf] %v933
      %966 = vst [vmem:[#allocation3 + $0x1f8] sm:$0xf] %v934
      %967 = vst [vmem:[#allocation3 + $0x21c] sm:$0xf] %v935
      %968 = vst [vmem:[#allocation3 + $0x240] sm:$0xf] %v936
      %969 = vst [vmem:[#allocation3 + $0x264] sm:$0xf] %v937
      %970 = vst [vmem:[#allocation3 + $0x288] sm:$0xf] %v938
      %971 = vst [vmem:[#allocation3 + $0x2ac] sm:$0xf] %v939
      %972 = vst [vmem:[#allocation3 + $0x2d0] sm:$0xf] %v940
      %973 = vst [vmem:[#allocation3 + $0x2f4] sm:$0xf] %v941
      %974 = vst [vmem:[#allocation3 + $0x318] sm:$0xf] %v942
      %975 = vst [vmem:[#allocation3 + $0x33c] sm:$0xf] %v943
      %976 = vst [vmem:[#allocation3 + $0x360] sm:$0xf] %v944
      %977 = vst [vmem:[#allocation3 + $0x384] sm:$0xf] %v945
      %978 = vst [vmem:[#allocation3 + $0x3a8] sm:$0xf] %v946
      %979 = vst [vmem:[#allocation3 + $0x3cc] sm:$0xf] %v947
      %980 = vst [vmem:[#allocation3 + $0x3f0] sm:$0xf] %v948
      %981 = vst [vmem:[#allocation3 + $0x414] sm:$0xf] %v949
      %982 = vst [vmem:[#allocation3 + $0x438] sm:$0xf] %v950
      %983 = vst [vmem:[#allocation3 + $0x45c] sm:$0xf] %v951
      %v984 = vld [vmem:[%s919] sm:$0xf]
      %v985 = vld [vmem:[%s919 + $0x4] sm:$0xf]
      %v986 = vld [vmem:[%s919 + $0x8] sm:$0x1]
      %v987 = vld [vmem:[%s919 + $0xc] sm:$0xf]
      %v988 = vld [vmem:[%s919 + $0x10] sm:$0xf]
      %v989 = vld [vmem:[%s919 + $0x14] sm:$0x1]
      %v990 = vld [vmem:[%s919 + $0x18] sm:$0xf]
      %v991 = vld [vmem:[%s919 + $0x1c] sm:$0xf]
      %v992 = vld [vmem:[%s919 + $0x20] sm:$0x1]
      %v993 = vld [vmem:[%s919 + $0x24] sm:$0xf]
      %v994 = vld [vmem:[%s919 + $0x28] sm:$0xf]
      %v995 = vld [vmem:[%s919 + $0x2c] sm:$0x1]
      %v996 = vld [vmem:[%s919 + $0x30] sm:$0xf]
      %v997 = vld [vmem:[%s919 + $0x34] sm:$0xf]
      %v998 = vld [vmem:[%s919 + $0x38] sm:$0x1]
      %v999 = vld [vmem:[%s919 + $0x3c] sm:$0xf]
      %v1000 = vld [vmem:[%s919 + $0x40] sm:$0xf]
      %v1001 = vld [vmem:[%s919 + $0x44] sm:$0x1]
      %v1002 = vld [vmem:[%s919 + $0x48] sm:$0xf]
      %v1003 = vld [vmem:[%s919 + $0x4c] sm:$0xf]
      %v1004 = vld [vmem:[%s919 + $0x50] sm:$0x1]
      %v1005 = vld [vmem:[%s919 + $0x54] sm:$0xf]
      %v1006 = vld [vmem:[%s919 + $0x58] sm:$0xf]
      %v1007 = vld [vmem:[%s919 + $0x5c] sm:$0x1]
      %v1008 = vld [vmem:[%s919 + $0x60] sm:$0xf]
      %v1009 = vld [vmem:[%s919 + $0x64] sm:$0xf]
      %v1010 = vld [vmem:[%s919 + $0x68] sm:$0x1]
      %v1011 = vld [vmem:[%s919 + $0x6c] sm:$0xf]
      %v1012 = vld [vmem:[%s919 + $0x70] sm:$0xf]
      %v1013 = vld [vmem:[%s919 + $0x74] sm:$0x1]
      %v1014 = vld [vmem:[%s919 + $0x78] sm:$0xf]
      %v1015 = vld [vmem:[%s919 + $0x7c] sm:$0xf]
      %v1016 = vld [vmem:[%s919 + $0x80] sm:$0x1]
      %v1017 = vld [vmem:[%s919 + $0x84] sm:$0xf]
      %v1018 = vld [vmem:[%s919 + $0x88] sm:$0xf]
      %v1019 = vld [vmem:[%s919 + $0x8c] sm:$0x1]
      %v1020 = vld [vmem:[%s919 + $0x90] sm:$0xf]
      %v1021 = vld [vmem:[%s919 + $0x94] sm:$0xf]
      %v1022 = vld [vmem:[%s919 + $0x98] sm:$0x1]
      %v1023 = vld [vmem:[%s919 + $0x9c] sm:$0xf]
      %v1024 = vld [vmem:[%s919 + $0xa0] sm:$0xf]
      %v1025 = vld [vmem:[%s919 + $0xa4] sm:$0x1]
      %v1026 = vld [vmem:[%s919 + $0xa8] sm:$0xf]
      %v1027 = vld [vmem:[%s919 + $0xac] sm:$0xf]
      %v1028 = vld [vmem:[%s919 + $0xb0] sm:$0x1]
      %v1029 = vld [vmem:[%s919 + $0xb4] sm:$0xf]
      %v1030 = vld [vmem:[%s919 + $0xb8] sm:$0xf]
      %v1031 = vld [vmem:[%s919 + $0xbc] sm:$0x1]
      %vm1032 = vsmask.f32 3328
      %vm1033 = vsmask.f32 7440
      %vm1034 = vmor %vm1032, %vm1033
      %v1036 = vshrl.u32 %v984, 16
      %v1038 = vrot.slane %v1036, 4
      %v1039 = vshll.u32 %v984, 16
      %v1041 = vrot.slane %v1039, 5
      %v1042 = vor.u32 %v1038, %v1041
      %v1043 = vrot.slane %v1042, 4
      %v1045 = vshll.u32 %v985, 16
      %v1047 = vrot.slane %v1045, 5
      %v1048 = vsel %vm1034, %v1043, %v1047
      %v1049 = vshrl.u32 %v985, 16
      %v1051 = vrot.slane %v1049, 4
      %v1052 = vor.u32 %v1051, %v1047
      %v1053 = vrot.slane %v1052, 4
      %v1055 = vshll.u32 %v986, 16
      %v1057 = vrot.slane %v1055, 5
      %v1058 = vsel %vm1034, %v1053, %v1057
      %v1060 = vshrl.u32 %v987, 16
      %v1062 = vrot.slane %v1060, 4
      %v1063 = vshll.u32 %v987, 16
      %v1065 = vrot.slane %v1063, 5
      %v1066 = vor.u32 %v1062, %v1065
      %v1067 = vrot.slane %v1066, 4
      %v1069 = vshll.u32 %v988, 16
      %v1071 = vrot.slane %v1069, 5
      %v1072 = vsel %vm1034, %v1067, %v1071
      %v1073 = vshrl.u32 %v988, 16
      %v1075 = vrot.slane %v1073, 4
      %v1076 = vor.u32 %v1075, %v1071
      %v1077 = vrot.slane %v1076, 4
      %v1079 = vshll.u32 %v989, 16
      %v1081 = vrot.slane %v1079, 5
      %v1082 = vsel %vm1034, %v1077, %v1081
      %v1084 = vshrl.u32 %v990, 16
      %v1086 = vrot.slane %v1084, 4
      %v1087 = vshll.u32 %v990, 16
      %v1089 = vrot.slane %v1087, 5
      %v1090 = vor.u32 %v1086, %v1089
      %v1091 = vrot.slane %v1090, 4
      %v1093 = vshll.u32 %v991, 16
      %v1095 = vrot.slane %v1093, 5
      %v1096 = vsel %vm1034, %v1091, %v1095
      %v1097 = vshrl.u32 %v991, 16
      %v1099 = vrot.slane %v1097, 4
      %v1100 = vor.u32 %v1099, %v1095
      %v1101 = vrot.slane %v1100, 4
      %v1103 = vshll.u32 %v992, 16
      %v1105 = vrot.slane %v1103, 5
      %v1106 = vsel %vm1034, %v1101, %v1105
      %v1108 = vshrl.u32 %v993, 16
      %v1110 = vrot.slane %v1108, 4
      %v1111 = vshll.u32 %v993, 16
      %v1113 = vrot.slane %v1111, 5
      %v1114 = vor.u32 %v1110, %v1113
      %v1115 = vrot.slane %v1114, 4
      %v1117 = vshll.u32 %v994, 16
      %v1119 = vrot.slane %v1117, 5
      %v1120 = vsel %vm1034, %v1115, %v1119
      %v1121 = vshrl.u32 %v994, 16
      %v1123 = vrot.slane %v1121, 4
      %v1124 = vor.u32 %v1123, %v1119
      %v1125 = vrot.slane %v1124, 4
      %v1127 = vshll.u32 %v995, 16
      %v1129 = vrot.slane %v1127, 5
      %v1130 = vsel %vm1034, %v1125, %v1129
      %v1132 = vshrl.u32 %v996, 16
      %v1134 = vrot.slane %v1132, 4
      %v1135 = vshll.u32 %v996, 16
      %v1137 = vrot.slane %v1135, 5
      %v1138 = vor.u32 %v1134, %v1137
      %v1139 = vrot.slane %v1138, 4
      %v1141 = vshll.u32 %v997, 16
      %v1143 = vrot.slane %v1141, 5
      %v1144 = vsel %vm1034, %v1139, %v1143
      %v1145 = vshrl.u32 %v997, 16
      %v1147 = vrot.slane %v1145, 4
      %v1148 = vor.u32 %v1147, %v1143
      %v1149 = vrot.slane %v1148, 4
      %v1151 = vshll.u32 %v998, 16
      %v1153 = vrot.slane %v1151, 5
      %v1154 = vsel %vm1034, %v1149, %v1153
      %v1156 = vshrl.u32 %v999, 16
      %v1158 = vrot.slane %v1156, 4
      %v1159 = vshll.u32 %v999, 16
      %v1161 = vrot.slane %v1159, 5
      %v1162 = vor.u32 %v1158, %v1161
      %v1163 = vrot.slane %v1162, 4
      %v1165 = vshll.u32 %v1000, 16
      %v1167 = vrot.slane %v1165, 5
      %v1168 = vsel %vm1034, %v1163, %v1167
      %v1169 = vshrl.u32 %v1000, 16
      %v1171 = vrot.slane %v1169, 4
      %v1172 = vor.u32 %v1171, %v1167
      %v1173 = vrot.slane %v1172, 4
      %v1175 = vshll.u32 %v1001, 16
      %v1177 = vrot.slane %v1175, 5
      %v1178 = vsel %vm1034, %v1173, %v1177
      %v1180 = vshrl.u32 %v1002, 16
      %v1182 = vrot.slane %v1180, 4
      %v1183 = vshll.u32 %v1002, 16
      %v1185 = vrot.slane %v1183, 5
      %v1186 = vor.u32 %v1182, %v1185
      %v1187 = vrot.slane %v1186, 4
      %v1189 = vshll.u32 %v1003, 16
      %v1191 = vrot.slane %v1189, 5
      %v1192 = vsel %vm1034, %v1187, %v1191
      %v1193 = vshrl.u32 %v1003, 16
      %v1195 = vrot.slane %v1193, 4
      %v1196 = vor.u32 %v1195, %v1191
      %v1197 = vrot.slane %v1196, 4
      %v1199 = vshll.u32 %v1004, 16
      %v1201 = vrot.slane %v1199, 5
      %v1202 = vsel %vm1034, %v1197, %v1201
      %v1204 = vshrl.u32 %v1005, 16
      %v1206 = vrot.slane %v1204, 4
      %v1207 = vshll.u32 %v1005, 16
      %v1209 = vrot.slane %v1207, 5
      %v1210 = vor.u32 %v1206, %v1209
      %v1211 = vrot.slane %v1210, 4
      %v1213 = vshll.u32 %v1006, 16
      %v1215 = vrot.slane %v1213, 5
      %v1216 = vsel %vm1034, %v1211, %v1215
      %v1217 = vshrl.u32 %v1006, 16
      %v1219 = vrot.slane %v1217, 4
      %v1220 = vor.u32 %v1219, %v1215
      %v1221 = vrot.slane %v1220, 4
      %v1223 = vshll.u32 %v1007, 16
      %v1225 = vrot.slane %v1223, 5
      %v1226 = vsel %vm1034, %v1221, %v1225
      %v1228 = vshrl.u32 %v1008, 16
      %v1230 = vrot.slane %v1228, 4
      %v1231 = vshll.u32 %v1008, 16
      %v1233 = vrot.slane %v1231, 5
      %v1234 = vor.u32 %v1230, %v1233
      %v1235 = vrot.slane %v1234, 4
      %v1237 = vshll.u32 %v1009, 16
      %v1239 = vrot.slane %v1237, 5
      %v1240 = vsel %vm1034, %v1235, %v1239
      %v1241 = vshrl.u32 %v1009, 16
      %v1243 = vrot.slane %v1241, 4
      %v1244 = vor.u32 %v1243, %v1239
      %v1245 = vrot.slane %v1244, 4
      %v1247 = vshll.u32 %v1010, 16
      %v1249 = vrot.slane %v1247, 5
      %v1250 = vsel %vm1034, %v1245, %v1249
      %v1252 = vshrl.u32 %v1011, 16
      %v1254 = vrot.slane %v1252, 4
      %v1255 = vshll.u32 %v1011, 16
      %v1257 = vrot.slane %v1255, 5
      %v1258 = vor.u32 %v1254, %v1257
      %v1259 = vrot.slane %v1258, 4
      %v1261 = vshll.u32 %v1012, 16
      %v1263 = vrot.slane %v1261, 5
      %v1264 = vsel %vm1034, %v1259, %v1263
      %v1265 = vshrl.u32 %v1012, 16
      %v1267 = vrot.slane %v1265, 4
      %v1268 = vor.u32 %v1267, %v1263
      %v1269 = vrot.slane %v1268, 4
      %v1271 = vshll.u32 %v1013, 16
      %v1273 = vrot.slane %v1271, 5
      %v1274 = vsel %vm1034, %v1269, %v1273
      %v1276 = vshrl.u32 %v1014, 16
      %v1278 = vrot.slane %v1276, 4
      %v1279 = vshll.u32 %v1014, 16
      %v1281 = vrot.slane %v1279, 5
      %v1282 = vor.u32 %v1278, %v1281
      %v1283 = vrot.slane %v1282, 4
      %v1285 = vshll.u32 %v1015, 16
      %v1287 = vrot.slane %v1285, 5
      %v1288 = vsel %vm1034, %v1283, %v1287
      %v1289 = vshrl.u32 %v1015, 16
      %v1291 = vrot.slane %v1289, 4
      %v1292 = vor.u32 %v1291, %v1287
      %v1293 = vrot.slane %v1292, 4
      %v1295 = vshll.u32 %v1016, 16
      %v1297 = vrot.slane %v1295, 5
      %v1298 = vsel %vm1034, %v1293, %v1297
      %v1300 = vshrl.u32 %v1017, 16
      %v1302 = vrot.slane %v1300, 4
      %v1303 = vshll.u32 %v1017, 16
      %v1305 = vrot.slane %v1303, 5
      %v1306 = vor.u32 %v1302, %v1305
      %v1307 = vrot.slane %v1306, 4
      %v1309 = vshll.u32 %v1018, 16
      %v1311 = vrot.slane %v1309, 5
      %v1312 = vsel %vm1034, %v1307, %v1311
      %v1313 = vshrl.u32 %v1018, 16
      %v1315 = vrot.slane %v1313, 4
      %v1316 = vor.u32 %v1315, %v1311
      %v1317 = vrot.slane %v1316, 4
      %v1319 = vshll.u32 %v1019, 16
      %v1321 = vrot.slane %v1319, 5
      %v1322 = vsel %vm1034, %v1317, %v1321
      %v1324 = vshrl.u32 %v1020, 16
      %v1326 = vrot.slane %v1324, 4
      %v1327 = vshll.u32 %v1020, 16
      %v1329 = vrot.slane %v1327, 5
      %v1330 = vor.u32 %v1326, %v1329
      %v1331 = vrot.slane %v1330, 4
      %v1333 = vshll.u32 %v1021, 16
      %v1335 = vrot.slane %v1333, 5
      %v1336 = vsel %vm1034, %v1331, %v1335
      %v1337 = vshrl.u32 %v1021, 16
      %v1339 = vrot.slane %v1337, 4
      %v1340 = vor.u32 %v1339, %v1335
      %v1341 = vrot.slane %v1340, 4
      %v1343 = vshll.u32 %v1022, 16
      %v1345 = vrot.slane %v1343, 5
      %v1346 = vsel %vm1034, %v1341, %v1345
      %v1348 = vshrl.u32 %v1023, 16
      %v1350 = vrot.slane %v1348, 4
      %v1351 = vshll.u32 %v1023, 16
      %v1353 = vrot.slane %v1351, 5
      %v1354 = vor.u32 %v1350, %v1353
      %v1355 = vrot.slane %v1354, 4
      %v1357 = vshll.u32 %v1024, 16
      %v1359 = vrot.slane %v1357, 5
      %v1360 = vsel %vm1034, %v1355, %v1359
      %v1361 = vshrl.u32 %v1024, 16
      %v1363 = vrot.slane %v1361, 4
      %v1364 = vor.u32 %v1363, %v1359
      %v1365 = vrot.slane %v1364, 4
      %v1367 = vshll.u32 %v1025, 16
      %v1369 = vrot.slane %v1367, 5
      %v1370 = vsel %vm1034, %v1365, %v1369
      %v1372 = vshrl.u32 %v1026, 16
      %v1374 = vrot.slane %v1372, 4
      %v1375 = vshll.u32 %v1026, 16
      %v1377 = vrot.slane %v1375, 5
      %v1378 = vor.u32 %v1374, %v1377
      %v1379 = vrot.slane %v1378, 4
      %v1381 = vshll.u32 %v1027, 16
      %v1383 = vrot.slane %v1381, 5
      %v1384 = vsel %vm1034, %v1379, %v1383
      %v1385 = vshrl.u32 %v1027, 16
      %v1387 = vrot.slane %v1385, 4
      %v1388 = vor.u32 %v1387, %v1383
      %v1389 = vrot.slane %v1388, 4
      %v1391 = vshll.u32 %v1028, 16
      %v1393 = vrot.slane %v1391, 5
      %v1394 = vsel %vm1034, %v1389, %v1393
      %v1396 = vshrl.u32 %v1029, 16
      %v1398 = vrot.slane %v1396, 4
      %v1399 = vshll.u32 %v1029, 16
      %v1401 = vrot.slane %v1399, 5
      %v1402 = vor.u32 %v1398, %v1401
      %v1403 = vrot.slane %v1402, 4
      %v1405 = vshll.u32 %v1030, 16
      %v1407 = vrot.slane %v1405, 5
      %v1408 = vsel %vm1034, %v1403, %v1407
      %v1409 = vshrl.u32 %v1030, 16
      %v1411 = vrot.slane %v1409, 4
      %v1412 = vor.u32 %v1411, %v1407
      %v1413 = vrot.slane %v1412, 4
      %v1415 = vshll.u32 %v1031, 16
      %v1417 = vrot.slane %v1415, 5
      %v1418 = vsel %vm1034, %v1413, %v1417
      %1451 = vst [vmem:[#allocation3 + $0x4] sm:$0xf] %v1048
      %1452 = vst [vmem:[#allocation3 + $0x28] sm:$0xf] %v1058
      %1453 = vst [vmem:[#allocation3 + $0x4c] sm:$0xf] %v1072
      %1454 = vst [vmem:[#allocation3 + $0x70] sm:$0xf] %v1082
      %1455 = vst [vmem:[#allocation3 + $0x94] sm:$0xf] %v1096
      %1456 = vst [vmem:[#allocation3 + $0xb8] sm:$0xf] %v1106
      %1457 = vst [vmem:[#allocation3 + $0xdc] sm:$0xf] %v1120
      %1458 = vst [vmem:[#allocation3 + $0x100] sm:$0xf] %v1130
      %1459 = vst [vmem:[#allocation3 + $0x124] sm:$0xf] %v1144
      %1460 = vst [vmem:[#allocation3 + $0x148] sm:$0xf] %v1154
      %1461 = vst [vmem:[#allocation3 + $0x16c] sm:$0xf] %v1168
      %1462 = vst [vmem:[#allocation3 + $0x190] sm:$0xf] %v1178
      %1463 = vst [vmem:[#allocation3 + $0x1b4] sm:$0xf] %v1192
      %1464 = vst [vmem:[#allocation3 + $0x1d8] sm:$0xf] %v1202
      %1465 = vst [vmem:[#allocation3 + $0x1fc] sm:$0xf] %v1216
      %1466 = vst [vmem:[#allocation3 + $0x220] sm:$0xf] %v1226
      %1467 = vst [vmem:[#allocation3 + $0x244] sm:$0xf] %v1240
      %1468 = vst [vmem:[#allocation3 + $0x268] sm:$0xf] %v1250
      %1469 = vst [vmem:[#allocation3 + $0x28c] sm:$0xf] %v1264
      %1470 = vst [vmem:[#allocation3 + $0x2b0] sm:$0xf] %v1274
      %1471 = vst [vmem:[#allocation3 + $0x2d4] sm:$0xf] %v1288
      %1472 = vst [vmem:[#allocation3 + $0x2f8] sm:$0xf] %v1298
      %1473 = vst [vmem:[#allocation3 + $0x31c] sm:$0xf] %v1312
      %1474 = vst [vmem:[#allocation3 + $0x340] sm:$0xf] %v1322
      %1475 = vst [vmem:[#allocation3 + $0x364] sm:$0xf] %v1336
      %1476 = vst [vmem:[#allocation3 + $0x388] sm:$0xf] %v1346
      %1477 = vst [vmem:[#allocation3 + $0x3ac] sm:$0xf] %v1360
      %1478 = vst [vmem:[#allocation3 + $0x3d0] sm:$0xf] %v1370
      %1479 = vst [vmem:[#allocation3 + $0x3f4] sm:$0xf] %v1384
      %1480 = vst [vmem:[#allocation3 + $0x418] sm:$0xf] %v1394
      %1481 = vst [vmem:[#allocation3 + $0x43c] sm:$0xf] %v1408
      %1482 = vst [vmem:[#allocation3 + $0x460] sm:$0xf] %v1418
      %v1483 = vld [vmem:[%s919] sm:$0xe]
      %v1484 = vld [vmem:[%s919 + $0x4] sm:$0xf]
      %v1485 = vld [vmem:[%s919 + $0x8] sm:$0x1]
      %v1486 = vld [vmem:[%s919 + $0xc] sm:$0xe]
      %v1487 = vld [vmem:[%s919 + $0x10] sm:$0xf]
      %v1488 = vld [vmem:[%s919 + $0x14] sm:$0x1]
      %v1489 = vld [vmem:[%s919 + $0x18] sm:$0xe]
      %v1490 = vld [vmem:[%s919 + $0x1c] sm:$0xf]
      %v1491 = vld [vmem:[%s919 + $0x20] sm:$0x1]
      %v1492 = vld [vmem:[%s919 + $0x24] sm:$0xe]
      %v1493 = vld [vmem:[%s919 + $0x28] sm:$0xf]
      %v1494 = vld [vmem:[%s919 + $0x2c] sm:$0x1]
      %v1495 = vld [vmem:[%s919 + $0x30] sm:$0xe]
      %v1496 = vld [vmem:[%s919 + $0x34] sm:$0xf]
      %v1497 = vld [vmem:[%s919 + $0x38] sm:$0x1]
      %v1498 = vld [vmem:[%s919 + $0x3c] sm:$0xe]
      %v1499 = vld [vmem:[%s919 + $0x40] sm:$0xf]
      %v1500 = vld [vmem:[%s919 + $0x44] sm:$0x1]
      %v1501 = vld [vmem:[%s919 + $0x48] sm:$0xe]
      %v1502 = vld [vmem:[%s919 + $0x4c] sm:$0xf]
      %v1503 = vld [vmem:[%s919 + $0x50] sm:$0x1]
      %v1504 = vld [vmem:[%s919 + $0x54] sm:$0xe]
      %v1505 = vld [vmem:[%s919 + $0x58] sm:$0xf]
      %v1506 = vld [vmem:[%s919 + $0x5c] sm:$0x1]
      %v1507 = vld [vmem:[%s919 + $0x60] sm:$0xe]
      %v1508 = vld [vmem:[%s919 + $0x64] sm:$0xf]
      %v1509 = vld [vmem:[%s919 + $0x68] sm:$0x1]
      %v1510 = vld [vmem:[%s919 + $0x6c] sm:$0xe]
      %v1511 = vld [vmem:[%s919 + $0x70] sm:$0xf]
      %v1512 = vld [vmem:[%s919 + $0x74] sm:$0x1]
      %v1513 = vld [vmem:[%s919 + $0x78] sm:$0xe]
      %v1514 = vld [vmem:[%s919 + $0x7c] sm:$0xf]
      %v1515 = vld [vmem:[%s919 + $0x80] sm:$0x1]
      %v1516 = vld [vmem:[%s919 + $0x84] sm:$0xe]
      %v1517 = vld [vmem:[%s919 + $0x88] sm:$0xf]
      %v1518 = vld [vmem:[%s919 + $0x8c] sm:$0x1]
      %v1519 = vld [vmem:[%s919 + $0x90] sm:$0xe]
      %v1520 = vld [vmem:[%s919 + $0x94] sm:$0xf]
      %v1521 = vld [vmem:[%s919 + $0x98] sm:$0x1]
      %v1522 = vld [vmem:[%s919 + $0x9c] sm:$0xe]
      %v1523 = vld [vmem:[%s919 + $0xa0] sm:$0xf]
      %v1524 = vld [vmem:[%s919 + $0xa4] sm:$0x1]
      %v1525 = vld [vmem:[%s919 + $0xa8] sm:$0xe]
      %v1526 = vld [vmem:[%s919 + $0xac] sm:$0xf]
      %v1527 = vld [vmem:[%s919 + $0xb0] sm:$0x1]
      %v1528 = vld [vmem:[%s919 + $0xb4] sm:$0xe]
      %v1529 = vld [vmem:[%s919 + $0xb8] sm:$0xf]
      %v1530 = vld [vmem:[%s919 + $0xbc] sm:$0x1]
      %vm1579 = vcmask 1042432
      %vm1580 = vcmask 1046532
      %vm1581 = vmor %vm1579, %vm1580
      %v1582 = vrot.slane %v1483, 5
      %v1583 = vrot.slane %v1582, 4
      %v1584 = vrot.slane %v1484, 5
      %v1585 = vsel %vm1581, %v1583, %v1584
      %v1586 = vrot.slane %v1584, 4
      %v1587 = vrot.slane %v1485, 5
      %v1588 = vsel %vm1581, %v1586, %v1587
      %v1589 = vrot.slane %v1486, 5
      %v1590 = vrot.slane %v1589, 4
      %v1591 = vrot.slane %v1487, 5
      %v1592 = vsel %vm1581, %v1590, %v1591
      %v1593 = vrot.slane %v1591, 4
      %v1594 = vrot.slane %v1488, 5
      %v1595 = vsel %vm1581, %v1593, %v1594
      %v1596 = vrot.slane %v1489, 5
      %v1597 = vrot.slane %v1596, 4
      %v1598 = vrot.slane %v1490, 5
      %v1599 = vsel %vm1581, %v1597, %v1598
      %v1600 = vrot.slane %v1598, 4
      %v1601 = vrot.slane %v1491, 5
      %v1602 = vsel %vm1581, %v1600, %v1601
      %v1603 = vrot.slane %v1492, 5
      %v1604 = vrot.slane %v1603, 4
      %v1605 = vrot.slane %v1493, 5
      %v1606 = vsel %vm1581, %v1604, %v1605
      %v1607 = vrot.slane %v1605, 4
      %v1608 = vrot.slane %v1494, 5
      %v1609 = vsel %vm1581, %v1607, %v1608
      %v1610 = vrot.slane %v1495, 5
      %v1611 = vrot.slane %v1610, 4
      %v1612 = vrot.slane %v1496, 5
      %v1613 = vsel %vm1581, %v1611, %v1612
      %v1614 = vrot.slane %v1612, 4
      %v1615 = vrot.slane %v1497, 5
      %v1616 = vsel %vm1581, %v1614, %v1615
      %v1617 = vrot.slane %v1498, 5
      %v1618 = vrot.slane %v1617, 4
      %v1619 = vrot.slane %v1499, 5
      %v1620 = vsel %vm1581, %v1618, %v1619
      %v1621 = vrot.slane %v1619, 4
      %v1622 = vrot.slane %v1500, 5
      %v1623 = vsel %vm1581, %v1621, %v1622
      %v1624 = vrot.slane %v1501, 5
      %v1625 = vrot.slane %v1624, 4
      %v1626 = vrot.slane %v1502, 5
      %v1627 = vsel %vm1581, %v1625, %v1626
      %v1628 = vrot.slane %v1626, 4
      %v1629 = vrot.slane %v1503, 5
      %v1630 = vsel %vm1581, %v1628, %v1629
      %v1631 = vrot.slane %v1504, 5
      %v1632 = vrot.slane %v1631, 4
      %v1633 = vrot.slane %v1505, 5
      %v1634 = vsel %vm1581, %v1632, %v1633
      %v1635 = vrot.slane %v1633, 4
      %v1636 = vrot.slane %v1506, 5
      %v1637 = vsel %vm1581, %v1635, %v1636
      %v1638 = vrot.slane %v1507, 5
      %v1639 = vrot.slane %v1638, 4
      %v1640 = vrot.slane %v1508, 5
      %v1641 = vsel %vm1581, %v1639, %v1640
      %v1642 = vrot.slane %v1640, 4
      %v1643 = vrot.slane %v1509, 5
      %v1644 = vsel %vm1581, %v1642, %v1643
      %v1645 = vrot.slane %v1510, 5
      %v1646 = vrot.slane %v1645, 4
      %v1647 = vrot.slane %v1511, 5
      %v1648 = vsel %vm1581, %v1646, %v1647
      %v1649 = vrot.slane %v1647, 4
      %v1650 = vrot.slane %v1512, 5
      %v1651 = vsel %vm1581, %v1649, %v1650
      %v1652 = vrot.slane %v1513, 5
      %v1653 = vrot.slane %v1652, 4
      %v1654 = vrot.slane %v1514, 5
      %v1655 = vsel %vm1581, %v1653, %v1654
      %v1656 = vrot.slane %v1654, 4
      %v1657 = vrot.slane %v1515, 5
      %v1658 = vsel %vm1581, %v1656, %v1657
      %v1659 = vrot.slane %v1516, 5
      %v1660 = vrot.slane %v1659, 4
      %v1661 = vrot.slane %v1517, 5
      %v1662 = vsel %vm1581, %v1660, %v1661
      %v1663 = vrot.slane %v1661, 4
      %v1664 = vrot.slane %v1518, 5
      %v1665 = vsel %vm1581, %v1663, %v1664
      %v1666 = vrot.slane %v1519, 5
      %v1667 = vrot.slane %v1666, 4
      %v1668 = vrot.slane %v1520, 5
      %v1669 = vsel %vm1581, %v1667, %v1668
      %v1670 = vrot.slane %v1668, 4
      %v1671 = vrot.slane %v1521, 5
      %v1672 = vsel %vm1581, %v1670, %v1671
      %v1673 = vrot.slane %v1522, 5
      %v1674 = vrot.slane %v1673, 4
      %v1675 = vrot.slane %v1523, 5
      %v1676 = vsel %vm1581, %v1674, %v1675
      %v1677 = vrot.slane %v1675, 4
      %v1678 = vrot.slane %v1524, 5
      %v1679 = vsel %vm1581, %v1677, %v1678
      %v1680 = vrot.slane %v1525, 5
      %v1681 = vrot.slane %v1680, 4
      %v1682 = vrot.slane %v1526, 5
      %v1683 = vsel %vm1581, %v1681, %v1682
      %v1684 = vrot.slane %v1682, 4
      %v1685 = vrot.slane %v1527, 5
      %v1686 = vsel %vm1581, %v1684, %v1685
      %v1687 = vrot.slane %v1528, 5
      %v1688 = vrot.slane %v1687, 4
      %v1689 = vrot.slane %v1529, 5
      %v1690 = vsel %vm1581, %v1688, %v1689
      %v1691 = vrot.slane %v1689, 4
      %v1692 = vrot.slane %v1530, 5
      %v1693 = vsel %vm1581, %v1691, %v1692
      %1726 = vst [vmem:[#allocation3 + $0x8] sm:$0xf] %v1585
      %1727 = vst [vmem:[#allocation3 + $0x2c] sm:$0xf] %v1588
      %1728 = vst [vmem:[#allocation3 + $0x50] sm:$0xf] %v1592
      %1729 = vst [vmem:[#allocation3 + $0x74] sm:$0xf] %v1595
      %1730 = vst [vmem:[#allocation3 + $0x98] sm:$0xf] %v1599
      %1731 = vst [vmem:[#allocation3 + $0xbc] sm:$0xf] %v1602
      %1732 = vst [vmem:[#allocation3 + $0xe0] sm:$0xf] %v1606
      %1733 = vst [vmem:[#allocation3 + $0x104] sm:$0xf] %v1609
      %1734 = vst [vmem:[#allocation3 + $0x128] sm:$0xf] %v1613
      %1735 = vst [vmem:[#allocation3 + $0x14c] sm:$0xf] %v1616
      %1736 = vst [vmem:[#allocation3 + $0x170] sm:$0xf] %v1620
      %1737 = vst [vmem:[#allocation3 + $0x194] sm:$0xf] %v1623
      %1738 = vst [vmem:[#allocation3 + $0x1b8] sm:$0xf] %v1627
      %1739 = vst [vmem:[#allocation3 + $0x1dc] sm:$0xf] %v1630
      %1740 = vst [vmem:[#allocation3 + $0x200] sm:$0xf] %v1634
      %1741 = vst [vmem:[#allocation3 + $0x224] sm:$0xf] %v1637
      %1742 = vst [vmem:[#allocation3 + $0x248] sm:$0xf] %v1641
      %1743 = vst [vmem:[#allocation3 + $0x26c] sm:$0xf] %v1644
      %1744 = vst [vmem:[#allocation3 + $0x290] sm:$0xf] %v1648
      %1745 = vst [vmem:[#allocation3 + $0x2b4] sm:$0xf] %v1651
      %1746 = vst [vmem:[#allocation3 + $0x2d8] sm:$0xf] %v1655
      %1747 = vst [vmem:[#allocation3 + $0x2fc] sm:$0xf] %v1658
      %1748 = vst [vmem:[#allocation3 + $0x320] sm:$0xf] %v1662
      %1749 = vst [vmem:[#allocation3 + $0x344] sm:$0xf] %v1665
      %1750 = vst [vmem:[#allocation3 + $0x368] sm:$0xf] %v1669
      %1751 = vst [vmem:[#allocation3 + $0x38c] sm:$0xf] %v1672
      %1752 = vst [vmem:[#allocation3 + $0x3b0] sm:$0xf] %v1676
      %1753 = vst [vmem:[#allocation3 + $0x3d4] sm:$0xf] %v1679
      %1754 = vst [vmem:[#allocation3 + $0x3f8] sm:$0xf] %v1683
      %1755 = vst [vmem:[#allocation3 + $0x41c] sm:$0xf] %v1686
      %1756 = vst [vmem:[#allocation3 + $0x440] sm:$0xf] %v1690
      %1757 = vst [vmem:[#allocation3 + $0x464] sm:$0xf] %v1693
      %s1758 = sadd.s32 %s916, 1
      %s1759 = smul.u32 %s1758, 3
      %s1760 = smul.addr %s1759, 4
      %s1761 = scalar_lea.vmem [#allocation2], %s1760
      %v1762 = vld [vmem:[%s1761] sm:$0xf]
      %v1763 = vld [vmem:[%s1761 + $0x4] sm:$0xf]
      %v1764 = vld [vmem:[%s1761 + $0xc] sm:$0xf]
      %v1765 = vld [vmem:[%s1761 + $0x10] sm:$0xf]
      %v1766 = vld [vmem:[%s1761 + $0x18] sm:$0xf]
      %v1767 = vld [vmem:[%s1761 + $0x1c] sm:$0xf]
      %v1768 = vld [vmem:[%s1761 + $0x24] sm:$0xf]
      %v1769 = vld [vmem:[%s1761 + $0x28] sm:$0xf]
      %v1770 = vld [vmem:[%s1761 + $0x30] sm:$0xf]
      %v1771 = vld [vmem:[%s1761 + $0x34] sm:$0xf]
      %v1772 = vld [vmem:[%s1761 + $0x3c] sm:$0xf]
      %v1773 = vld [vmem:[%s1761 + $0x40] sm:$0xf]
      %v1774 = vld [vmem:[%s1761 + $0x48] sm:$0xf]
      %v1775 = vld [vmem:[%s1761 + $0x4c] sm:$0xf]
      %v1776 = vld [vmem:[%s1761 + $0x54] sm:$0xf]
      %v1777 = vld [vmem:[%s1761 + $0x58] sm:$0xf]
      %v1778 = vld [vmem:[%s1761 + $0x60] sm:$0xf]
      %v1779 = vld [vmem:[%s1761 + $0x64] sm:$0xf]
      %v1780 = vld [vmem:[%s1761 + $0x6c] sm:$0xf]
      %v1781 = vld [vmem:[%s1761 + $0x70] sm:$0xf]
      %v1782 = vld [vmem:[%s1761 + $0x78] sm:$0xf]
      %v1783 = vld [vmem:[%s1761 + $0x7c] sm:$0xf]
      %v1784 = vld [vmem:[%s1761 + $0x84] sm:$0xf]
      %v1785 = vld [vmem:[%s1761 + $0x88] sm:$0xf]
      %v1786 = vld [vmem:[%s1761 + $0x90] sm:$0xf]
      %v1787 = vld [vmem:[%s1761 + $0x94] sm:$0xf]
      %v1788 = vld [vmem:[%s1761 + $0x9c] sm:$0xf]
      %v1789 = vld [vmem:[%s1761 + $0xa0] sm:$0xf]
      %v1790 = vld [vmem:[%s1761 + $0xa8] sm:$0xf]
      %v1791 = vld [vmem:[%s1761 + $0xac] sm:$0xf]
      %v1792 = vld [vmem:[%s1761 + $0xb4] sm:$0xf]
      %v1793 = vld [vmem:[%s1761 + $0xb8] sm:$0xf]
      %1794 = vst [vmem:[#allocation3 + $0xc] sm:$0xf] %v1762
      %1795 = vst [vmem:[#allocation3 + $0x30] sm:$0xf] %v1763
      %1796 = vst [vmem:[#allocation3 + $0x54] sm:$0xf] %v1764
      %1797 = vst [vmem:[#allocation3 + $0x78] sm:$0xf] %v1765
      %1798 = vst [vmem:[#allocation3 + $0x9c] sm:$0xf] %v1766
      %1799 = vst [vmem:[#allocation3 + $0xc0] sm:$0xf] %v1767
      %1800 = vst [vmem:[#allocation3 + $0xe4] sm:$0xf] %v1768
      %1801 = vst [vmem:[#allocation3 + $0x108] sm:$0xf] %v1769
      %1802 = vst [vmem:[#allocation3 + $0x12c] sm:$0xf] %v1770
      %1803 = vst [vmem:[#allocation3 + $0x150] sm:$0xf] %v1771
      %1804 = vst [vmem:[#allocation3 + $0x174] sm:$0xf] %v1772
      %1805 = vst [vmem:[#allocation3 + $0x198] sm:$0xf] %v1773
      %1806 = vst [vmem:[#allocation3 + $0x1bc] sm:$0xf] %v1774
      %1807 = vst [vmem:[#allocation3 + $0x1e0] sm:$0xf] %v1775
      %1808 = vst [vmem:[#allocation3 + $0x204] sm:$0xf] %v1776
      %1809 = vst [vmem:[#allocation3 + $0x228] sm:$0xf] %v1777
      %1810 = vst [vmem:[#allocation3 + $0x24c] sm:$0xf] %v1778
      %1811 = vst [vmem:[#allocation3 + $0x270] sm:$0xf] %v1779
      %1812 = vst [vmem:[#allocation3 + $0x294] sm:$0xf] %v1780
      %1813 = vst [vmem:[#allocation3 + $0x2b8] sm:$0xf] %v1781
      %1814 = vst [vmem:[#allocation3 + $0x2dc] sm:$0xf] %v1782
      %1815 = vst [vmem:[#allocation3 + $0x300] sm:$0xf] %v1783
      %1816 = vst [vmem:[#allocation3 + $0x324] sm:$0xf] %v1784
      %1817 = vst [vmem:[#allocation3 + $0x348] sm:$0xf] %v1785
      %1818 = vst [vmem:[#allocation3 + $0x36c] sm:$0xf] %v1786
      %1819 = vst [vmem:[#allocation3 + $0x390] sm:$0xf] %v1787
      %1820 = vst [vmem:[#allocation3 + $0x3b4] sm:$0xf] %v1788
      %1821 = vst [vmem:[#allocation3 + $0x3d8] sm:$0xf] %v1789
      %1822 = vst [vmem:[#allocation3 + $0x3fc] sm:$0xf] %v1790
      %1823 = vst [vmem:[#allocation3 + $0x420] sm:$0xf] %v1791
      %1824 = vst [vmem:[#allocation3 + $0x444] sm:$0xf] %v1792
      %1825 = vst [vmem:[#allocation3 + $0x468] sm:$0xf] %v1793
      %v1826 = vld [vmem:[%s1761] sm:$0xf]
      %v1827 = vld [vmem:[%s1761 + $0x4] sm:$0xf]
      %v1828 = vld [vmem:[%s1761 + $0x8] sm:$0x1]
      %v1829 = vld [vmem:[%s1761 + $0xc] sm:$0xf]
      %v1830 = vld [vmem:[%s1761 + $0x10] sm:$0xf]
      %v1831 = vld [vmem:[%s1761 + $0x14] sm:$0x1]
      %v1832 = vld [vmem:[%s1761 + $0x18] sm:$0xf]
      %v1833 = vld [vmem:[%s1761 + $0x1c] sm:$0xf]
      %v1834 = vld [vmem:[%s1761 + $0x20] sm:$0x1]
      %v1835 = vld [vmem:[%s1761 + $0x24] sm:$0xf]
      %v1836 = vld [vmem:[%s1761 + $0x28] sm:$0xf]
      %v1837 = vld [vmem:[%s1761 + $0x2c] sm:$0x1]
      %v1838 = vld [vmem:[%s1761 + $0x30] sm:$0xf]
      %v1839 = vld [vmem:[%s1761 + $0x34] sm:$0xf]
      %v1840 = vld [vmem:[%s1761 + $0x38] sm:$0x1]
      %v1841 = vld [vmem:[%s1761 + $0x3c] sm:$0xf]
      %v1842 = vld [vmem:[%s1761 + $0x40] sm:$0xf]
      %v1843 = vld [vmem:[%s1761 + $0x44] sm:$0x1]
      %v1844 = vld [vmem:[%s1761 + $0x48] sm:$0xf]
      %v1845 = vld [vmem:[%s1761 + $0x4c] sm:$0xf]
      %v1846 = vld [vmem:[%s1761 + $0x50] sm:$0x1]
      %v1847 = vld [vmem:[%s1761 + $0x54] sm:$0xf]
      %v1848 = vld [vmem:[%s1761 + $0x58] sm:$0xf]
      %v1849 = vld [vmem:[%s1761 + $0x5c] sm:$0x1]
      %v1850 = vld [vmem:[%s1761 + $0x60] sm:$0xf]
      %v1851 = vld [vmem:[%s1761 + $0x64] sm:$0xf]
      %v1852 = vld [vmem:[%s1761 + $0x68] sm:$0x1]
      %v1853 = vld [vmem:[%s1761 + $0x6c] sm:$0xf]
      %v1854 = vld [vmem:[%s1761 + $0x70] sm:$0xf]
      %v1855 = vld [vmem:[%s1761 + $0x74] sm:$0x1]
      %v1856 = vld [vmem:[%s1761 + $0x78] sm:$0xf]
      %v1857 = vld [vmem:[%s1761 + $0x7c] sm:$0xf]
      %v1858 = vld [vmem:[%s1761 + $0x80] sm:$0x1]
      %v1859 = vld [vmem:[%s1761 + $0x84] sm:$0xf]
      %v1860 = vld [vmem:[%s1761 + $0x88] sm:$0xf]
      %v1861 = vld [vmem:[%s1761 + $0x8c] sm:$0x1]
      %v1862 = vld [vmem:[%s1761 + $0x90] sm:$0xf]
      %v1863 = vld [vmem:[%s1761 + $0x94] sm:$0xf]
      %v1864 = vld [vmem:[%s1761 + $0x98] sm:$0x1]
      %v1865 = vld [vmem:[%s1761 + $0x9c] sm:$0xf]
      %v1866 = vld [vmem:[%s1761 + $0xa0] sm:$0xf]
      %v1867 = vld [vmem:[%s1761 + $0xa4] sm:$0x1]
      %v1868 = vld [vmem:[%s1761 + $0xa8] sm:$0xf]
      %v1869 = vld [vmem:[%s1761 + $0xac] sm:$0xf]
      %v1870 = vld [vmem:[%s1761 + $0xb0] sm:$0x1]
      %v1871 = vld [vmem:[%s1761 + $0xb4] sm:$0xf]
      %v1872 = vld [vmem:[%s1761 + $0xb8] sm:$0xf]
      %v1873 = vld [vmem:[%s1761 + $0xbc] sm:$0x1]
      %v1875 = vshrl.u32 %v1826, 16
      %v1877 = vrot.slane %v1875, 4
      %v1878 = vshll.u32 %v1826, 16
      %v1880 = vrot.slane %v1878, 5
      %v1881 = vor.u32 %v1877, %v1880
      %v1882 = vrot.slane %v1881, 4
      %v1884 = vshll.u32 %v1827, 16
      %v1886 = vrot.slane %v1884, 5
      %v1887 = vsel %vm1034, %v1882, %v1886
      %v1888 = vshrl.u32 %v1827, 16
      %v1890 = vrot.slane %v1888, 4
      %v1891 = vor.u32 %v1890, %v1886
      %v1892 = vrot.slane %v1891, 4
      %v1894 = vshll.u32 %v1828, 16
      %v1896 = vrot.slane %v1894, 5
      %v1897 = vsel %vm1034, %v1892, %v1896
      %v1899 = vshrl.u32 %v1829, 16
      %v1901 = vrot.slane %v1899, 4
      %v1902 = vshll.u32 %v1829, 16
      %v1904 = vrot.slane %v1902, 5
      %v1905 = vor.u32 %v1901, %v1904
      %v1906 = vrot.slane %v1905, 4
      %v1908 = vshll.u32 %v1830, 16
      %v1910 = vrot.slane %v1908, 5
      %v1911 = vsel %vm1034, %v1906, %v1910
      %v1912 = vshrl.u32 %v1830, 16
      %v1914 = vrot.slane %v1912, 4
      %v1915 = vor.u32 %v1914, %v1910
      %v1916 = vrot.slane %v1915, 4
      %v1918 = vshll.u32 %v1831, 16
      %v1920 = vrot.slane %v1918, 5
      %v1921 = vsel %vm1034, %v1916, %v1920
      %v1923 = vshrl.u32 %v1832, 16
      %v1925 = vrot.slane %v1923, 4
      %v1926 = vshll.u32 %v1832, 16
      %v1928 = vrot.slane %v1926, 5
      %v1929 = vor.u32 %v1925, %v1928
      %v1930 = vrot.slane %v1929, 4
      %v1932 = vshll.u32 %v1833, 16
      %v1934 = vrot.slane %v1932, 5
      %v1935 = vsel %vm1034, %v1930, %v1934
      %v1936 = vshrl.u32 %v1833, 16
      %v1938 = vrot.slane %v1936, 4
      %v1939 = vor.u32 %v1938, %v1934
      %v1940 = vrot.slane %v1939, 4
      %v1942 = vshll.u32 %v1834, 16
      %v1944 = vrot.slane %v1942, 5
      %v1945 = vsel %vm1034, %v1940, %v1944
      %v1947 = vshrl.u32 %v1835, 16
      %v1949 = vrot.slane %v1947, 4
      %v1950 = vshll.u32 %v1835, 16
      %v1952 = vrot.slane %v1950, 5
      %v1953 = vor.u32 %v1949, %v1952
      %v1954 = vrot.slane %v1953, 4
      %v1956 = vshll.u32 %v1836, 16
      %v1958 = vrot.slane %v1956, 5
      %v1959 = vsel %vm1034, %v1954, %v1958
      %v1960 = vshrl.u32 %v1836, 16
      %v1962 = vrot.slane %v1960, 4
      %v1963 = vor.u32 %v1962, %v1958
      %v1964 = vrot.slane %v1963, 4
      %v1966 = vshll.u32 %v1837, 16
      %v1968 = vrot.slane %v1966, 5
      %v1969 = vsel %vm1034, %v1964, %v1968
      %v1971 = vshrl.u32 %v1838, 16
      %v1973 = vrot.slane %v1971, 4
      %v1974 = vshll.u32 %v1838, 16
      %v1976 = vrot.slane %v1974, 5
      %v1977 = vor.u32 %v1973, %v1976
      %v1978 = vrot.slane %v1977, 4
      %v1980 = vshll.u32 %v1839, 16
      %v1982 = vrot.slane %v1980, 5
      %v1983 = vsel %vm1034, %v1978, %v1982
      %v1984 = vshrl.u32 %v1839, 16
      %v1986 = vrot.slane %v1984, 4
      %v1987 = vor.u32 %v1986, %v1982
      %v1988 = vrot.slane %v1987, 4
      %v1990 = vshll.u32 %v1840, 16
      %v1992 = vrot.slane %v1990, 5
      %v1993 = vsel %vm1034, %v1988, %v1992
      %v1995 = vshrl.u32 %v1841, 16
      %v1997 = vrot.slane %v1995, 4
      %v1998 = vshll.u32 %v1841, 16
      %v2000 = vrot.slane %v1998, 5
      %v2001 = vor.u32 %v1997, %v2000
      %v2002 = vrot.slane %v2001, 4
      %v2004 = vshll.u32 %v1842, 16
      %v2006 = vrot.slane %v2004, 5
      %v2007 = vsel %vm1034, %v2002, %v2006
      %v2008 = vshrl.u32 %v1842, 16
      %v2010 = vrot.slane %v2008, 4
      %v2011 = vor.u32 %v2010, %v2006
      %v2012 = vrot.slane %v2011, 4
      %v2014 = vshll.u32 %v1843, 16
      %v2016 = vrot.slane %v2014, 5
      %v2017 = vsel %vm1034, %v2012, %v2016
      %v2019 = vshrl.u32 %v1844, 16
      %v2021 = vrot.slane %v2019, 4
      %v2022 = vshll.u32 %v1844, 16
      %v2024 = vrot.slane %v2022, 5
      %v2025 = vor.u32 %v2021, %v2024
      %v2026 = vrot.slane %v2025, 4
      %v2028 = vshll.u32 %v1845, 16
      %v2030 = vrot.slane %v2028, 5
      %v2031 = vsel %vm1034, %v2026, %v2030
      %v2032 = vshrl.u32 %v1845, 16
      %v2034 = vrot.slane %v2032, 4
      %v2035 = vor.u32 %v2034, %v2030
      %v2036 = vrot.slane %v2035, 4
      %v2038 = vshll.u32 %v1846, 16
      %v2040 = vrot.slane %v2038, 5
      %v2041 = vsel %vm1034, %v2036, %v2040
      %v2043 = vshrl.u32 %v1847, 16
      %v2045 = vrot.slane %v2043, 4
      %v2046 = vshll.u32 %v1847, 16
      %v2048 = vrot.slane %v2046, 5
      %v2049 = vor.u32 %v2045, %v2048
      %v2050 = vrot.slane %v2049, 4
      %v2052 = vshll.u32 %v1848, 16
      %v2054 = vrot.slane %v2052, 5
      %v2055 = vsel %vm1034, %v2050, %v2054
      %v2056 = vshrl.u32 %v1848, 16
      %v2058 = vrot.slane %v2056, 4
      %v2059 = vor.u32 %v2058, %v2054
      %v2060 = vrot.slane %v2059, 4
      %v2062 = vshll.u32 %v1849, 16
      %v2064 = vrot.slane %v2062, 5
      %v2065 = vsel %vm1034, %v2060, %v2064
      %v2067 = vshrl.u32 %v1850, 16
      %v2069 = vrot.slane %v2067, 4
      %v2070 = vshll.u32 %v1850, 16
      %v2072 = vrot.slane %v2070, 5
      %v2073 = vor.u32 %v2069, %v2072
      %v2074 = vrot.slane %v2073, 4
      %v2076 = vshll.u32 %v1851, 16
      %v2078 = vrot.slane %v2076, 5
      %v2079 = vsel %vm1034, %v2074, %v2078
      %v2080 = vshrl.u32 %v1851, 16
      %v2082 = vrot.slane %v2080, 4
      %v2083 = vor.u32 %v2082, %v2078
      %v2084 = vrot.slane %v2083, 4
      %v2086 = vshll.u32 %v1852, 16
      %v2088 = vrot.slane %v2086, 5
      %v2089 = vsel %vm1034, %v2084, %v2088
      %v2091 = vshrl.u32 %v1853, 16
      %v2093 = vrot.slane %v2091, 4
      %v2094 = vshll.u32 %v1853, 16
      %v2096 = vrot.slane %v2094, 5
      %v2097 = vor.u32 %v2093, %v2096
      %v2098 = vrot.slane %v2097, 4
      %v2100 = vshll.u32 %v1854, 16
      %v2102 = vrot.slane %v2100, 5
      %v2103 = vsel %vm1034, %v2098, %v2102
      %v2104 = vshrl.u32 %v1854, 16
      %v2106 = vrot.slane %v2104, 4
      %v2107 = vor.u32 %v2106, %v2102
      %v2108 = vrot.slane %v2107, 4
      %v2110 = vshll.u32 %v1855, 16
      %v2112 = vrot.slane %v2110, 5
      %v2113 = vsel %vm1034, %v2108, %v2112
      %v2115 = vshrl.u32 %v1856, 16
      %v2117 = vrot.slane %v2115, 4
      %v2118 = vshll.u32 %v1856, 16
      %v2120 = vrot.slane %v2118, 5
      %v2121 = vor.u32 %v2117, %v2120
      %v2122 = vrot.slane %v2121, 4
      %v2124 = vshll.u32 %v1857, 16
      %v2126 = vrot.slane %v2124, 5
      %v2127 = vsel %vm1034, %v2122, %v2126
      %v2128 = vshrl.u32 %v1857, 16
      %v2130 = vrot.slane %v2128, 4
      %v2131 = vor.u32 %v2130, %v2126
      %v2132 = vrot.slane %v2131, 4
      %v2134 = vshll.u32 %v1858, 16
      %v2136 = vrot.slane %v2134, 5
      %v2137 = vsel %vm1034, %v2132, %v2136
      %v2139 = vshrl.u32 %v1859, 16
      %v2141 = vrot.slane %v2139, 4
      %v2142 = vshll.u32 %v1859, 16
      %v2144 = vrot.slane %v2142, 5
      %v2145 = vor.u32 %v2141, %v2144
      %v2146 = vrot.slane %v2145, 4
      %v2148 = vshll.u32 %v1860, 16
      %v2150 = vrot.slane %v2148, 5
      %v2151 = vsel %vm1034, %v2146, %v2150
      %v2152 = vshrl.u32 %v1860, 16
      %v2154 = vrot.slane %v2152, 4
      %v2155 = vor.u32 %v2154, %v2150
      %v2156 = vrot.slane %v2155, 4
      %v2158 = vshll.u32 %v1861, 16
      %v2160 = vrot.slane %v2158, 5
      %v2161 = vsel %vm1034, %v2156, %v2160
      %v2163 = vshrl.u32 %v1862, 16
      %v2165 = vrot.slane %v2163, 4
      %v2166 = vshll.u32 %v1862, 16
      %v2168 = vrot.slane %v2166, 5
      %v2169 = vor.u32 %v2165, %v2168
      %v2170 = vrot.slane %v2169, 4
      %v2172 = vshll.u32 %v1863, 16
      %v2174 = vrot.slane %v2172, 5
      %v2175 = vsel %vm1034, %v2170, %v2174
      %v2176 = vshrl.u32 %v1863, 16
      %v2178 = vrot.slane %v2176, 4
      %v2179 = vor.u32 %v2178, %v2174
      %v2180 = vrot.slane %v2179, 4
      %v2182 = vshll.u32 %v1864, 16
      %v2184 = vrot.slane %v2182, 5
      %v2185 = vsel %vm1034, %v2180, %v2184
      %v2187 = vshrl.u32 %v1865, 16
      %v2189 = vrot.slane %v2187, 4
      %v2190 = vshll.u32 %v1865, 16
      %v2192 = vrot.slane %v2190, 5
      %v2193 = vor.u32 %v2189, %v2192
      %v2194 = vrot.slane %v2193, 4
      %v2196 = vshll.u32 %v1866, 16
      %v2198 = vrot.slane %v2196, 5
      %v2199 = vsel %vm1034, %v2194, %v2198
      %v2200 = vshrl.u32 %v1866, 16
      %v2202 = vrot.slane %v2200, 4
      %v2203 = vor.u32 %v2202, %v2198
      %v2204 = vrot.slane %v2203, 4
      %v2206 = vshll.u32 %v1867, 16
      %v2208 = vrot.slane %v2206, 5
      %v2209 = vsel %vm1034, %v2204, %v2208
      %v2211 = vshrl.u32 %v1868, 16
      %v2213 = vrot.slane %v2211, 4
      %v2214 = vshll.u32 %v1868, 16
      %v2216 = vrot.slane %v2214, 5
      %v2217 = vor.u32 %v2213, %v2216
      %v2218 = vrot.slane %v2217, 4
      %v2220 = vshll.u32 %v1869, 16
      %v2222 = vrot.slane %v2220, 5
      %v2223 = vsel %vm1034, %v2218, %v2222
      %v2224 = vshrl.u32 %v1869, 16
      %v2226 = vrot.slane %v2224, 4
      %v2227 = vor.u32 %v2226, %v2222
      %v2228 = vrot.slane %v2227, 4
      %v2230 = vshll.u32 %v1870, 16
      %v2232 = vrot.slane %v2230, 5
      %v2233 = vsel %vm1034, %v2228, %v2232
      %v2235 = vshrl.u32 %v1871, 16
      %v2237 = vrot.slane %v2235, 4
      %v2238 = vshll.u32 %v1871, 16
      %v2240 = vrot.slane %v2238, 5
      %v2241 = vor.u32 %v2237, %v2240
      %v2242 = vrot.slane %v2241, 4
      %v2244 = vshll.u32 %v1872, 16
      %v2246 = vrot.slane %v2244, 5
      %v2247 = vsel %vm1034, %v2242, %v2246
      %v2248 = vshrl.u32 %v1872, 16
      %v2250 = vrot.slane %v2248, 4
      %v2251 = vor.u32 %v2250, %v2246
      %v2252 = vrot.slane %v2251, 4
      %v2254 = vshll.u32 %v1873, 16
      %v2256 = vrot.slane %v2254, 5
      %v2257 = vsel %vm1034, %v2252, %v2256
      %2290 = vst [vmem:[#allocation3 + $0x10] sm:$0xf] %v1887
      %2291 = vst [vmem:[#allocation3 + $0x34] sm:$0xf] %v1897
      %2292 = vst [vmem:[#allocation3 + $0x58] sm:$0xf] %v1911
      %2293 = vst [vmem:[#allocation3 + $0x7c] sm:$0xf] %v1921
      %2294 = vst [vmem:[#allocation3 + $0xa0] sm:$0xf] %v1935
      %2295 = vst [vmem:[#allocation3 + $0xc4] sm:$0xf] %v1945
      %2296 = vst [vmem:[#allocation3 + $0xe8] sm:$0xf] %v1959
      %2297 = vst [vmem:[#allocation3 + $0x10c] sm:$0xf] %v1969
      %2298 = vst [vmem:[#allocation3 + $0x130] sm:$0xf] %v1983
      %2299 = vst [vmem:[#allocation3 + $0x154] sm:$0xf] %v1993
      %2300 = vst [vmem:[#allocation3 + $0x178] sm:$0xf] %v2007
      %2301 = vst [vmem:[#allocation3 + $0x19c] sm:$0xf] %v2017
      %2302 = vst [vmem:[#allocation3 + $0x1c0] sm:$0xf] %v2031
      %2303 = vst [vmem:[#allocation3 + $0x1e4] sm:$0xf] %v2041
      %2304 = vst [vmem:[#allocation3 + $0x208] sm:$0xf] %v2055
      %2305 = vst [vmem:[#allocation3 + $0x22c] sm:$0xf] %v2065
      %2306 = vst [vmem:[#allocation3 + $0x250] sm:$0xf] %v2079
      %2307 = vst [vmem:[#allocation3 + $0x274] sm:$0xf] %v2089
      %2308 = vst [vmem:[#allocation3 + $0x298] sm:$0xf] %v2103
      %2309 = vst [vmem:[#allocation3 + $0x2bc] sm:$0xf] %v2113
      %2310 = vst [vmem:[#allocation3 + $0x2e0] sm:$0xf] %v2127
      %2311 = vst [vmem:[#allocation3 + $0x304] sm:$0xf] %v2137
      %2312 = vst [vmem:[#allocation3 + $0x328] sm:$0xf] %v2151
      %2313 = vst [vmem:[#allocation3 + $0x34c] sm:$0xf] %v2161
      %2314 = vst [vmem:[#allocation3 + $0x370] sm:$0xf] %v2175
      %2315 = vst [vmem:[#allocation3 + $0x394] sm:$0xf] %v2185
      %2316 = vst [vmem:[#allocation3 + $0x3b8] sm:$0xf] %v2199
      %2317 = vst [vmem:[#allocation3 + $0x3dc] sm:$0xf] %v2209
      %2318 = vst [vmem:[#allocation3 + $0x400] sm:$0xf] %v2223
      %2319 = vst [vmem:[#allocation3 + $0x424] sm:$0xf] %v2233
      %2320 = vst [vmem:[#allocation3 + $0x448] sm:$0xf] %v2247
      %2321 = vst [vmem:[#allocation3 + $0x46c] sm:$0xf] %v2257
      %v2322 = vld [vmem:[%s1761] sm:$0xe]
      %v2323 = vld [vmem:[%s1761 + $0x4] sm:$0xf]
      %v2324 = vld [vmem:[%s1761 + $0x8] sm:$0x1]
      %v2325 = vld [vmem:[%s1761 + $0xc] sm:$0xe]
      %v2326 = vld [vmem:[%s1761 + $0x10] sm:$0xf]
      %v2327 = vld [vmem:[%s1761 + $0x14] sm:$0x1]
      %v2328 = vld [vmem:[%s1761 + $0x18] sm:$0xe]
      %v2329 = vld [vmem:[%s1761 + $0x1c] sm:$0xf]
      %v2330 = vld [vmem:[%s1761 + $0x20] sm:$0x1]
      %v2331 = vld [vmem:[%s1761 + $0x24] sm:$0xe]
      %v2332 = vld [vmem:[%s1761 + $0x28] sm:$0xf]
      %v2333 = vld [vmem:[%s1761 + $0x2c] sm:$0x1]
      %v2334 = vld [vmem:[%s1761 + $0x30] sm:$0xe]
      %v2335 = vld [vmem:[%s1761 + $0x34] sm:$0xf]
      %v2336 = vld [vmem:[%s1761 + $0x38] sm:$0x1]
      %v2337 = vld [vmem:[%s1761 + $0x3c] sm:$0xe]
      %v2338 = vld [vmem:[%s1761 + $0x40] sm:$0xf]
      %v2339 = vld [vmem:[%s1761 + $0x44] sm:$0x1]
      %v2340 = vld [vmem:[%s1761 + $0x48] sm:$0xe]
      %v2341 = vld [vmem:[%s1761 + $0x4c] sm:$0xf]
      %v2342 = vld [vmem:[%s1761 + $0x50] sm:$0x1]
      %v2343 = vld [vmem:[%s1761 + $0x54] sm:$0xe]
      %v2344 = vld [vmem:[%s1761 + $0x58] sm:$0xf]
      %v2345 = vld [vmem:[%s1761 + $0x5c] sm:$0x1]
      %v2346 = vld [vmem:[%s1761 + $0x60] sm:$0xe]
      %v2347 = vld [vmem:[%s1761 + $0x64] sm:$0xf]
      %v2348 = vld [vmem:[%s1761 + $0x68] sm:$0x1]
      %v2349 = vld [vmem:[%s1761 + $0x6c] sm:$0xe]
      %v2350 = vld [vmem:[%s1761 + $0x70] sm:$0xf]
      %v2351 = vld [vmem:[%s1761 + $0x74] sm:$0x1]
      %v2352 = vld [vmem:[%s1761 + $0x78] sm:$0xe]
      %v2353 = vld [vmem:[%s1761 + $0x7c] sm:$0xf]
      %v2354 = vld [vmem:[%s1761 + $0x80] sm:$0x1]
      %v2355 = vld [vmem:[%s1761 + $0x84] sm:$0xe]
      %v2356 = vld [vmem:[%s1761 + $0x88] sm:$0xf]
      %v2357 = vld [vmem:[%s1761 + $0x8c] sm:$0x1]
      %v2358 = vld [vmem:[%s1761 + $0x90] sm:$0xe]
      %v2359 = vld [vmem:[%s1761 + $0x94] sm:$0xf]
      %v2360 = vld [vmem:[%s1761 + $0x98] sm:$0x1]
      %v2361 = vld [vmem:[%s1761 + $0x9c] sm:$0xe]
      %v2362 = vld [vmem:[%s1761 + $0xa0] sm:$0xf]
      %v2363 = vld [vmem:[%s1761 + $0xa4] sm:$0x1]
      %v2364 = vld [vmem:[%s1761 + $0xa8] sm:$0xe]
      %v2365 = vld [vmem:[%s1761 + $0xac] sm:$0xf]
      %v2366 = vld [vmem:[%s1761 + $0xb0] sm:$0x1]
      %v2367 = vld [vmem:[%s1761 + $0xb4] sm:$0xe]
      %v2368 = vld [vmem:[%s1761 + $0xb8] sm:$0xf]
      %v2369 = vld [vmem:[%s1761 + $0xbc] sm:$0x1]
      %v2418 = vrot.slane %v2322, 5
      %v2419 = vrot.slane %v2418, 4
      %v2420 = vrot.slane %v2323, 5
      %v2421 = vsel %vm1581, %v2419, %v2420
      %v2422 = vrot.slane %v2420, 4
      %v2423 = vrot.slane %v2324, 5
      %v2424 = vsel %vm1581, %v2422, %v2423
      %v2425 = vrot.slane %v2325, 5
      %v2426 = vrot.slane %v2425, 4
      %v2427 = vrot.slane %v2326, 5
      %v2428 = vsel %vm1581, %v2426, %v2427
      %v2429 = vrot.slane %v2427, 4
      %v2430 = vrot.slane %v2327, 5
      %v2431 = vsel %vm1581, %v2429, %v2430
      %v2432 = vrot.slane %v2328, 5
      %v2433 = vrot.slane %v2432, 4
      %v2434 = vrot.slane %v2329, 5
      %v2435 = vsel %vm1581, %v2433, %v2434
      %v2436 = vrot.slane %v2434, 4
      %v2437 = vrot.slane %v2330, 5
      %v2438 = vsel %vm1581, %v2436, %v2437
      %v2439 = vrot.slane %v2331, 5
      %v2440 = vrot.slane %v2439, 4
      %v2441 = vrot.slane %v2332, 5
      %v2442 = vsel %vm1581, %v2440, %v2441
      %v2443 = vrot.slane %v2441, 4
      %v2444 = vrot.slane %v2333, 5
      %v2445 = vsel %vm1581, %v2443, %v2444
      %v2446 = vrot.slane %v2334, 5
      %v2447 = vrot.slane %v2446, 4
      %v2448 = vrot.slane %v2335, 5
      %v2449 = vsel %vm1581, %v2447, %v2448
      %v2450 = vrot.slane %v2448, 4
      %v2451 = vrot.slane %v2336, 5
      %v2452 = vsel %vm1581, %v2450, %v2451
      %v2453 = vrot.slane %v2337, 5
      %v2454 = vrot.slane %v2453, 4
      %v2455 = vrot.slane %v2338, 5
      %v2456 = vsel %vm1581, %v2454, %v2455
      %v2457 = vrot.slane %v2455, 4
      %v2458 = vrot.slane %v2339, 5
      %v2459 = vsel %vm1581, %v2457, %v2458
      %v2460 = vrot.slane %v2340, 5
      %v2461 = vrot.slane %v2460, 4
      %v2462 = vrot.slane %v2341, 5
      %v2463 = vsel %vm1581, %v2461, %v2462
      %v2464 = vrot.slane %v2462, 4
      %v2465 = vrot.slane %v2342, 5
      %v2466 = vsel %vm1581, %v2464, %v2465
      %v2467 = vrot.slane %v2343, 5
      %v2468 = vrot.slane %v2467, 4
      %v2469 = vrot.slane %v2344, 5
      %v2470 = vsel %vm1581, %v2468, %v2469
      %v2471 = vrot.slane %v2469, 4
      %v2472 = vrot.slane %v2345, 5
      %v2473 = vsel %vm1581, %v2471, %v2472
      %v2474 = vrot.slane %v2346, 5
      %v2475 = vrot.slane %v2474, 4
      %v2476 = vrot.slane %v2347, 5
      %v2477 = vsel %vm1581, %v2475, %v2476
      %v2478 = vrot.slane %v2476, 4
      %v2479 = vrot.slane %v2348, 5
      %v2480 = vsel %vm1581, %v2478, %v2479
      %v2481 = vrot.slane %v2349, 5
      %v2482 = vrot.slane %v2481, 4
      %v2483 = vrot.slane %v2350, 5
      %v2484 = vsel %vm1581, %v2482, %v2483
      %v2485 = vrot.slane %v2483, 4
      %v2486 = vrot.slane %v2351, 5
      %v2487 = vsel %vm1581, %v2485, %v2486
      %v2488 = vrot.slane %v2352, 5
      %v2489 = vrot.slane %v2488, 4
      %v2490 = vrot.slane %v2353, 5
      %v2491 = vsel %vm1581, %v2489, %v2490
      %v2492 = vrot.slane %v2490, 4
      %v2493 = vrot.slane %v2354, 5
      %v2494 = vsel %vm1581, %v2492, %v2493
      %v2495 = vrot.slane %v2355, 5
      %v2496 = vrot.slane %v2495, 4
      %v2497 = vrot.slane %v2356, 5
      %v2498 = vsel %vm1581, %v2496, %v2497
      %v2499 = vrot.slane %v2497, 4
      %v2500 = vrot.slane %v2357, 5
      %v2501 = vsel %vm1581, %v2499, %v2500
      %v2502 = vrot.slane %v2358, 5
      %v2503 = vrot.slane %v2502, 4
      %v2504 = vrot.slane %v2359, 5
      %v2505 = vsel %vm1581, %v2503, %v2504
      %v2506 = vrot.slane %v2504, 4
      %v2507 = vrot.slane %v2360, 5
      %v2508 = vsel %vm1581, %v2506, %v2507
      %v2509 = vrot.slane %v2361, 5
      %v2510 = vrot.slane %v2509, 4
      %v2511 = vrot.slane %v2362, 5
      %v2512 = vsel %vm1581, %v2510, %v2511
      %v2513 = vrot.slane %v2511, 4
      %v2514 = vrot.slane %v2363, 5
      %v2515 = vsel %vm1581, %v2513, %v2514
      %v2516 = vrot.slane %v2364, 5
      %v2517 = vrot.slane %v2516, 4
      %v2518 = vrot.slane %v2365, 5
      %v2519 = vsel %vm1581, %v2517, %v2518
      %v2520 = vrot.slane %v2518, 4
      %v2521 = vrot.slane %v2366, 5
      %v2522 = vsel %vm1581, %v2520, %v2521
      %v2523 = vrot.slane %v2367, 5
      %v2524 = vrot.slane %v2523, 4
      %v2525 = vrot.slane %v2368, 5
      %v2526 = vsel %vm1581, %v2524, %v2525
      %v2527 = vrot.slane %v2525, 4
      %v2528 = vrot.slane %v2369, 5
      %v2529 = vsel %vm1581, %v2527, %v2528
      %2562 = vst [vmem:[#allocation3 + $0x14] sm:$0xf] %v2421
      %2563 = vst [vmem:[#allocation3 + $0x38] sm:$0xf] %v2424
      %2564 = vst [vmem:[#allocation3 + $0x5c] sm:$0xf] %v2428
      %2565 = vst [vmem:[#allocation3 + $0x80] sm:$0xf] %v2431
      %2566 = vst [vmem:[#allocation3 + $0xa4] sm:$0xf] %v2435
      %2567 = vst [vmem:[#allocation3 + $0xc8] sm:$0xf] %v2438
      %2568 = vst [vmem:[#allocation3 + $0xec] sm:$0xf] %v2442
      %2569 = vst [vmem:[#allocation3 + $0x110] sm:$0xf] %v2445
      %2570 = vst [vmem:[#allocation3 + $0x134] sm:$0xf] %v2449
      %2571 = vst [vmem:[#allocation3 + $0x158] sm:$0xf] %v2452
      %2572 = vst [vmem:[#allocation3 + $0x17c] sm:$0xf] %v2456
      %2573 = vst [vmem:[#allocation3 + $0x1a0] sm:$0xf] %v2459
      %2574 = vst [vmem:[#allocation3 + $0x1c4] sm:$0xf] %v2463
      %2575 = vst [vmem:[#allocation3 + $0x1e8] sm:$0xf] %v2466
      %2576 = vst [vmem:[#allocation3 + $0x20c] sm:$0xf] %v2470
      %2577 = vst [vmem:[#allocation3 + $0x230] sm:$0xf] %v2473
      %2578 = vst [vmem:[#allocation3 + $0x254] sm:$0xf] %v2477
      %2579 = vst [vmem:[#allocation3 + $0x278] sm:$0xf] %v2480
      %2580 = vst [vmem:[#allocation3 + $0x29c] sm:$0xf] %v2484
      %2581 = vst [vmem:[#allocation3 + $0x2c0] sm:$0xf] %v2487
      %2582 = vst [vmem:[#allocation3 + $0x2e4] sm:$0xf] %v2491
      %2583 = vst [vmem:[#allocation3 + $0x308] sm:$0xf] %v2494
      %2584 = vst [vmem:[#allocation3 + $0x32c] sm:$0xf] %v2498
      %2585 = vst [vmem:[#allocation3 + $0x350] sm:$0xf] %v2501
      %2586 = vst [vmem:[#allocation3 + $0x374] sm:$0xf] %v2505
      %2587 = vst [vmem:[#allocation3 + $0x398] sm:$0xf] %v2508
      %2588 = vst [vmem:[#allocation3 + $0x3bc] sm:$0xf] %v2512
      %2589 = vst [vmem:[#allocation3 + $0x3e0] sm:$0xf] %v2515
      %2590 = vst [vmem:[#allocation3 + $0x404] sm:$0xf] %v2519
      %2591 = vst [vmem:[#allocation3 + $0x428] sm:$0xf] %v2522
      %2592 = vst [vmem:[#allocation3 + $0x44c] sm:$0xf] %v2526
      %2593 = vst [vmem:[#allocation3 + $0x470] sm:$0xf] %v2529
      %s2594 = sadd.s32 %s916, 2
      %s2595 = smul.u32 %s2594, 3
      %s2596 = smul.addr %s2595, 4
      %s2597 = scalar_lea.vmem [#allocation2], %s2596
      %v2598 = vld [vmem:[%s2597] sm:$0xf]
      %v2599 = vld [vmem:[%s2597 + $0x4] sm:$0xf]
      %v2600 = vld [vmem:[%s2597 + $0xc] sm:$0xf]
      %v2601 = vld [vmem:[%s2597 + $0x10] sm:$0xf]
      %v2602 = vld [vmem:[%s2597 + $0x18] sm:$0xf]
      %v2603 = vld [vmem:[%s2597 + $0x1c] sm:$0xf]
      %v2604 = vld [vmem:[%s2597 + $0x24] sm:$0xf]
      %v2605 = vld [vmem:[%s2597 + $0x28] sm:$0xf]
      %v2606 = vld [vmem:[%s2597 + $0x30] sm:$0xf]
      %v2607 = vld [vmem:[%s2597 + $0x34] sm:$0xf]
      %v2608 = vld [vmem:[%s2597 + $0x3c] sm:$0xf]
      %v2609 = vld [vmem:[%s2597 + $0x40] sm:$0xf]
      %v2610 = vld [vmem:[%s2597 + $0x48] sm:$0xf]
      %v2611 = vld [vmem:[%s2597 + $0x4c] sm:$0xf]
      %v2612 = vld [vmem:[%s2597 + $0x54] sm:$0xf]
      %v2613 = vld [vmem:[%s2597 + $0x58] sm:$0xf]
      %v2614 = vld [vmem:[%s2597 + $0x60] sm:$0xf]
      %v2615 = vld [vmem:[%s2597 + $0x64] sm:$0xf]
      %v2616 = vld [vmem:[%s2597 + $0x6c] sm:$0xf]
      %v2617 = vld [vmem:[%s2597 + $0x70] sm:$0xf]
      %v2618 = vld [vmem:[%s2597 + $0x78] sm:$0xf]
      %v2619 = vld [vmem:[%s2597 + $0x7c] sm:$0xf]
      %v2620 = vld [vmem:[%s2597 + $0x84] sm:$0xf]
      %v2621 = vld [vmem:[%s2597 + $0x88] sm:$0xf]
      %v2622 = vld [vmem:[%s2597 + $0x90] sm:$0xf]
      %v2623 = vld [vmem:[%s2597 + $0x94] sm:$0xf]
      %v2624 = vld [vmem:[%s2597 + $0x9c] sm:$0xf]
      %v2625 = vld [vmem:[%s2597 + $0xa0] sm:$0xf]
      %v2626 = vld [vmem:[%s2597 + $0xa8] sm:$0xf]
      %v2627 = vld [vmem:[%s2597 + $0xac] sm:$0xf]
      %v2628 = vld [vmem:[%s2597 + $0xb4] sm:$0xf]
      %v2629 = vld [vmem:[%s2597 + $0xb8] sm:$0xf]
      %2630 = vst [vmem:[#allocation3 + $0x18] sm:$0xf] %v2598
      %2631 = vst [vmem:[#allocation3 + $0x3c] sm:$0xf] %v2599
      %2632 = vst [vmem:[#allocation3 + $0x60] sm:$0xf] %v2600
      %2633 = vst [vmem:[#allocation3 + $0x84] sm:$0xf] %v2601
      %2634 = vst [vmem:[#allocation3 + $0xa8] sm:$0xf] %v2602
      %2635 = vst [vmem:[#allocation3 + $0xcc] sm:$0xf] %v2603
      %2636 = vst [vmem:[#allocation3 + $0xf0] sm:$0xf] %v2604
      %2637 = vst [vmem:[#allocation3 + $0x114] sm:$0xf] %v2605
      %2638 = vst [vmem:[#allocation3 + $0x138] sm:$0xf] %v2606
      %2639 = vst [vmem:[#allocation3 + $0x15c] sm:$0xf] %v2607
      %2640 = vst [vmem:[#allocation3 + $0x180] sm:$0xf] %v2608
      %2641 = vst [vmem:[#allocation3 + $0x1a4] sm:$0xf] %v2609
      %2642 = vst [vmem:[#allocation3 + $0x1c8] sm:$0xf] %v2610
      %2643 = vst [vmem:[#allocation3 + $0x1ec] sm:$0xf] %v2611
      %2644 = vst [vmem:[#allocation3 + $0x210] sm:$0xf] %v2612
      %2645 = vst [vmem:[#allocation3 + $0x234] sm:$0xf] %v2613
      %2646 = vst [vmem:[#allocation3 + $0x258] sm:$0xf] %v2614
      %2647 = vst [vmem:[#allocation3 + $0x27c] sm:$0xf] %v2615
      %2648 = vst [vmem:[#allocation3 + $0x2a0] sm:$0xf] %v2616
      %2649 = vst [vmem:[#allocation3 + $0x2c4] sm:$0xf] %v2617
      %2650 = vst [vmem:[#allocation3 + $0x2e8] sm:$0xf] %v2618
      %2651 = vst [vmem:[#allocation3 + $0x30c] sm:$0xf] %v2619
      %2652 = vst [vmem:[#allocation3 + $0x330] sm:$0xf] %v2620
      %2653 = vst [vmem:[#allocation3 + $0x354] sm:$0xf] %v2621
      %2654 = vst [vmem:[#allocation3 + $0x378] sm:$0xf] %v2622
      %2655 = vst [vmem:[#allocation3 + $0x39c] sm:$0xf] %v2623
      %2656 = vst [vmem:[#allocation3 + $0x3c0] sm:$0xf] %v2624
      %2657 = vst [vmem:[#allocation3 + $0x3e4] sm:$0xf] %v2625
      %2658 = vst [vmem:[#allocation3 + $0x408] sm:$0xf] %v2626
      %2659 = vst [vmem:[#allocation3 + $0x42c] sm:$0xf] %v2627
      %2660 = vst [vmem:[#allocation3 + $0x450] sm:$0xf] %v2628
      %2661 = vst [vmem:[#allocation3 + $0x474] sm:$0xf] %v2629
      %v2662 = vld [vmem:[%s2597] sm:$0xf]
      %v2663 = vld [vmem:[%s2597 + $0x4] sm:$0xf]
      %v2664 = vld [vmem:[%s2597 + $0x8] sm:$0x1]
      %v2665 = vld [vmem:[%s2597 + $0xc] sm:$0xf]
      %v2666 = vld [vmem:[%s2597 + $0x10] sm:$0xf]
      %v2667 = vld [vmem:[%s2597 + $0x14] sm:$0x1]
      %v2668 = vld [vmem:[%s2597 + $0x18] sm:$0xf]
      %v2669 = vld [vmem:[%s2597 + $0x1c] sm:$0xf]
      %v2670 = vld [vmem:[%s2597 + $0x20] sm:$0x1]
      %v2671 = vld [vmem:[%s2597 + $0x24] sm:$0xf]
      %v2672 = vld [vmem:[%s2597 + $0x28] sm:$0xf]
      %v2673 = vld [vmem:[%s2597 + $0x2c] sm:$0x1]
      %v2674 = vld [vmem:[%s2597 + $0x30] sm:$0xf]
      %v2675 = vld [vmem:[%s2597 + $0x34] sm:$0xf]
      %v2676 = vld [vmem:[%s2597 + $0x38] sm:$0x1]
      %v2677 = vld [vmem:[%s2597 + $0x3c] sm:$0xf]
      %v2678 = vld [vmem:[%s2597 + $0x40] sm:$0xf]
      %v2679 = vld [vmem:[%s2597 + $0x44] sm:$0x1]
      %v2680 = vld [vmem:[%s2597 + $0x48] sm:$0xf]
      %v2681 = vld [vmem:[%s2597 + $0x4c] sm:$0xf]
      %v2682 = vld [vmem:[%s2597 + $0x50] sm:$0x1]
      %v2683 = vld [vmem:[%s2597 + $0x54] sm:$0xf]
      %v2684 = vld [vmem:[%s2597 + $0x58] sm:$0xf]
      %v2685 = vld [vmem:[%s2597 + $0x5c] sm:$0x1]
      %v2686 = vld [vmem:[%s2597 + $0x60] sm:$0xf]
      %v2687 = vld [vmem:[%s2597 + $0x64] sm:$0xf]
      %v2688 = vld [vmem:[%s2597 + $0x68] sm:$0x1]
      %v2689 = vld [vmem:[%s2597 + $0x6c] sm:$0xf]
      %v2690 = vld [vmem:[%s2597 + $0x70] sm:$0xf]
      %v2691 = vld [vmem:[%s2597 + $0x74] sm:$0x1]
      %v2692 = vld [vmem:[%s2597 + $0x78] sm:$0xf]
      %v2693 = vld [vmem:[%s2597 + $0x7c] sm:$0xf]
      %v2694 = vld [vmem:[%s2597 + $0x80] sm:$0x1]
      %v2695 = vld [vmem:[%s2597 + $0x84] sm:$0xf]
      %v2696 = vld [vmem:[%s2597 + $0x88] sm:$0xf]
      %v2697 = vld [vmem:[%s2597 + $0x8c] sm:$0x1]
      %v2698 = vld [vmem:[%s2597 + $0x90] sm:$0xf]
      %v2699 = vld [vmem:[%s2597 + $0x94] sm:$0xf]
      %v2700 = vld [vmem:[%s2597 + $0x98] sm:$0x1]
      %v2701 = vld [vmem:[%s2597 + $0x9c] sm:$0xf]
      %v2702 = vld [vmem:[%s2597 + $0xa0] sm:$0xf]
      %v2703 = vld [vmem:[%s2597 + $0xa4] sm:$0x1]
      %v2704 = vld [vmem:[%s2597 + $0xa8] sm:$0xf]
      %v2705 = vld [vmem:[%s2597 + $0xac] sm:$0xf]
      %v2706 = vld [vmem:[%s2597 + $0xb0] sm:$0x1]
      %v2707 = vld [vmem:[%s2597 + $0xb4] sm:$0xf]
      %v2708 = vld [vmem:[%s2597 + $0xb8] sm:$0xf]
      %v2709 = vld [vmem:[%s2597 + $0xbc] sm:$0x1]
      %v2711 = vshrl.u32 %v2662, 16
      %v2713 = vrot.slane %v2711, 4
      %v2714 = vshll.u32 %v2662, 16
      %v2716 = vrot.slane %v2714, 5
      %v2717 = vor.u32 %v2713, %v2716
      %v2718 = vrot.slane %v2717, 4
      %v2720 = vshll.u32 %v2663, 16
      %v2722 = vrot.slane %v2720, 5
      %v2723 = vsel %vm1034, %v2718, %v2722
      %v2724 = vshrl.u32 %v2663, 16
      %v2726 = vrot.slane %v2724, 4
      %v2727 = vor.u32 %v2726, %v2722
      %v2728 = vrot.slane %v2727, 4
      %v2730 = vshll.u32 %v2664, 16
      %v2732 = vrot.slane %v2730, 5
      %v2733 = vsel %vm1034, %v2728, %v2732
      %v2735 = vshrl.u32 %v2665, 16
      %v2737 = vrot.slane %v2735, 4
      %v2738 = vshll.u32 %v2665, 16
      %v2740 = vrot.slane %v2738, 5
      %v2741 = vor.u32 %v2737, %v2740
      %v2742 = vrot.slane %v2741, 4
      %v2744 = vshll.u32 %v2666, 16
      %v2746 = vrot.slane %v2744, 5
      %v2747 = vsel %vm1034, %v2742, %v2746
      %v2748 = vshrl.u32 %v2666, 16
      %v2750 = vrot.slane %v2748, 4
      %v2751 = vor.u32 %v2750, %v2746
      %v2752 = vrot.slane %v2751, 4
      %v2754 = vshll.u32 %v2667, 16
      %v2756 = vrot.slane %v2754, 5
      %v2757 = vsel %vm1034, %v2752, %v2756
      %v2759 = vshrl.u32 %v2668, 16
      %v2761 = vrot.slane %v2759, 4
      %v2762 = vshll.u32 %v2668, 16
      %v2764 = vrot.slane %v2762, 5
      %v2765 = vor.u32 %v2761, %v2764
      %v2766 = vrot.slane %v2765, 4
      %v2768 = vshll.u32 %v2669, 16
      %v2770 = vrot.slane %v2768, 5
      %v2771 = vsel %vm1034, %v2766, %v2770
      %v2772 = vshrl.u32 %v2669, 16
      %v2774 = vrot.slane %v2772, 4
      %v2775 = vor.u32 %v2774, %v2770
      %v2776 = vrot.slane %v2775, 4
      %v2778 = vshll.u32 %v2670, 16
      %v2780 = vrot.slane %v2778, 5
      %v2781 = vsel %vm1034, %v2776, %v2780
      %v2783 = vshrl.u32 %v2671, 16
      %v2785 = vrot.slane %v2783, 4
      %v2786 = vshll.u32 %v2671, 16
      %v2788 = vrot.slane %v2786, 5
      %v2789 = vor.u32 %v2785, %v2788
      %v2790 = vrot.slane %v2789, 4
      %v2792 = vshll.u32 %v2672, 16
      %v2794 = vrot.slane %v2792, 5
      %v2795 = vsel %vm1034, %v2790, %v2794
      %v2796 = vshrl.u32 %v2672, 16
      %v2798 = vrot.slane %v2796, 4
      %v2799 = vor.u32 %v2798, %v2794
      %v2800 = vrot.slane %v2799, 4
      %v2802 = vshll.u32 %v2673, 16
      %v2804 = vrot.slane %v2802, 5
      %v2805 = vsel %vm1034, %v2800, %v2804
      %v2807 = vshrl.u32 %v2674, 16
      %v2809 = vrot.slane %v2807, 4
      %v2810 = vshll.u32 %v2674, 16
      %v2812 = vrot.slane %v2810, 5
      %v2813 = vor.u32 %v2809, %v2812
      %v2814 = vrot.slane %v2813, 4
      %v2816 = vshll.u32 %v2675, 16
      %v2818 = vrot.slane %v2816, 5
      %v2819 = vsel %vm1034, %v2814, %v2818
      %v2820 = vshrl.u32 %v2675, 16
      %v2822 = vrot.slane %v2820, 4
      %v2823 = vor.u32 %v2822, %v2818
      %v2824 = vrot.slane %v2823, 4
      %v2826 = vshll.u32 %v2676, 16
      %v2828 = vrot.slane %v2826, 5
      %v2829 = vsel %vm1034, %v2824, %v2828
      %v2831 = vshrl.u32 %v2677, 16
      %v2833 = vrot.slane %v2831, 4
      %v2834 = vshll.u32 %v2677, 16
      %v2836 = vrot.slane %v2834, 5
      %v2837 = vor.u32 %v2833, %v2836
      %v2838 = vrot.slane %v2837, 4
      %v2840 = vshll.u32 %v2678, 16
      %v2842 = vrot.slane %v2840, 5
      %v2843 = vsel %vm1034, %v2838, %v2842
      %v2844 = vshrl.u32 %v2678, 16
      %v2846 = vrot.slane %v2844, 4
      %v2847 = vor.u32 %v2846, %v2842
      %v2848 = vrot.slane %v2847, 4
      %v2850 = vshll.u32 %v2679, 16
      %v2852 = vrot.slane %v2850, 5
      %v2853 = vsel %vm1034, %v2848, %v2852
      %v2855 = vshrl.u32 %v2680, 16
      %v2857 = vrot.slane %v2855, 4
      %v2858 = vshll.u32 %v2680, 16
      %v2860 = vrot.slane %v2858, 5
      %v2861 = vor.u32 %v2857, %v2860
      %v2862 = vrot.slane %v2861, 4
      %v2864 = vshll.u32 %v2681, 16
      %v2866 = vrot.slane %v2864, 5
      %v2867 = vsel %vm1034, %v2862, %v2866
      %v2868 = vshrl.u32 %v2681, 16
      %v2870 = vrot.slane %v2868, 4
      %v2871 = vor.u32 %v2870, %v2866
      %v2872 = vrot.slane %v2871, 4
      %v2874 = vshll.u32 %v2682, 16
      %v2876 = vrot.slane %v2874, 5
      %v2877 = vsel %vm1034, %v2872, %v2876
      %v2879 = vshrl.u32 %v2683, 16
      %v2881 = vrot.slane %v2879, 4
      %v2882 = vshll.u32 %v2683, 16
      %v2884 = vrot.slane %v2882, 5
      %v2885 = vor.u32 %v2881, %v2884
      %v2886 = vrot.slane %v2885, 4
      %v2888 = vshll.u32 %v2684, 16
      %v2890 = vrot.slane %v2888, 5
      %v2891 = vsel %vm1034, %v2886, %v2890
      %v2892 = vshrl.u32 %v2684, 16
      %v2894 = vrot.slane %v2892, 4
      %v2895 = vor.u32 %v2894, %v2890
      %v2896 = vrot.slane %v2895, 4
      %v2898 = vshll.u32 %v2685, 16
      %v2900 = vrot.slane %v2898, 5
      %v2901 = vsel %vm1034, %v2896, %v2900
      %v2903 = vshrl.u32 %v2686, 16
      %v2905 = vrot.slane %v2903, 4
      %v2906 = vshll.u32 %v2686, 16
      %v2908 = vrot.slane %v2906, 5
      %v2909 = vor.u32 %v2905, %v2908
      %v2910 = vrot.slane %v2909, 4
      %v2912 = vshll.u32 %v2687, 16
      %v2914 = vrot.slane %v2912, 5
      %v2915 = vsel %vm1034, %v2910, %v2914
      %v2916 = vshrl.u32 %v2687, 16
      %v2918 = vrot.slane %v2916, 4
      %v2919 = vor.u32 %v2918, %v2914
      %v2920 = vrot.slane %v2919, 4
      %v2922 = vshll.u32 %v2688, 16
      %v2924 = vrot.slane %v2922, 5
      %v2925 = vsel %vm1034, %v2920, %v2924
      %v2927 = vshrl.u32 %v2689, 16
      %v2929 = vrot.slane %v2927, 4
      %v2930 = vshll.u32 %v2689, 16
      %v2932 = vrot.slane %v2930, 5
      %v2933 = vor.u32 %v2929, %v2932
      %v2934 = vrot.slane %v2933, 4
      %v2936 = vshll.u32 %v2690, 16
      %v2938 = vrot.slane %v2936, 5
      %v2939 = vsel %vm1034, %v2934, %v2938
      %v2940 = vshrl.u32 %v2690, 16
      %v2942 = vrot.slane %v2940, 4
      %v2943 = vor.u32 %v2942, %v2938
      %v2944 = vrot.slane %v2943, 4
      %v2946 = vshll.u32 %v2691, 16
      %v2948 = vrot.slane %v2946, 5
      %v2949 = vsel %vm1034, %v2944, %v2948
      %v2951 = vshrl.u32 %v2692, 16
      %v2953 = vrot.slane %v2951, 4
      %v2954 = vshll.u32 %v2692, 16
      %v2956 = vrot.slane %v2954, 5
      %v2957 = vor.u32 %v2953, %v2956
      %v2958 = vrot.slane %v2957, 4
      %v2960 = vshll.u32 %v2693, 16
      %v2962 = vrot.slane %v2960, 5
      %v2963 = vsel %vm1034, %v2958, %v2962
      %v2964 = vshrl.u32 %v2693, 16
      %v2966 = vrot.slane %v2964, 4
      %v2967 = vor.u32 %v2966, %v2962
      %v2968 = vrot.slane %v2967, 4
      %v2970 = vshll.u32 %v2694, 16
      %v2972 = vrot.slane %v2970, 5
      %v2973 = vsel %vm1034, %v2968, %v2972
      %v2975 = vshrl.u32 %v2695, 16
      %v2977 = vrot.slane %v2975, 4
      %v2978 = vshll.u32 %v2695, 16
      %v2980 = vrot.slane %v2978, 5
      %v2981 = vor.u32 %v2977, %v2980
      %v2982 = vrot.slane %v2981, 4
      %v2984 = vshll.u32 %v2696, 16
      %v2986 = vrot.slane %v2984, 5
      %v2987 = vsel %vm1034, %v2982, %v2986
      %v2988 = vshrl.u32 %v2696, 16
      %v2990 = vrot.slane %v2988, 4
      %v2991 = vor.u32 %v2990, %v2986
      %v2992 = vrot.slane %v2991, 4
      %v2994 = vshll.u32 %v2697, 16
      %v2996 = vrot.slane %v2994, 5
      %v2997 = vsel %vm1034, %v2992, %v2996
      %v2999 = vshrl.u32 %v2698, 16
      %v3001 = vrot.slane %v2999, 4
      %v3002 = vshll.u32 %v2698, 16
      %v3004 = vrot.slane %v3002, 5
      %v3005 = vor.u32 %v3001, %v3004
      %v3006 = vrot.slane %v3005, 4
      %v3008 = vshll.u32 %v2699, 16
      %v3010 = vrot.slane %v3008, 5
      %v3011 = vsel %vm1034, %v3006, %v3010
      %v3012 = vshrl.u32 %v2699, 16
      %v3014 = vrot.slane %v3012, 4
      %v3015 = vor.u32 %v3014, %v3010
      %v3016 = vrot.slane %v3015, 4
      %v3018 = vshll.u32 %v2700, 16
      %v3020 = vrot.slane %v3018, 5
      %v3021 = vsel %vm1034, %v3016, %v3020
      %v3023 = vshrl.u32 %v2701, 16
      %v3025 = vrot.slane %v3023, 4
      %v3026 = vshll.u32 %v2701, 16
      %v3028 = vrot.slane %v3026, 5
      %v3029 = vor.u32 %v3025, %v3028
      %v3030 = vrot.slane %v3029, 4
      %v3032 = vshll.u32 %v2702, 16
      %v3034 = vrot.slane %v3032, 5
      %v3035 = vsel %vm1034, %v3030, %v3034
      %v3036 = vshrl.u32 %v2702, 16
      %v3038 = vrot.slane %v3036, 4
      %v3039 = vor.u32 %v3038, %v3034
      %v3040 = vrot.slane %v3039, 4
      %v3042 = vshll.u32 %v2703, 16
      %v3044 = vrot.slane %v3042, 5
      %v3045 = vsel %vm1034, %v3040, %v3044
      %v3047 = vshrl.u32 %v2704, 16
      %v3049 = vrot.slane %v3047, 4
      %v3050 = vshll.u32 %v2704, 16
      %v3052 = vrot.slane %v3050, 5
      %v3053 = vor.u32 %v3049, %v3052
      %v3054 = vrot.slane %v3053, 4
      %v3056 = vshll.u32 %v2705, 16
      %v3058 = vrot.slane %v3056, 5
      %v3059 = vsel %vm1034, %v3054, %v3058
      %v3060 = vshrl.u32 %v2705, 16
      %v3062 = vrot.slane %v3060, 4
      %v3063 = vor.u32 %v3062, %v3058
      %v3064 = vrot.slane %v3063, 4
      %v3066 = vshll.u32 %v2706, 16
      %v3068 = vrot.slane %v3066, 5
      %v3069 = vsel %vm1034, %v3064, %v3068
      %v3071 = vshrl.u32 %v2707, 16
      %v3073 = vrot.slane %v3071, 4
      %v3074 = vshll.u32 %v2707, 16
      %v3076 = vrot.slane %v3074, 5
      %v3077 = vor.u32 %v3073, %v3076
      %v3078 = vrot.slane %v3077, 4
      %v3080 = vshll.u32 %v2708, 16
      %v3082 = vrot.slane %v3080, 5
      %v3083 = vsel %vm1034, %v3078, %v3082
      %v3084 = vshrl.u32 %v2708, 16
      %v3086 = vrot.slane %v3084, 4
      %v3087 = vor.u32 %v3086, %v3082
      %v3088 = vrot.slane %v3087, 4
      %v3090 = vshll.u32 %v2709, 16
      %v3092 = vrot.slane %v3090, 5
      %v3093 = vsel %vm1034, %v3088, %v3092
      %3126 = vst [vmem:[#allocation3 + $0x1c] sm:$0xf] %v2723
      %3127 = vst [vmem:[#allocation3 + $0x40] sm:$0xf] %v2733
      %3128 = vst [vmem:[#allocation3 + $0x64] sm:$0xf] %v2747
      %3129 = vst [vmem:[#allocation3 + $0x88] sm:$0xf] %v2757
      %3130 = vst [vmem:[#allocation3 + $0xac] sm:$0xf] %v2771
      %3131 = vst [vmem:[#allocation3 + $0xd0] sm:$0xf] %v2781
      %3132 = vst [vmem:[#allocation3 + $0xf4] sm:$0xf] %v2795
      %3133 = vst [vmem:[#allocation3 + $0x118] sm:$0xf] %v2805
      %3134 = vst [vmem:[#allocation3 + $0x13c] sm:$0xf] %v2819
      %3135 = vst [vmem:[#allocation3 + $0x160] sm:$0xf] %v2829
      %3136 = vst [vmem:[#allocation3 + $0x184] sm:$0xf] %v2843
      %3137 = vst [vmem:[#allocation3 + $0x1a8] sm:$0xf] %v2853
      %3138 = vst [vmem:[#allocation3 + $0x1cc] sm:$0xf] %v2867
      %3139 = vst [vmem:[#allocation3 + $0x1f0] sm:$0xf] %v2877
      %3140 = vst [vmem:[#allocation3 + $0x214] sm:$0xf] %v2891
      %3141 = vst [vmem:[#allocation3 + $0x238] sm:$0xf] %v2901
      %3142 = vst [vmem:[#allocation3 + $0x25c] sm:$0xf] %v2915
      %3143 = vst [vmem:[#allocation3 + $0x280] sm:$0xf] %v2925
      %3144 = vst [vmem:[#allocation3 + $0x2a4] sm:$0xf] %v2939
      %3145 = vst [vmem:[#allocation3 + $0x2c8] sm:$0xf] %v2949
      %3146 = vst [vmem:[#allocation3 + $0x2ec] sm:$0xf] %v2963
      %3147 = vst [vmem:[#allocation3 + $0x310] sm:$0xf] %v2973
      %3148 = vst [vmem:[#allocation3 + $0x334] sm:$0xf] %v2987
      %3149 = vst [vmem:[#allocation3 + $0x358] sm:$0xf] %v2997
      %3150 = vst [vmem:[#allocation3 + $0x37c] sm:$0xf] %v3011
      %3151 = vst [vmem:[#allocation3 + $0x3a0] sm:$0xf] %v3021
      %3152 = vst [vmem:[#allocation3 + $0x3c4] sm:$0xf] %v3035
      %3153 = vst [vmem:[#allocation3 + $0x3e8] sm:$0xf] %v3045
      %3154 = vst [vmem:[#allocation3 + $0x40c] sm:$0xf] %v3059
      %3155 = vst [vmem:[#allocation3 + $0x430] sm:$0xf] %v3069
      %3156 = vst [vmem:[#allocation3 + $0x454] sm:$0xf] %v3083
      %3157 = vst [vmem:[#allocation3 + $0x478] sm:$0xf] %v3093
      %v3158 = vld [vmem:[%s2597] sm:$0xe]
      %v3159 = vld [vmem:[%s2597 + $0x4] sm:$0xf]
      %v3160 = vld [vmem:[%s2597 + $0x8] sm:$0x1]
      %v3161 = vld [vmem:[%s2597 + $0xc] sm:$0xe]
      %v3162 = vld [vmem:[%s2597 + $0x10] sm:$0xf]
      %v3163 = vld [vmem:[%s2597 + $0x14] sm:$0x1]
      %v3164 = vld [vmem:[%s2597 + $0x18] sm:$0xe]
      %v3165 = vld [vmem:[%s2597 + $0x1c] sm:$0xf]
      %v3166 = vld [vmem:[%s2597 + $0x20] sm:$0x1]
      %v3167 = vld [vmem:[%s2597 + $0x24] sm:$0xe]
      %v3168 = vld [vmem:[%s2597 + $0x28] sm:$0xf]
      %v3169 = vld [vmem:[%s2597 + $0x2c] sm:$0x1]
      %v3170 = vld [vmem:[%s2597 + $0x30] sm:$0xe]
      %v3171 = vld [vmem:[%s2597 + $0x34] sm:$0xf]
      %v3172 = vld [vmem:[%s2597 + $0x38] sm:$0x1]
      %v3173 = vld [vmem:[%s2597 + $0x3c] sm:$0xe]
      %v3174 = vld [vmem:[%s2597 + $0x40] sm:$0xf]
      %v3175 = vld [vmem:[%s2597 + $0x44] sm:$0x1]
      %v3176 = vld [vmem:[%s2597 + $0x48] sm:$0xe]
      %v3177 = vld [vmem:[%s2597 + $0x4c] sm:$0xf]
      %v3178 = vld [vmem:[%s2597 + $0x50] sm:$0x1]
      %v3179 = vld [vmem:[%s2597 + $0x54] sm:$0xe]
      %v3180 = vld [vmem:[%s2597 + $0x58] sm:$0xf]
      %v3181 = vld [vmem:[%s2597 + $0x5c] sm:$0x1]
      %v3182 = vld [vmem:[%s2597 + $0x60] sm:$0xe]
      %v3183 = vld [vmem:[%s2597 + $0x64] sm:$0xf]
      %v3184 = vld [vmem:[%s2597 + $0x68] sm:$0x1]
      %v3185 = vld [vmem:[%s2597 + $0x6c] sm:$0xe]
      %v3186 = vld [vmem:[%s2597 + $0x70] sm:$0xf]
      %v3187 = vld [vmem:[%s2597 + $0x74] sm:$0x1]
      %v3188 = vld [vmem:[%s2597 + $0x78] sm:$0xe]
      %v3189 = vld [vmem:[%s2597 + $0x7c] sm:$0xf]
      %v3190 = vld [vmem:[%s2597 + $0x80] sm:$0x1]
      %v3191 = vld [vmem:[%s2597 + $0x84] sm:$0xe]
      %v3192 = vld [vmem:[%s2597 + $0x88] sm:$0xf]
      %v3193 = vld [vmem:[%s2597 + $0x8c] sm:$0x1]
      %v3194 = vld [vmem:[%s2597 + $0x90] sm:$0xe]
      %v3195 = vld [vmem:[%s2597 + $0x94] sm:$0xf]
      %v3196 = vld [vmem:[%s2597 + $0x98] sm:$0x1]
      %v3197 = vld [vmem:[%s2597 + $0x9c] sm:$0xe]
      %v3198 = vld [vmem:[%s2597 + $0xa0] sm:$0xf]
      %v3199 = vld [vmem:[%s2597 + $0xa4] sm:$0x1]
      %v3200 = vld [vmem:[%s2597 + $0xa8] sm:$0xe]
      %v3201 = vld [vmem:[%s2597 + $0xac] sm:$0xf]
      %v3202 = vld [vmem:[%s2597 + $0xb0] sm:$0x1]
      %v3203 = vld [vmem:[%s2597 + $0xb4] sm:$0xe]
      %v3204 = vld [vmem:[%s2597 + $0xb8] sm:$0xf]
      %v3205 = vld [vmem:[%s2597 + $0xbc] sm:$0x1]
      %v3254 = vrot.slane %v3158, 5
      %v3255 = vrot.slane %v3254, 4
      %v3256 = vrot.slane %v3159, 5
      %v3257 = vsel %vm1581, %v3255, %v3256
      %v3258 = vrot.slane %v3256, 4
      %v3259 = vrot.slane %v3160, 5
      %v3260 = vsel %vm1581, %v3258, %v3259
      %v3261 = vrot.slane %v3161, 5
      %v3262 = vrot.slane %v3261, 4
      %v3263 = vrot.slane %v3162, 5
      %v3264 = vsel %vm1581, %v3262, %v3263
      %v3265 = vrot.slane %v3263, 4
      %v3266 = vrot.slane %v3163, 5
      %v3267 = vsel %vm1581, %v3265, %v3266
      %v3268 = vrot.slane %v3164, 5
      %v3269 = vrot.slane %v3268, 4
      %v3270 = vrot.slane %v3165, 5
      %v3271 = vsel %vm1581, %v3269, %v3270
      %v3272 = vrot.slane %v3270, 4
      %v3273 = vrot.slane %v3166, 5
      %v3274 = vsel %vm1581, %v3272, %v3273
      %v3275 = vrot.slane %v3167, 5
      %v3276 = vrot.slane %v3275, 4
      %v3277 = vrot.slane %v3168, 5
      %v3278 = vsel %vm1581, %v3276, %v3277
      %v3279 = vrot.slane %v3277, 4
      %v3280 = vrot.slane %v3169, 5
      %v3281 = vsel %vm1581, %v3279, %v3280
      %v3282 = vrot.slane %v3170, 5
      %v3283 = vrot.slane %v3282, 4
      %v3284 = vrot.slane %v3171, 5
      %v3285 = vsel %vm1581, %v3283, %v3284
      %v3286 = vrot.slane %v3284, 4
      %v3287 = vrot.slane %v3172, 5
      %v3288 = vsel %vm1581, %v3286, %v3287
      %v3289 = vrot.slane %v3173, 5
      %v3290 = vrot.slane %v3289, 4
      %v3291 = vrot.slane %v3174, 5
      %v3292 = vsel %vm1581, %v3290, %v3291
      %v3293 = vrot.slane %v3291, 4
      %v3294 = vrot.slane %v3175, 5
      %v3295 = vsel %vm1581, %v3293, %v3294
      %v3296 = vrot.slane %v3176, 5
      %v3297 = vrot.slane %v3296, 4
      %v3298 = vrot.slane %v3177, 5
      %v3299 = vsel %vm1581, %v3297, %v3298
      %v3300 = vrot.slane %v3298, 4
      %v3301 = vrot.slane %v3178, 5
      %v3302 = vsel %vm1581, %v3300, %v3301
      %v3303 = vrot.slane %v3179, 5
      %v3304 = vrot.slane %v3303, 4
      %v3305 = vrot.slane %v3180, 5
      %v3306 = vsel %vm1581, %v3304, %v3305
      %v3307 = vrot.slane %v3305, 4
      %v3308 = vrot.slane %v3181, 5
      %v3309 = vsel %vm1581, %v3307, %v3308
      %v3310 = vrot.slane %v3182, 5
      %v3311 = vrot.slane %v3310, 4
      %v3312 = vrot.slane %v3183, 5
      %v3313 = vsel %vm1581, %v3311, %v3312
      %v3314 = vrot.slane %v3312, 4
      %v3315 = vrot.slane %v3184, 5
      %v3316 = vsel %vm1581, %v3314, %v3315
      %v3317 = vrot.slane %v3185, 5
      %v3318 = vrot.slane %v3317, 4
      %v3319 = vrot.slane %v3186, 5
      %v3320 = vsel %vm1581, %v3318, %v3319
      %v3321 = vrot.slane %v3319, 4
      %v3322 = vrot.slane %v3187, 5
      %v3323 = vsel %vm1581, %v3321, %v3322
      %v3324 = vrot.slane %v3188, 5
      %v3325 = vrot.slane %v3324, 4
      %v3326 = vrot.slane %v3189, 5
      %v3327 = vsel %vm1581, %v3325, %v3326
      %v3328 = vrot.slane %v3326, 4
      %v3329 = vrot.slane %v3190, 5
      %v3330 = vsel %vm1581, %v3328, %v3329
      %v3331 = vrot.slane %v3191, 5
      %v3332 = vrot.slane %v3331, 4
      %v3333 = vrot.slane %v3192, 5
      %v3334 = vsel %vm1581, %v3332, %v3333
      %v3335 = vrot.slane %v3333, 4
      %v3336 = vrot.slane %v3193, 5
      %v3337 = vsel %vm1581, %v3335, %v3336
      %v3338 = vrot.slane %v3194, 5
      %v3339 = vrot.slane %v3338, 4
      %v3340 = vrot.slane %v3195, 5
      %v3341 = vsel %vm1581, %v3339, %v3340
      %v3342 = vrot.slane %v3340, 4
      %v3343 = vrot.slane %v3196, 5
      %v3344 = vsel %vm1581, %v3342, %v3343
      %v3345 = vrot.slane %v3197, 5
      %v3346 = vrot.slane %v3345, 4
      %v3347 = vrot.slane %v3198, 5
      %v3348 = vsel %vm1581, %v3346, %v3347
      %v3349 = vrot.slane %v3347, 4
      %v3350 = vrot.slane %v3199, 5
      %v3351 = vsel %vm1581, %v3349, %v3350
      %v3352 = vrot.slane %v3200, 5
      %v3353 = vrot.slane %v3352, 4
      %v3354 = vrot.slane %v3201, 5
      %v3355 = vsel %vm1581, %v3353, %v3354
      %v3356 = vrot.slane %v3354, 4
      %v3357 = vrot.slane %v3202, 5
      %v3358 = vsel %vm1581, %v3356, %v3357
      %v3359 = vrot.slane %v3203, 5
      %v3360 = vrot.slane %v3359, 4
      %v3361 = vrot.slane %v3204, 5
      %v3362 = vsel %vm1581, %v3360, %v3361
      %v3363 = vrot.slane %v3361, 4
      %v3364 = vrot.slane %v3205, 5
      %v3365 = vsel %vm1581, %v3363, %v3364
      %3398 = vst [vmem:[#allocation3 + $0x20] sm:$0xf] %v3257
      %3399 = vst [vmem:[#allocation3 + $0x44] sm:$0xf] %v3260
      %3400 = vst [vmem:[#allocation3 + $0x68] sm:$0xf] %v3264
      %3401 = vst [vmem:[#allocation3 + $0x8c] sm:$0xf] %v3267
      %3402 = vst [vmem:[#allocation3 + $0xb0] sm:$0xf] %v3271
      %3403 = vst [vmem:[#allocation3 + $0xd4] sm:$0xf] %v3274
      %3404 = vst [vmem:[#allocation3 + $0xf8] sm:$0xf] %v3278
      %3405 = vst [vmem:[#allocation3 + $0x11c] sm:$0xf] %v3281
      %3406 = vst [vmem:[#allocation3 + $0x140] sm:$0xf] %v3285
      %3407 = vst [vmem:[#allocation3 + $0x164] sm:$0xf] %v3288
      %3408 = vst [vmem:[#allocation3 + $0x188] sm:$0xf] %v3292
      %3409 = vst [vmem:[#allocation3 + $0x1ac] sm:$0xf] %v3295
      %3410 = vst [vmem:[#allocation3 + $0x1d0] sm:$0xf] %v3299
      %3411 = vst [vmem:[#allocation3 + $0x1f4] sm:$0xf] %v3302
      %3412 = vst [vmem:[#allocation3 + $0x218] sm:$0xf] %v3306
      %3413 = vst [vmem:[#allocation3 + $0x23c] sm:$0xf] %v3309
      %3414 = vst [vmem:[#allocation3 + $0x260] sm:$0xf] %v3313
      %3415 = vst [vmem:[#allocation3 + $0x284] sm:$0xf] %v3316
      %3416 = vst [vmem:[#allocation3 + $0x2a8] sm:$0xf] %v3320
      %3417 = vst [vmem:[#allocation3 + $0x2cc] sm:$0xf] %v3323
      %3418 = vst [vmem:[#allocation3 + $0x2f0] sm:$0xf] %v3327
      %3419 = vst [vmem:[#allocation3 + $0x314] sm:$0xf] %v3330
      %3420 = vst [vmem:[#allocation3 + $0x338] sm:$0xf] %v3334
      %3421 = vst [vmem:[#allocation3 + $0x35c] sm:$0xf] %v3337
      %3422 = vst [vmem:[#allocation3 + $0x380] sm:$0xf] %v3341
      %3423 = vst [vmem:[#allocation3 + $0x3a4] sm:$0xf] %v3344
      %3424 = vst [vmem:[#allocation3 + $0x3c8] sm:$0xf] %v3348
      %3425 = vst [vmem:[#allocation3 + $0x3ec] sm:$0xf] %v3351
      %3426 = vst [vmem:[#allocation3 + $0x410] sm:$0xf] %v3355
      %3427 = vst [vmem:[#allocation3 + $0x434] sm:$0xf] %v3358
      %3428 = vst [vmem:[#allocation3 + $0x458] sm:$0xf] %v3362
      %3429 = vst [vmem:[#allocation3 + $0x47c] sm:$0xf] %v3365
      %v3430 = vld [vmem:[#allocation3] sm:$0xff]
      %v3431 = vld [vmem:[#allocation3 + $0x8] sm:$0xff]
      %v3432 = vld [vmem:[#allocation3 + $0x10] sm:$0xff]
      %v3433 = vld [vmem:[#allocation3 + $0x18] sm:$0xff]
      %v3434 = vld [vmem:[#allocation3 + $0x20] sm:$0xf]
      %v3435 = vld [vmem:[#allocation3 + $0x24] sm:$0xff]
      %v3436 = vld [vmem:[#allocation3 + $0x2c] sm:$0xff]
      %v3437 = vld [vmem:[#allocation3 + $0x34] sm:$0xff]
      %v3438 = vld [vmem:[#allocation3 + $0x3c] sm:$0xff]
      %v3439 = vld [vmem:[#allocation3 + $0x44] sm:$0xf]
      %v3440 = vld [vmem:[#allocation3 + $0x48] sm:$0xff]
      %v3441 = vld [vmem:[#allocation3 + $0x50] sm:$0xff]
      %v3442 = vld [vmem:[#allocation3 + $0x58] sm:$0xff]
      %v3443 = vld [vmem:[#allocation3 + $0x60] sm:$0xff]
      %v3444 = vld [vmem:[#allocation3 + $0x68] sm:$0xf]
      %v3445 = vld [vmem:[#allocation3 + $0x6c] sm:$0xff]
      %v3446 = vld [vmem:[#allocation3 + $0x74] sm:$0xff]
      %v3447 = vld [vmem:[#allocation3 + $0x7c] sm:$0xff]
      %v3448 = vld [vmem:[#allocation3 + $0x84] sm:$0xff]
      %v3449 = vld [vmem:[#allocation3 + $0x8c] sm:$0xf]
      %v3450 = vld [vmem:[#allocation3 + $0x90] sm:$0xff]
      %v3451 = vld [vmem:[#allocation3 + $0x98] sm:$0xff]
      %v3452 = vld [vmem:[#allocation3 + $0xa0] sm:$0xff]
      %v3453 = vld [vmem:[#allocation3 + $0xa8] sm:$0xff]
      %v3454 = vld [vmem:[#allocation3 + $0xb0] sm:$0xf]
      %v3455 = vld [vmem:[#allocation3 + $0xb4] sm:$0xff]
      %v3456 = vld [vmem:[#allocation3 + $0xbc] sm:$0xff]
      %v3457 = vld [vmem:[#allocation3 + $0xc4] sm:$0xff]
      %v3458 = vld [vmem:[#allocation3 + $0xcc] sm:$0xff]
      %v3459 = vld [vmem:[#allocation3 + $0xd4] sm:$0xf]
      %v3460 = vld [vmem:[#allocation3 + $0xd8] sm:$0xff]
      %v3461 = vld [vmem:[#allocation3 + $0xe0] sm:$0xff]
      %v3462 = vld [vmem:[#allocation3 + $0xe8] sm:$0xff]
      %v3463 = vld [vmem:[#allocation3 + $0xf0] sm:$0xff]
      %v3464 = vld [vmem:[#allocation3 + $0xf8] sm:$0xf]
      %v3465 = vld [vmem:[#allocation3 + $0xfc] sm:$0xff]
      %v3466 = vld [vmem:[#allocation3 + $0x104] sm:$0xff]
      %v3467 = vld [vmem:[#allocation3 + $0x10c] sm:$0xff]
      %v3468 = vld [vmem:[#allocation3 + $0x114] sm:$0xff]
      %v3469 = vld [vmem:[#allocation3 + $0x11c] sm:$0xf]
      %v3470 = vld [vmem:[#allocation3 + $0x120] sm:$0xff]
      %v3471 = vld [vmem:[#allocation3 + $0x128] sm:$0xff]
      %v3472 = vld [vmem:[#allocation3 + $0x130] sm:$0xff]
      %v3473 = vld [vmem:[#allocation3 + $0x138] sm:$0xff]
      %v3474 = vld [vmem:[#allocation3 + $0x140] sm:$0xf]
      %v3475 = vld [vmem:[#allocation3 + $0x144] sm:$0xff]
      %v3476 = vld [vmem:[#allocation3 + $0x14c] sm:$0xff]
      %v3477 = vld [vmem:[#allocation3 + $0x154] sm:$0xff]
      %v3478 = vld [vmem:[#allocation3 + $0x15c] sm:$0xff]
      %v3479 = vld [vmem:[#allocation3 + $0x164] sm:$0xf]
      %v3480 = vld [vmem:[#allocation3 + $0x168] sm:$0xff]
      %v3481 = vld [vmem:[#allocation3 + $0x170] sm:$0xff]
      %v3482 = vld [vmem:[#allocation3 + $0x178] sm:$0xff]
      %v3483 = vld [vmem:[#allocation3 + $0x180] sm:$0xff]
      %v3484 = vld [vmem:[#allocation3 + $0x188] sm:$0xf]
      %v3485 = vld [vmem:[#allocation3 + $0x18c] sm:$0xff]
      %v3486 = vld [vmem:[#allocation3 + $0x194] sm:$0xff]
      %v3487 = vld [vmem:[#allocation3 + $0x19c] sm:$0xff]
      %v3488 = vld [vmem:[#allocation3 + $0x1a4] sm:$0xff]
      %v3489 = vld [vmem:[#allocation3 + $0x1ac] sm:$0xf]
      %v3490 = vld [vmem:[#allocation3 + $0x1b0] sm:$0xff]
      %v3491 = vld [vmem:[#allocation3 + $0x1b8] sm:$0xff]
      %v3492 = vld [vmem:[#allocation3 + $0x1c0] sm:$0xff]
      %v3493 = vld [vmem:[#allocation3 + $0x1c8] sm:$0xff]
      %v3494 = vld [vmem:[#allocation3 + $0x1d0] sm:$0xf]
      %v3495 = vld [vmem:[#allocation3 + $0x1d4] sm:$0xff]
      %v3496 = vld [vmem:[#allocation3 + $0x1dc] sm:$0xff]
      %v3497 = vld [vmem:[#allocation3 + $0x1e4] sm:$0xff]
      %v3498 = vld [vmem:[#allocation3 + $0x1ec] sm:$0xff]
      %v3499 = vld [vmem:[#allocation3 + $0x1f4] sm:$0xf]
      %v3500 = vld [vmem:[#allocation3 + $0x1f8] sm:$0xff]
      %v3501 = vld [vmem:[#allocation3 + $0x200] sm:$0xff]
      %v3502 = vld [vmem:[#allocation3 + $0x208] sm:$0xff]
      %v3503 = vld [vmem:[#allocation3 + $0x210] sm:$0xff]
      %v3504 = vld [vmem:[#allocation3 + $0x218] sm:$0xf]
      %v3505 = vld [vmem:[#allocation3 + $0x21c] sm:$0xff]
      %v3506 = vld [vmem:[#allocation3 + $0x224] sm:$0xff]
      %v3507 = vld [vmem:[#allocation3 + $0x22c] sm:$0xff]
      %v3508 = vld [vmem:[#allocation3 + $0x234] sm:$0xff]
      %v3509 = vld [vmem:[#allocation3 + $0x23c] sm:$0xf]
      %v3510 = vld [vmem:[#allocation3 + $0x240] sm:$0xff]
      %v3511 = vld [vmem:[#allocation3 + $0x248] sm:$0xff]
      %v3512 = vld [vmem:[#allocation3 + $0x250] sm:$0xff]
      %v3513 = vld [vmem:[#allocation3 + $0x258] sm:$0xff]
      %v3514 = vld [vmem:[#allocation3 + $0x260] sm:$0xf]
      %v3515 = vld [vmem:[#allocation3 + $0x264] sm:$0xff]
      %v3516 = vld [vmem:[#allocation3 + $0x26c] sm:$0xff]
      %v3517 = vld [vmem:[#allocation3 + $0x274] sm:$0xff]
      %v3518 = vld [vmem:[#allocation3 + $0x27c] sm:$0xff]
      %v3519 = vld [vmem:[#allocation3 + $0x284] sm:$0xf]
      %v3520 = vld [vmem:[#allocation3 + $0x288] sm:$0xff]
      %v3521 = vld [vmem:[#allocation3 + $0x290] sm:$0xff]
      %v3522 = vld [vmem:[#allocation3 + $0x298] sm:$0xff]
      %v3523 = vld [vmem:[#allocation3 + $0x2a0] sm:$0xff]
      %v3524 = vld [vmem:[#allocation3 + $0x2a8] sm:$0xf]
      %v3525 = vld [vmem:[#allocation3 + $0x2ac] sm:$0xff]
      %v3526 = vld [vmem:[#allocation3 + $0x2b4] sm:$0xff]
      %v3527 = vld [vmem:[#allocation3 + $0x2bc] sm:$0xff]
      %v3528 = vld [vmem:[#allocation3 + $0x2c4] sm:$0xff]
      %v3529 = vld [vmem:[#allocation3 + $0x2cc] sm:$0xf]
      %v3530 = vld [vmem:[#allocation3 + $0x2d0] sm:$0xff]
      %v3531 = vld [vmem:[#allocation3 + $0x2d8] sm:$0xff]
      %v3532 = vld [vmem:[#allocation3 + $0x2e0] sm:$0xff]
      %v3533 = vld [vmem:[#allocation3 + $0x2e8] sm:$0xff]
      %v3534 = vld [vmem:[#allocation3 + $0x2f0] sm:$0xf]
      %v3535 = vld [vmem:[#allocation3 + $0x2f4] sm:$0xff]
      %v3536 = vld [vmem:[#allocation3 + $0x2fc] sm:$0xff]
      %v3537 = vld [vmem:[#allocation3 + $0x304] sm:$0xff]
      %v3538 = vld [vmem:[#allocation3 + $0x30c] sm:$0xff]
      %v3539 = vld [vmem:[#allocation3 + $0x314] sm:$0xf]
      %v3540 = vld [vmem:[#allocation3 + $0x318] sm:$0xff]
      %v3541 = vld [vmem:[#allocation3 + $0x320] sm:$0xff]
      %v3542 = vld [vmem:[#allocation3 + $0x328] sm:$0xff]
      %v3543 = vld [vmem:[#allocation3 + $0x330] sm:$0xff]
      %v3544 = vld [vmem:[#allocation3 + $0x338] sm:$0xf]
      %v3545 = vld [vmem:[#allocation3 + $0x33c] sm:$0xff]
      %v3546 = vld [vmem:[#allocation3 + $0x344] sm:$0xff]
      %v3547 = vld [vmem:[#allocation3 + $0x34c] sm:$0xff]
      %v3548 = vld [vmem:[#allocation3 + $0x354] sm:$0xff]
      %v3549 = vld [vmem:[#allocation3 + $0x35c] sm:$0xf]
      %v3550 = vld [vmem:[#allocation3 + $0x360] sm:$0xff]
      %v3551 = vld [vmem:[#allocation3 + $0x368] sm:$0xff]
      %v3552 = vld [vmem:[#allocation3 + $0x370] sm:$0xff]
      %v3553 = vld [vmem:[#allocation3 + $0x378] sm:$0xff]
      %v3554 = vld [vmem:[#allocation3 + $0x380] sm:$0xf]
      %v3555 = vld [vmem:[#allocation3 + $0x384] sm:$0xff]
      %v3556 = vld [vmem:[#allocation3 + $0x38c] sm:$0xff]
      %v3557 = vld [vmem:[#allocation3 + $0x394] sm:$0xff]
      %v3558 = vld [vmem:[#allocation3 + $0x39c] sm:$0xff]
      %v3559 = vld [vmem:[#allocation3 + $0x3a4] sm:$0xf]
      %v3560 = vld [vmem:[#allocation3 + $0x3a8] sm:$0xff]
      %v3561 = vld [vmem:[#allocation3 + $0x3b0] sm:$0xff]
      %v3562 = vld [vmem:[#allocation3 + $0x3b8] sm:$0xff]
      %v3563 = vld [vmem:[#allocation3 + $0x3c0] sm:$0xff]
      %v3564 = vld [vmem:[#allocation3 + $0x3c8] sm:$0xf]
      %v3565 = vld [vmem:[#allocation3 + $0x3cc] sm:$0xff]
      %v3566 = vld [vmem:[#allocation3 + $0x3d4] sm:$0xff]
      %v3567 = vld [vmem:[#allocation3 + $0x3dc] sm:$0xff]
      %v3568 = vld [vmem:[#allocation3 + $0x3e4] sm:$0xff]
      %v3569 = vld [vmem:[#allocation3 + $0x3ec] sm:$0xf]
      %v3570 = vld [vmem:[#allocation3 + $0x3f0] sm:$0xff]
      %v3571 = vld [vmem:[#allocation3 + $0x3f8] sm:$0xff]
      %v3572 = vld [vmem:[#allocation3 + $0x400] sm:$0xff]
      %v3573 = vld [vmem:[#allocation3 + $0x408] sm:$0xff]
      %v3574 = vld [vmem:[#allocation3 + $0x410] sm:$0xf]
      %v3575 = vld [vmem:[#allocation3 + $0x414] sm:$0xff]
      %v3576 = vld [vmem:[#allocation3 + $0x41c] sm:$0xff]
      %v3577 = vld [vmem:[#allocation3 + $0x424] sm:$0xff]
      %v3578 = vld [vmem:[#allocation3 + $0x42c] sm:$0xff]
      %v3579 = vld [vmem:[#allocation3 + $0x434] sm:$0xf]
      %v3580 = vld [vmem:[#allocation3 + $0x438] sm:$0xff]
      %v3581 = vld [vmem:[#allocation3 + $0x440] sm:$0xff]
      %v3582 = vld [vmem:[#allocation3 + $0x448] sm:$0xff]
      %v3583 = vld [vmem:[#allocation3 + $0x450] sm:$0xff]
      %v3584 = vld [vmem:[#allocation3 + $0x458] sm:$0xf]
      %v3585 = vld [vmem:[#allocation3 + $0x45c] sm:$0xff]
      %v3586 = vld [vmem:[#allocation3 + $0x464] sm:$0xff]
      %v3587 = vld [vmem:[#allocation3 + $0x46c] sm:$0xff]
      %v3588 = vld [vmem:[#allocation3 + $0x474] sm:$0xff]
      %v3589 = vld [vmem:[#allocation3 + $0x47c] sm:$0xf]
      %v3590 = vld [vmem:[%s3] sm:$0xf]
      %v3591 = vld [vmem:[%s3 + $0x4] sm:$0xf]
      %v3592 = vld [vmem:[%s3 + $0x8] sm:$0xf]
      %v3593 = vld [vmem:[%s3 + $0xc] sm:$0xf]
      %v3594 = vld [vmem:[%s3 + $0x10] sm:$0xf]
      %v3595 = vld [vmem:[%s3 + $0x14] sm:$0xf]
      %v3596 = vld [vmem:[%s3 + $0x18] sm:$0xf]
      %v3597 = vld [vmem:[%s3 + $0x1c] sm:$0xf]
      %v3598 = vld [vmem:[%s3 + $0x20] sm:$0xf]
      %v3599 = vld [vmem:[%s3 + $0x24] sm:$0xf]
      %v3600 = vld [vmem:[%s3 + $0x28] sm:$0xf]
      %v3601 = vld [vmem:[%s3 + $0x2c] sm:$0xf]
      %v3602 = vld [vmem:[%s3 + $0x30] sm:$0xf]
      %v3603 = vld [vmem:[%s3 + $0x34] sm:$0xf]
      %v3604 = vld [vmem:[%s3 + $0x38] sm:$0xf]
      %v3605 = vld [vmem:[%s3 + $0x3c] sm:$0xf]
      %v3606 = vld [vmem:[%s3 + $0x40] sm:$0xf]
      %v3607 = vld [vmem:[%s3 + $0x44] sm:$0xf]
      %v3608 = vld [vmem:[%s3 + $0x48] sm:$0xf]
      %v3609 = vld [vmem:[%s3 + $0x4c] sm:$0xf]
      %v3610 = vld [vmem:[%s3 + $0x50] sm:$0xf]
      %v3611 = vld [vmem:[%s3 + $0x54] sm:$0xf]
      %v3612 = vld [vmem:[%s3 + $0x58] sm:$0xf]
      %v3613 = vld [vmem:[%s3 + $0x5c] sm:$0xf]
      %v3614 = vld [vmem:[%s3 + $0x60] sm:$0xf]
      %v3615 = vld [vmem:[%s3 + $0x64] sm:$0xf]
      %v3616 = vld [vmem:[%s3 + $0x68] sm:$0xf]
      %v3617 = vld [vmem:[%s3 + $0x6c] sm:$0xf]
      %v3618 = vld [vmem:[%s3 + $0x70] sm:$0xf]
      %v3619 = vld [vmem:[%s3 + $0x74] sm:$0xf]
      %v3620 = vld [vmem:[%s3 + $0x78] sm:$0xf]
      %v3621 = vld [vmem:[%s3 + $0x7c] sm:$0xf]
      %v3622 = vld [vmem:[%s3 + $0x80] sm:$0xf]
      %v3623 = vld [vmem:[%s3 + $0x84] sm:$0xf]
      %v3624 = vld [vmem:[%s3 + $0x88] sm:$0xf]
      %v3625 = vld [vmem:[%s3 + $0x8c] sm:$0xf]
      %v3626 = vld [vmem:[%s3 + $0x90] sm:$0xf]
      %v3627 = vld [vmem:[%s3 + $0x94] sm:$0xf]
      %v3628 = vld [vmem:[%s3 + $0x98] sm:$0xf]
      %v3629 = vld [vmem:[%s3 + $0x9c] sm:$0xf]
      %v3630 = vld [vmem:[%s3 + $0xa0] sm:$0xf]
      %v3631 = vld [vmem:[%s3 + $0xa4] sm:$0xf]
      %v3632 = vld [vmem:[%s3 + $0xa8] sm:$0xf]
      %v3633 = vld [vmem:[%s3 + $0xac] sm:$0xf]
      %v3634 = vld [vmem:[%s3 + $0xb0] sm:$0xf]
      %v3635 = vld [vmem:[%s3 + $0xb4] sm:$0xf]
      %v3636 = vld [vmem:[%s3 + $0xb8] sm:$0xf]
      %v3637 = vld [vmem:[%s3 + $0xbc] sm:$0xf]
      %v3638 = vld [vmem:[%s3 + $0xc0] sm:$0xf]
      %v3639 = vld [vmem:[%s3 + $0xc4] sm:$0xf]
      %v3640 = vld [vmem:[%s3 + $0xc8] sm:$0xf]
      %v3641 = vld [vmem:[%s3 + $0xcc] sm:$0xf]
      %v3642 = vld [vmem:[%s3 + $0xd0] sm:$0xf]
      %v3643 = vld [vmem:[%s3 + $0xd4] sm:$0xf]
      %v3644 = vld [vmem:[%s3 + $0xd8] sm:$0xf]
      %v3645 = vld [vmem:[%s3 + $0xdc] sm:$0xf]
      %v3646 = vld [vmem:[%s3 + $0xe0] sm:$0xf]
      %v3647 = vld [vmem:[%s3 + $0xe4] sm:$0xf]
      %v3648 = vld [vmem:[%s3 + $0xe8] sm:$0xf]
      %v3649 = vld [vmem:[%s3 + $0xec] sm:$0xf]
      %v3650 = vld [vmem:[%s3 + $0xf0] sm:$0xf]
      %v3651 = vld [vmem:[%s3 + $0xf4] sm:$0xf]
      %v3652 = vld [vmem:[%s3 + $0xf8] sm:$0xf]
      %v3653 = vld [vmem:[%s3 + $0xfc] sm:$0xf]
      %v3654 = vld [vmem:[%s3 + $0x100] sm:$0xf]
      %v3655 = vld [vmem:[%s3 + $0x104] sm:$0xf]
      %v3656 = vld [vmem:[%s3 + $0x108] sm:$0xf]
      %v3657 = vld [vmem:[%s3 + $0x10c] sm:$0xf]
      %v3658 = vld [vmem:[%s3 + $0x110] sm:$0xf]
      %v3659 = vld [vmem:[%s3 + $0x114] sm:$0xf]
      %v3660 = vld [vmem:[%s3 + $0x118] sm:$0xf]
      %v3661 = vld [vmem:[%s3 + $0x11c] sm:$0xf]
      %v3662 = vld [vmem:[%s3 + $0x120] sm:$0xf]
      %v3663 = vld [vmem:[%s3 + $0x124] sm:$0xf]
      %v3664 = vld [vmem:[%s3 + $0x128] sm:$0xf]
      %v3665 = vld [vmem:[%s3 + $0x12c] sm:$0xf]
      %v3666 = vld [vmem:[%s3 + $0x130] sm:$0xf]
      %v3667 = vld [vmem:[%s3 + $0x134] sm:$0xf]
      %v3668 = vld [vmem:[%s3 + $0x138] sm:$0xf]
      %v3669 = vld [vmem:[%s3 + $0x13c] sm:$0xf]
      %v3670 = vld [vmem:[%s3 + $0x140] sm:$0xf]
      %v3671 = vld [vmem:[%s3 + $0x144] sm:$0xf]
      %v3672 = vld [vmem:[%s3 + $0x148] sm:$0xf]
      %v3673 = vld [vmem:[%s3 + $0x14c] sm:$0xf]
      %v3674 = vld [vmem:[%s3 + $0x150] sm:$0xf]
      %v3675 = vld [vmem:[%s3 + $0x154] sm:$0xf]
      %v3676 = vld [vmem:[%s3 + $0x158] sm:$0xf]
      %v3677 = vld [vmem:[%s3 + $0x15c] sm:$0xf]
      %v3678 = vld [vmem:[%s3 + $0x160] sm:$0xf]
      %v3679 = vld [vmem:[%s3 + $0x164] sm:$0xf]
      %v3680 = vld [vmem:[%s3 + $0x168] sm:$0xf]
      %v3681 = vld [vmem:[%s3 + $0x16c] sm:$0xf]
      %v3682 = vld [vmem:[%s3 + $0x170] sm:$0xf]
      %v3683 = vld [vmem:[%s3 + $0x174] sm:$0xf]
      %v3684 = vld [vmem:[%s3 + $0x178] sm:$0xf]
      %v3685 = vld [vmem:[%s3 + $0x17c] sm:$0xf]
      %v3686 = vld [vmem:[%s3 + $0x180] sm:$0xf]
      %v3687 = vld [vmem:[%s3 + $0x184] sm:$0xf]
      %v3688 = vld [vmem:[%s3 + $0x188] sm:$0xf]
      %v3689 = vld [vmem:[%s3 + $0x18c] sm:$0xf]
      %v3690 = vld [vmem:[%s3 + $0x190] sm:$0xf]
      %v3691 = vld [vmem:[%s3 + $0x194] sm:$0xf]
      %v3692 = vld [vmem:[%s3 + $0x198] sm:$0xf]
      %v3693 = vld [vmem:[%s3 + $0x19c] sm:$0xf]
      %v3694 = vld [vmem:[%s3 + $0x1a0] sm:$0xf]
      %v3695 = vld [vmem:[%s3 + $0x1a4] sm:$0xf]
      %v3696 = vld [vmem:[%s3 + $0x1a8] sm:$0xf]
      %v3697 = vld [vmem:[%s3 + $0x1ac] sm:$0xf]
      %v3698 = vld [vmem:[%s3 + $0x1b0] sm:$0xf]
      %v3699 = vld [vmem:[%s3 + $0x1b4] sm:$0xf]
      %v3700 = vld [vmem:[%s3 + $0x1b8] sm:$0xf]
      %v3701 = vld [vmem:[%s3 + $0x1bc] sm:$0xf]
      %v3702 = vld [vmem:[%s3 + $0x1c0] sm:$0xf]
      %v3703 = vld [vmem:[%s3 + $0x1c4] sm:$0xf]
      %v3704 = vld [vmem:[%s3 + $0x1c8] sm:$0xf]
      %v3705 = vld [vmem:[%s3 + $0x1cc] sm:$0xf]
      %v3706 = vld [vmem:[%s3 + $0x1d0] sm:$0xf]
      %v3707 = vld [vmem:[%s3 + $0x1d4] sm:$0xf]
      %v3708 = vld [vmem:[%s3 + $0x1d8] sm:$0xf]
      %v3709 = vld [vmem:[%s3 + $0x1dc] sm:$0xf]
      %v3710 = vld [vmem:[%s3 + $0x1e0] sm:$0xf]
      %v3711 = vld [vmem:[%s3 + $0x1e4] sm:$0xf]
      %v3712 = vld [vmem:[%s3 + $0x1e8] sm:$0xf]
      %v3713 = vld [vmem:[%s3 + $0x1ec] sm:$0xf]
      %v3714 = vld [vmem:[%s3 + $0x1f0] sm:$0xf]
      %v3715 = vld [vmem:[%s3 + $0x1f4] sm:$0xf]
      %v3716 = vld [vmem:[%s3 + $0x1f8] sm:$0xf]
      %v3717 = vld [vmem:[%s3 + $0x1fc] sm:$0xf]
      %v3718 = vld [vmem:[%s3 + $0x200] sm:$0xf]
      %v3719 = vld [vmem:[%s3 + $0x204] sm:$0xf]
      %v3720 = vld [vmem:[%s3 + $0x208] sm:$0xf]
      %v3721 = vld [vmem:[%s3 + $0x20c] sm:$0xf]
      %v3722 = vld [vmem:[%s3 + $0x210] sm:$0xf]
      %v3723 = vld [vmem:[%s3 + $0x214] sm:$0xf]
      %v3724 = vld [vmem:[%s3 + $0x218] sm:$0xf]
      %v3725 = vld [vmem:[%s3 + $0x21c] sm:$0xf]
      %v3726 = vld [vmem:[%s3 + $0x220] sm:$0xf]
      %v3727 = vld [vmem:[%s3 + $0x224] sm:$0xf]
      %v3728 = vld [vmem:[%s3 + $0x228] sm:$0xf]
      %v3729 = vld [vmem:[%s3 + $0x22c] sm:$0xf]
      %v3730 = vld [vmem:[%s3 + $0x230] sm:$0xf]
      %v3731 = vld [vmem:[%s3 + $0x234] sm:$0xf]
      %v3732 = vld [vmem:[%s3 + $0x238] sm:$0xf]
      %v3733 = vld [vmem:[%s3 + $0x23c] sm:$0xf]
      %v3734 = vld [vmem:[%s4] sm:$0x1]
      %v3736 = vperm.slane %v3734, 0
      %v3898 = vunpack.c.l.b16 %v3430
      %v3899 = vunpack.c.h.b16 %v3430
      %v3900 = vunpack.c.l.b16 %v3431
      %v3901 = vunpack.c.h.b16 %v3431
      %v3902 = vunpack.c.l.b16 %v3432
      %v3903 = vunpack.c.h.b16 %v3432
      %v3904 = vunpack.c.l.b16 %v3433
      %v3905 = vunpack.c.h.b16 %v3433
      %v3906 = vunpack.c.l.b16 %v3434
      %v3907 = vunpack.c.l.b16 %v3435
      %v3908 = vunpack.c.h.b16 %v3435
      %v3909 = vunpack.c.l.b16 %v3436
      %v3910 = vunpack.c.h.b16 %v3436
      %v3911 = vunpack.c.l.b16 %v3437
      %v3912 = vunpack.c.h.b16 %v3437
      %v3913 = vunpack.c.l.b16 %v3438
      %v3914 = vunpack.c.h.b16 %v3438
      %v3915 = vunpack.c.l.b16 %v3439
      %v3916 = vunpack.c.l.b16 %v3440
      %v3917 = vunpack.c.h.b16 %v3440
      %v3918 = vunpack.c.l.b16 %v3441
      %v3919 = vunpack.c.h.b16 %v3441
      %v3920 = vunpack.c.l.b16 %v3442
      %v3921 = vunpack.c.h.b16 %v3442
      %v3922 = vunpack.c.l.b16 %v3443
      %v3923 = vunpack.c.h.b16 %v3443
      %v3924 = vunpack.c.l.b16 %v3444
      %v3925 = vunpack.c.l.b16 %v3445
      %v3926 = vunpack.c.h.b16 %v3445
      %v3927 = vunpack.c.l.b16 %v3446
      %v3928 = vunpack.c.h.b16 %v3446
      %v3929 = vunpack.c.l.b16 %v3447
      %v3930 = vunpack.c.h.b16 %v3447
      %v3931 = vunpack.c.l.b16 %v3448
      %v3932 = vunpack.c.h.b16 %v3448
      %v3933 = vunpack.c.l.b16 %v3449
      %v3934 = vunpack.c.l.b16 %v3450
      %v3935 = vunpack.c.h.b16 %v3450
      %v3936 = vunpack.c.l.b16 %v3451
      %v3937 = vunpack.c.h.b16 %v3451
      %v3938 = vunpack.c.l.b16 %v3452
      %v3939 = vunpack.c.h.b16 %v3452
      %v3940 = vunpack.c.l.b16 %v3453
      %v3941 = vunpack.c.h.b16 %v3453
      %v3942 = vunpack.c.l.b16 %v3454
      %v3943 = vunpack.c.l.b16 %v3455
      %v3944 = vunpack.c.h.b16 %v3455
      %v3945 = vunpack.c.l.b16 %v3456
      %v3946 = vunpack.c.h.b16 %v3456
      %v3947 = vunpack.c.l.b16 %v3457
      %v3948 = vunpack.c.h.b16 %v3457
      %v3949 = vunpack.c.l.b16 %v3458
      %v3950 = vunpack.c.h.b16 %v3458
      %v3951 = vunpack.c.l.b16 %v3459
      %v3952 = vunpack.c.l.b16 %v3460
      %v3953 = vunpack.c.h.b16 %v3460
      %v3954 = vunpack.c.l.b16 %v3461
      %v3955 = vunpack.c.h.b16 %v3461
      %v3956 = vunpack.c.l.b16 %v3462
      %v3957 = vunpack.c.h.b16 %v3462
      %v3958 = vunpack.c.l.b16 %v3463
      %v3959 = vunpack.c.h.b16 %v3463
      %v3960 = vunpack.c.l.b16 %v3464
      %v3961 = vunpack.c.l.b16 %v3465
      %v3962 = vunpack.c.h.b16 %v3465
      %v3963 = vunpack.c.l.b16 %v3466
      %v3964 = vunpack.c.h.b16 %v3466
      %v3965 = vunpack.c.l.b16 %v3467
      %v3966 = vunpack.c.h.b16 %v3467
      %v3967 = vunpack.c.l.b16 %v3468
      %v3968 = vunpack.c.h.b16 %v3468
      %v3969 = vunpack.c.l.b16 %v3469
      %v3970 = vunpack.c.l.b16 %v3470
      %v3971 = vunpack.c.h.b16 %v3470
      %v3972 = vunpack.c.l.b16 %v3471
      %v3973 = vunpack.c.h.b16 %v3471
      %v3974 = vunpack.c.l.b16 %v3472
      %v3975 = vunpack.c.h.b16 %v3472
      %v3976 = vunpack.c.l.b16 %v3473
      %v3977 = vunpack.c.h.b16 %v3473
      %v3978 = vunpack.c.l.b16 %v3474
      %v3979 = vunpack.c.l.b16 %v3475
      %v3980 = vunpack.c.h.b16 %v3475
      %v3981 = vunpack.c.l.b16 %v3476
      %v3982 = vunpack.c.h.b16 %v3476
      %v3983 = vunpack.c.l.b16 %v3477
      %v3984 = vunpack.c.h.b16 %v3477
      %v3985 = vunpack.c.l.b16 %v3478
      %v3986 = vunpack.c.h.b16 %v3478
      %v3987 = vunpack.c.l.b16 %v3479
      %v3988 = vunpack.c.l.b16 %v3480
      %v3989 = vunpack.c.h.b16 %v3480
      %v3990 = vunpack.c.l.b16 %v3481
      %v3991 = vunpack.c.h.b16 %v3481
      %v3992 = vunpack.c.l.b16 %v3482
      %v3993 = vunpack.c.h.b16 %v3482
      %v3994 = vunpack.c.l.b16 %v3483
      %v3995 = vunpack.c.h.b16 %v3483
      %v3996 = vunpack.c.l.b16 %v3484
      %v3997 = vunpack.c.l.b16 %v3485
      %v3998 = vunpack.c.h.b16 %v3485
      %v3999 = vunpack.c.l.b16 %v3486
      %v4000 = vunpack.c.h.b16 %v3486
      %v4001 = vunpack.c.l.b16 %v3487
      %v4002 = vunpack.c.h.b16 %v3487
      %v4003 = vunpack.c.l.b16 %v3488
      %v4004 = vunpack.c.h.b16 %v3488
      %v4005 = vunpack.c.l.b16 %v3489
      %v4006 = vunpack.c.l.b16 %v3490
      %v4007 = vunpack.c.h.b16 %v3490
      %v4008 = vunpack.c.l.b16 %v3491
      %v4009 = vunpack.c.h.b16 %v3491
      %v4010 = vunpack.c.l.b16 %v3492
      %v4011 = vunpack.c.h.b16 %v3492
      %v4012 = vunpack.c.l.b16 %v3493
      %v4013 = vunpack.c.h.b16 %v3493
      %v4014 = vunpack.c.l.b16 %v3494
      %v4015 = vunpack.c.l.b16 %v3495
      %v4016 = vunpack.c.h.b16 %v3495
      %v4017 = vunpack.c.l.b16 %v3496
      %v4018 = vunpack.c.h.b16 %v3496
      %v4019 = vunpack.c.l.b16 %v3497
      %v4020 = vunpack.c.h.b16 %v3497
      %v4021 = vunpack.c.l.b16 %v3498
      %v4022 = vunpack.c.h.b16 %v3498
      %v4023 = vunpack.c.l.b16 %v3499
      %v4024 = vunpack.c.l.b16 %v3500
      %v4025 = vunpack.c.h.b16 %v3500
      %v4026 = vunpack.c.l.b16 %v3501
      %v4027 = vunpack.c.h.b16 %v3501
      %v4028 = vunpack.c.l.b16 %v3502
      %v4029 = vunpack.c.h.b16 %v3502
      %v4030 = vunpack.c.l.b16 %v3503
      %v4031 = vunpack.c.h.b16 %v3503
      %v4032 = vunpack.c.l.b16 %v3504
      %v4033 = vunpack.c.l.b16 %v3505
      %v4034 = vunpack.c.h.b16 %v3505
      %v4035 = vunpack.c.l.b16 %v3506
      %v4036 = vunpack.c.h.b16 %v3506
      %v4037 = vunpack.c.l.b16 %v3507
      %v4038 = vunpack.c.h.b16 %v3507
      %v4039 = vunpack.c.l.b16 %v3508
      %v4040 = vunpack.c.h.b16 %v3508
      %v4041 = vunpack.c.l.b16 %v3509
      %v4042 = vunpack.c.l.b16 %v3510
      %v4043 = vunpack.c.h.b16 %v3510
      %v4044 = vunpack.c.l.b16 %v3511
      %v4045 = vunpack.c.h.b16 %v3511
      %v4046 = vunpack.c.l.b16 %v3512
      %v4047 = vunpack.c.h.b16 %v3512
      %v4048 = vunpack.c.l.b16 %v3513
      %v4049 = vunpack.c.h.b16 %v3513
      %v4050 = vunpack.c.l.b16 %v3514
      %v4051 = vunpack.c.l.b16 %v3515
      %v4052 = vunpack.c.h.b16 %v3515
      %v4053 = vunpack.c.l.b16 %v3516
      %v4054 = vunpack.c.h.b16 %v3516
      %v4055 = vunpack.c.l.b16 %v3517
      %v4056 = vunpack.c.h.b16 %v3517
      %v4057 = vunpack.c.l.b16 %v3518
      %v4058 = vunpack.c.h.b16 %v3518
      %v4059 = vunpack.c.l.b16 %v3519
      %v4060 = vunpack.c.l.b16 %v3520
      %v4061 = vunpack.c.h.b16 %v3520
      %v4062 = vunpack.c.l.b16 %v3521
      %v4063 = vunpack.c.h.b16 %v3521
      %v4064 = vunpack.c.l.b16 %v3522
      %v4065 = vunpack.c.h.b16 %v3522
      %v4066 = vunpack.c.l.b16 %v3523
      %v4067 = vunpack.c.h.b16 %v3523
      %v4068 = vunpack.c.l.b16 %v3524
      %v4069 = vunpack.c.l.b16 %v3525
      %v4070 = vunpack.c.h.b16 %v3525
      %v4071 = vunpack.c.l.b16 %v3526
      %v4072 = vunpack.c.h.b16 %v3526
      %v4073 = vunpack.c.l.b16 %v3527
      %v4074 = vunpack.c.h.b16 %v3527
      %v4075 = vunpack.c.l.b16 %v3528
      %v4076 = vunpack.c.h.b16 %v3528
      %v4077 = vunpack.c.l.b16 %v3529
      %v4078 = vunpack.c.l.b16 %v3530
      %v4079 = vunpack.c.h.b16 %v3530
      %v4080 = vunpack.c.l.b16 %v3531
      %v4081 = vunpack.c.h.b16 %v3531
      %v4082 = vunpack.c.l.b16 %v3532
      %v4083 = vunpack.c.h.b16 %v3532
      %v4084 = vunpack.c.l.b16 %v3533
      %v4085 = vunpack.c.h.b16 %v3533
      %v4086 = vunpack.c.l.b16 %v3534
      %v4087 = vunpack.c.l.b16 %v3535
      %v4088 = vunpack.c.h.b16 %v3535
      %v4089 = vunpack.c.l.b16 %v3536
      %v4090 = vunpack.c.h.b16 %v3536
      %v4091 = vunpack.c.l.b16 %v3537
      %v4092 = vunpack.c.h.b16 %v3537
      %v4093 = vunpack.c.l.b16 %v3538
      %v4094 = vunpack.c.h.b16 %v3538
      %v4095 = vunpack.c.l.b16 %v3539
      %v4096 = vunpack.c.l.b16 %v3540
      %v4097 = vunpack.c.h.b16 %v3540
      %v4098 = vunpack.c.l.b16 %v3541
      %v4099 = vunpack.c.h.b16 %v3541
      %v4100 = vunpack.c.l.b16 %v3542
      %v4101 = vunpack.c.h.b16 %v3542
      %v4102 = vunpack.c.l.b16 %v3543
      %v4103 = vunpack.c.h.b16 %v3543
      %v4104 = vunpack.c.l.b16 %v3544
      %v4105 = vunpack.c.l.b16 %v3545
      %v4106 = vunpack.c.h.b16 %v3545
      %v4107 = vunpack.c.l.b16 %v3546
      %v4108 = vunpack.c.h.b16 %v3546
      %v4109 = vunpack.c.l.b16 %v3547
      %v4110 = vunpack.c.h.b16 %v3547
      %v4111 = vunpack.c.l.b16 %v3548
      %v4112 = vunpack.c.h.b16 %v3548
      %v4113 = vunpack.c.l.b16 %v3549
      %v4114 = vunpack.c.l.b16 %v3550
      %v4115 = vunpack.c.h.b16 %v3550
      %v4116 = vunpack.c.l.b16 %v3551
      %v4117 = vunpack.c.h.b16 %v3551
      %v4118 = vunpack.c.l.b16 %v3552
      %v4119 = vunpack.c.h.b16 %v3552
      %v4120 = vunpack.c.l.b16 %v3553
      %v4121 = vunpack.c.h.b16 %v3553
      %v4122 = vunpack.c.l.b16 %v3554
      %v4123 = vunpack.c.l.b16 %v3555
      %v4124 = vunpack.c.h.b16 %v3555
      %v4125 = vunpack.c.l.b16 %v3556
      %v4126 = vunpack.c.h.b16 %v3556
      %v4127 = vunpack.c.l.b16 %v3557
      %v4128 = vunpack.c.h.b16 %v3557
      %v4129 = vunpack.c.l.b16 %v3558
      %v4130 = vunpack.c.h.b16 %v3558
      %v4131 = vunpack.c.l.b16 %v3559
      %v4132 = vunpack.c.l.b16 %v3560
      %v4133 = vunpack.c.h.b16 %v3560
      %v4134 = vunpack.c.l.b16 %v3561
      %v4135 = vunpack.c.h.b16 %v3561
      %v4136 = vunpack.c.l.b16 %v3562
      %v4137 = vunpack.c.h.b16 %v3562
      %v4138 = vunpack.c.l.b16 %v3563
      %v4139 = vunpack.c.h.b16 %v3563
      %v4140 = vunpack.c.l.b16 %v3564
      %v4141 = vunpack.c.l.b16 %v3565
      %v4142 = vunpack.c.h.b16 %v3565
      %v4143 = vunpack.c.l.b16 %v3566
      %v4144 = vunpack.c.h.b16 %v3566
      %v4145 = vunpack.c.l.b16 %v3567
      %v4146 = vunpack.c.h.b16 %v3567
      %v4147 = vunpack.c.l.b16 %v3568
      %v4148 = vunpack.c.h.b16 %v3568
      %v4149 = vunpack.c.l.b16 %v3569
      %v4150 = vunpack.c.l.b16 %v3570
      %v4151 = vunpack.c.h.b16 %v3570
      %v4152 = vunpack.c.l.b16 %v3571
      %v4153 = vunpack.c.h.b16 %v3571
      %v4154 = vunpack.c.l.b16 %v3572
      %v4155 = vunpack.c.h.b16 %v3572
      %v4156 = vunpack.c.l.b16 %v3573
      %v4157 = vunpack.c.h.b16 %v3573
      %v4158 = vunpack.c.l.b16 %v3574
      %v4159 = vunpack.c.l.b16 %v3575
      %v4160 = vunpack.c.h.b16 %v3575
      %v4161 = vunpack.c.l.b16 %v3576
      %v4162 = vunpack.c.h.b16 %v3576
      %v4163 = vunpack.c.l.b16 %v3577
      %v4164 = vunpack.c.h.b16 %v3577
      %v4165 = vunpack.c.l.b16 %v3578
      %v4166 = vunpack.c.h.b16 %v3578
      %v4167 = vunpack.c.l.b16 %v3579
      %v4168 = vunpack.c.l.b16 %v3580
      %v4169 = vunpack.c.h.b16 %v3580
      %v4170 = vunpack.c.l.b16 %v3581
      %v4171 = vunpack.c.h.b16 %v3581
      %v4172 = vunpack.c.l.b16 %v3582
      %v4173 = vunpack.c.h.b16 %v3582
      %v4174 = vunpack.c.l.b16 %v3583
      %v4175 = vunpack.c.h.b16 %v3583
      %v4176 = vunpack.c.l.b16 %v3584
      %v4177 = vunpack.c.l.b16 %v3585
      %v4178 = vunpack.c.h.b16 %v3585
      %v4179 = vunpack.c.l.b16 %v3586
      %v4180 = vunpack.c.h.b16 %v3586
      %v4181 = vunpack.c.l.b16 %v3587
      %v4182 = vunpack.c.h.b16 %v3587
      %v4183 = vunpack.c.l.b16 %v3588
      %v4184 = vunpack.c.h.b16 %v3588
      %v4185 = vunpack.c.l.b16 %v3589
      %v4186 = vpack.c.b16 %v3907, %v3898
      %v4187 = vpack.c.b16 %v3908, %v3899
      %v4188 = vpack.c.b16 %v3909, %v3900
      %v4189 = vpack.c.b16 %v3910, %v3901
      %v4190 = vpack.c.b16 %v3911, %v3902
      %v4191 = vpack.c.b16 %v3912, %v3903
      %v4192 = vpack.c.b16 %v3913, %v3904
      %v4193 = vpack.c.b16 %v3914, %v3905
      %v4194 = vpack.c.b16 %v3915, %v3906
      %v4195 = vpack.c.b16 %v3925, %v3916
      %v4196 = vpack.c.b16 %v3926, %v3917
      %v4197 = vpack.c.b16 %v3927, %v3918
      %v4198 = vpack.c.b16 %v3928, %v3919
      %v4199 = vpack.c.b16 %v3929, %v3920
      %v4200 = vpack.c.b16 %v3930, %v3921
      %v4201 = vpack.c.b16 %v3931, %v3922
      %v4202 = vpack.c.b16 %v3932, %v3923
      %v4203 = vpack.c.b16 %v3933, %v3924
      %v4204 = vpack.c.b16 %v3943, %v3934
      %v4205 = vpack.c.b16 %v3944, %v3935
      %v4206 = vpack.c.b16 %v3945, %v3936
      %v4207 = vpack.c.b16 %v3946, %v3937
      %v4208 = vpack.c.b16 %v3947, %v3938
      %v4209 = vpack.c.b16 %v3948, %v3939
      %v4210 = vpack.c.b16 %v3949, %v3940
      %v4211 = vpack.c.b16 %v3950, %v3941
      %v4212 = vpack.c.b16 %v3951, %v3942
      %v4213 = vpack.c.b16 %v3961, %v3952
      %v4214 = vpack.c.b16 %v3962, %v3953
      %v4215 = vpack.c.b16 %v3963, %v3954
      %v4216 = vpack.c.b16 %v3964, %v3955
      %v4217 = vpack.c.b16 %v3965, %v3956
      %v4218 = vpack.c.b16 %v3966, %v3957
      %v4219 = vpack.c.b16 %v3967, %v3958
      %v4220 = vpack.c.b16 %v3968, %v3959
      %v4221 = vpack.c.b16 %v3969, %v3960
      %v4222 = vpack.c.b16 %v3979, %v3970
      %v4223 = vpack.c.b16 %v3980, %v3971
      %v4224 = vpack.c.b16 %v3981, %v3972
      %v4225 = vpack.c.b16 %v3982, %v3973
      %v4226 = vpack.c.b16 %v3983, %v3974
      %v4227 = vpack.c.b16 %v3984, %v3975
      %v4228 = vpack.c.b16 %v3985, %v3976
      %v4229 = vpack.c.b16 %v3986, %v3977
      %v4230 = vpack.c.b16 %v3987, %v3978
      %v4231 = vpack.c.b16 %v3997, %v3988
      %v4232 = vpack.c.b16 %v3998, %v3989
      %v4233 = vpack.c.b16 %v3999, %v3990
      %v4234 = vpack.c.b16 %v4000, %v3991
      %v4235 = vpack.c.b16 %v4001, %v3992
      %v4236 = vpack.c.b16 %v4002, %v3993
      %v4237 = vpack.c.b16 %v4003, %v3994
      %v4238 = vpack.c.b16 %v4004, %v3995
      %v4239 = vpack.c.b16 %v4005, %v3996
      %v4240 = vpack.c.b16 %v4015, %v4006
      %v4241 = vpack.c.b16 %v4016, %v4007
      %v4242 = vpack.c.b16 %v4017, %v4008
      %v4243 = vpack.c.b16 %v4018, %v4009
      %v4244 = vpack.c.b16 %v4019, %v4010
      %v4245 = vpack.c.b16 %v4020, %v4011
      %v4246 = vpack.c.b16 %v4021, %v4012
      %v4247 = vpack.c.b16 %v4022, %v4013
      %v4248 = vpack.c.b16 %v4023, %v4014
      %v4249 = vpack.c.b16 %v4033, %v4024
      %v4250 = vpack.c.b16 %v4034, %v4025
      %v4251 = vpack.c.b16 %v4035, %v4026
      %v4252 = vpack.c.b16 %v4036, %v4027
      %v4253 = vpack.c.b16 %v4037, %v4028
      %v4254 = vpack.c.b16 %v4038, %v4029
      %v4255 = vpack.c.b16 %v4039, %v4030
      %v4256 = vpack.c.b16 %v4040, %v4031
      %v4257 = vpack.c.b16 %v4041, %v4032
      %v4258 = vpack.c.b16 %v4051, %v4042
      %v4259 = vpack.c.b16 %v4052, %v4043
      %v4260 = vpack.c.b16 %v4053, %v4044
      %v4261 = vpack.c.b16 %v4054, %v4045
      %v4262 = vpack.c.b16 %v4055, %v4046
      %v4263 = vpack.c.b16 %v4056, %v4047
      %v4264 = vpack.c.b16 %v4057, %v4048
      %v4265 = vpack.c.b16 %v4058, %v4049
      %v4266 = vpack.c.b16 %v4059, %v4050
      %v4267 = vpack.c.b16 %v4069, %v4060
      %v4268 = vpack.c.b16 %v4070, %v4061
      %v4269 = vpack.c.b16 %v4071, %v4062
      %v4270 = vpack.c.b16 %v4072, %v4063
      %v4271 = vpack.c.b16 %v4073, %v4064
      %v4272 = vpack.c.b16 %v4074, %v4065
      %v4273 = vpack.c.b16 %v4075, %v4066
      %v4274 = vpack.c.b16 %v4076, %v4067
      %v4275 = vpack.c.b16 %v4077, %v4068
      %v4276 = vpack.c.b16 %v4087, %v4078
      %v4277 = vpack.c.b16 %v4088, %v4079
      %v4278 = vpack.c.b16 %v4089, %v4080
      %v4279 = vpack.c.b16 %v4090, %v4081
      %v4280 = vpack.c.b16 %v4091, %v4082
      %v4281 = vpack.c.b16 %v4092, %v4083
      %v4282 = vpack.c.b16 %v4093, %v4084
      %v4283 = vpack.c.b16 %v4094, %v4085
      %v4284 = vpack.c.b16 %v4095, %v4086
      %v4285 = vpack.c.b16 %v4105, %v4096
      %v4286 = vpack.c.b16 %v4106, %v4097
      %v4287 = vpack.c.b16 %v4107, %v4098
      %v4288 = vpack.c.b16 %v4108, %v4099
      %v4289 = vpack.c.b16 %v4109, %v4100
      %v4290 = vpack.c.b16 %v4110, %v4101
      %v4291 = vpack.c.b16 %v4111, %v4102
      %v4292 = vpack.c.b16 %v4112, %v4103
      %v4293 = vpack.c.b16 %v4113, %v4104
      %v4294 = vpack.c.b16 %v4123, %v4114
      %v4295 = vpack.c.b16 %v4124, %v4115
      %v4296 = vpack.c.b16 %v4125, %v4116
      %v4297 = vpack.c.b16 %v4126, %v4117
      %v4298 = vpack.c.b16 %v4127, %v4118
      %v4299 = vpack.c.b16 %v4128, %v4119
      %v4300 = vpack.c.b16 %v4129, %v4120
      %v4301 = vpack.c.b16 %v4130, %v4121
      %v4302 = vpack.c.b16 %v4131, %v4122
      %v4303 = vpack.c.b16 %v4141, %v4132
      %v4304 = vpack.c.b16 %v4142, %v4133
      %v4305 = vpack.c.b16 %v4143, %v4134
      %v4306 = vpack.c.b16 %v4144, %v4135
      %v4307 = vpack.c.b16 %v4145, %v4136
      %v4308 = vpack.c.b16 %v4146, %v4137
      %v4309 = vpack.c.b16 %v4147, %v4138
      %v4310 = vpack.c.b16 %v4148, %v4139
      %v4311 = vpack.c.b16 %v4149, %v4140
      %v4312 = vpack.c.b16 %v4159, %v4150
      %v4313 = vpack.c.b16 %v4160, %v4151
      %v4314 = vpack.c.b16 %v4161, %v4152
      %v4315 = vpack.c.b16 %v4162, %v4153
      %v4316 = vpack.c.b16 %v4163, %v4154
      %v4317 = vpack.c.b16 %v4164, %v4155
      %v4318 = vpack.c.b16 %v4165, %v4156
      %v4319 = vpack.c.b16 %v4166, %v4157
      %v4320 = vpack.c.b16 %v4167, %v4158
      %v4321 = vpack.c.b16 %v4177, %v4168
      %v4322 = vpack.c.b16 %v4178, %v4169
      %v4323 = vpack.c.b16 %v4179, %v4170
      %v4324 = vpack.c.b16 %v4180, %v4171
      %v4325 = vpack.c.b16 %v4181, %v4172
      %v4326 = vpack.c.b16 %v4182, %v4173
      %v4327 = vpack.c.b16 %v4183, %v4174
      %v4328 = vpack.c.b16 %v4184, %v4175
      %v4329 = vpack.c.b16 %v4185, %v4176
      %v4618 = vunpack.c.l.b16 %v3590
      %v4619 = vunpack.c.l.b16 %v3591
      %v4620 = vunpack.c.l.b16 %v3592
      %v4621 = vunpack.c.l.b16 %v3593
      %v4622 = vunpack.c.l.b16 %v3594
      %v4623 = vunpack.c.l.b16 %v3595
      %v4624 = vunpack.c.l.b16 %v3596
      %v4625 = vunpack.c.l.b16 %v3597
      %v4626 = vunpack.c.l.b16 %v3598
      %v4627 = vunpack.c.l.b16 %v3599
      %v4628 = vunpack.c.l.b16 %v3600
      %v4629 = vunpack.c.l.b16 %v3601
      %v4630 = vunpack.c.l.b16 %v3602
      %v4631 = vunpack.c.l.b16 %v3603
      %v4632 = vunpack.c.l.b16 %v3604
      %v4633 = vunpack.c.l.b16 %v3605
      %v4634 = vunpack.c.l.b16 %v3606
      %v4635 = vunpack.c.l.b16 %v3607
      %v4636 = vunpack.c.l.b16 %v3608
      %v4637 = vunpack.c.l.b16 %v3609
      %v4638 = vunpack.c.l.b16 %v3610
      %v4639 = vunpack.c.l.b16 %v3611
      %v4640 = vunpack.c.l.b16 %v3612
      %v4641 = vunpack.c.l.b16 %v3613
      %v4642 = vunpack.c.l.b16 %v3614
      %v4643 = vunpack.c.l.b16 %v3615
      %v4644 = vunpack.c.l.b16 %v3616
      %v4645 = vunpack.c.l.b16 %v3617
      %v4646 = vunpack.c.l.b16 %v3618
      %v4647 = vunpack.c.l.b16 %v3619
      %v4648 = vunpack.c.l.b16 %v3620
      %v4649 = vunpack.c.l.b16 %v3621
      %v4650 = vunpack.c.l.b16 %v3622
      %v4651 = vunpack.c.l.b16 %v3623
      %v4652 = vunpack.c.l.b16 %v3624
      %v4653 = vunpack.c.l.b16 %v3625
      %v4654 = vunpack.c.l.b16 %v3626
      %v4655 = vunpack.c.l.b16 %v3627
      %v4656 = vunpack.c.l.b16 %v3628
      %v4657 = vunpack.c.l.b16 %v3629
      %v4658 = vunpack.c.l.b16 %v3630
      %v4659 = vunpack.c.l.b16 %v3631
      %v4660 = vunpack.c.l.b16 %v3632
      %v4661 = vunpack.c.l.b16 %v3633
      %v4662 = vunpack.c.l.b16 %v3634
      %v4663 = vunpack.c.l.b16 %v3635
      %v4664 = vunpack.c.l.b16 %v3636
      %v4665 = vunpack.c.l.b16 %v3637
      %v4666 = vunpack.c.l.b16 %v3638
      %v4667 = vunpack.c.l.b16 %v3639
      %v4668 = vunpack.c.l.b16 %v3640
      %v4669 = vunpack.c.l.b16 %v3641
      %v4670 = vunpack.c.l.b16 %v3642
      %v4671 = vunpack.c.l.b16 %v3643
      %v4672 = vunpack.c.l.b16 %v3644
      %v4673 = vunpack.c.l.b16 %v3645
      %v4674 = vunpack.c.l.b16 %v3646
      %v4675 = vunpack.c.l.b16 %v3647
      %v4676 = vunpack.c.l.b16 %v3648
      %v4677 = vunpack.c.l.b16 %v3649
      %v4678 = vunpack.c.l.b16 %v3650
      %v4679 = vunpack.c.l.b16 %v3651
      %v4680 = vunpack.c.l.b16 %v3652
      %v4681 = vunpack.c.l.b16 %v3653
      %v4682 = vunpack.c.l.b16 %v3654
      %v4683 = vunpack.c.l.b16 %v3655
      %v4684 = vunpack.c.l.b16 %v3656
      %v4685 = vunpack.c.l.b16 %v3657
      %v4686 = vunpack.c.l.b16 %v3658
      %v4687 = vunpack.c.l.b16 %v3659
      %v4688 = vunpack.c.l.b16 %v3660
      %v4689 = vunpack.c.l.b16 %v3661
      %v4690 = vunpack.c.l.b16 %v3662
      %v4691 = vunpack.c.l.b16 %v3663
      %v4692 = vunpack.c.l.b16 %v3664
      %v4693 = vunpack.c.l.b16 %v3665
      %v4694 = vunpack.c.l.b16 %v3666
      %v4695 = vunpack.c.l.b16 %v3667
      %v4696 = vunpack.c.l.b16 %v3668
      %v4697 = vunpack.c.l.b16 %v3669
      %v4698 = vunpack.c.l.b16 %v3670
      %v4699 = vunpack.c.l.b16 %v3671
      %v4700 = vunpack.c.l.b16 %v3672
      %v4701 = vunpack.c.l.b16 %v3673
      %v4702 = vunpack.c.l.b16 %v3674
      %v4703 = vunpack.c.l.b16 %v3675
      %v4704 = vunpack.c.l.b16 %v3676
      %v4705 = vunpack.c.l.b16 %v3677
      %v4706 = vunpack.c.l.b16 %v3678
      %v4707 = vunpack.c.l.b16 %v3679
      %v4708 = vunpack.c.l.b16 %v3680
      %v4709 = vunpack.c.l.b16 %v3681
      %v4710 = vunpack.c.l.b16 %v3682
      %v4711 = vunpack.c.l.b16 %v3683
      %v4712 = vunpack.c.l.b16 %v3684
      %v4713 = vunpack.c.l.b16 %v3685
      %v4714 = vunpack.c.l.b16 %v3686
      %v4715 = vunpack.c.l.b16 %v3687
      %v4716 = vunpack.c.l.b16 %v3688
      %v4717 = vunpack.c.l.b16 %v3689
      %v4718 = vunpack.c.l.b16 %v3690
      %v4719 = vunpack.c.l.b16 %v3691
      %v4720 = vunpack.c.l.b16 %v3692
      %v4721 = vunpack.c.l.b16 %v3693
      %v4722 = vunpack.c.l.b16 %v3694
      %v4723 = vunpack.c.l.b16 %v3695
      %v4724 = vunpack.c.l.b16 %v3696
      %v4725 = vunpack.c.l.b16 %v3697
      %v4726 = vunpack.c.l.b16 %v3698
      %v4727 = vunpack.c.l.b16 %v3699
      %v4728 = vunpack.c.l.b16 %v3700
      %v4729 = vunpack.c.l.b16 %v3701
      %v4730 = vunpack.c.l.b16 %v3702
      %v4731 = vunpack.c.l.b16 %v3703
      %v4732 = vunpack.c.l.b16 %v3704
      %v4733 = vunpack.c.l.b16 %v3705
      %v4734 = vunpack.c.l.b16 %v3706
      %v4735 = vunpack.c.l.b16 %v3707
      %v4736 = vunpack.c.l.b16 %v3708
      %v4737 = vunpack.c.l.b16 %v3709
      %v4738 = vunpack.c.l.b16 %v3710
      %v4739 = vunpack.c.l.b16 %v3711
      %v4740 = vunpack.c.l.b16 %v3712
      %v4741 = vunpack.c.l.b16 %v3713
      %v4742 = vunpack.c.l.b16 %v3714
      %v4743 = vunpack.c.l.b16 %v3715
      %v4744 = vunpack.c.l.b16 %v3716
      %v4745 = vunpack.c.l.b16 %v3717
      %v4746 = vunpack.c.l.b16 %v3718
      %v4747 = vunpack.c.l.b16 %v3719
      %v4748 = vunpack.c.l.b16 %v3720
      %v4749 = vunpack.c.l.b16 %v3721
      %v4750 = vunpack.c.l.b16 %v3722
      %v4751 = vunpack.c.l.b16 %v3723
      %v4752 = vunpack.c.l.b16 %v3724
      %v4753 = vunpack.c.l.b16 %v3725
      %v4754 = vunpack.c.l.b16 %v3726
      %v4755 = vunpack.c.l.b16 %v3727
      %v4756 = vunpack.c.l.b16 %v3728
      %v4757 = vunpack.c.l.b16 %v3729
      %v4758 = vunpack.c.l.b16 %v3730
      %v4759 = vunpack.c.l.b16 %v3731
      %v4760 = vunpack.c.l.b16 %v3732
      %v4761 = vunpack.c.l.b16 %v3733
      %v4762 = vpack.c.b16 %v4619, %v4618
      %v4763 = vpack.c.b16 %v4621, %v4620
      %v4764 = vpack.c.b16 %v4623, %v4622
      %v4765 = vpack.c.b16 %v4625, %v4624
      %v4766 = vpack.c.b16 %v4627, %v4626
      %v4767 = vpack.c.b16 %v4629, %v4628
      %v4768 = vpack.c.b16 %v4631, %v4630
      %v4769 = vpack.c.b16 %v4633, %v4632
      %v4770 = vpack.c.b16 %v4635, %v4634
      %v4771 = vpack.c.b16 %v4637, %v4636
      %v4772 = vpack.c.b16 %v4639, %v4638
      %v4773 = vpack.c.b16 %v4641, %v4640
      %v4774 = vpack.c.b16 %v4643, %v4642
      %v4775 = vpack.c.b16 %v4645, %v4644
      %v4776 = vpack.c.b16 %v4647, %v4646
      %v4777 = vpack.c.b16 %v4649, %v4648
      %v4778 = vpack.c.b16 %v4651, %v4650
      %v4779 = vpack.c.b16 %v4653, %v4652
      %v4780 = vpack.c.b16 %v4655, %v4654
      %v4781 = vpack.c.b16 %v4657, %v4656
      %v4782 = vpack.c.b16 %v4659, %v4658
      %v4783 = vpack.c.b16 %v4661, %v4660
      %v4784 = vpack.c.b16 %v4663, %v4662
      %v4785 = vpack.c.b16 %v4665, %v4664
      %v4786 = vpack.c.b16 %v4667, %v4666
      %v4787 = vpack.c.b16 %v4669, %v4668
      %v4788 = vpack.c.b16 %v4671, %v4670
      %v4789 = vpack.c.b16 %v4673, %v4672
      %v4790 = vpack.c.b16 %v4675, %v4674
      %v4791 = vpack.c.b16 %v4677, %v4676
      %v4792 = vpack.c.b16 %v4679, %v4678
      %v4793 = vpack.c.b16 %v4681, %v4680
      %v4794 = vpack.c.b16 %v4683, %v4682
      %v4795 = vpack.c.b16 %v4685, %v4684
      %v4796 = vpack.c.b16 %v4687, %v4686
      %v4797 = vpack.c.b16 %v4689, %v4688
      %v4798 = vpack.c.b16 %v4691, %v4690
      %v4799 = vpack.c.b16 %v4693, %v4692
      %v4800 = vpack.c.b16 %v4695, %v4694
      %v4801 = vpack.c.b16 %v4697, %v4696
      %v4802 = vpack.c.b16 %v4699, %v4698
      %v4803 = vpack.c.b16 %v4701, %v4700
      %v4804 = vpack.c.b16 %v4703, %v4702
      %v4805 = vpack.c.b16 %v4705, %v4704
      %v4806 = vpack.c.b16 %v4707, %v4706
      %v4807 = vpack.c.b16 %v4709, %v4708
      %v4808 = vpack.c.b16 %v4711, %v4710
      %v4809 = vpack.c.b16 %v4713, %v4712
      %v4810 = vpack.c.b16 %v4715, %v4714
      %v4811 = vpack.c.b16 %v4717, %v4716
      %v4812 = vpack.c.b16 %v4719, %v4718
      %v4813 = vpack.c.b16 %v4721, %v4720
      %v4814 = vpack.c.b16 %v4723, %v4722
      %v4815 = vpack.c.b16 %v4725, %v4724
      %v4816 = vpack.c.b16 %v4727, %v4726
      %v4817 = vpack.c.b16 %v4729, %v4728
      %v4818 = vpack.c.b16 %v4731, %v4730
      %v4819 = vpack.c.b16 %v4733, %v4732
      %v4820 = vpack.c.b16 %v4735, %v4734
      %v4821 = vpack.c.b16 %v4737, %v4736
      %v4822 = vpack.c.b16 %v4739, %v4738
      %v4823 = vpack.c.b16 %v4741, %v4740
      %v4824 = vpack.c.b16 %v4743, %v4742
      %v4825 = vpack.c.b16 %v4745, %v4744
      %v4826 = vpack.c.b16 %v4747, %v4746
      %v4827 = vpack.c.b16 %v4749, %v4748
      %v4828 = vpack.c.b16 %v4751, %v4750
      %v4829 = vpack.c.b16 %v4753, %v4752
      %v4830 = vpack.c.b16 %v4755, %v4754
      %v4831 = vpack.c.b16 %v4757, %v4756
      %v4832 = vpack.c.b16 %v4759, %v4758
      %v4833 = vpack.c.b16 %v4761, %v4760
      %4906 = vmatpush.bf16.msra.mxu0 %v4769
      %4907 = vmatpush.bf16.msra.mxu0 %v4768
      %4908 = vmatpush.bf16.msra.mxu0 %v4767
      %4909 = vmatpush.bf16.msra.mxu0 %v4766
      %4910 = vmatpush.bf16.msra.mxu0 %v4765
      %4911 = vmatpush.bf16.msra.mxu0 %v4764
      %4912 = vmatpush.bf16.msra.mxu0 %v4763
      %4913 = vmatpush.bf16.msra.mxu0 %v4762
      %4914 = vmatmul.bf16.gmra.mxu0 %v4186
      %v4915 = vpop.f32.mrf.mxu0
      %v4916 = vadd.f32 %v3736, %v4915
      %v4917 = vpop.f32.mrf.mxu0
      %v4918 = vadd.f32 %v3736, %v4917
      %4919 = vmatmul.bf16.gmra.mxu0 %v4195
      %v4920 = vpop.f32.mrf.mxu0
      %v4921 = vadd.f32 %v3736, %v4920
      %v4922 = vpop.f32.mrf.mxu0
      %v4923 = vadd.f32 %v3736, %v4922
      %4924 = vmatmul.bf16.gmra.mxu0 %v4204
      %v4925 = vpop.f32.mrf.mxu0
      %v4926 = vadd.f32 %v3736, %v4925
      %v4927 = vpop.f32.mrf.mxu0
      %v4928 = vadd.f32 %v3736, %v4927
      %4929 = vmatmul.bf16.gmra.mxu0 %v4213
      %v4930 = vpop.f32.mrf.mxu0
      %v4931 = vadd.f32 %v3736, %v4930
      %v4932 = vpop.f32.mrf.mxu0
      %v4933 = vadd.f32 %v3736, %v4932
      %4934 = vmatmul.bf16.gmra.mxu0 %v4222
      %v4935 = vpop.f32.mrf.mxu0
      %v4936 = vadd.f32 %v3736, %v4935
      %v4937 = vpop.f32.mrf.mxu0
      %v4938 = vadd.f32 %v3736, %v4937
      %4939 = vmatmul.bf16.gmra.mxu0 %v4231
      %v4940 = vpop.f32.mrf.mxu0
      %v4941 = vadd.f32 %v3736, %v4940
      %v4942 = vpop.f32.mrf.mxu0
      %v4943 = vadd.f32 %v3736, %v4942
      %4944 = vmatmul.bf16.gmra.mxu0 %v4240
      %v4945 = vpop.f32.mrf.mxu0
      %v4946 = vadd.f32 %v3736, %v4945
      %v4947 = vpop.f32.mrf.mxu0
      %v4948 = vadd.f32 %v3736, %v4947
      %4949 = vmatmul.bf16.gmra.mxu0 %v4249
      %v4950 = vpop.f32.mrf.mxu0
      %v4951 = vadd.f32 %v3736, %v4950
      %v4952 = vpop.f32.mrf.mxu0
      %v4953 = vadd.f32 %v3736, %v4952
      %4954 = vmatmul.bf16.gmra.mxu0 %v4258
      %v4955 = vpop.f32.mrf.mxu0
      %v4956 = vadd.f32 %v3736, %v4955
      %v4957 = vpop.f32.mrf.mxu0
      %v4958 = vadd.f32 %v3736, %v4957
      %4959 = vmatmul.bf16.gmra.mxu0 %v4267
      %v4960 = vpop.f32.mrf.mxu0
      %v4961 = vadd.f32 %v3736, %v4960
      %v4962 = vpop.f32.mrf.mxu0
      %v4963 = vadd.f32 %v3736, %v4962
      %4964 = vmatmul.bf16.gmra.mxu0 %v4276
      %v4965 = vpop.f32.mrf.mxu0
      %v4966 = vadd.f32 %v3736, %v4965
      %v4967 = vpop.f32.mrf.mxu0
      %v4968 = vadd.f32 %v3736, %v4967
      %4969 = vmatmul.bf16.gmra.mxu0 %v4285
      %v4970 = vpop.f32.mrf.mxu0
      %v4971 = vadd.f32 %v3736, %v4970
      %v4972 = vpop.f32.mrf.mxu0
      %v4973 = vadd.f32 %v3736, %v4972
      %4974 = vmatmul.bf16.gmra.mxu0 %v4294
      %v4975 = vpop.f32.mrf.mxu0
      %v4976 = vadd.f32 %v3736, %v4975
      %v4977 = vpop.f32.mrf.mxu0
      %v4978 = vadd.f32 %v3736, %v4977
      %4979 = vmatmul.bf16.gmra.mxu0 %v4303
      %v4980 = vpop.f32.mrf.mxu0
      %v4981 = vadd.f32 %v3736, %v4980
      %v4982 = vpop.f32.mrf.mxu0
      %v4983 = vadd.f32 %v3736, %v4982
      %4984 = vmatmul.bf16.gmra.mxu0 %v4312
      %v4985 = vpop.f32.mrf.mxu0
      %v4986 = vadd.f32 %v3736, %v4985
      %v4987 = vpop.f32.mrf.mxu0
      %v4988 = vadd.f32 %v3736, %v4987
      %4989 = vmatmul.bf16.gmra.mxu0 %v4321
      %v4990 = vpop.f32.mrf.mxu0
      %v4991 = vadd.f32 %v3736, %v4990
      %v4992 = vpop.f32.mrf.mxu0
      %v4993 = vadd.f32 %v3736, %v4992
      %4994 = vdwg.mxu0
      %4995 = vmatpush.bf16.msra.mxu0 %v4777
      %4996 = vmatpush.bf16.msra.mxu0 %v4776
      %4997 = vmatpush.bf16.msra.mxu0 %v4775
      %4998 = vmatpush.bf16.msra.mxu0 %v4774
      %4999 = vmatpush.bf16.msra.mxu0 %v4773
      %5000 = vmatpush.bf16.msra.mxu0 %v4772
      %5001 = vmatpush.bf16.msra.mxu0 %v4771
      %5002 = vmatpush.bf16.msra.mxu0 %v4770
      %5003 = vmatmul.bf16.gmra.mxu0 %v4187
      %v5004 = vpop.f32.mrf.mxu0
      %v5005 = vadd.f32 %v4916, %v5004
      %v5006 = vpop.f32.mrf.mxu0
      %v5007 = vadd.f32 %v4918, %v5006
      %5008 = vmatmul.bf16.gmra.mxu0 %v4196
      %v5009 = vpop.f32.mrf.mxu0
      %v5010 = vadd.f32 %v4921, %v5009
      %v5011 = vpop.f32.mrf.mxu0
      %v5012 = vadd.f32 %v4923, %v5011
      %5013 = vmatmul.bf16.gmra.mxu0 %v4205
      %v5014 = vpop.f32.mrf.mxu0
      %v5015 = vadd.f32 %v4926, %v5014
      %v5016 = vpop.f32.mrf.mxu0
      %v5017 = vadd.f32 %v4928, %v5016
      %5018 = vmatmul.bf16.gmra.mxu0 %v4214
      %v5019 = vpop.f32.mrf.mxu0
      %v5020 = vadd.f32 %v4931, %v5019
      %v5021 = vpop.f32.mrf.mxu0
      %v5022 = vadd.f32 %v4933, %v5021
      %5023 = vmatmul.bf16.gmra.mxu0 %v4223
      %v5024 = vpop.f32.mrf.mxu0
      %v5025 = vadd.f32 %v4936, %v5024
      %v5026 = vpop.f32.mrf.mxu0
      %v5027 = vadd.f32 %v4938, %v5026
      %5028 = vmatmul.bf16.gmra.mxu0 %v4232
      %v5029 = vpop.f32.mrf.mxu0
      %v5030 = vadd.f32 %v4941, %v5029
      %v5031 = vpop.f32.mrf.mxu0
      %v5032 = vadd.f32 %v4943, %v5031
      %5033 = vmatmul.bf16.gmra.mxu0 %v4241
      %v5034 = vpop.f32.mrf.mxu0
      %v5035 = vadd.f32 %v4946, %v5034
      %v5036 = vpop.f32.mrf.mxu0
      %v5037 = vadd.f32 %v4948, %v5036
      %5038 = vmatmul.bf16.gmra.mxu0 %v4250
      %v5039 = vpop.f32.mrf.mxu0
      %v5040 = vadd.f32 %v4951, %v5039
      %v5041 = vpop.f32.mrf.mxu0
      %v5042 = vadd.f32 %v4953, %v5041
      %5043 = vmatmul.bf16.gmra.mxu0 %v4259
      %v5044 = vpop.f32.mrf.mxu0
      %v5045 = vadd.f32 %v4956, %v5044
      %v5046 = vpop.f32.mrf.mxu0
      %v5047 = vadd.f32 %v4958, %v5046
      %5048 = vmatmul.bf16.gmra.mxu0 %v4268
      %v5049 = vpop.f32.mrf.mxu0
      %v5050 = vadd.f32 %v4961, %v5049
      %v5051 = vpop.f32.mrf.mxu0
      %v5052 = vadd.f32 %v4963, %v5051
      %5053 = vmatmul.bf16.gmra.mxu0 %v4277
      %v5054 = vpop.f32.mrf.mxu0
      %v5055 = vadd.f32 %v4966, %v5054
      %v5056 = vpop.f32.mrf.mxu0
      %v5057 = vadd.f32 %v4968, %v5056
      %5058 = vmatmul.bf16.gmra.mxu0 %v4286
      %v5059 = vpop.f32.mrf.mxu0
      %v5060 = vadd.f32 %v4971, %v5059
      %v5061 = vpop.f32.mrf.mxu0
      %v5062 = vadd.f32 %v4973, %v5061
      %5063 = vmatmul.bf16.gmra.mxu0 %v4295
      %v5064 = vpop.f32.mrf.mxu0
      %v5065 = vadd.f32 %v4976, %v5064
      %v5066 = vpop.f32.mrf.mxu0
      %v5067 = vadd.f32 %v4978, %v5066
      %5068 = vmatmul.bf16.gmra.mxu0 %v4304
      %v5069 = vpop.f32.mrf.mxu0
      %v5070 = vadd.f32 %v4981, %v5069
      %v5071 = vpop.f32.mrf.mxu0
      %v5072 = vadd.f32 %v4983, %v5071
      %5073 = vmatmul.bf16.gmra.mxu0 %v4313
      %v5074 = vpop.f32.mrf.mxu0
      %v5075 = vadd.f32 %v4986, %v5074
      %v5076 = vpop.f32.mrf.mxu0
      %v5077 = vadd.f32 %v4988, %v5076
      %5078 = vmatmul.bf16.gmra.mxu0 %v4322
      %v5079 = vpop.f32.mrf.mxu0
      %v5080 = vadd.f32 %v4991, %v5079
      %v5081 = vpop.f32.mrf.mxu0
      %v5082 = vadd.f32 %v4993, %v5081
      %5083 = vdwg.mxu0
      %5084 = vmatpush.bf16.msra.mxu0 %v4785
      %5085 = vmatpush.bf16.msra.mxu0 %v4784
      %5086 = vmatpush.bf16.msra.mxu0 %v4783
      %5087 = vmatpush.bf16.msra.mxu0 %v4782
      %5088 = vmatpush.bf16.msra.mxu0 %v4781
      %5089 = vmatpush.bf16.msra.mxu0 %v4780
      %5090 = vmatpush.bf16.msra.mxu0 %v4779
      %5091 = vmatpush.bf16.msra.mxu0 %v4778
      %5092 = vmatmul.bf16.gmra.mxu0 %v4188
      %v5093 = vpop.f32.mrf.mxu0
      %v5094 = vadd.f32 %v5005, %v5093
      %v5095 = vpop.f32.mrf.mxu0
      %v5096 = vadd.f32 %v5007, %v5095
      %5097 = vmatmul.bf16.gmra.mxu0 %v4197
      %v5098 = vpop.f32.mrf.mxu0
      %v5099 = vadd.f32 %v5010, %v5098
      %v5100 = vpop.f32.mrf.mxu0
      %v5101 = vadd.f32 %v5012, %v5100
      %5102 = vmatmul.bf16.gmra.mxu0 %v4206
      %v5103 = vpop.f32.mrf.mxu0
      %v5104 = vadd.f32 %v5015, %v5103
      %v5105 = vpop.f32.mrf.mxu0
      %v5106 = vadd.f32 %v5017, %v5105
      %5107 = vmatmul.bf16.gmra.mxu0 %v4215
      %v5108 = vpop.f32.mrf.mxu0
      %v5109 = vadd.f32 %v5020, %v5108
      %v5110 = vpop.f32.mrf.mxu0
      %v5111 = vadd.f32 %v5022, %v5110
      %5112 = vmatmul.bf16.gmra.mxu0 %v4224
      %v5113 = vpop.f32.mrf.mxu0
      %v5114 = vadd.f32 %v5025, %v5113
      %v5115 = vpop.f32.mrf.mxu0
      %v5116 = vadd.f32 %v5027, %v5115
      %5117 = vmatmul.bf16.gmra.mxu0 %v4233
      %v5118 = vpop.f32.mrf.mxu0
      %v5119 = vadd.f32 %v5030, %v5118
      %v5120 = vpop.f32.mrf.mxu0
      %v5121 = vadd.f32 %v5032, %v5120
      %5122 = vmatmul.bf16.gmra.mxu0 %v4242
      %v5123 = vpop.f32.mrf.mxu0
      %v5124 = vadd.f32 %v5035, %v5123
      %v5125 = vpop.f32.mrf.mxu0
      %v5126 = vadd.f32 %v5037, %v5125
      %5127 = vmatmul.bf16.gmra.mxu0 %v4251
      %v5128 = vpop.f32.mrf.mxu0
      %v5129 = vadd.f32 %v5040, %v5128
      %v5130 = vpop.f32.mrf.mxu0
      %v5131 = vadd.f32 %v5042, %v5130
      %5132 = vmatmul.bf16.gmra.mxu0 %v4260
      %v5133 = vpop.f32.mrf.mxu0
      %v5134 = vadd.f32 %v5045, %v5133
      %v5135 = vpop.f32.mrf.mxu0
      %v5136 = vadd.f32 %v5047, %v5135
      %5137 = vmatmul.bf16.gmra.mxu0 %v4269
      %v5138 = vpop.f32.mrf.mxu0
      %v5139 = vadd.f32 %v5050, %v5138
      %v5140 = vpop.f32.mrf.mxu0
      %v5141 = vadd.f32 %v5052, %v5140
      %5142 = vmatmul.bf16.gmra.mxu0 %v4278
      %v5143 = vpop.f32.mrf.mxu0
      %v5144 = vadd.f32 %v5055, %v5143
      %v5145 = vpop.f32.mrf.mxu0
      %v5146 = vadd.f32 %v5057, %v5145
      %5147 = vmatmul.bf16.gmra.mxu0 %v4287
      %v5148 = vpop.f32.mrf.mxu0
      %v5149 = vadd.f32 %v5060, %v5148
      %v5150 = vpop.f32.mrf.mxu0
      %v5151 = vadd.f32 %v5062, %v5150
      %5152 = vmatmul.bf16.gmra.mxu0 %v4296
      %v5153 = vpop.f32.mrf.mxu0
      %v5154 = vadd.f32 %v5065, %v5153
      %v5155 = vpop.f32.mrf.mxu0
      %v5156 = vadd.f32 %v5067, %v5155
      %5157 = vmatmul.bf16.gmra.mxu0 %v4305
      %v5158 = vpop.f32.mrf.mxu0
      %v5159 = vadd.f32 %v5070, %v5158
      %v5160 = vpop.f32.mrf.mxu0
      %v5161 = vadd.f32 %v5072, %v5160
      %5162 = vmatmul.bf16.gmra.mxu0 %v4314
      %v5163 = vpop.f32.mrf.mxu0
      %v5164 = vadd.f32 %v5075, %v5163
      %v5165 = vpop.f32.mrf.mxu0
      %v5166 = vadd.f32 %v5077, %v5165
      %5167 = vmatmul.bf16.gmra.mxu0 %v4323
      %v5168 = vpop.f32.mrf.mxu0
      %v5169 = vadd.f32 %v5080, %v5168
      %v5170 = vpop.f32.mrf.mxu0
      %v5171 = vadd.f32 %v5082, %v5170
      %5172 = vdwg.mxu0
      %5173 = vmatpush.bf16.msra.mxu0 %v4793
      %5174 = vmatpush.bf16.msra.mxu0 %v4792
      %5175 = vmatpush.bf16.msra.mxu0 %v4791
      %5176 = vmatpush.bf16.msra.mxu0 %v4790
      %5177 = vmatpush.bf16.msra.mxu0 %v4789
      %5178 = vmatpush.bf16.msra.mxu0 %v4788
      %5179 = vmatpush.bf16.msra.mxu0 %v4787
      %5180 = vmatpush.bf16.msra.mxu0 %v4786
      %5181 = vmatmul.bf16.gmra.mxu0 %v4189
      %v5182 = vpop.f32.mrf.mxu0
      %v5183 = vadd.f32 %v5094, %v5182
      %v5184 = vpop.f32.mrf.mxu0
      %v5185 = vadd.f32 %v5096, %v5184
      %5186 = vmatmul.bf16.gmra.mxu0 %v4198
      %v5187 = vpop.f32.mrf.mxu0
      %v5188 = vadd.f32 %v5099, %v5187
      %v5189 = vpop.f32.mrf.mxu0
      %v5190 = vadd.f32 %v5101, %v5189
      %5191 = vmatmul.bf16.gmra.mxu0 %v4207
      %v5192 = vpop.f32.mrf.mxu0
      %v5193 = vadd.f32 %v5104, %v5192
      %v5194 = vpop.f32.mrf.mxu0
      %v5195 = vadd.f32 %v5106, %v5194
      %5196 = vmatmul.bf16.gmra.mxu0 %v4216
      %v5197 = vpop.f32.mrf.mxu0
      %v5198 = vadd.f32 %v5109, %v5197
      %v5199 = vpop.f32.mrf.mxu0
      %v5200 = vadd.f32 %v5111, %v5199
      %5201 = vmatmul.bf16.gmra.mxu0 %v4225
      %v5202 = vpop.f32.mrf.mxu0
      %v5203 = vadd.f32 %v5114, %v5202
      %v5204 = vpop.f32.mrf.mxu0
      %v5205 = vadd.f32 %v5116, %v5204
      %5206 = vmatmul.bf16.gmra.mxu0 %v4234
      %v5207 = vpop.f32.mrf.mxu0
      %v5208 = vadd.f32 %v5119, %v5207
      %v5209 = vpop.f32.mrf.mxu0
      %v5210 = vadd.f32 %v5121, %v5209
      %5211 = vmatmul.bf16.gmra.mxu0 %v4243
      %v5212 = vpop.f32.mrf.mxu0
      %v5213 = vadd.f32 %v5124, %v5212
      %v5214 = vpop.f32.mrf.mxu0
      %v5215 = vadd.f32 %v5126, %v5214
      %5216 = vmatmul.bf16.gmra.mxu0 %v4252
      %v5217 = vpop.f32.mrf.mxu0
      %v5218 = vadd.f32 %v5129, %v5217
      %v5219 = vpop.f32.mrf.mxu0
      %v5220 = vadd.f32 %v5131, %v5219
      %5221 = vmatmul.bf16.gmra.mxu0 %v4261
      %v5222 = vpop.f32.mrf.mxu0
      %v5223 = vadd.f32 %v5134, %v5222
      %v5224 = vpop.f32.mrf.mxu0
      %v5225 = vadd.f32 %v5136, %v5224
      %5226 = vmatmul.bf16.gmra.mxu0 %v4270
      %v5227 = vpop.f32.mrf.mxu0
      %v5228 = vadd.f32 %v5139, %v5227
      %v5229 = vpop.f32.mrf.mxu0
      %v5230 = vadd.f32 %v5141, %v5229
      %5231 = vmatmul.bf16.gmra.mxu0 %v4279
      %v5232 = vpop.f32.mrf.mxu0
      %v5233 = vadd.f32 %v5144, %v5232
      %v5234 = vpop.f32.mrf.mxu0
      %v5235 = vadd.f32 %v5146, %v5234
      %5236 = vmatmul.bf16.gmra.mxu0 %v4288
      %v5237 = vpop.f32.mrf.mxu0
      %v5238 = vadd.f32 %v5149, %v5237
      %v5239 = vpop.f32.mrf.mxu0
      %v5240 = vadd.f32 %v5151, %v5239
      %5241 = vmatmul.bf16.gmra.mxu0 %v4297
      %v5242 = vpop.f32.mrf.mxu0
      %v5243 = vadd.f32 %v5154, %v5242
      %v5244 = vpop.f32.mrf.mxu0
      %v5245 = vadd.f32 %v5156, %v5244
      %5246 = vmatmul.bf16.gmra.mxu0 %v4306
      %v5247 = vpop.f32.mrf.mxu0
      %v5248 = vadd.f32 %v5159, %v5247
      %v5249 = vpop.f32.mrf.mxu0
      %v5250 = vadd.f32 %v5161, %v5249
      %5251 = vmatmul.bf16.gmra.mxu0 %v4315
      %v5252 = vpop.f32.mrf.mxu0
      %v5253 = vadd.f32 %v5164, %v5252
      %v5254 = vpop.f32.mrf.mxu0
      %v5255 = vadd.f32 %v5166, %v5254
      %5256 = vmatmul.bf16.gmra.mxu0 %v4324
      %v5257 = vpop.f32.mrf.mxu0
      %v5258 = vadd.f32 %v5169, %v5257
      %v5259 = vpop.f32.mrf.mxu0
      %v5260 = vadd.f32 %v5171, %v5259
      %5261 = vdwg.mxu0
      %5262 = vmatpush.bf16.msra.mxu0 %v4801
      %5263 = vmatpush.bf16.msra.mxu0 %v4800
      %5264 = vmatpush.bf16.msra.mxu0 %v4799
      %5265 = vmatpush.bf16.msra.mxu0 %v4798
      %5266 = vmatpush.bf16.msra.mxu0 %v4797
      %5267 = vmatpush.bf16.msra.mxu0 %v4796
      %5268 = vmatpush.bf16.msra.mxu0 %v4795
      %5269 = vmatpush.bf16.msra.mxu0 %v4794
      %5270 = vmatmul.bf16.gmra.mxu0 %v4190
      %v5271 = vpop.f32.mrf.mxu0
      %v5272 = vadd.f32 %v5183, %v5271
      %v5273 = vpop.f32.mrf.mxu0
      %v5274 = vadd.f32 %v5185, %v5273
      %5275 = vmatmul.bf16.gmra.mxu0 %v4199
      %v5276 = vpop.f32.mrf.mxu0
      %v5277 = vadd.f32 %v5188, %v5276
      %v5278 = vpop.f32.mrf.mxu0
      %v5279 = vadd.f32 %v5190, %v5278
      %5280 = vmatmul.bf16.gmra.mxu0 %v4208
      %v5281 = vpop.f32.mrf.mxu0
      %v5282 = vadd.f32 %v5193, %v5281
      %v5283 = vpop.f32.mrf.mxu0
      %v5284 = vadd.f32 %v5195, %v5283
      %5285 = vmatmul.bf16.gmra.mxu0 %v4217
      %v5286 = vpop.f32.mrf.mxu0
      %v5287 = vadd.f32 %v5198, %v5286
      %v5288 = vpop.f32.mrf.mxu0
      %v5289 = vadd.f32 %v5200, %v5288
      %5290 = vmatmul.bf16.gmra.mxu0 %v4226
      %v5291 = vpop.f32.mrf.mxu0
      %v5292 = vadd.f32 %v5203, %v5291
      %v5293 = vpop.f32.mrf.mxu0
      %v5294 = vadd.f32 %v5205, %v5293
      %5295 = vmatmul.bf16.gmra.mxu0 %v4235
      %v5296 = vpop.f32.mrf.mxu0
      %v5297 = vadd.f32 %v5208, %v5296
      %v5298 = vpop.f32.mrf.mxu0
      %v5299 = vadd.f32 %v5210, %v5298
      %5300 = vmatmul.bf16.gmra.mxu0 %v4244
      %v5301 = vpop.f32.mrf.mxu0
      %v5302 = vadd.f32 %v5213, %v5301
      %v5303 = vpop.f32.mrf.mxu0
      %v5304 = vadd.f32 %v5215, %v5303
      %5305 = vmatmul.bf16.gmra.mxu0 %v4253
      %v5306 = vpop.f32.mrf.mxu0
      %v5307 = vadd.f32 %v5218, %v5306
      %v5308 = vpop.f32.mrf.mxu0
      %v5309 = vadd.f32 %v5220, %v5308
      %5310 = vmatmul.bf16.gmra.mxu0 %v4262
      %v5311 = vpop.f32.mrf.mxu0
      %v5312 = vadd.f32 %v5223, %v5311
      %v5313 = vpop.f32.mrf.mxu0
      %v5314 = vadd.f32 %v5225, %v5313
      %5315 = vmatmul.bf16.gmra.mxu0 %v4271
      %v5316 = vpop.f32.mrf.mxu0
      %v5317 = vadd.f32 %v5228, %v5316
      %v5318 = vpop.f32.mrf.mxu0
      %v5319 = vadd.f32 %v5230, %v5318
      %5320 = vmatmul.bf16.gmra.mxu0 %v4280
      %v5321 = vpop.f32.mrf.mxu0
      %v5322 = vadd.f32 %v5233, %v5321
      %v5323 = vpop.f32.mrf.mxu0
      %v5324 = vadd.f32 %v5235, %v5323
      %5325 = vmatmul.bf16.gmra.mxu0 %v4289
      %v5326 = vpop.f32.mrf.mxu0
      %v5327 = vadd.f32 %v5238, %v5326
      %v5328 = vpop.f32.mrf.mxu0
      %v5329 = vadd.f32 %v5240, %v5328
      %5330 = vmatmul.bf16.gmra.mxu0 %v4298
      %v5331 = vpop.f32.mrf.mxu0
      %v5332 = vadd.f32 %v5243, %v5331
      %v5333 = vpop.f32.mrf.mxu0
      %v5334 = vadd.f32 %v5245, %v5333
      %5335 = vmatmul.bf16.gmra.mxu0 %v4307
      %v5336 = vpop.f32.mrf.mxu0
      %v5337 = vadd.f32 %v5248, %v5336
      %v5338 = vpop.f32.mrf.mxu0
      %v5339 = vadd.f32 %v5250, %v5338
      %5340 = vmatmul.bf16.gmra.mxu0 %v4316
      %v5341 = vpop.f32.mrf.mxu0
      %v5342 = vadd.f32 %v5253, %v5341
      %v5343 = vpop.f32.mrf.mxu0
      %v5344 = vadd.f32 %v5255, %v5343
      %5345 = vmatmul.bf16.gmra.mxu0 %v4325
      %v5346 = vpop.f32.mrf.mxu0
      %v5347 = vadd.f32 %v5258, %v5346
      %v5348 = vpop.f32.mrf.mxu0
      %v5349 = vadd.f32 %v5260, %v5348
      %5350 = vdwg.mxu0
      %5351 = vmatpush.bf16.msra.mxu0 %v4809
      %5352 = vmatpush.bf16.msra.mxu0 %v4808
      %5353 = vmatpush.bf16.msra.mxu0 %v4807
      %5354 = vmatpush.bf16.msra.mxu0 %v4806
      %5355 = vmatpush.bf16.msra.mxu0 %v4805
      %5356 = vmatpush.bf16.msra.mxu0 %v4804
      %5357 = vmatpush.bf16.msra.mxu0 %v4803
      %5358 = vmatpush.bf16.msra.mxu0 %v4802
      %5359 = vmatmul.bf16.gmra.mxu0 %v4191
      %v5360 = vpop.f32.mrf.mxu0
      %v5361 = vadd.f32 %v5272, %v5360
      %v5362 = vpop.f32.mrf.mxu0
      %v5363 = vadd.f32 %v5274, %v5362
      %5364 = vmatmul.bf16.gmra.mxu0 %v4200
      %v5365 = vpop.f32.mrf.mxu0
      %v5366 = vadd.f32 %v5277, %v5365
      %v5367 = vpop.f32.mrf.mxu0
      %v5368 = vadd.f32 %v5279, %v5367
      %5369 = vmatmul.bf16.gmra.mxu0 %v4209
      %v5370 = vpop.f32.mrf.mxu0
      %v5371 = vadd.f32 %v5282, %v5370
      %v5372 = vpop.f32.mrf.mxu0
      %v5373 = vadd.f32 %v5284, %v5372
      %5374 = vmatmul.bf16.gmra.mxu0 %v4218
      %v5375 = vpop.f32.mrf.mxu0
      %v5376 = vadd.f32 %v5287, %v5375
      %v5377 = vpop.f32.mrf.mxu0
      %v5378 = vadd.f32 %v5289, %v5377
      %5379 = vmatmul.bf16.gmra.mxu0 %v4227
      %v5380 = vpop.f32.mrf.mxu0
      %v5381 = vadd.f32 %v5292, %v5380
      %v5382 = vpop.f32.mrf.mxu0
      %v5383 = vadd.f32 %v5294, %v5382
      %5384 = vmatmul.bf16.gmra.mxu0 %v4236
      %v5385 = vpop.f32.mrf.mxu0
      %v5386 = vadd.f32 %v5297, %v5385
      %v5387 = vpop.f32.mrf.mxu0
      %v5388 = vadd.f32 %v5299, %v5387
      %5389 = vmatmul.bf16.gmra.mxu0 %v4245
      %v5390 = vpop.f32.mrf.mxu0
      %v5391 = vadd.f32 %v5302, %v5390
      %v5392 = vpop.f32.mrf.mxu0
      %v5393 = vadd.f32 %v5304, %v5392
      %5394 = vmatmul.bf16.gmra.mxu0 %v4254
      %v5395 = vpop.f32.mrf.mxu0
      %v5396 = vadd.f32 %v5307, %v5395
      %v5397 = vpop.f32.mrf.mxu0
      %v5398 = vadd.f32 %v5309, %v5397
      %5399 = vmatmul.bf16.gmra.mxu0 %v4263
      %v5400 = vpop.f32.mrf.mxu0
      %v5401 = vadd.f32 %v5312, %v5400
      %v5402 = vpop.f32.mrf.mxu0
      %v5403 = vadd.f32 %v5314, %v5402
      %5404 = vmatmul.bf16.gmra.mxu0 %v4272
      %v5405 = vpop.f32.mrf.mxu0
      %v5406 = vadd.f32 %v5317, %v5405
      %v5407 = vpop.f32.mrf.mxu0
      %v5408 = vadd.f32 %v5319, %v5407
      %5409 = vmatmul.bf16.gmra.mxu0 %v4281
      %v5410 = vpop.f32.mrf.mxu0
      %v5411 = vadd.f32 %v5322, %v5410
      %v5412 = vpop.f32.mrf.mxu0
      %v5413 = vadd.f32 %v5324, %v5412
      %5414 = vmatmul.bf16.gmra.mxu0 %v4290
      %v5415 = vpop.f32.mrf.mxu0
      %v5416 = vadd.f32 %v5327, %v5415
      %v5417 = vpop.f32.mrf.mxu0
      %v5418 = vadd.f32 %v5329, %v5417
      %5419 = vmatmul.bf16.gmra.mxu0 %v4299
      %v5420 = vpop.f32.mrf.mxu0
      %v5421 = vadd.f32 %v5332, %v5420
      %v5422 = vpop.f32.mrf.mxu0
      %v5423 = vadd.f32 %v5334, %v5422
      %5424 = vmatmul.bf16.gmra.mxu0 %v4308
      %v5425 = vpop.f32.mrf.mxu0
      %v5426 = vadd.f32 %v5337, %v5425
      %v5427 = vpop.f32.mrf.mxu0
      %v5428 = vadd.f32 %v5339, %v5427
      %5429 = vmatmul.bf16.gmra.mxu0 %v4317
      %v5430 = vpop.f32.mrf.mxu0
      %v5431 = vadd.f32 %v5342, %v5430
      %v5432 = vpop.f32.mrf.mxu0
      %v5433 = vadd.f32 %v5344, %v5432
      %5434 = vmatmul.bf16.gmra.mxu0 %v4326
      %v5435 = vpop.f32.mrf.mxu0
      %v5436 = vadd.f32 %v5347, %v5435
      %v5437 = vpop.f32.mrf.mxu0
      %v5438 = vadd.f32 %v5349, %v5437
      %5439 = vdwg.mxu0
      %5440 = vmatpush.bf16.msra.mxu0 %v4817
      %5441 = vmatpush.bf16.msra.mxu0 %v4816
      %5442 = vmatpush.bf16.msra.mxu0 %v4815
      %5443 = vmatpush.bf16.msra.mxu0 %v4814
      %5444 = vmatpush.bf16.msra.mxu0 %v4813
      %5445 = vmatpush.bf16.msra.mxu0 %v4812
      %5446 = vmatpush.bf16.msra.mxu0 %v4811
      %5447 = vmatpush.bf16.msra.mxu0 %v4810
      %5448 = vmatmul.bf16.gmra.mxu0 %v4192
      %v5449 = vpop.f32.mrf.mxu0
      %v5450 = vadd.f32 %v5361, %v5449
      %v5451 = vpop.f32.mrf.mxu0
      %v5452 = vadd.f32 %v5363, %v5451
      %5453 = vmatmul.bf16.gmra.mxu0 %v4201
      %v5454 = vpop.f32.mrf.mxu0
      %v5455 = vadd.f32 %v5366, %v5454
      %v5456 = vpop.f32.mrf.mxu0
      %v5457 = vadd.f32 %v5368, %v5456
      %5458 = vmatmul.bf16.gmra.mxu0 %v4210
      %v5459 = vpop.f32.mrf.mxu0
      %v5460 = vadd.f32 %v5371, %v5459
      %v5461 = vpop.f32.mrf.mxu0
      %v5462 = vadd.f32 %v5373, %v5461
      %5463 = vmatmul.bf16.gmra.mxu0 %v4219
      %v5464 = vpop.f32.mrf.mxu0
      %v5465 = vadd.f32 %v5376, %v5464
      %v5466 = vpop.f32.mrf.mxu0
      %v5467 = vadd.f32 %v5378, %v5466
      %5468 = vmatmul.bf16.gmra.mxu0 %v4228
      %v5469 = vpop.f32.mrf.mxu0
      %v5470 = vadd.f32 %v5381, %v5469
      %v5471 = vpop.f32.mrf.mxu0
      %v5472 = vadd.f32 %v5383, %v5471
      %5473 = vmatmul.bf16.gmra.mxu0 %v4237
      %v5474 = vpop.f32.mrf.mxu0
      %v5475 = vadd.f32 %v5386, %v5474
      %v5476 = vpop.f32.mrf.mxu0
      %v5477 = vadd.f32 %v5388, %v5476
      %5478 = vmatmul.bf16.gmra.mxu0 %v4246
      %v5479 = vpop.f32.mrf.mxu0
      %v5480 = vadd.f32 %v5391, %v5479
      %v5481 = vpop.f32.mrf.mxu0
      %v5482 = vadd.f32 %v5393, %v5481
      %5483 = vmatmul.bf16.gmra.mxu0 %v4255
      %v5484 = vpop.f32.mrf.mxu0
      %v5485 = vadd.f32 %v5396, %v5484
      %v5486 = vpop.f32.mrf.mxu0
      %v5487 = vadd.f32 %v5398, %v5486
      %5488 = vmatmul.bf16.gmra.mxu0 %v4264
      %v5489 = vpop.f32.mrf.mxu0
      %v5490 = vadd.f32 %v5401, %v5489
      %v5491 = vpop.f32.mrf.mxu0
      %v5492 = vadd.f32 %v5403, %v5491
      %5493 = vmatmul.bf16.gmra.mxu0 %v4273
      %v5494 = vpop.f32.mrf.mxu0
      %v5495 = vadd.f32 %v5406, %v5494
      %v5496 = vpop.f32.mrf.mxu0
      %v5497 = vadd.f32 %v5408, %v5496
      %5498 = vmatmul.bf16.gmra.mxu0 %v4282
      %v5499 = vpop.f32.mrf.mxu0
      %v5500 = vadd.f32 %v5411, %v5499
      %v5501 = vpop.f32.mrf.mxu0
      %v5502 = vadd.f32 %v5413, %v5501
      %5503 = vmatmul.bf16.gmra.mxu0 %v4291
      %v5504 = vpop.f32.mrf.mxu0
      %v5505 = vadd.f32 %v5416, %v5504
      %v5506 = vpop.f32.mrf.mxu0
      %v5507 = vadd.f32 %v5418, %v5506
      %5508 = vmatmul.bf16.gmra.mxu0 %v4300
      %v5509 = vpop.f32.mrf.mxu0
      %v5510 = vadd.f32 %v5421, %v5509
      %v5511 = vpop.f32.mrf.mxu0
      %v5512 = vadd.f32 %v5423, %v5511
      %5513 = vmatmul.bf16.gmra.mxu0 %v4309
      %v5514 = vpop.f32.mrf.mxu0
      %v5515 = vadd.f32 %v5426, %v5514
      %v5516 = vpop.f32.mrf.mxu0
      %v5517 = vadd.f32 %v5428, %v5516
      %5518 = vmatmul.bf16.gmra.mxu0 %v4318
      %v5519 = vpop.f32.mrf.mxu0
      %v5520 = vadd.f32 %v5431, %v5519
      %v5521 = vpop.f32.mrf.mxu0
      %v5522 = vadd.f32 %v5433, %v5521
      %5523 = vmatmul.bf16.gmra.mxu0 %v4327
      %v5524 = vpop.f32.mrf.mxu0
      %v5525 = vadd.f32 %v5436, %v5524
      %v5526 = vpop.f32.mrf.mxu0
      %v5527 = vadd.f32 %v5438, %v5526
      %5528 = vdwg.mxu0
      %5529 = vmatpush.bf16.msra.mxu0 %v4825
      %5530 = vmatpush.bf16.msra.mxu0 %v4824
      %5531 = vmatpush.bf16.msra.mxu0 %v4823
      %5532 = vmatpush.bf16.msra.mxu0 %v4822
      %5533 = vmatpush.bf16.msra.mxu0 %v4821
      %5534 = vmatpush.bf16.msra.mxu0 %v4820
      %5535 = vmatpush.bf16.msra.mxu0 %v4819
      %5536 = vmatpush.bf16.msra.mxu0 %v4818
      %5537 = vmatmul.bf16.gmra.mxu0 %v4193
      %v5538 = vpop.f32.mrf.mxu0
      %v5539 = vadd.f32 %v5450, %v5538
      %v5540 = vpop.f32.mrf.mxu0
      %v5541 = vadd.f32 %v5452, %v5540
      %5542 = vmatmul.bf16.gmra.mxu0 %v4202
      %v5543 = vpop.f32.mrf.mxu0
      %v5544 = vadd.f32 %v5455, %v5543
      %v5545 = vpop.f32.mrf.mxu0
      %v5546 = vadd.f32 %v5457, %v5545
      %5547 = vmatmul.bf16.gmra.mxu0 %v4211
      %v5548 = vpop.f32.mrf.mxu0
      %v5549 = vadd.f32 %v5460, %v5548
      %v5550 = vpop.f32.mrf.mxu0
      %v5551 = vadd.f32 %v5462, %v5550
      %5552 = vmatmul.bf16.gmra.mxu0 %v4220
      %v5553 = vpop.f32.mrf.mxu0
      %v5554 = vadd.f32 %v5465, %v5553
      %v5555 = vpop.f32.mrf.mxu0
      %v5556 = vadd.f32 %v5467, %v5555
      %5557 = vmatmul.bf16.gmra.mxu0 %v4229
      %v5558 = vpop.f32.mrf.mxu0
      %v5559 = vadd.f32 %v5470, %v5558
      %v5560 = vpop.f32.mrf.mxu0
      %v5561 = vadd.f32 %v5472, %v5560
      %5562 = vmatmul.bf16.gmra.mxu0 %v4238
      %v5563 = vpop.f32.mrf.mxu0
      %v5564 = vadd.f32 %v5475, %v5563
      %v5565 = vpop.f32.mrf.mxu0
      %v5566 = vadd.f32 %v5477, %v5565
      %5567 = vmatmul.bf16.gmra.mxu0 %v4247
      %v5568 = vpop.f32.mrf.mxu0
      %v5569 = vadd.f32 %v5480, %v5568
      %v5570 = vpop.f32.mrf.mxu0
      %v5571 = vadd.f32 %v5482, %v5570
      %5572 = vmatmul.bf16.gmra.mxu0 %v4256
      %v5573 = vpop.f32.mrf.mxu0
      %v5574 = vadd.f32 %v5485, %v5573
      %v5575 = vpop.f32.mrf.mxu0
      %v5576 = vadd.f32 %v5487, %v5575
      %5577 = vmatmul.bf16.gmra.mxu0 %v4265
      %v5578 = vpop.f32.mrf.mxu0
      %v5579 = vadd.f32 %v5490, %v5578
      %v5580 = vpop.f32.mrf.mxu0
      %v5581 = vadd.f32 %v5492, %v5580
      %5582 = vmatmul.bf16.gmra.mxu0 %v4274
      %v5583 = vpop.f32.mrf.mxu0
      %v5584 = vadd.f32 %v5495, %v5583
      %v5585 = vpop.f32.mrf.mxu0
      %v5586 = vadd.f32 %v5497, %v5585
      %5587 = vmatmul.bf16.gmra.mxu0 %v4283
      %v5588 = vpop.f32.mrf.mxu0
      %v5589 = vadd.f32 %v5500, %v5588
      %v5590 = vpop.f32.mrf.mxu0
      %v5591 = vadd.f32 %v5502, %v5590
      %5592 = vmatmul.bf16.gmra.mxu0 %v4292
      %v5593 = vpop.f32.mrf.mxu0
      %v5594 = vadd.f32 %v5505, %v5593
      %v5595 = vpop.f32.mrf.mxu0
      %v5596 = vadd.f32 %v5507, %v5595
      %5597 = vmatmul.bf16.gmra.mxu0 %v4301
      %v5598 = vpop.f32.mrf.mxu0
      %v5599 = vadd.f32 %v5510, %v5598
      %v5600 = vpop.f32.mrf.mxu0
      %v5601 = vadd.f32 %v5512, %v5600
      %5602 = vmatmul.bf16.gmra.mxu0 %v4310
      %v5603 = vpop.f32.mrf.mxu0
      %v5604 = vadd.f32 %v5515, %v5603
      %v5605 = vpop.f32.mrf.mxu0
      %v5606 = vadd.f32 %v5517, %v5605
      %5607 = vmatmul.bf16.gmra.mxu0 %v4319
      %v5608 = vpop.f32.mrf.mxu0
      %v5609 = vadd.f32 %v5520, %v5608
      %v5610 = vpop.f32.mrf.mxu0
      %v5611 = vadd.f32 %v5522, %v5610
      %5612 = vmatmul.bf16.gmra.mxu0 %v4328
      %v5613 = vpop.f32.mrf.mxu0
      %v5614 = vadd.f32 %v5525, %v5613
      %v5615 = vpop.f32.mrf.mxu0
      %v5616 = vadd.f32 %v5527, %v5615
      %5617 = vdwg.mxu0
      %5618 = vmatpush.bf16.msra.mxu0 %v4833
      %5619 = vmatpush.bf16.msra.mxu0 %v4832
      %5620 = vmatpush.bf16.msra.mxu0 %v4831
      %5621 = vmatpush.bf16.msra.mxu0 %v4830
      %5622 = vmatpush.bf16.msra.mxu0 %v4829
      %5623 = vmatpush.bf16.msra.mxu0 %v4828
      %5624 = vmatpush.bf16.msra.mxu0 %v4827
      %5625 = vmatpush.bf16.msra.mxu0 %v4826
      %5626 = vmatmul.bf16.gmra.mxu0 %v4194
      %v5627 = vpop.f32.mrf.mxu0
      %v5628 = vadd.f32 %v5539, %v5627
      %v5629 = vpop.f32.mrf.mxu0
      %v5630 = vadd.f32 %v5541, %v5629
      %5631 = vmatmul.bf16.gmra.mxu0 %v4203
      %v5632 = vpop.f32.mrf.mxu0
      %v5633 = vadd.f32 %v5544, %v5632
      %v5634 = vpop.f32.mrf.mxu0
      %v5635 = vadd.f32 %v5546, %v5634
      %5636 = vmatmul.bf16.gmra.mxu0 %v4212
      %v5637 = vpop.f32.mrf.mxu0
      %v5638 = vadd.f32 %v5549, %v5637
      %v5639 = vpop.f32.mrf.mxu0
      %v5640 = vadd.f32 %v5551, %v5639
      %5641 = vmatmul.bf16.gmra.mxu0 %v4221
      %v5642 = vpop.f32.mrf.mxu0
      %v5643 = vadd.f32 %v5554, %v5642
      %v5644 = vpop.f32.mrf.mxu0
      %v5645 = vadd.f32 %v5556, %v5644
      %5646 = vmatmul.bf16.gmra.mxu0 %v4230
      %v5647 = vpop.f32.mrf.mxu0
      %v5648 = vadd.f32 %v5559, %v5647
      %v5649 = vpop.f32.mrf.mxu0
      %v5650 = vadd.f32 %v5561, %v5649
      %5651 = vmatmul.bf16.gmra.mxu0 %v4239
      %v5652 = vpop.f32.mrf.mxu0
      %v5653 = vadd.f32 %v5564, %v5652
      %v5654 = vpop.f32.mrf.mxu0
      %v5655 = vadd.f32 %v5566, %v5654
      %5656 = vmatmul.bf16.gmra.mxu0 %v4248
      %v5657 = vpop.f32.mrf.mxu0
      %v5658 = vadd.f32 %v5569, %v5657
      %v5659 = vpop.f32.mrf.mxu0
      %v5660 = vadd.f32 %v5571, %v5659
      %5661 = vmatmul.bf16.gmra.mxu0 %v4257
      %v5662 = vpop.f32.mrf.mxu0
      %v5663 = vadd.f32 %v5574, %v5662
      %v5664 = vpop.f32.mrf.mxu0
      %v5665 = vadd.f32 %v5576, %v5664
      %5666 = vmatmul.bf16.gmra.mxu0 %v4266
      %v5667 = vpop.f32.mrf.mxu0
      %v5668 = vadd.f32 %v5579, %v5667
      %v5669 = vpop.f32.mrf.mxu0
      %v5670 = vadd.f32 %v5581, %v5669
      %5671 = vmatmul.bf16.gmra.mxu0 %v4275
      %v5672 = vpop.f32.mrf.mxu0
      %v5673 = vadd.f32 %v5584, %v5672
      %v5674 = vpop.f32.mrf.mxu0
      %v5675 = vadd.f32 %v5586, %v5674
      %5676 = vmatmul.bf16.gmra.mxu0 %v4284
      %v5677 = vpop.f32.mrf.mxu0
      %v5678 = vadd.f32 %v5589, %v5677
      %v5679 = vpop.f32.mrf.mxu0
      %v5680 = vadd.f32 %v5591, %v5679
      %5681 = vmatmul.bf16.gmra.mxu0 %v4293
      %v5682 = vpop.f32.mrf.mxu0
      %v5683 = vadd.f32 %v5594, %v5682
      %v5684 = vpop.f32.mrf.mxu0
      %v5685 = vadd.f32 %v5596, %v5684
      %5686 = vmatmul.bf16.gmra.mxu0 %v4302
      %v5687 = vpop.f32.mrf.mxu0
      %v5688 = vadd.f32 %v5599, %v5687
      %v5689 = vpop.f32.mrf.mxu0
      %v5690 = vadd.f32 %v5601, %v5689
      %5691 = vmatmul.bf16.gmra.mxu0 %v4311
      %v5692 = vpop.f32.mrf.mxu0
      %v5693 = vadd.f32 %v5604, %v5692
      %v5694 = vpop.f32.mrf.mxu0
      %v5695 = vadd.f32 %v5606, %v5694
      %5696 = vmatmul.bf16.gmra.mxu0 %v4320
      %v5697 = vpop.f32.mrf.mxu0
      %v5698 = vadd.f32 %v5609, %v5697
      %v5699 = vpop.f32.mrf.mxu0
      %v5700 = vadd.f32 %v5611, %v5699
      %5701 = vmatmul.bf16.gmra.mxu0 %v4329
      %v5702 = vpop.f32.mrf.mxu0
      %v5703 = vadd.f32 %v5614, %v5702
      %v5704 = vpop.f32.mrf.mxu0
      %v5705 = vadd.f32 %v5616, %v5704
      %5706 = vdwg.mxu0
      %v5707 = vpack.c.bf16 %v5628, %v5628
      %v5708 = vpack.c.bf16 %v5630, %v5630
      %v5709 = vpack.c.bf16 %v5633, %v5633
      %v5710 = vpack.c.bf16 %v5635, %v5635
      %v5711 = vpack.c.bf16 %v5638, %v5638
      %v5712 = vpack.c.bf16 %v5640, %v5640
      %v5713 = vpack.c.bf16 %v5643, %v5643
      %v5714 = vpack.c.bf16 %v5645, %v5645
      %v5715 = vpack.c.bf16 %v5648, %v5648
      %v5716 = vpack.c.bf16 %v5650, %v5650
      %v5717 = vpack.c.bf16 %v5653, %v5653
      %v5718 = vpack.c.bf16 %v5655, %v5655
      %v5719 = vpack.c.bf16 %v5658, %v5658
      %v5720 = vpack.c.bf16 %v5660, %v5660
      %v5721 = vpack.c.bf16 %v5663, %v5663
      %v5722 = vpack.c.bf16 %v5665, %v5665
      %v5723 = vpack.c.bf16 %v5668, %v5668
      %v5724 = vpack.c.bf16 %v5670, %v5670
      %v5725 = vpack.c.bf16 %v5673, %v5673
      %v5726 = vpack.c.bf16 %v5675, %v5675
      %v5727 = vpack.c.bf16 %v5678, %v5678
      %v5728 = vpack.c.bf16 %v5680, %v5680
      %v5729 = vpack.c.bf16 %v5683, %v5683
      %v5730 = vpack.c.bf16 %v5685, %v5685
      %v5731 = vpack.c.bf16 %v5688, %v5688
      %v5732 = vpack.c.bf16 %v5690, %v5690
      %v5733 = vpack.c.bf16 %v5693, %v5693
      %v5734 = vpack.c.bf16 %v5695, %v5695
      %v5735 = vpack.c.bf16 %v5698, %v5698
      %v5736 = vpack.c.bf16 %v5700, %v5700
      %v5737 = vpack.c.bf16 %v5703, %v5703
      %v5738 = vpack.c.bf16 %v5705, %v5705
      %5739 = vst [vmem:[%s246] sm:$0xf] %v5707
      %5740 = vst [vmem:[%s246 + $0x4] sm:$0xf] %v5708
      %5741 = vst [vmem:[%s246 + $0x8] sm:$0xf] %v5709
      %5742 = vst [vmem:[%s246 + $0xc] sm:$0xf] %v5710
      %5743 = vst [vmem:[%s246 + $0x10] sm:$0xf] %v5711
      %5744 = vst [vmem:[%s246 + $0x14] sm:$0xf] %v5712
      %5745 = vst [vmem:[%s246 + $0x18] sm:$0xf] %v5713
      %5746 = vst [vmem:[%s246 + $0x1c] sm:$0xf] %v5714
      %5747 = vst [vmem:[%s246 + $0x20] sm:$0xf] %v5715
      %5748 = vst [vmem:[%s246 + $0x24] sm:$0xf] %v5716
      %5749 = vst [vmem:[%s246 + $0x28] sm:$0xf] %v5717
      %5750 = vst [vmem:[%s246 + $0x2c] sm:$0xf] %v5718
      %5751 = vst [vmem:[%s246 + $0x30] sm:$0xf] %v5719
      %5752 = vst [vmem:[%s246 + $0x34] sm:$0xf] %v5720
      %5753 = vst [vmem:[%s246 + $0x38] sm:$0xf] %v5721
      %5754 = vst [vmem:[%s246 + $0x3c] sm:$0xf] %v5722
      %5755 = vst [vmem:[%s246 + $0x40] sm:$0xf] %v5723
      %5756 = vst [vmem:[%s246 + $0x44] sm:$0xf] %v5724
      %5757 = vst [vmem:[%s246 + $0x48] sm:$0xf] %v5725
      %5758 = vst [vmem:[%s246 + $0x4c] sm:$0xf] %v5726
      %5759 = vst [vmem:[%s246 + $0x50] sm:$0xf] %v5727
      %5760 = vst [vmem:[%s246 + $0x54] sm:$0xf] %v5728
      %5761 = vst [vmem:[%s246 + $0x58] sm:$0xf] %v5729
      %5762 = vst [vmem:[%s246 + $0x5c] sm:$0xf] %v5730
      %5763 = vst [vmem:[%s246 + $0x60] sm:$0xf] %v5731
      %5764 = vst [vmem:[%s246 + $0x64] sm:$0xf] %v5732
      %5765 = vst [vmem:[%s246 + $0x68] sm:$0xf] %v5733
      %5766 = vst [vmem:[%s246 + $0x6c] sm:$0xf] %v5734
      %5767 = vst [vmem:[%s246 + $0x70] sm:$0xf] %v5735
      %5768 = vst [vmem:[%s246 + $0x74] sm:$0xf] %v5736
      %5769 = vst [vmem:[%s246 + $0x78] sm:$0xf] %v5737
      %5770 = vst [vmem:[%s246 + $0x7c] sm:$0xf] %v5738
      %s5771 = smul.u32 32, %s21
      %p5772 = scmp.lt.s32.totalorder %s20, 1
      %s5773 = scalar_select %p5772, %s20, 1
      %p5774 = scmp.lt.s32.totalorder %s5771, 31
      %s5775 = scalar_select %p5774, %s5771, 31
      %s5776 = smul.addr %s5773, 32
      %s5777 = sadd.s32 %s5775, %s5776
      %s5778 = smul.addr %s5777, 4
      %s5779 = scalar_lea.vmem %s5, %s5778
      // Predicated region
      $region45: #{residual_forward.5} parent=39 // pred_check
        %p5780 = pneg %p158
      $region46: #{residual_forward.5} parent=39 // pred_check_branch
        %5782 = sbr.rel (%p5780) target = $region48
      $region47: #{residual_forward.5} parent=39 // pred_region
        %s5783 = smul.u32 32, %s21
      $region48: #{residual_forward.5} parent=39 // pred_fallthru
        _
    $region40: #{residual_forward.5} parent=5 // pred_fallthru
      _
    %p5784 = scmp.le.s32.totalorder 2, %s11
    // Predicated region
    $region49: #{residual_forward.5} parent=5 // pred_check
      %p5785 = pneg %p5784
    $region50: #{residual_forward.5} parent=5 // pred_check_branch
      %5787 = sbr.rel (%p5785) target = $region52
    $region51: #{residual_forward.5} parent=5 // pred_region
      %s5788 = ssub.s32 %s11, 2
      // Predicated region
      $region53: #{residual_forward.5} parent=51 // pred_check
        %p5789 = pneg %p164
      $region54: #{residual_forward.5} parent=51 // pred_check_branch
        %5791 = sbr.rel (%p5789) target = $region56
      $region55: #{residual_forward.5} parent=51 // pred_region
        %s5792 = smul.u32 32, %s23
        %p5793 = scmp.lt.s32.totalorder %s22, 1
        %s5794 = scalar_select %p5793, %s22, 1
        %p5795 = scmp.lt.s32.totalorder %s5792, 31
        %s5796 = scalar_select %p5795, %s5792, 31
        %s5797 = smul.addr %s5794, 32
        %s5798 = sadd.s32 %s5796, %s5797
        %s5799 = smul.addr %s5798, 4
        %s5800 = scalar_lea.vmem %s5, %s5799
      $region56: #{residual_forward.5} parent=51 // pred_fallthru
        _
    $region52: #{residual_forward.5} parent=5 // pred_fallthru
      _
  $region6: #{residual_forward.5} parent=0 // loop_footer
    %s15 = sadd.s32 1, %s11
  $region7: #{residual_forward.5} parent=0 // loop_footer_branch
    %10 = sbr.rel target = $region3
  $region8: #{residual_forward.5} parent=0 // loop_exit
    _

</llo_original>
